<compile_context>
chip_gen: v6e
topology: v6e:2x2x1
jax: 0.10.0
libtpu: 0.0.40
codegen_flags: <defaults>
</compile_context>

<pallas_src>
import math

import jax
import jax.numpy as jnp
from jax.experimental import pallas as pl
from jax.experimental.pallas import tpu as pltpu

BN_EPS = 1e-5      # nn.BatchNorm2d default eps
COUT = 64
CIN0_PAD = 8       # pad the 3 input channels to 8 so the layer-0 K is 9*8=72


# ---------------------------------------------------------------------------
# Static network geometry (depth=4: pool+pad0, pool+pad0, pad1, pad1)
# ---------------------------------------------------------------------------
def _network_dims(N, H, W):
    Hp0, Wp0 = H, W                       # layer-0 frame (padding=0)
    Ho0, Wo0 = Hp0 - 2, Wp0 - 2           # layer-0 conv output
    Hp1, Wp1 = Hp0 // 2, Wp0 // 2         # layer-1 frame = half-resolution frame
    H1, W1 = Ho0 // 2, Wo0 // 2           # real data inside it (after MaxPool2d(2))
    Ho1, Wo1 = H1 - 2, W1 - 2             # layer-1 conv output
    H2, W2 = Ho1 // 2, Wo1 // 2           # after MaxPool2d(2)
    Hp2, Wp2 = H2 + 2, W2 + 2             # layer-2/3 frame (padding=1)
    assert Hp0 % 2 == 0 and Wp0 % 2 == 0 and Wp1 % 2 == 0
    assert Ho0 >= 2 and Ho1 >= 2 and H2 >= 1 and W2 >= 1
    L0 = N * Hp0 * Wp0 - 2 * Wp0 - 2      # anchored conv-output rows per layer
    L1 = N * Hp1 * Wp1 - 2 * Wp1 - 2
    L2 = N * Hp2 * Wp2 - 2 * Wp2 - 2
    return dict(Hp0=Hp0, Wp0=Wp0, Ho0=Ho0, Wo0=Wo0, Hp1=Hp1, Wp1=Wp1,
                H1=H1, W1=W1, Ho1=Ho1, Wo1=Wo1, H2=H2, W2=W2, Hp2=Hp2,
                Wp2=Wp2, L0=L0, L1=L1, L2=L2)


def _imod(x, m):
    if m & (m - 1) == 0:                  # power of two -> cheap VPU bit ops
        return jnp.bitwise_and(x, m - 1)
    return jax.lax.rem(x, m)


def _idiv(x, m):
    if m & (m - 1) == 0:
        return jax.lax.shift_right_logical(x, m.bit_length() - 1)
    return x // m


# ---------------------------------------------------------------------------
# Fused kernel factory (all shapes/loops are static Python)
# ---------------------------------------------------------------------------
def make_kernel(N, H, W):
    d = _network_dims(N, H, W)
    Hp0, Wp0, Ho0, Wo0 = d["Hp0"], d["Wp0"], d["Ho0"], d["Wo0"]
    Hp1, Wp1, Ho1, Wo1 = d["Hp1"], d["Wp1"], d["Ho1"], d["Wo1"]
    H2, W2, Hp2, Wp2 = d["H2"], d["W2"], d["Hp2"], d["Wp2"]
    L0, L1, L2 = d["L0"], d["L1"], d["L2"]
    NHW0 = N * Hp0 * Wp0
    NHW1 = N * Hp1 * Wp1
    halfw0 = Wp0 // 2
    halfw1 = Wp1 // 2

    def valid_mask(pf, wp, hout, wout, shape, axis):
        """Bool mask of anchored rows that are real conv outputs (in-kernel iota)."""
        r = jax.lax.broadcasted_iota(jnp.int32, shape, axis)
        p = _imod(r, pf)                     # position within the per-image frame
        return jnp.logical_and(_idiv(p, wp) < hout, _imod(p, wp) < wout)

    def conv_bn_relu(in_ref, slab_ref, w_ref, cin, wp, pf, L, hout, wout,
                     gamma, beta):
        # -- im2col: 9 shifted views -> contiguous K blocks of one bf16 slab --
        for k in range(9):
            di, dj = divmod(k, 3)
            s = di * wp + dj
            slab_ref[0:L, k * cin:(k + 1) * cin] = in_ref[s:s + L, :]
        # -- one MXU pass per layer: (L, 9*cin) x (9*cin, 64), f32 accumulate --
        acc = jnp.dot(slab_ref[0:L, :], w_ref[...],
                      preferred_element_type=jnp.float32)
        # -- masked BN batch stats on the MXU (training-mode, biased variance) --
        mrow = valid_mask(pf, wp, hout, wout, (1, L), 1).astype(jnp.float32)
        inv = 1.0 / float(N * hout * wout)
        mean = jnp.dot(mrow, acc, preferred_element_type=jnp.float32) * inv
        cen = acc - mean                                    # centered two-pass var
        var = jnp.dot(mrow, cen * cen, preferred_element_type=jnp.float32) * inv
        scale = gamma * jax.lax.rsqrt(var + BN_EPS)
        return jnp.maximum(cen * scale + beta, 0.0)         # (L, 64) f32

    def kernel(x_ref, w0_ref, w1_ref, w2_ref, w3_ref, g_ref, be_ref, o_ref,
               slab0_s, slab_s, y_s, hm_s, c_s, a1_s, a2_s, a3_s):
        f32 = jnp.float32

        # ============== layer 0: conv(3->64, pad 0) + BN + ReLU ==============
        y_s[0:L0, :] = conv_bn_relu(x_ref, slab0_s, w0_ref, CIN0_PAD, Wp0,
                                    Hp0 * Wp0, L0, Ho0, Wo0,
                                    g_ref[0:1, :], be_ref[0:1, :])
        y_s[L0:NHW0, :] = jnp.zeros((NHW0 - L0, COUT), f32)   # finite frame tail

        # ----- MaxPool2d(2) + relayout into the (Hp1 x Wp1) layer-1 frame -----
        hm_s[0:NHW0 - 1, :] = jnp.maximum(y_s[0:NHW0 - 1, :], y_s[1:NHW0, :])
        for n in range(N):
            # one bulk stride-2 slice per image (W-downsample) ...
            c_s[0:Hp0 * halfw0, :] = hm_s[pl.ds(n * Hp0 * Wp0, Hp0 * halfw0,
                                                stride=2), :]
            # ... then vertical pair-max written as aligned, dense Wp1-row blocks
            for ih in range(Hp1):
                dst = n * Hp1 * Wp1 + ih * Wp1
                a1_s[dst:dst + Wp1, :] = jnp.maximum(
                    c_s[(2 * ih) * halfw0:(2 * ih) * halfw0 + Wp1, :],
                    c_s[(2 * ih + 1) * halfw0:(2 * ih + 1) * halfw0 + Wp1, :],
                ).astype(a1_s.dtype)

        # ============== layer 1: conv(64->64, pad 0) + BN + ReLU ==============
        y_s[0:L1, :] = conv_bn_relu(a1_s, slab_s, w1_ref, COUT, Wp1,
                                    Hp1 * Wp1, L1, Ho1, Wo1,
                                    g_ref[1:2, :], be_ref[1:2, :])
        y_s[L1:NHW1, :] = jnp.zeros((NHW1 - L1, COUT), f32)

        # ----- MaxPool2d(2) + relayout into the zero-padded layer-2 frame -----
        hm_s[0:NHW1 - 1, :] = jnp.maximum(y_s[0:NHW1 - 1, :], y_s[1:NHW1, :])
        a2_s[...] = jnp.zeros(a2_s.shape, a2_s.dtype)   # zero border (padding=1)
        for n in range(N):
            c_s[0:Hp1 * halfw1, :] = hm_s[pl.ds(n * Hp1 * Wp1, Hp1 * halfw1,
                                                stride=2), :]
            for ih in range(H2):
                dst = n * Hp2 * Wp2 + (ih + 1) * Wp2 + 1
                a2_s[dst:dst + W2, :] = jnp.maximum(
                    c_s[(2 * ih) * halfw1:(2 * ih) * halfw1 + W2, :],
                    c_s[(2 * ih + 1) * halfw1:(2 * ih + 1) * halfw1 + W2, :],
                ).astype(a2_s.dtype)

        # ============== layer 2: conv(64->64, pad 1) + BN + ReLU ==============
        y2 = conv_bn_relu(a2_s, slab_s, w2_ref, COUT, Wp2, Hp2 * Wp2, L2,
                          H2, W2, g_ref[2:3, :], be_ref[2:3, :])
        # No copy loop: the *masked* anchored output written at flat offset Wp2+1
        # of a zeroed buffer is exactly layer 3's zero-padded input frame.
        a3_s[...] = jnp.zeros(a3_s.shape, a3_s.dtype)
        vcol = valid_mask(Hp2 * Wp2, Wp2, H2, W2, (L2, 1), 0)
        a3_s[Wp2 + 1:Wp2 + 1 + L2, :] = jnp.where(vcol, y2, 0.0).astype(a3_s.dtype)

        # ============== layer 3: conv(64->64, pad 1) + BN + ReLU ==============
        y3 = conv_bn_relu(a3_s, slab_s, w3_ref, COUT, Wp2, Hp2 * Wp2, L2,
                          H2, W2, g_ref[3:4, :], be_ref[3:4, :])
        # compact (n, i, j) raster output: only the valid H2 x W2 anchors
        for n in range(N):
            for i in range(H2):
                dst = (n * H2 + i) * W2
                src = n * Hp2 * Wp2 + i * Wp2
                o_ref[dst:dst + W2, :] = y3[src:src + W2, :]

    bf16 = jnp.bfloat16
    scratch_shapes = [
        pltpu.VMEM((L0, 9 * CIN0_PAD), bf16),            # slab0_s: layer-0 im2col
        pltpu.VMEM((L1, 9 * COUT), bf16),                # slab_s : shared, layers 1-3
        pltpu.VMEM((NHW0, COUT), jnp.float32),           # y_s    : shared, layers 0-1
        pltpu.VMEM((NHW0 - 1, COUT), jnp.float32),       # hm_s   : horizontal pair-max
        pltpu.VMEM((Hp0 * halfw0, COUT), jnp.float32),   # c_s    : per-image W-downsample
        pltpu.VMEM((N * Hp1 * Wp1, COUT), bf16),         # a1_s   : layer-1 input frame
        pltpu.VMEM((N * Hp2 * Wp2, COUT), bf16),         # a2_s   : layer-2 input frame
        pltpu.VMEM((N * Hp2 * Wp2, COUT), bf16),         # a3_s   : layer-3 input frame
    ]
    return kernel, d, scratch_shapes


# ---------------------------------------------------------------------------
# Parameters (shapes/init match ConvNetNopool + init_layer)
# ---------------------------------------------------------------------------
def init_params(key, depth=4):
    params = []
    for i in range(depth):
        indim = 3 if i == 0 else 64
        key, kw = jax.random.split(key)
        n = 3 * 3 * COUT
        w = jax.random.normal(kw, (COUT, indim, 3, 3), jnp.float32) * math.sqrt(
            2.0 / float(n))
        # NOTE: nn.Conv2d(bias=True) followed by a training-mode BatchNorm2d: the
        # per-channel bias is exactly cancelled by the batch-mean subtraction, so
        # it is dropped (forward output unchanged).
        gamma = jnp.ones((COUT,), jnp.float32)    # init_layer: BN weight = 1
        beta = jnp.zeros((COUT,), jnp.float32)    # init_layer: BN bias = 0
        params.append(dict(w=w, gamma=gamma, beta=beta))
    return params


def _conv_weight_matrix(w, pad_cin_to=None):
    """(Cout, Cin, 3, 3) -> (9*Cin, Cout) bf16, kernel-position-major / channel-minor."""
    cout, cin = w.shape[0], w.shape[1]
    wm = jnp.transpose(w, (2, 3, 1, 0))            # (kh, kw, cin, cout)
    if pad_cin_to is not None and pad_cin_to > cin:
        wm = jnp.pad(wm, ((0, 0), (0, 0), (0, pad_cin_to - cin), (0, 0)))
        cin = pad_cin_to
    return wm.reshape(9 * cin, cout).astype(jnp.bfloat16)


# ---------------------------------------------------------------------------
# Forward (NCHW in / NCHW out, matching the PyTorch module)
# ---------------------------------------------------------------------------
def convnet_nopool_forward(x_nchw, params):
    N, C, H, W = x_nchw.shape
    assert C == 3 and len(params) == 4
    kernel, d, scratch_shapes = make_kernel(N, H, W)

    # Input: NCHW -> NHWC -> flat (N*H*W, 8) channel-last, zero channel pad, bf16.
    x_nhwc = jnp.transpose(x_nchw, (0, 2, 3, 1)).astype(jnp.float32)
    x_nhwc = jnp.pad(x_nhwc, ((0, 0), (0, 0), (0, 0), (0, CIN0_PAD - C)))
    x_flat = x_nhwc.reshape(N * H * W, CIN0_PAD).astype(jnp.bfloat16)

    w0 = _conv_weight_matrix(params[0]["w"], pad_cin_to=CIN0_PAD)
    w1 = _conv_weight_matrix(params[1]["w"])
    w2 = _conv_weight_matrix(params[2]["w"])
    w3 = _conv_weight_matrix(params[3]["w"])
    gamma = jnp.stack([p["gamma"] for p in params]).astype(jnp.float32)  # (4, 64)
    beta = jnp.stack([p["beta"] for p in params]).astype(jnp.float32)    # (4, 64)

    vmem = pl.BlockSpec(memory_space=pltpu.MemorySpace.VMEM)
    out2d = pl.pallas_call(
        kernel,
        out_shape=jax.ShapeDtypeStruct((N * d["H2"] * d["W2"], COUT), jnp.float32),
        in_specs=[vmem] * 7,
        out_specs=vmem,
        scratch_shapes=scratch_shapes,
    )(x_flat, w0, w1, w2, w3, gamma, beta)

    out = out2d.reshape(N, d["H2"], d["W2"], COUT)
    return jnp.transpose(out, (0, 3, 1, 2))        # back to NCHW


if __name__ == "__main__":
    key = jax.random.PRNGKey(0)
    kx, kp = jax.random.split(key)

    # Small NCHW input consistent with the module (3 input channels).
    x = jax.random.normal(kx, (2, 3, 16, 16), jnp.float32)
    params = init_params(kp, depth=4)

    fwd = jax.jit(lambda a: convnet_nopool_forward(a, params))
    out = jax.block_until_ready(fwd(x))

    # 16 ->(conv p=0) 14 ->(pool) 7 ->(conv p=0) 5 ->(pool) 2 ->(conv p=1) 2 ->(conv p=1) 2
    assert out.shape == (2, 64, 2, 2), out.shape
    assert out.dtype == jnp.float32
    assert bool(jnp.all(jnp.isfinite(out)))
    print("KERNEL_OK")
</pallas_src>

<mosaic_0001>
module attributes {stable_mosaic.version = 11 : i64} {
  func.func @kernel(%arg0: memref<512x8xbf16, #tpu.memory_space<vmem>>, %arg1: memref<72x64xbf16, #tpu.memory_space<vmem>>, %arg2: memref<576x64xbf16, #tpu.memory_space<vmem>>, %arg3: memref<576x64xbf16, #tpu.memory_space<vmem>>, %arg4: memref<576x64xbf16, #tpu.memory_space<vmem>>, %arg5: memref<4x64xf32, #tpu.memory_space<vmem>>, %arg6: memref<4x64xf32, #tpu.memory_space<vmem>>, %arg7: memref<8x64xf32, #tpu.memory_space<vmem>>, %arg8: memref<478x72xbf16, #tpu.memory_space<vmem>>, %arg9: memref<110x576xbf16, #tpu.memory_space<vmem>>, %arg10: memref<512x64xf32, #tpu.memory_space<vmem>>, %arg11: memref<511x64xf32, #tpu.memory_space<vmem>>, %arg12: memref<128x64xf32, #tpu.memory_space<vmem>>, %arg13: memref<128x64xbf16, #tpu.memory_space<vmem>>, %arg14: memref<32x64xbf16, #tpu.memory_space<vmem>>, %arg15: memref<32x64xbf16, #tpu.memory_space<vmem>>) attributes {dimension_semantics = [], scalar_prefetch = 0 : i64, scratch_operands = 8 : i64, tpu.core_type = #tpu.core_type<tc>} {
    %c0 = arith.constant 0 : index
    %c0_0 = arith.constant 0 : index
    %0 = vector.load %arg5[%c0, %c0_0] : memref<4x64xf32, #tpu.memory_space<vmem>>, vector<1x64xf32>
    %c0_1 = arith.constant 0 : index
    %c0_2 = arith.constant 0 : index
    %1 = vector.load %arg6[%c0_1, %c0_2] : memref<4x64xf32, #tpu.memory_space<vmem>>, vector<1x64xf32>
    %c0_3 = arith.constant 0 : index
    %c0_4 = arith.constant 0 : index
    %2 = vector.load %arg0[%c0_3, %c0_4] : memref<512x8xbf16, #tpu.memory_space<vmem>>, vector<478x8xbf16>
    %c0_5 = arith.constant 0 : index
    %c0_6 = arith.constant 0 : index
    %3 = vector.load %arg8[%c0_5, %c0_6] : memref<478x72xbf16, #tpu.memory_space<vmem>>, vector<478x8xbf16>
    tpu.vector_store %arg8[%c0_5, %c0_6], %2 {strides = array<i32>} : memref<478x72xbf16, #tpu.memory_space<vmem>>, vector<478x8xbf16>,
    %c1 = arith.constant 1 : index
    %c0_7 = arith.constant 0 : index
    %4 = vector.load %arg0[%c1, %c0_7] : memref<512x8xbf16, #tpu.memory_space<vmem>>, vector<478x8xbf16>
    %c0_8 = arith.constant 0 : index
    %c8 = arith.constant 8 : index
    %5 = vector.load %arg8[%c0_8, %c8] : memref<478x72xbf16, #tpu.memory_space<vmem>>, vector<478x8xbf16>
    tpu.vector_store %arg8[%c0_8, %c8], %4 {strides = array<i32>} : memref<478x72xbf16, #tpu.memory_space<vmem>>, vector<478x8xbf16>,
    %c2 = arith.constant 2 : index
    %c0_9 = arith.constant 0 : index
    %6 = vector.load %arg0[%c2, %c0_9] : memref<512x8xbf16, #tpu.memory_space<vmem>>, vector<478x8xbf16>
    %c0_10 = arith.constant 0 : index
    %c16 = arith.constant 16 : index
    %7 = vector.load %arg8[%c0_10, %c16] : memref<478x72xbf16, #tpu.memory_space<vmem>>, vector<478x8xbf16>
    tpu.vector_store %arg8[%c0_10, %c16], %6 {strides = array<i32>} : memref<478x72xbf16, #tpu.memory_space<vmem>>, vector<478x8xbf16>,
    %c16_11 = arith.constant 16 : index
    %c0_12 = arith.constant 0 : index
    %8 = vector.load %arg0[%c16_11, %c0_12] : memref<512x8xbf16, #tpu.memory_space<vmem>>, vector<478x8xbf16>
    %c0_13 = arith.constant 0 : index
    %c24 = arith.constant 24 : index
    %9 = vector.load %arg8[%c0_13, %c24] : memref<478x72xbf16, #tpu.memory_space<vmem>>, vector<478x8xbf16>
    tpu.vector_store %arg8[%c0_13, %c24], %8 {strides = array<i32>} : memref<478x72xbf16, #tpu.memory_space<vmem>>, vector<478x8xbf16>,
    %c17 = arith.constant 17 : index
    %c0_14 = arith.constant 0 : index
    %10 = vector.load %arg0[%c17, %c0_14] : memref<512x8xbf16, #tpu.memory_space<vmem>>, vector<478x8xbf16>
    %c0_15 = arith.constant 0 : index
    %c32 = arith.constant 32 : index
    %11 = vector.load %arg8[%c0_15, %c32] : memref<478x72xbf16, #tpu.memory_space<vmem>>, vector<478x8xbf16>
    tpu.vector_store %arg8[%c0_15, %c32], %10 {strides = array<i32>} : memref<478x72xbf16, #tpu.memory_space<vmem>>, vector<478x8xbf16>,
    %c18 = arith.constant 18 : index
    %c0_16 = arith.constant 0 : index
    %12 = vector.load %arg0[%c18, %c0_16] : memref<512x8xbf16, #tpu.memory_space<vmem>>, vector<478x8xbf16>
    %c0_17 = arith.constant 0 : index
    %c40 = arith.constant 40 : index
    %13 = vector.load %arg8[%c0_17, %c40] : memref<478x72xbf16, #tpu.memory_space<vmem>>, vector<478x8xbf16>
    tpu.vector_store %arg8[%c0_17, %c40], %12 {strides = array<i32>} : memref<478x72xbf16, #tpu.memory_space<vmem>>, vector<478x8xbf16>,
    %c32_18 = arith.constant 32 : index
    %c0_19 = arith.constant 0 : index
    %14 = vector.load %arg0[%c32_18, %c0_19] : memref<512x8xbf16, #tpu.memory_space<vmem>>, vector<478x8xbf16>
    %c0_20 = arith.constant 0 : index
    %c48 = arith.constant 48 : index
    %15 = vector.load %arg8[%c0_20, %c48] : memref<478x72xbf16, #tpu.memory_space<vmem>>, vector<478x8xbf16>
    tpu.vector_store %arg8[%c0_20, %c48], %14 {strides = array<i32>} : memref<478x72xbf16, #tpu.memory_space<vmem>>, vector<478x8xbf16>,
    %c33 = arith.constant 33 : index
    %c0_21 = arith.constant 0 : index
    %16 = vector.load %arg0[%c33, %c0_21] : memref<512x8xbf16, #tpu.memory_space<vmem>>, vector<478x8xbf16>
    %c0_22 = arith.constant 0 : index
    %c56 = arith.constant 56 : index
    %17 = vector.load %arg8[%c0_22, %c56] : memref<478x72xbf16, #tpu.memory_space<vmem>>, vector<478x8xbf16>
    tpu.vector_store %arg8[%c0_22, %c56], %16 {strides = array<i32>} : memref<478x72xbf16, #tpu.memory_space<vmem>>, vector<478x8xbf16>,
    %c34 = arith.constant 34 : index
    %c0_23 = arith.constant 0 : index
    %18 = vector.load %arg0[%c34, %c0_23] : memref<512x8xbf16, #tpu.memory_space<vmem>>, vector<478x8xbf16>
    %c0_24 = arith.constant 0 : index
    %c64 = arith.constant 64 : index
    %19 = vector.load %arg8[%c0_24, %c64] : memref<478x72xbf16, #tpu.memory_space<vmem>>, vector<478x8xbf16>
    tpu.vector_store %arg8[%c0_24, %c64], %18 {strides = array<i32>} : memref<478x72xbf16, #tpu.memory_space<vmem>>, vector<478x8xbf16>,
    %c0_25 = arith.constant 0 : index
    %c0_26 = arith.constant 0 : index
    %20 = vector.load %arg8[%c0_25, %c0_26] : memref<478x72xbf16, #tpu.memory_space<vmem>>, vector<478x72xbf16>
    %c0_27 = arith.constant 0 : index
    %c0_28 = arith.constant 0 : index
    %21 = vector.load %arg1[%c0_27, %c0_28] : memref<72x64xbf16, #tpu.memory_space<vmem>>, vector<72x64xbf16>
    %cst = arith.constant dense<0.000000e+00> : vector<478x64xf32>
    %22 = tpu.matmul %20, %21, %cst {dimension_numbers = #tpu.dot_dimension_numbers<[1], [0], [0], [1], [0, 0, 1, 1], [], []>} : vector<478x72xbf16>, vector<72x64xbf16>, vector<478x64xf32> -> vector<478x64xf32>
    %23 = tpu.iota {dimensions = array<i32: 1>} : vector<1x478xi32>
    %c255_i32 = arith.constant 255 : i32
    %24 = vector.broadcast %c255_i32 : i32 to vector<1x478xi32>
    %25 = arith.andi %23, %24 : vector<1x478xi32>
    %c4_i32 = arith.constant 4 : i32
    %26 = vector.broadcast %c4_i32 : i32 to vector<1x478xi32>
    %27 = arith.shrui %25, %26 : vector<1x478xi32>
    %c14_i32 = arith.constant 14 : i32
    %28 = vector.broadcast %c14_i32 : i32 to vector<1x478xi32>
    %29 = arith.cmpi slt, %27, %28 : vector<1x478xi32>
    %c15_i32 = arith.constant 15 : i32
    %30 = vector.broadcast %c15_i32 : i32 to vector<1x478xi32>
    %31 = arith.andi %25, %30 : vector<1x478xi32>
    %c14_i32_29 = arith.constant 14 : i32
    %32 = vector.broadcast %c14_i32_29 : i32 to vector<1x478xi32>
    %33 = arith.cmpi slt, %31, %32 : vector<1x478xi32>
    %34 = arith.andi %29, %33 : vector<1x478xi1>
    %35 = arith.extui %34 : vector<1x478xi1> to vector<1x478xi32>
    %36 = arith.sitofp %35 : vector<1x478xi32> to vector<1x478xf32>
    %cst_30 = arith.constant dense<0.000000e+00> : vector<1x64xf32>
    %37 = tpu.matmul %36, %22, %cst_30 {dimension_numbers = #tpu.dot_dimension_numbers<[1], [0], [0], [1], [0, 0, 1, 1], [], []>} : vector<1x478xf32>, vector<478x64xf32>, vector<1x64xf32> -> vector<1x64xf32>
    %cst_31 = arith.constant 0.00255102036 : f32
    %38 = vector.broadcast %cst_31 : f32 to vector<1x64xf32>
    %39 = arith.mulf %37, %38 : vector<1x64xf32>
    %40 = vector.broadcast %39 : vector<1x64xf32> to vector<478x64xf32>
    %41 = arith.subf %22, %40 : vector<478x64xf32>
    %42 = arith.mulf %41, %41 : vector<478x64xf32>
    %cst_32 = arith.constant dense<0.000000e+00> : vector<1x64xf32>
    %43 = tpu.matmul %36, %42, %cst_32 {dimension_numbers = #tpu.dot_dimension_numbers<[1], [0], [0], [1], [0, 0, 1, 1], [], []>} : vector<1x478xf32>, vector<478x64xf32>, vector<1x64xf32> -> vector<1x64xf32>
    %cst_33 = arith.constant 0.00255102036 : f32
    %44 = vector.broadcast %cst_33 : f32 to vector<1x64xf32>
    %45 = arith.mulf %43, %44 : vector<1x64xf32>
    %cst_34 = arith.constant 9.99999974E-6 : f32
    %46 = vector.broadcast %cst_34 : f32 to vector<1x64xf32>
    %47 = arith.addf %45, %46 : vector<1x64xf32>
    %48 = math.rsqrt %47 : vector<1x64xf32>
    %49 = arith.mulf %0, %48 : vector<1x64xf32>
    %50 = vector.broadcast %49 : vector<1x64xf32> to vector<478x64xf32>
    %51 = arith.mulf %41, %50 : vector<478x64xf32>
    %52 = vector.broadcast %1 : vector<1x64xf32> to vector<478x64xf32>
    %53 = arith.addf %51, %52 : vector<478x64xf32>
    %cst_35 = arith.constant 0.000000e+00 : f32
    %54 = vector.broadcast %cst_35 : f32 to vector<478x64xf32>
    %55 = arith.maximumf %53, %54 : vector<478x64xf32>
    %c0_36 = arith.constant 0 : index
    %c0_37 = arith.constant 0 : index
    %56 = vector.load %arg10[%c0_36, %c0_37] : memref<512x64xf32, #tpu.memory_space<vmem>>, vector<478x64xf32>
    tpu.vector_store %arg10[%c0_36, %c0_37], %55 {strides = array<i32>} : memref<512x64xf32, #tpu.memory_space<vmem>>, vector<478x64xf32>,
    %cst_38 = arith.constant 0.000000e+00 : f32
    %57 = vector.broadcast %cst_38 : f32 to vector<34x64xf32>
    %c478 = arith.constant 478 : index
    %c0_39 = arith.constant 0 : index
    %58 = vector.load %arg10[%c478, %c0_39] : memref<512x64xf32, #tpu.memory_space<vmem>>, vector<34x64xf32>
    tpu.vector_store %arg10[%c478, %c0_39], %57 {strides = array<i32>} : memref<512x64xf32, #tpu.memory_space<vmem>>, vector<34x64xf32>,
    %c0_40 = arith.constant 0 : index
    %c0_41 = arith.constant 0 : index
    %59 = vector.load %arg10[%c0_40, %c0_41] : memref<512x64xf32, #tpu.memory_space<vmem>>, vector<511x64xf32>
    %c1_42 = arith.constant 1 : index
    %c0_43 = arith.constant 0 : index
    %60 = vector.load %arg10[%c1_42, %c0_43] : memref<512x64xf32, #tpu.memory_space<vmem>>, vector<511x64xf32>
    %61 = arith.maximumf %59, %60 : vector<511x64xf32>
    %c0_44 = arith.constant 0 : index
    %c0_45 = arith.constant 0 : index
    %62 = vector.load %arg11[%c0_44, %c0_45] : memref<511x64xf32, #tpu.memory_space<vmem>>, vector<511x64xf32>
    tpu.vector_store %arg11[%c0_44, %c0_45], %61 {strides = array<i32>} : memref<511x64xf32, #tpu.memory_space<vmem>>, vector<511x64xf32>,
    %c0_46 = arith.constant 0 : index
    %c0_47 = arith.constant 0 : index
    %63 = tpu.strided_load %arg11[%c0_46, %c0_47] {strides = array<i32: 2, 1>} : memref<511x64xf32, #tpu.memory_space<vmem>>, vector<128x64xf32>
    %c0_48 = arith.constant 0 : index
    %c0_49 = arith.constant 0 : index
    %64 = vector.load %arg12[%c0_48, %c0_49] : memref<128x64xf32, #tpu.memory_space<vmem>>, vector<128x64xf32>
    tpu.vector_store %arg12[%c0_48, %c0_49], %63 {strides = array<i32>} : memref<128x64xf32, #tpu.memory_space<vmem>>, vector<128x64xf32>,
    %c0_50 = arith.constant 0 : index
    %c0_51 = arith.constant 0 : index
    %65 = vector.load %arg12[%c0_50, %c0_51] : memref<128x64xf32, #tpu.memory_space<vmem>>, vector<8x64xf32>
    %c8_52 = arith.constant 8 : index
    %c0_53 = arith.constant 0 : index
    %66 = vector.load %arg12[%c8_52, %c0_53] : memref<128x64xf32, #tpu.memory_space<vmem>>, vector<8x64xf32>
    %67 = arith.maximumf %65, %66 : vector<8x64xf32>
    %68 = arith.truncf %67 : vector<8x64xf32> to vector<8x64xbf16>
    %c0_54 = arith.constant 0 : index
    %c0_55 = arith.constant 0 : index
    %69 = vector.load %arg13[%c0_54, %c0_55] : memref<128x64xbf16, #tpu.memory_space<vmem>>, vector<8x64xbf16>
    tpu.vector_store %arg13[%c0_54, %c0_55], %68 {strides = array<i32>} : memref<128x64xbf16, #tpu.memory_space<vmem>>, vector<8x64xbf16>,
    %c16_56 = arith.constant 16 : index
    %c0_57 = arith.constant 0 : index
    %70 = vector.load %arg12[%c16_56, %c0_57] : memref<128x64xf32, #tpu.memory_space<vmem>>, vector<8x64xf32>
    %c24_58 = arith.constant 24 : index
    %c0_59 = arith.constant 0 : index
    %71 = vector.load %arg12[%c24_58, %c0_59] : memref<128x64xf32, #tpu.memory_space<vmem>>, vector<8x64xf32>
    %72 = arith.maximumf %70, %71 : vector<8x64xf32>
    %73 = arith.truncf %72 : vector<8x64xf32> to vector<8x64xbf16>
    %c8_60 = arith.constant 8 : index
    %c0_61 = arith.constant 0 : index
    %74 = vector.load %arg13[%c8_60, %c0_61] : memref<128x64xbf16, #tpu.memory_space<vmem>>, vector<8x64xbf16>
    tpu.vector_store %arg13[%c8_60, %c0_61], %73 {strides = array<i32>} : memref<128x64xbf16, #tpu.memory_space<vmem>>, vector<8x64xbf16>,
    %c32_62 = arith.constant 32 : index
    %c0_63 = arith.constant 0 : index
    %75 = vector.load %arg12[%c32_62, %c0_63] : memref<128x64xf32, #tpu.memory_space<vmem>>, vector<8x64xf32>
    %c40_64 = arith.constant 40 : index
    %c0_65 = arith.constant 0 : index
    %76 = vector.load %arg12[%c40_64, %c0_65] : memref<128x64xf32, #tpu.memory_space<vmem>>, vector<8x64xf32>
    %77 = arith.maximumf %75, %76 : vector<8x64xf32>
    %78 = arith.truncf %77 : vector<8x64xf32> to vector<8x64xbf16>
    %c16_66 = arith.constant 16 : index
    %c0_67 = arith.constant 0 : index
    %79 = vector.load %arg13[%c16_66, %c0_67] : memref<128x64xbf16, #tpu.memory_space<vmem>>, vector<8x64xbf16>
    tpu.vector_store %arg13[%c16_66, %c0_67], %78 {strides = array<i32>} : memref<128x64xbf16, #tpu.memory_space<vmem>>, vector<8x64xbf16>,
    %c48_68 = arith.constant 48 : index
    %c0_69 = arith.constant 0 : index
    %80 = vector.load %arg12[%c48_68, %c0_69] : memref<128x64xf32, #tpu.memory_space<vmem>>, vector<8x64xf32>
    %c56_70 = arith.constant 56 : index
    %c0_71 = arith.constant 0 : index
    %81 = vector.load %arg12[%c56_70, %c0_71] : memref<128x64xf32, #tpu.memory_space<vmem>>, vector<8x64xf32>
    %82 = arith.maximumf %80, %81 : vector<8x64xf32>
    %83 = arith.truncf %82 : vector<8x64xf32> to vector<8x64xbf16>
    %c24_72 = arith.constant 24 : index
    %c0_73 = arith.constant 0 : index
    %84 = vector.load %arg13[%c24_72, %c0_73] : memref<128x64xbf16, #tpu.memory_space<vmem>>, vector<8x64xbf16>
    tpu.vector_store %arg13[%c24_72, %c0_73], %83 {strides = array<i32>} : memref<128x64xbf16, #tpu.memory_space<vmem>>, vector<8x64xbf16>,
    %c64_74 = arith.constant 64 : index
    %c0_75 = arith.constant 0 : index
    %85 = vector.load %arg12[%c64_74, %c0_75] : memref<128x64xf32, #tpu.memory_space<vmem>>, vector<8x64xf32>
    %c72 = arith.constant 72 : index
    %c0_76 = arith.constant 0 : index
    %86 = vector.load %arg12[%c72, %c0_76] : memref<128x64xf32, #tpu.memory_space<vmem>>, vector<8x64xf32>
    %87 = arith.maximumf %85, %86 : vector<8x64xf32>
    %88 = arith.truncf %87 : vector<8x64xf32> to vector<8x64xbf16>
    %c32_77 = arith.constant 32 : index
    %c0_78 = arith.constant 0 : index
    %89 = vector.load %arg13[%c32_77, %c0_78] : memref<128x64xbf16, #tpu.memory_space<vmem>>, vector<8x64xbf16>
    tpu.vector_store %arg13[%c32_77, %c0_78], %88 {strides = array<i32>} : memref<128x64xbf16, #tpu.memory_space<vmem>>, vector<8x64xbf16>,
    %c80 = arith.constant 80 : index
    %c0_79 = arith.constant 0 : index
    %90 = vector.load %arg12[%c80, %c0_79] : memref<128x64xf32, #tpu.memory_space<vmem>>, vector<8x64xf32>
    %c88 = arith.constant 88 : index
    %c0_80 = arith.constant 0 : index
    %91 = vector.load %arg12[%c88, %c0_80] : memref<128x64xf32, #tpu.memory_space<vmem>>, vector<8x64xf32>
    %92 = arith.maximumf %90, %91 : vector<8x64xf32>
    %93 = arith.truncf %92 : vector<8x64xf32> to vector<8x64xbf16>
    %c40_81 = arith.constant 40 : index
    %c0_82 = arith.constant 0 : index
    %94 = vector.load %arg13[%c40_81, %c0_82] : memref<128x64xbf16, #tpu.memory_space<vmem>>, vector<8x64xbf16>
    tpu.vector_store %arg13[%c40_81, %c0_82], %93 {strides = array<i32>} : memref<128x64xbf16, #tpu.memory_space<vmem>>, vector<8x64xbf16>,
    %c96 = arith.constant 96 : index
    %c0_83 = arith.constant 0 : index
    %95 = vector.load %arg12[%c96, %c0_83] : memref<128x64xf32, #tpu.memory_space<vmem>>, vector<8x64xf32>
    %c104 = arith.constant 104 : index
    %c0_84 = arith.constant 0 : index
    %96 = vector.load %arg12[%c104, %c0_84] : memref<128x64xf32, #tpu.memory_space<vmem>>, vector<8x64xf32>
    %97 = arith.maximumf %95, %96 : vector<8x64xf32>
    %98 = arith.truncf %97 : vector<8x64xf32> to vector<8x64xbf16>
    %c48_85 = arith.constant 48 : index
    %c0_86 = arith.constant 0 : index
    %99 = vector.load %arg13[%c48_85, %c0_86] : memref<128x64xbf16, #tpu.memory_space<vmem>>, vector<8x64xbf16>
    tpu.vector_store %arg13[%c48_85, %c0_86], %98 {strides = array<i32>} : memref<128x64xbf16, #tpu.memory_space<vmem>>, vector<8x64xbf16>,
    %c112 = arith.constant 112 : index
    %c0_87 = arith.constant 0 : index
    %100 = vector.load %arg12[%c112, %c0_87] : memref<128x64xf32, #tpu.memory_space<vmem>>, vector<8x64xf32>
    %c120 = arith.constant 120 : index
    %c0_88 = arith.constant 0 : index
    %101 = vector.load %arg12[%c120, %c0_88] : memref<128x64xf32, #tpu.memory_space<vmem>>, vector<8x64xf32>
    %102 = arith.maximumf %100, %101 : vector<8x64xf32>
    %103 = arith.truncf %102 : vector<8x64xf32> to vector<8x64xbf16>
    %c56_89 = arith.constant 56 : index
    %c0_90 = arith.constant 0 : index
    %104 = vector.load %arg13[%c56_89, %c0_90] : memref<128x64xbf16, #tpu.memory_space<vmem>>, vector<8x64xbf16>
    tpu.vector_store %arg13[%c56_89, %c0_90], %103 {strides = array<i32>} : memref<128x64xbf16, #tpu.memory_space<vmem>>, vector<8x64xbf16>,
    %c256 = arith.constant 256 : index
    %c0_91 = arith.constant 0 : index
    %105 = tpu.strided_load %arg11[%c256, %c0_91] {strides = array<i32: 2, 1>} : memref<511x64xf32, #tpu.memory_space<vmem>>, vector<128x64xf32>
    %c0_92 = arith.constant 0 : index
    %c0_93 = arith.constant 0 : index
    %106 = vector.load %arg12[%c0_92, %c0_93] : memref<128x64xf32, #tpu.memory_space<vmem>>, vector<128x64xf32>
    tpu.vector_store %arg12[%c0_92, %c0_93], %105 {strides = array<i32>} : memref<128x64xf32, #tpu.memory_space<vmem>>, vector<128x64xf32>,
    %c0_94 = arith.constant 0 : index
    %c0_95 = arith.constant 0 : index
    %107 = vector.load %arg12[%c0_94, %c0_95] : memref<128x64xf32, #tpu.memory_space<vmem>>, vector<8x64xf32>
    %c8_96 = arith.constant 8 : index
    %c0_97 = arith.constant 0 : index
    %108 = vector.load %arg12[%c8_96, %c0_97] : memref<128x64xf32, #tpu.memory_space<vmem>>, vector<8x64xf32>
    %109 = arith.maximumf %107, %108 : vector<8x64xf32>
    %110 = arith.truncf %109 : vector<8x64xf32> to vector<8x64xbf16>
    %c64_98 = arith.constant 64 : index
    %c0_99 = arith.constant 0 : index
    %111 = vector.load %arg13[%c64_98, %c0_99] : memref<128x64xbf16, #tpu.memory_space<vmem>>, vector<8x64xbf16>
    tpu.vector_store %arg13[%c64_98, %c0_99], %110 {strides = array<i32>} : memref<128x64xbf16, #tpu.memory_space<vmem>>, vector<8x64xbf16>,
    %c16_100 = arith.constant 16 : index
    %c0_101 = arith.constant 0 : index
    %112 = vector.load %arg12[%c16_100, %c0_101] : memref<128x64xf32, #tpu.memory_space<vmem>>, vector<8x64xf32>
    %c24_102 = arith.constant 24 : index
    %c0_103 = arith.constant 0 : index
    %113 = vector.load %arg12[%c24_102, %c0_103] : memref<128x64xf32, #tpu.memory_space<vmem>>, vector<8x64xf32>
    %114 = arith.maximumf %112, %113 : vector<8x64xf32>
    %115 = arith.truncf %114 : vector<8x64xf32> to vector<8x64xbf16>
    %c72_104 = arith.constant 72 : index
    %c0_105 = arith.constant 0 : index
    %116 = vector.load %arg13[%c72_104, %c0_105] : memref<128x64xbf16, #tpu.memory_space<vmem>>, vector<8x64xbf16>
    tpu.vector_store %arg13[%c72_104, %c0_105], %115 {strides = array<i32>} : memref<128x64xbf16, #tpu.memory_space<vmem>>, vector<8x64xbf16>,
    %c32_106 = arith.constant 32 : index
    %c0_107 = arith.constant 0 : index
    %117 = vector.load %arg12[%c32_106, %c0_107] : memref<128x64xf32, #tpu.memory_space<vmem>>, vector<8x64xf32>
    %c40_108 = arith.constant 40 : index
    %c0_109 = arith.constant 0 : index
    %118 = vector.load %arg12[%c40_108, %c0_109] : memref<128x64xf32, #tpu.memory_space<vmem>>, vector<8x64xf32>
    %119 = arith.maximumf %117, %118 : vector<8x64xf32>
    %120 = arith.truncf %119 : vector<8x64xf32> to vector<8x64xbf16>
    %c80_110 = arith.constant 80 : index
    %c0_111 = arith.constant 0 : index
    %121 = vector.load %arg13[%c80_110, %c0_111] : memref<128x64xbf16, #tpu.memory_space<vmem>>, vector<8x64xbf16>
    tpu.vector_store %arg13[%c80_110, %c0_111], %120 {strides = array<i32>} : memref<128x64xbf16, #tpu.memory_space<vmem>>, vector<8x64xbf16>,
    %c48_112 = arith.constant 48 : index
    %c0_113 = arith.constant 0 : index
    %122 = vector.load %arg12[%c48_112, %c0_113] : memref<128x64xf32, #tpu.memory_space<vmem>>, vector<8x64xf32>
    %c56_114 = arith.constant 56 : index
    %c0_115 = arith.constant 0 : index
    %123 = vector.load %arg12[%c56_114, %c0_115] : memref<128x64xf32, #tpu.memory_space<vmem>>, vector<8x64xf32>
    %124 = arith.maximumf %122, %123 : vector<8x64xf32>
    %125 = arith.truncf %124 : vector<8x64xf32> to vector<8x64xbf16>
    %c88_116 = arith.constant 88 : index
    %c0_117 = arith.constant 0 : index
    %126 = vector.load %arg13[%c88_116, %c0_117] : memref<128x64xbf16, #tpu.memory_space<vmem>>, vector<8x64xbf16>
    tpu.vector_store %arg13[%c88_116, %c0_117], %125 {strides = array<i32>} : memref<128x64xbf16, #tpu.memory_space<vmem>>, vector<8x64xbf16>,
    %c64_118 = arith.constant 64 : index
    %c0_119 = arith.constant 0 : index
    %127 = vector.load %arg12[%c64_118, %c0_119] : memref<128x64xf32, #tpu.memory_space<vmem>>, vector<8x64xf32>
    %c72_120 = arith.constant 72 : index
    %c0_121 = arith.constant 0 : index
    %128 = vector.load %arg12[%c72_120, %c0_121] : memref<128x64xf32, #tpu.memory_space<vmem>>, vector<8x64xf32>
    %129 = arith.maximumf %127, %128 : vector<8x64xf32>
    %130 = arith.truncf %129 : vector<8x64xf32> to vector<8x64xbf16>
    %c96_122 = arith.constant 96 : index
    %c0_123 = arith.constant 0 : index
    %131 = vector.load %arg13[%c96_122, %c0_123] : memref<128x64xbf16, #tpu.memory_space<vmem>>, vector<8x64xbf16>
    tpu.vector_store %arg13[%c96_122, %c0_123], %130 {strides = array<i32>} : memref<128x64xbf16, #tpu.memory_space<vmem>>, vector<8x64xbf16>,
    %c80_124 = arith.constant 80 : index
    %c0_125 = arith.constant 0 : index
    %132 = vector.load %arg12[%c80_124, %c0_125] : memref<128x64xf32, #tpu.memory_space<vmem>>, vector<8x64xf32>
    %c88_126 = arith.constant 88 : index
    %c0_127 = arith.constant 0 : index
    %133 = vector.load %arg12[%c88_126, %c0_127] : memref<128x64xf32, #tpu.memory_space<vmem>>, vector<8x64xf32>
    %134 = arith.maximumf %132, %133 : vector<8x64xf32>
    %135 = arith.truncf %134 : vector<8x64xf32> to vector<8x64xbf16>
    %c104_128 = arith.constant 104 : index
    %c0_129 = arith.constant 0 : index
    %136 = vector.load %arg13[%c104_128, %c0_129] : memref<128x64xbf16, #tpu.memory_space<vmem>>, vector<8x64xbf16>
    tpu.vector_store %arg13[%c104_128, %c0_129], %135 {strides = array<i32>} : memref<128x64xbf16, #tpu.memory_space<vmem>>, vector<8x64xbf16>,
    %c96_130 = arith.constant 96 : index
    %c0_131 = arith.constant 0 : index
    %137 = vector.load %arg12[%c96_130, %c0_131] : memref<128x64xf32, #tpu.memory_space<vmem>>, vector<8x64xf32>
    %c104_132 = arith.constant 104 : index
    %c0_133 = arith.constant 0 : index
    %138 = vector.load %arg12[%c104_132, %c0_133] : memref<128x64xf32, #tpu.memory_space<vmem>>, vector<8x64xf32>
    %139 = arith.maximumf %137, %138 : vector<8x64xf32>
    %140 = arith.truncf %139 : vector<8x64xf32> to vector<8x64xbf16>
    %c112_134 = arith.constant 112 : index
    %c0_135 = arith.constant 0 : index
    %141 = vector.load %arg13[%c112_134, %c0_135] : memref<128x64xbf16, #tpu.memory_space<vmem>>, vector<8x64xbf16>
    tpu.vector_store %arg13[%c112_134, %c0_135], %140 {strides = array<i32>} : memref<128x64xbf16, #tpu.memory_space<vmem>>, vector<8x64xbf16>,
    %c112_136 = arith.constant 112 : index
    %c0_137 = arith.constant 0 : index
    %142 = vector.load %arg12[%c112_136, %c0_137] : memref<128x64xf32, #tpu.memory_space<vmem>>, vector<8x64xf32>
    %c120_138 = arith.constant 120 : index
    %c0_139 = arith.constant 0 : index
    %143 = vector.load %arg12[%c120_138, %c0_139] : memref<128x64xf32, #tpu.memory_space<vmem>>, vector<8x64xf32>
    %144 = arith.maximumf %142, %143 : vector<8x64xf32>
    %145 = arith.truncf %144 : vector<8x64xf32> to vector<8x64xbf16>
    %c120_140 = arith.constant 120 : index
    %c0_141 = arith.constant 0 : index
    %146 = vector.load %arg13[%c120_140, %c0_141] : memref<128x64xbf16, #tpu.memory_space<vmem>>, vector<8x64xbf16>
    tpu.vector_store %arg13[%c120_140, %c0_141], %145 {strides = array<i32>} : memref<128x64xbf16, #tpu.memory_space<vmem>>, vector<8x64xbf16>,
    %c1_142 = arith.constant 1 : index
    %c0_143 = arith.constant 0 : index
    %147 = vector.load %arg5[%c1_142, %c0_143] : memref<4x64xf32, #tpu.memory_space<vmem>>, vector<1x64xf32>
    %c1_144 = arith.constant 1 : index
    %c0_145 = arith.constant 0 : index
    %148 = vector.load %arg6[%c1_144, %c0_145] : memref<4x64xf32, #tpu.memory_space<vmem>>, vector<1x64xf32>
    %c0_146 = arith.constant 0 : index
    %c0_147 = arith.constant 0 : index
    %149 = vector.load %arg13[%c0_146, %c0_147] : memref<128x64xbf16, #tpu.memory_space<vmem>>, vector<110x64xbf16>
    %c0_148 = arith.constant 0 : index
    %c0_149 = arith.constant 0 : index
    %150 = vector.load %arg9[%c0_148, %c0_149] : memref<110x576xbf16, #tpu.memory_space<vmem>>, vector<110x64xbf16>
    tpu.vector_store %arg9[%c0_148, %c0_149], %149 {strides = array<i32>} : memref<110x576xbf16, #tpu.memory_space<vmem>>, vector<110x64xbf16>,
    %c1_150 = arith.constant 1 : index
    %c0_151 = arith.constant 0 : index
    %151 = vector.load %arg13[%c1_150, %c0_151] : memref<128x64xbf16, #tpu.memory_space<vmem>>, vector<110x64xbf16>
    %c0_152 = arith.constant 0 : index
    %c64_153 = arith.constant 64 : index
    %152 = vector.load %arg9[%c0_152, %c64_153] : memref<110x576xbf16, #tpu.memory_space<vmem>>, vector<110x64xbf16>
    tpu.vector_store %arg9[%c0_152, %c64_153], %151 {strides = array<i32>} : memref<110x576xbf16, #tpu.memory_space<vmem>>, vector<110x64xbf16>,
    %c2_154 = arith.constant 2 : index
    %c0_155 = arith.constant 0 : index
    %153 = vector.load %arg13[%c2_154, %c0_155] : memref<128x64xbf16, #tpu.memory_space<vmem>>, vector<110x64xbf16>
    %c0_156 = arith.constant 0 : index
    %c128 = arith.constant 128 : index
    %154 = vector.load %arg9[%c0_156, %c128] : memref<110x576xbf16, #tpu.memory_space<vmem>>, vector<110x64xbf16>
    tpu.vector_store %arg9[%c0_156, %c128], %153 {strides = array<i32>} : memref<110x576xbf16, #tpu.memory_space<vmem>>, vector<110x64xbf16>,
    %c8_157 = arith.constant 8 : index
    %c0_158 = arith.constant 0 : index
    %155 = vector.load %arg13[%c8_157, %c0_158] : memref<128x64xbf16, #tpu.memory_space<vmem>>, vector<110x64xbf16>
    %c0_159 = arith.constant 0 : index
    %c192 = arith.constant 192 : index
    %156 = vector.load %arg9[%c0_159, %c192] : memref<110x576xbf16, #tpu.memory_space<vmem>>, vector<110x64xbf16>
    tpu.vector_store %arg9[%c0_159, %c192], %155 {strides = array<i32>} : memref<110x576xbf16, #tpu.memory_space<vmem>>, vector<110x64xbf16>,
    %c9 = arith.constant 9 : index
    %c0_160 = arith.constant 0 : index
    %157 = vector.load %arg13[%c9, %c0_160] : memref<128x64xbf16, #tpu.memory_space<vmem>>, vector<110x64xbf16>
    %c0_161 = arith.constant 0 : index
    %c256_162 = arith.constant 256 : index
    %158 = vector.load %arg9[%c0_161, %c256_162] : memref<110x576xbf16, #tpu.memory_space<vmem>>, vector<110x64xbf16>
    tpu.vector_store %arg9[%c0_161, %c256_162], %157 {strides = array<i32>} : memref<110x576xbf16, #tpu.memory_space<vmem>>, vector<110x64xbf16>,
    %c10 = arith.constant 10 : index
    %c0_163 = arith.constant 0 : index
    %159 = vector.load %arg13[%c10, %c0_163] : memref<128x64xbf16, #tpu.memory_space<vmem>>, vector<110x64xbf16>
    %c0_164 = arith.constant 0 : index
    %c320 = arith.constant 320 : index
    %160 = vector.load %arg9[%c0_164, %c320] : memref<110x576xbf16, #tpu.memory_space<vmem>>, vector<110x64xbf16>
    tpu.vector_store %arg9[%c0_164, %c320], %159 {strides = array<i32>} : memref<110x576xbf16, #tpu.memory_space<vmem>>, vector<110x64xbf16>,
    %c16_165 = arith.constant 16 : index
    %c0_166 = arith.constant 0 : index
    %161 = vector.load %arg13[%c16_165, %c0_166] : memref<128x64xbf16, #tpu.memory_space<vmem>>, vector<110x64xbf16>
    %c0_167 = arith.constant 0 : index
    %c384 = arith.constant 384 : index
    %162 = vector.load %arg9[%c0_167, %c384] : memref<110x576xbf16, #tpu.memory_space<vmem>>, vector<110x64xbf16>
    tpu.vector_store %arg9[%c0_167, %c384], %161 {strides = array<i32>} : memref<110x576xbf16, #tpu.memory_space<vmem>>, vector<110x64xbf16>,
    %c17_168 = arith.constant 17 : index
    %c0_169 = arith.constant 0 : index
    %163 = vector.load %arg13[%c17_168, %c0_169] : memref<128x64xbf16, #tpu.memory_space<vmem>>, vector<110x64xbf16>
    %c0_170 = arith.constant 0 : index
    %c448 = arith.constant 448 : index
    %164 = vector.load %arg9[%c0_170, %c448] : memref<110x576xbf16, #tpu.memory_space<vmem>>, vector<110x64xbf16>
    tpu.vector_store %arg9[%c0_170, %c448], %163 {strides = array<i32>} : memref<110x576xbf16, #tpu.memory_space<vmem>>, vector<110x64xbf16>,
    %c18_171 = arith.constant 18 : index
    %c0_172 = arith.constant 0 : index
    %165 = vector.load %arg13[%c18_171, %c0_172] : memref<128x64xbf16, #tpu.memory_space<vmem>>, vector<110x64xbf16>
    %c0_173 = arith.constant 0 : index
    %c512 = arith.constant 512 : index
    %166 = vector.load %arg9[%c0_173, %c512] : memref<110x576xbf16, #tpu.memory_space<vmem>>, vector<110x64xbf16>
    tpu.vector_store %arg9[%c0_173, %c512], %165 {strides = array<i32>} : memref<110x576xbf16, #tpu.memory_space<vmem>>, vector<110x64xbf16>,
    %c0_174 = arith.constant 0 : index
    %c0_175 = arith.constant 0 : index
    %167 = vector.load %arg9[%c0_174, %c0_175] : memref<110x576xbf16, #tpu.memory_space<vmem>>, vector<110x576xbf16>
    %c0_176 = arith.constant 0 : index
    %c0_177 = arith.constant 0 : index
    %168 = vector.load %arg2[%c0_176, %c0_177] : memref<576x64xbf16, #tpu.memory_space<vmem>>, vector<576x64xbf16>
    %cst_178 = arith.constant dense<0.000000e+00> : vector<110x64xf32>
    %169 = tpu.matmul %167, %168, %cst_178 {dimension_numbers = #tpu.dot_dimension_numbers<[1], [0], [0], [1], [0, 0, 1, 1], [], []>} : vector<110x576xbf16>, vector<576x64xbf16>, vector<110x64xf32> -> vector<110x64xf32>
    %170 = tpu.iota {dimensions = array<i32: 1>} : vector<1x110xi32>
    %c63_i32 = arith.constant 63 : i32
    %171 = vector.broadcast %c63_i32 : i32 to vector<1x110xi32>
    %172 = arith.andi %170, %171 : vector<1x110xi32>
    %c3_i32 = arith.constant 3 : i32
    %173 = vector.broadcast %c3_i32 : i32 to vector<1x110xi32>
    %174 = arith.shrui %172, %173 : vector<1x110xi32>
    %c5_i32 = arith.constant 5 : i32
    %175 = vector.broadcast %c5_i32 : i32 to vector<1x110xi32>
    %176 = arith.cmpi slt, %174, %175 : vector<1x110xi32>
    %c7_i32 = arith.constant 7 : i32
    %177 = vector.broadcast %c7_i32 : i32 to vector<1x110xi32>
    %178 = arith.andi %172, %177 : vector<1x110xi32>
    %c5_i32_179 = arith.constant 5 : i32
    %179 = vector.broadcast %c5_i32_179 : i32 to vector<1x110xi32>
    %180 = arith.cmpi slt, %178, %179 : vector<1x110xi32>
    %181 = arith.andi %176, %180 : vector<1x110xi1>
    %182 = arith.extui %181 : vector<1x110xi1> to vector<1x110xi32>
    %183 = arith.sitofp %182 : vector<1x110xi32> to vector<1x110xf32>
    %cst_180 = arith.constant dense<0.000000e+00> : vector<1x64xf32>
    %184 = tpu.matmul %183, %169, %cst_180 {dimension_numbers = #tpu.dot_dimension_numbers<[1], [0], [0], [1], [0, 0, 1, 1], [], []>} : vector<1x110xf32>, vector<110x64xf32>, vector<1x64xf32> -> vector<1x64xf32>
    %cst_181 = arith.constant 2.000000e-02 : f32
    %185 = vector.broadcast %cst_181 : f32 to vector<1x64xf32>
    %186 = arith.mulf %184, %185 : vector<1x64xf32>
    %187 = vector.broadcast %186 : vector<1x64xf32> to vector<110x64xf32>
    %188 = arith.subf %169, %187 : vector<110x64xf32>
    %189 = arith.mulf %188, %188 : vector<110x64xf32>
    %cst_182 = arith.constant dense<0.000000e+00> : vector<1x64xf32>
    %190 = tpu.matmul %183, %189, %cst_182 {dimension_numbers = #tpu.dot_dimension_numbers<[1], [0], [0], [1], [0, 0, 1, 1], [], []>} : vector<1x110xf32>, vector<110x64xf32>, vector<1x64xf32> -> vector<1x64xf32>
    %cst_183 = arith.constant 2.000000e-02 : f32
    %191 = vector.broadcast %cst_183 : f32 to vector<1x64xf32>
    %192 = arith.mulf %190, %191 : vector<1x64xf32>
    %cst_184 = arith.constant 9.99999974E-6 : f32
    %193 = vector.broadcast %cst_184 : f32 to vector<1x64xf32>
    %194 = arith.addf %192, %193 : vector<1x64xf32>
    %195 = math.rsqrt %194 : vector<1x64xf32>
    %196 = arith.mulf %147, %195 : vector<1x64xf32>
    %197 = vector.broadcast %196 : vector<1x64xf32> to vector<110x64xf32>
    %198 = arith.mulf %188, %197 : vector<110x64xf32>
    %199 = vector.broadcast %148 : vector<1x64xf32> to vector<110x64xf32>
    %200 = arith.addf %198, %199 : vector<110x64xf32>
    %cst_185 = arith.constant 0.000000e+00 : f32
    %201 = vector.broadcast %cst_185 : f32 to vector<110x64xf32>
    %202 = arith.maximumf %200, %201 : vector<110x64xf32>
    %c0_186 = arith.constant 0 : index
    %c0_187 = arith.constant 0 : index
    %203 = vector.load %arg10[%c0_186, %c0_187] : memref<512x64xf32, #tpu.memory_space<vmem>>, vector<110x64xf32>
    tpu.vector_store %arg10[%c0_186, %c0_187], %202 {strides = array<i32>} : memref<512x64xf32, #tpu.memory_space<vmem>>, vector<110x64xf32>,
    %cst_188 = arith.constant 0.000000e+00 : f32
    %204 = vector.broadcast %cst_188 : f32 to vector<18x64xf32>
    %c110 = arith.constant 110 : index
    %c0_189 = arith.constant 0 : index
    %205 = vector.load %arg10[%c110, %c0_189] : memref<512x64xf32, #tpu.memory_space<vmem>>, vector<18x64xf32>
    tpu.vector_store %arg10[%c110, %c0_189], %204 {strides = array<i32>} : memref<512x64xf32, #tpu.memory_space<vmem>>, vector<18x64xf32>,
    %c0_190 = arith.constant 0 : index
    %c0_191 = arith.constant 0 : index
    %206 = vector.load %arg10[%c0_190, %c0_191] : memref<512x64xf32, #tpu.memory_space<vmem>>, vector<127x64xf32>
    %c1_192 = arith.constant 1 : index
    %c0_193 = arith.constant 0 : index
    %207 = vector.load %arg10[%c1_192, %c0_193] : memref<512x64xf32, #tpu.memory_space<vmem>>, vector<127x64xf32>
    %208 = arith.maximumf %206, %207 : vector<127x64xf32>
    %c0_194 = arith.constant 0 : index
    %c0_195 = arith.constant 0 : index
    %209 = vector.load %arg11[%c0_194, %c0_195] : memref<511x64xf32, #tpu.memory_space<vmem>>, vector<127x64xf32>
    tpu.vector_store %arg11[%c0_194, %c0_195], %208 {strides = array<i32>} : memref<511x64xf32, #tpu.memory_space<vmem>>, vector<127x64xf32>,
    %cst_196 = arith.constant 0.000000e+00 : bf16
    %210 = vector.broadcast %cst_196 : bf16 to vector<32x64xbf16>
    %c0_197 = arith.constant 0 : index
    %c0_198 = arith.constant 0 : index
    %211 = vector.load %arg14[%c0_197, %c0_198] : memref<32x64xbf16, #tpu.memory_space<vmem>>, vector<32x64xbf16>
    tpu.vector_store %arg14[%c0_197, %c0_198], %210 {strides = array<i32>} : memref<32x64xbf16, #tpu.memory_space<vmem>>, vector<32x64xbf16>,
    %c0_199 = arith.constant 0 : index
    %c0_200 = arith.constant 0 : index
    %212 = tpu.strided_load %arg11[%c0_199, %c0_200] {strides = array<i32: 2, 1>} : memref<511x64xf32, #tpu.memory_space<vmem>>, vector<32x64xf32>
    %c0_201 = arith.constant 0 : index
    %c0_202 = arith.constant 0 : index
    %213 = vector.load %arg12[%c0_201, %c0_202] : memref<128x64xf32, #tpu.memory_space<vmem>>, vector<32x64xf32>
    tpu.vector_store %arg12[%c0_201, %c0_202], %212 {strides = array<i32>} : memref<128x64xf32, #tpu.memory_space<vmem>>, vector<32x64xf32>,
    %c0_203 = arith.constant 0 : index
    %c0_204 = arith.constant 0 : index
    %214 = vector.load %arg12[%c0_203, %c0_204] : memref<128x64xf32, #tpu.memory_space<vmem>>, vector<2x64xf32>
    %c4 = arith.constant 4 : index
    %c0_205 = arith.constant 0 : index
    %215 = vector.load %arg12[%c4, %c0_205] : memref<128x64xf32, #tpu.memory_space<vmem>>, vector<2x64xf32>
    %216 = arith.maximumf %214, %215 : vector<2x64xf32>
    %217 = arith.truncf %216 : vector<2x64xf32> to vector<2x64xbf16>
    %c5 = arith.constant 5 : index
    %c0_206 = arith.constant 0 : index
    %218 = vector.load %arg14[%c5, %c0_206] : memref<32x64xbf16, #tpu.memory_space<vmem>>, vector<2x64xbf16>
    tpu.vector_store %arg14[%c5, %c0_206], %217 {strides = array<i32>} : memref<32x64xbf16, #tpu.memory_space<vmem>>, vector<2x64xbf16>,
    %c8_207 = arith.constant 8 : index
    %c0_208 = arith.constant 0 : index
    %219 = vector.load %arg12[%c8_207, %c0_208] : memref<128x64xf32, #tpu.memory_space<vmem>>, vector<2x64xf32>
    %c12 = arith.constant 12 : index
    %c0_209 = arith.constant 0 : index
    %220 = vector.load %arg12[%c12, %c0_209] : memref<128x64xf32, #tpu.memory_space<vmem>>, vector<2x64xf32>
    %221 = arith.maximumf %219, %220 : vector<2x64xf32>
    %222 = arith.truncf %221 : vector<2x64xf32> to vector<2x64xbf16>
    %c9_210 = arith.constant 9 : index
    %c0_211 = arith.constant 0 : index
    %223 = vector.load %arg14[%c9_210, %c0_211] : memref<32x64xbf16, #tpu.memory_space<vmem>>, vector<2x64xbf16>
    tpu.vector_store %arg14[%c9_210, %c0_211], %222 {strides = array<i32>} : memref<32x64xbf16, #tpu.memory_space<vmem>>, vector<2x64xbf16>,
    %c64_212 = arith.constant 64 : index
    %c0_213 = arith.constant 0 : index
    %224 = tpu.strided_load %arg11[%c64_212, %c0_213] {strides = array<i32: 2, 1>} : memref<511x64xf32, #tpu.memory_space<vmem>>, vector<32x64xf32>
    %c0_214 = arith.constant 0 : index
    %c0_215 = arith.constant 0 : index
    %225 = vector.load %arg12[%c0_214, %c0_215] : memref<128x64xf32, #tpu.memory_space<vmem>>, vector<32x64xf32>
    tpu.vector_store %arg12[%c0_214, %c0_215], %224 {strides = array<i32>} : memref<128x64xf32, #tpu.memory_space<vmem>>, vector<32x64xf32>,
    %c0_216 = arith.constant 0 : index
    %c0_217 = arith.constant 0 : index
    %226 = vector.load %arg12[%c0_216, %c0_217] : memref<128x64xf32, #tpu.memory_space<vmem>>, vector<2x64xf32>
    %c4_218 = arith.constant 4 : index
    %c0_219 = arith.constant 0 : index
    %227 = vector.load %arg12[%c4_218, %c0_219] : memref<128x64xf32, #tpu.memory_space<vmem>>, vector<2x64xf32>
    %228 = arith.maximumf %226, %227 : vector<2x64xf32>
    %229 = arith.truncf %228 : vector<2x64xf32> to vector<2x64xbf16>
    %c21 = arith.constant 21 : index
    %c0_220 = arith.constant 0 : index
    %230 = vector.load %arg14[%c21, %c0_220] : memref<32x64xbf16, #tpu.memory_space<vmem>>, vector<2x64xbf16>
    tpu.vector_store %arg14[%c21, %c0_220], %229 {strides = array<i32>} : memref<32x64xbf16, #tpu.memory_space<vmem>>, vector<2x64xbf16>,
    %c8_221 = arith.constant 8 : index
    %c0_222 = arith.constant 0 : index
    %231 = vector.load %arg12[%c8_221, %c0_222] : memref<128x64xf32, #tpu.memory_space<vmem>>, vector<2x64xf32>
    %c12_223 = arith.constant 12 : index
    %c0_224 = arith.constant 0 : index
    %232 = vector.load %arg12[%c12_223, %c0_224] : memref<128x64xf32, #tpu.memory_space<vmem>>, vector<2x64xf32>
    %233 = arith.maximumf %231, %232 : vector<2x64xf32>
    %234 = arith.truncf %233 : vector<2x64xf32> to vector<2x64xbf16>
    %c25 = arith.constant 25 : index
    %c0_225 = arith.constant 0 : index
    %235 = vector.load %arg14[%c25, %c0_225] : memref<32x64xbf16, #tpu.memory_space<vmem>>, vector<2x64xbf16>
    tpu.vector_store %arg14[%c25, %c0_225], %234 {strides = array<i32>} : memref<32x64xbf16, #tpu.memory_space<vmem>>, vector<2x64xbf16>,
    %c2_226 = arith.constant 2 : index
    %c0_227 = arith.constant 0 : index
    %236 = vector.load %arg5[%c2_226, %c0_227] : memref<4x64xf32, #tpu.memory_space<vmem>>, vector<1x64xf32>
    %c2_228 = arith.constant 2 : index
    %c0_229 = arith.constant 0 : index
    %237 = vector.load %arg6[%c2_228, %c0_229] : memref<4x64xf32, #tpu.memory_space<vmem>>, vector<1x64xf32>
    %c0_230 = arith.constant 0 : index
    %c0_231 = arith.constant 0 : index
    %238 = vector.load %arg14[%c0_230, %c0_231] : memref<32x64xbf16, #tpu.memory_space<vmem>>, vector<22x64xbf16>
    %c0_232 = arith.constant 0 : index
    %c0_233 = arith.constant 0 : index
    %239 = vector.load %arg9[%c0_232, %c0_233] : memref<110x576xbf16, #tpu.memory_space<vmem>>, vector<22x64xbf16>
    tpu.vector_store %arg9[%c0_232, %c0_233], %238 {strides = array<i32>} : memref<110x576xbf16, #tpu.memory_space<vmem>>, vector<22x64xbf16>,
    %c1_234 = arith.constant 1 : index
    %c0_235 = arith.constant 0 : index
    %240 = vector.load %arg14[%c1_234, %c0_235] : memref<32x64xbf16, #tpu.memory_space<vmem>>, vector<22x64xbf16>
    %c0_236 = arith.constant 0 : index
    %c64_237 = arith.constant 64 : index
    %241 = vector.load %arg9[%c0_236, %c64_237] : memref<110x576xbf16, #tpu.memory_space<vmem>>, vector<22x64xbf16>
    tpu.vector_store %arg9[%c0_236, %c64_237], %240 {strides = array<i32>} : memref<110x576xbf16, #tpu.memory_space<vmem>>, vector<22x64xbf16>,
    %c2_238 = arith.constant 2 : index
    %c0_239 = arith.constant 0 : index
    %242 = vector.load %arg14[%c2_238, %c0_239] : memref<32x64xbf16, #tpu.memory_space<vmem>>, vector<22x64xbf16>
    %c0_240 = arith.constant 0 : index
    %c128_241 = arith.constant 128 : index
    %243 = vector.load %arg9[%c0_240, %c128_241] : memref<110x576xbf16, #tpu.memory_space<vmem>>, vector<22x64xbf16>
    tpu.vector_store %arg9[%c0_240, %c128_241], %242 {strides = array<i32>} : memref<110x576xbf16, #tpu.memory_space<vmem>>, vector<22x64xbf16>,
    %c4_242 = arith.constant 4 : index
    %c0_243 = arith.constant 0 : index
    %244 = vector.load %arg14[%c4_242, %c0_243] : memref<32x64xbf16, #tpu.memory_space<vmem>>, vector<22x64xbf16>
    %c0_244 = arith.constant 0 : index
    %c192_245 = arith.constant 192 : index
    %245 = vector.load %arg9[%c0_244, %c192_245] : memref<110x576xbf16, #tpu.memory_space<vmem>>, vector<22x64xbf16>
    tpu.vector_store %arg9[%c0_244, %c192_245], %244 {strides = array<i32>} : memref<110x576xbf16, #tpu.memory_space<vmem>>, vector<22x64xbf16>,
    %c5_246 = arith.constant 5 : index
    %c0_247 = arith.constant 0 : index
    %246 = vector.load %arg14[%c5_246, %c0_247] : memref<32x64xbf16, #tpu.memory_space<vmem>>, vector<22x64xbf16>
    %c0_248 = arith.constant 0 : index
    %c256_249 = arith.constant 256 : index
    %247 = vector.load %arg9[%c0_248, %c256_249] : memref<110x576xbf16, #tpu.memory_space<vmem>>, vector<22x64xbf16>
    tpu.vector_store %arg9[%c0_248, %c256_249], %246 {strides = array<i32>} : memref<110x576xbf16, #tpu.memory_space<vmem>>, vector<22x64xbf16>,
    %c6 = arith.constant 6 : index
    %c0_250 = arith.constant 0 : index
    %248 = vector.load %arg14[%c6, %c0_250] : memref<32x64xbf16, #tpu.memory_space<vmem>>, vector<22x64xbf16>
    %c0_251 = arith.constant 0 : index
    %c320_252 = arith.constant 320 : index
    %249 = vector.load %arg9[%c0_251, %c320_252] : memref<110x576xbf16, #tpu.memory_space<vmem>>, vector<22x64xbf16>
    tpu.vector_store %arg9[%c0_251, %c320_252], %248 {strides = array<i32>} : memref<110x576xbf16, #tpu.memory_space<vmem>>, vector<22x64xbf16>,
    %c8_253 = arith.constant 8 : index
    %c0_254 = arith.constant 0 : index
    %250 = vector.load %arg14[%c8_253, %c0_254] : memref<32x64xbf16, #tpu.memory_space<vmem>>, vector<22x64xbf16>
    %c0_255 = arith.constant 0 : index
    %c384_256 = arith.constant 384 : index
    %251 = vector.load %arg9[%c0_255, %c384_256] : memref<110x576xbf16, #tpu.memory_space<vmem>>, vector<22x64xbf16>
    tpu.vector_store %arg9[%c0_255, %c384_256], %250 {strides = array<i32>} : memref<110x576xbf16, #tpu.memory_space<vmem>>, vector<22x64xbf16>,
    %c9_257 = arith.constant 9 : index
    %c0_258 = arith.constant 0 : index
    %252 = vector.load %arg14[%c9_257, %c0_258] : memref<32x64xbf16, #tpu.memory_space<vmem>>, vector<22x64xbf16>
    %c0_259 = arith.constant 0 : index
    %c448_260 = arith.constant 448 : index
    %253 = vector.load %arg9[%c0_259, %c448_260] : memref<110x576xbf16, #tpu.memory_space<vmem>>, vector<22x64xbf16>
    tpu.vector_store %arg9[%c0_259, %c448_260], %252 {strides = array<i32>} : memref<110x576xbf16, #tpu.memory_space<vmem>>, vector<22x64xbf16>,
    %c10_261 = arith.constant 10 : index
    %c0_262 = arith.constant 0 : index
    %254 = vector.load %arg14[%c10_261, %c0_262] : memref<32x64xbf16, #tpu.memory_space<vmem>>, vector<22x64xbf16>
    %c0_263 = arith.constant 0 : index
    %c512_264 = arith.constant 512 : index
    %255 = vector.load %arg9[%c0_263, %c512_264] : memref<110x576xbf16, #tpu.memory_space<vmem>>, vector<22x64xbf16>
    tpu.vector_store %arg9[%c0_263, %c512_264], %254 {strides = array<i32>} : memref<110x576xbf16, #tpu.memory_space<vmem>>, vector<22x64xbf16>,
    %c0_265 = arith.constant 0 : index
    %c0_266 = arith.constant 0 : index
    %256 = vector.load %arg9[%c0_265, %c0_266] : memref<110x576xbf16, #tpu.memory_space<vmem>>, vector<22x576xbf16>
    %c0_267 = arith.constant 0 : index
    %c0_268 = arith.constant 0 : index
    %257 = vector.load %arg3[%c0_267, %c0_268] : memref<576x64xbf16, #tpu.memory_space<vmem>>, vector<576x64xbf16>
    %cst_269 = arith.constant dense<0.000000e+00> : vector<22x64xf32>
    %258 = tpu.matmul %256, %257, %cst_269 {dimension_numbers = #tpu.dot_dimension_numbers<[1], [0], [0], [1], [0, 0, 1, 1], [], []>} : vector<22x576xbf16>, vector<576x64xbf16>, vector<22x64xf32> -> vector<22x64xf32>
    %259 = tpu.iota {dimensions = array<i32: 1>} : vector<1x22xi32>
    %c15_i32_270 = arith.constant 15 : i32
    %260 = vector.broadcast %c15_i32_270 : i32 to vector<1x22xi32>
    %261 = arith.andi %259, %260 : vector<1x22xi32>
    %c2_i32 = arith.constant 2 : i32
    %262 = vector.broadcast %c2_i32 : i32 to vector<1x22xi32>
    %263 = arith.shrui %261, %262 : vector<1x22xi32>
    %c2_i32_271 = arith.constant 2 : i32
    %264 = vector.broadcast %c2_i32_271 : i32 to vector<1x22xi32>
    %265 = arith.cmpi slt, %263, %264 : vector<1x22xi32>
    %c3_i32_272 = arith.constant 3 : i32
    %266 = vector.broadcast %c3_i32_272 : i32 to vector<1x22xi32>
    %267 = arith.andi %261, %266 : vector<1x22xi32>
    %c2_i32_273 = arith.constant 2 : i32
    %268 = vector.broadcast %c2_i32_273 : i32 to vector<1x22xi32>
    %269 = arith.cmpi slt, %267, %268 : vector<1x22xi32>
    %270 = arith.andi %265, %269 : vector<1x22xi1>
    %271 = arith.extui %270 : vector<1x22xi1> to vector<1x22xi32>
    %272 = arith.sitofp %271 : vector<1x22xi32> to vector<1x22xf32>
    %cst_274 = arith.constant dense<0.000000e+00> : vector<1x64xf32>
    %273 = tpu.matmul %272, %258, %cst_274 {dimension_numbers = #tpu.dot_dimension_numbers<[1], [0], [0], [1], [0, 0, 1, 1], [], []>} : vector<1x22xf32>, vector<22x64xf32>, vector<1x64xf32> -> vector<1x64xf32>
    %cst_275 = arith.constant 1.250000e-01 : f32
    %274 = vector.broadcast %cst_275 : f32 to vector<1x64xf32>
    %275 = arith.mulf %273, %274 : vector<1x64xf32>
    %276 = vector.broadcast %275 : vector<1x64xf32> to vector<22x64xf32>
    %277 = arith.subf %258, %276 : vector<22x64xf32>
    %278 = arith.mulf %277, %277 : vector<22x64xf32>
    %cst_276 = arith.constant dense<0.000000e+00> : vector<1x64xf32>
    %279 = tpu.matmul %272, %278, %cst_276 {dimension_numbers = #tpu.dot_dimension_numbers<[1], [0], [0], [1], [0, 0, 1, 1], [], []>} : vector<1x22xf32>, vector<22x64xf32>, vector<1x64xf32> -> vector<1x64xf32>
    %cst_277 = arith.constant 1.250000e-01 : f32
    %280 = vector.broadcast %cst_277 : f32 to vector<1x64xf32>
    %281 = arith.mulf %279, %280 : vector<1x64xf32>
    %cst_278 = arith.constant 9.99999974E-6 : f32
    %282 = vector.broadcast %cst_278 : f32 to vector<1x64xf32>
    %283 = arith.addf %281, %282 : vector<1x64xf32>
    %284 = math.rsqrt %283 : vector<1x64xf32>
    %285 = arith.mulf %236, %284 : vector<1x64xf32>
    %286 = vector.broadcast %285 : vector<1x64xf32> to vector<22x64xf32>
    %287 = arith.mulf %277, %286 : vector<22x64xf32>
    %288 = vector.broadcast %237 : vector<1x64xf32> to vector<22x64xf32>
    %289 = arith.addf %287, %288 : vector<22x64xf32>
    %cst_279 = arith.constant 0.000000e+00 : f32
    %290 = vector.broadcast %cst_279 : f32 to vector<22x64xf32>
    %291 = arith.maximumf %289, %290 : vector<22x64xf32>
    %cst_280 = arith.constant 0.000000e+00 : bf16
    %292 = vector.broadcast %cst_280 : bf16 to vector<32x64xbf16>
    %c0_281 = arith.constant 0 : index
    %c0_282 = arith.constant 0 : index
    %293 = vector.load %arg15[%c0_281, %c0_282] : memref<32x64xbf16, #tpu.memory_space<vmem>>, vector<32x64xbf16>
    tpu.vector_store %arg15[%c0_281, %c0_282], %292 {strides = array<i32>} : memref<32x64xbf16, #tpu.memory_space<vmem>>, vector<32x64xbf16>,
    %294 = tpu.iota {dimensions = array<i32: 0>} : vector<22x1xi32>
    %c15_i32_283 = arith.constant 15 : i32
    %295 = vector.broadcast %c15_i32_283 : i32 to vector<22x1xi32>
    %296 = arith.andi %294, %295 : vector<22x1xi32>
    %c2_i32_284 = arith.constant 2 : i32
    %297 = vector.broadcast %c2_i32_284 : i32 to vector<22x1xi32>
    %298 = arith.shrui %296, %297 : vector<22x1xi32>
    %c2_i32_285 = arith.constant 2 : i32
    %299 = vector.broadcast %c2_i32_285 : i32 to vector<22x1xi32>
    %300 = arith.cmpi slt, %298, %299 : vector<22x1xi32>
    %c3_i32_286 = arith.constant 3 : i32
    %301 = vector.broadcast %c3_i32_286 : i32 to vector<22x1xi32>
    %302 = arith.andi %296, %301 : vector<22x1xi32>
    %c2_i32_287 = arith.constant 2 : i32
    %303 = vector.broadcast %c2_i32_287 : i32 to vector<22x1xi32>
    %304 = arith.cmpi slt, %302, %303 : vector<22x1xi32>
    %305 = arith.andi %300, %304 : vector<22x1xi1>
    %cst_288 = arith.constant 0.000000e+00 : f32
    %306 = vector.shape_cast %305 : vector<22x1xi1> to vector<22x1xi1>
    %307 = vector.broadcast %306 : vector<22x1xi1> to vector<22x64xi1>
    %308 = vector.broadcast %cst_288 : f32 to vector<22x64xf32>
    %309 = arith.select %307, %291, %308 : vector<22x64xi1>, vector<22x64xf32>
    %310 = arith.truncf %309 : vector<22x64xf32> to vector<22x64xbf16>
    %c5_289 = arith.constant 5 : index
    %c0_290 = arith.constant 0 : index
    %311 = vector.load %arg15[%c5_289, %c0_290] : memref<32x64xbf16, #tpu.memory_space<vmem>>, vector<22x64xbf16>
    tpu.vector_store %arg15[%c5_289, %c0_290], %310 {strides = array<i32>} : memref<32x64xbf16, #tpu.memory_space<vmem>>, vector<22x64xbf16>,
    %c3 = arith.constant 3 : index
    %c0_291 = arith.constant 0 : index
    %312 = vector.load %arg5[%c3, %c0_291] : memref<4x64xf32, #tpu.memory_space<vmem>>, vector<1x64xf32>
    %c3_292 = arith.constant 3 : index
    %c0_293 = arith.constant 0 : index
    %313 = vector.load %arg6[%c3_292, %c0_293] : memref<4x64xf32, #tpu.memory_space<vmem>>, vector<1x64xf32>
    %c0_294 = arith.constant 0 : index
    %c0_295 = arith.constant 0 : index
    %314 = vector.load %arg15[%c0_294, %c0_295] : memref<32x64xbf16, #tpu.memory_space<vmem>>, vector<22x64xbf16>
    %c0_296 = arith.constant 0 : index
    %c0_297 = arith.constant 0 : index
    %315 = vector.load %arg9[%c0_296, %c0_297] : memref<110x576xbf16, #tpu.memory_space<vmem>>, vector<22x64xbf16>
    tpu.vector_store %arg9[%c0_296, %c0_297], %314 {strides = array<i32>} : memref<110x576xbf16, #tpu.memory_space<vmem>>, vector<22x64xbf16>,
    %c1_298 = arith.constant 1 : index
    %c0_299 = arith.constant 0 : index
    %316 = vector.load %arg15[%c1_298, %c0_299] : memref<32x64xbf16, #tpu.memory_space<vmem>>, vector<22x64xbf16>
    %c0_300 = arith.constant 0 : index
    %c64_301 = arith.constant 64 : index
    %317 = vector.load %arg9[%c0_300, %c64_301] : memref<110x576xbf16, #tpu.memory_space<vmem>>, vector<22x64xbf16>
    tpu.vector_store %arg9[%c0_300, %c64_301], %316 {strides = array<i32>} : memref<110x576xbf16, #tpu.memory_space<vmem>>, vector<22x64xbf16>,
    %c2_302 = arith.constant 2 : index
    %c0_303 = arith.constant 0 : index
    %318 = vector.load %arg15[%c2_302, %c0_303] : memref<32x64xbf16, #tpu.memory_space<vmem>>, vector<22x64xbf16>
    %c0_304 = arith.constant 0 : index
    %c128_305 = arith.constant 128 : index
    %319 = vector.load %arg9[%c0_304, %c128_305] : memref<110x576xbf16, #tpu.memory_space<vmem>>, vector<22x64xbf16>
    tpu.vector_store %arg9[%c0_304, %c128_305], %318 {strides = array<i32>} : memref<110x576xbf16, #tpu.memory_space<vmem>>, vector<22x64xbf16>,
    %c4_306 = arith.constant 4 : index
    %c0_307 = arith.constant 0 : index
    %320 = vector.load %arg15[%c4_306, %c0_307] : memref<32x64xbf16, #tpu.memory_space<vmem>>, vector<22x64xbf16>
    %c0_308 = arith.constant 0 : index
    %c192_309 = arith.constant 192 : index
    %321 = vector.load %arg9[%c0_308, %c192_309] : memref<110x576xbf16, #tpu.memory_space<vmem>>, vector<22x64xbf16>
    tpu.vector_store %arg9[%c0_308, %c192_309], %320 {strides = array<i32>} : memref<110x576xbf16, #tpu.memory_space<vmem>>, vector<22x64xbf16>,
    %c5_310 = arith.constant 5 : index
    %c0_311 = arith.constant 0 : index
    %322 = vector.load %arg15[%c5_310, %c0_311] : memref<32x64xbf16, #tpu.memory_space<vmem>>, vector<22x64xbf16>
    %c0_312 = arith.constant 0 : index
    %c256_313 = arith.constant 256 : index
    %323 = vector.load %arg9[%c0_312, %c256_313] : memref<110x576xbf16, #tpu.memory_space<vmem>>, vector<22x64xbf16>
    tpu.vector_store %arg9[%c0_312, %c256_313], %322 {strides = array<i32>} : memref<110x576xbf16, #tpu.memory_space<vmem>>, vector<22x64xbf16>,
    %c6_314 = arith.constant 6 : index
    %c0_315 = arith.constant 0 : index
    %324 = vector.load %arg15[%c6_314, %c0_315] : memref<32x64xbf16, #tpu.memory_space<vmem>>, vector<22x64xbf16>
    %c0_316 = arith.constant 0 : index
    %c320_317 = arith.constant 320 : index
    %325 = vector.load %arg9[%c0_316, %c320_317] : memref<110x576xbf16, #tpu.memory_space<vmem>>, vector<22x64xbf16>
    tpu.vector_store %arg9[%c0_316, %c320_317], %324 {strides = array<i32>} : memref<110x576xbf16, #tpu.memory_space<vmem>>, vector<22x64xbf16>,
    %c8_318 = arith.constant 8 : index
    %c0_319 = arith.constant 0 : index
    %326 = vector.load %arg15[%c8_318, %c0_319] : memref<32x64xbf16, #tpu.memory_space<vmem>>, vector<22x64xbf16>
    %c0_320 = arith.constant 0 : index
    %c384_321 = arith.constant 384 : index
    %327 = vector.load %arg9[%c0_320, %c384_321] : memref<110x576xbf16, #tpu.memory_space<vmem>>, vector<22x64xbf16>
    tpu.vector_store %arg9[%c0_320, %c384_321], %326 {strides = array<i32>} : memref<110x576xbf16, #tpu.memory_space<vmem>>, vector<22x64xbf16>,
    %c9_322 = arith.constant 9 : index
    %c0_323 = arith.constant 0 : index
    %328 = vector.load %arg15[%c9_322, %c0_323] : memref<32x64xbf16, #tpu.memory_space<vmem>>, vector<22x64xbf16>
    %c0_324 = arith.constant 0 : index
    %c448_325 = arith.constant 448 : index
    %329 = vector.load %arg9[%c0_324, %c448_325] : memref<110x576xbf16, #tpu.memory_space<vmem>>, vector<22x64xbf16>
    tpu.vector_store %arg9[%c0_324, %c448_325], %328 {strides = array<i32>} : memref<110x576xbf16, #tpu.memory_space<vmem>>, vector<22x64xbf16>,
    %c10_326 = arith.constant 10 : index
    %c0_327 = arith.constant 0 : index
    %330 = vector.load %arg15[%c10_326, %c0_327] : memref<32x64xbf16, #tpu.memory_space<vmem>>, vector<22x64xbf16>
    %c0_328 = arith.constant 0 : index
    %c512_329 = arith.constant 512 : index
    %331 = vector.load %arg9[%c0_328, %c512_329] : memref<110x576xbf16, #tpu.memory_space<vmem>>, vector<22x64xbf16>
    tpu.vector_store %arg9[%c0_328, %c512_329], %330 {strides = array<i32>} : memref<110x576xbf16, #tpu.memory_space<vmem>>, vector<22x64xbf16>,
    %c0_330 = arith.constant 0 : index
    %c0_331 = arith.constant 0 : index
    %332 = vector.load %arg9[%c0_330, %c0_331] : memref<110x576xbf16, #tpu.memory_space<vmem>>, vector<22x576xbf16>
    %c0_332 = arith.constant 0 : index
    %c0_333 = arith.constant 0 : index
    %333 = vector.load %arg4[%c0_332, %c0_333] : memref<576x64xbf16, #tpu.memory_space<vmem>>, vector<576x64xbf16>
    %cst_334 = arith.constant dense<0.000000e+00> : vector<22x64xf32>
    %334 = tpu.matmul %332, %333, %cst_334 {dimension_numbers = #tpu.dot_dimension_numbers<[1], [0], [0], [1], [0, 0, 1, 1], [], []>} : vector<22x576xbf16>, vector<576x64xbf16>, vector<22x64xf32> -> vector<22x64xf32>
    %335 = tpu.iota {dimensions = array<i32: 1>} : vector<1x22xi32>
    %c15_i32_335 = arith.constant 15 : i32
    %336 = vector.broadcast %c15_i32_335 : i32 to vector<1x22xi32>
    %337 = arith.andi %335, %336 : vector<1x22xi32>
    %c2_i32_336 = arith.constant 2 : i32
    %338 = vector.broadcast %c2_i32_336 : i32 to vector<1x22xi32>
    %339 = arith.shrui %337, %338 : vector<1x22xi32>
    %c2_i32_337 = arith.constant 2 : i32
    %340 = vector.broadcast %c2_i32_337 : i32 to vector<1x22xi32>
    %341 = arith.cmpi slt, %339, %340 : vector<1x22xi32>
    %c3_i32_338 = arith.constant 3 : i32
    %342 = vector.broadcast %c3_i32_338 : i32 to vector<1x22xi32>
    %343 = arith.andi %337, %342 : vector<1x22xi32>
    %c2_i32_339 = arith.constant 2 : i32
    %344 = vector.broadcast %c2_i32_339 : i32 to vector<1x22xi32>
    %345 = arith.cmpi slt, %343, %344 : vector<1x22xi32>
    %346 = arith.andi %341, %345 : vector<1x22xi1>
    %347 = arith.extui %346 : vector<1x22xi1> to vector<1x22xi32>
    %348 = arith.sitofp %347 : vector<1x22xi32> to vector<1x22xf32>
    %cst_340 = arith.constant dense<0.000000e+00> : vector<1x64xf32>
    %349 = tpu.matmul %348, %334, %cst_340 {dimension_numbers = #tpu.dot_dimension_numbers<[1], [0], [0], [1], [0, 0, 1, 1], [], []>} : vector<1x22xf32>, vector<22x64xf32>, vector<1x64xf32> -> vector<1x64xf32>
    %cst_341 = arith.constant 1.250000e-01 : f32
    %350 = vector.broadcast %cst_341 : f32 to vector<1x64xf32>
    %351 = arith.mulf %349, %350 : vector<1x64xf32>
    %352 = vector.broadcast %351 : vector<1x64xf32> to vector<22x64xf32>
    %353 = arith.subf %334, %352 : vector<22x64xf32>
    %354 = arith.mulf %353, %353 : vector<22x64xf32>
    %cst_342 = arith.constant dense<0.000000e+00> : vector<1x64xf32>
    %355 = tpu.matmul %348, %354, %cst_342 {dimension_numbers = #tpu.dot_dimension_numbers<[1], [0], [0], [1], [0, 0, 1, 1], [], []>} : vector<1x22xf32>, vector<22x64xf32>, vector<1x64xf32> -> vector<1x64xf32>
    %cst_343 = arith.constant 1.250000e-01 : f32
    %356 = vector.broadcast %cst_343 : f32 to vector<1x64xf32>
    %357 = arith.mulf %355, %356 : vector<1x64xf32>
    %cst_344 = arith.constant 9.99999974E-6 : f32
    %358 = vector.broadcast %cst_344 : f32 to vector<1x64xf32>
    %359 = arith.addf %357, %358 : vector<1x64xf32>
    %360 = math.rsqrt %359 : vector<1x64xf32>
    %361 = arith.mulf %312, %360 : vector<1x64xf32>
    %362 = vector.broadcast %361 : vector<1x64xf32> to vector<22x64xf32>
    %363 = arith.mulf %353, %362 : vector<22x64xf32>
    %364 = vector.broadcast %313 : vector<1x64xf32> to vector<22x64xf32>
    %365 = arith.addf %363, %364 : vector<22x64xf32>
    %cst_345 = arith.constant 0.000000e+00 : f32
    %366 = vector.broadcast %cst_345 : f32 to vector<22x64xf32>
    %367 = arith.maximumf %365, %366 : vector<22x64xf32>
    %368 = vector.extract_strided_slice %367 {offsets = [0, 0], sizes = [2, 64], strides = [1, 1]} : vector<22x64xf32> to vector<2x64xf32>
    %c0_346 = arith.constant 0 : index
    %c0_347 = arith.constant 0 : index
    %369 = vector.load %arg7[%c0_346, %c0_347] : memref<8x64xf32, #tpu.memory_space<vmem>>, vector<2x64xf32>
    tpu.vector_store %arg7[%c0_346, %c0_347], %368 {strides = array<i32>} : memref<8x64xf32, #tpu.memory_space<vmem>>, vector<2x64xf32>,
    %370 = vector.extract_strided_slice %367 {offsets = [4, 0], sizes = [2, 64], strides = [1, 1]} : vector<22x64xf32> to vector<2x64xf32>
    %c2_348 = arith.constant 2 : index
    %c0_349 = arith.constant 0 : index
    %371 = vector.load %arg7[%c2_348, %c0_349] : memref<8x64xf32, #tpu.memory_space<vmem>>, vector<2x64xf32>
    tpu.vector_store %arg7[%c2_348, %c0_349], %370 {strides = array<i32>} : memref<8x64xf32, #tpu.memory_space<vmem>>, vector<2x64xf32>,
    %372 = vector.extract_strided_slice %367 {offsets = [16, 0], sizes = [2, 64], strides = [1, 1]} : vector<22x64xf32> to vector<2x64xf32>
    %c4_350 = arith.constant 4 : index
    %c0_351 = arith.constant 0 : index
    %373 = vector.load %arg7[%c4_350, %c0_351] : memref<8x64xf32, #tpu.memory_space<vmem>>, vector<2x64xf32>
    tpu.vector_store %arg7[%c4_350, %c0_351], %372 {strides = array<i32>} : memref<8x64xf32, #tpu.memory_space<vmem>>, vector<2x64xf32>,
    %374 = vector.extract_strided_slice %367 {offsets = [20, 0], sizes = [2, 64], strides = [1, 1]} : vector<22x64xf32> to vector<2x64xf32>
    %c6_352 = arith.constant 6 : index
    %c0_353 = arith.constant 0 : index
    %375 = vector.load %arg7[%c6_352, %c0_353] : memref<8x64xf32, #tpu.memory_space<vmem>>, vector<2x64xf32>
    tpu.vector_store %arg7[%c6_352, %c0_353], %374 {strides = array<i32>} : memref<8x64xf32, #tpu.memory_space<vmem>>, vector<2x64xf32>,
    return
  }
}

</mosaic_0001>

<llo_original>
// kernel: _lambda_.1
$region0: #{_lambda_.1}
  #allocation0 [shape = 'u32[]', space=smem, size = 0x4, offset = 0x4, fixed_abs, tag = 'smem constant byte address 0x4 - core index']
  #allocation1 [shape = 'u32[144,128]{1,0:T(1,128)}', space=vmem, size = 0x12000, scoped, tag = 'internal scratch']
  #allocation2 [shape = 'bf16[478,72]{1,0:T(8,128)(2,1)}', space=vmem, size = 0x1e000, scoped, tag = 'scratch operand']
  #allocation3 [shape = 'bf16[110,576]{1,0:T(8,128)(2,1)}', space=vmem, size = 0x23000, scoped, tag = 'scratch operand']
  #allocation4 [shape = 'f32[512,64]{1,0:T(8,128)}', space=vmem, size = 0x40000, scoped, tag = 'scratch operand']
  #allocation5 [shape = 'f32[511,64]{1,0:T(8,128)}', space=vmem, size = 0x40000, scoped, tag = 'scratch operand']
  #allocation6 [shape = 'f32[128,64]{1,0:T(8,128)}', space=vmem, size = 0x10000, scoped, tag = 'scratch operand']
  #allocation7 [shape = 'bf16[128,64]{1,0:T(8,128)(2,1)}', space=vmem, size = 0x8000, scoped, tag = 'scratch operand']
  #allocation8 [shape = 'bf16[32,64]{1,0:T(8,128)(2,1)}', space=vmem, size = 0x2000, scoped, tag = 'scratch operand']
  #allocation9 [shape = 'bf16[32,64]{1,0:T(8,128)(2,1)}', space=vmem, size = 0x2000, scoped, tag = 'scratch operand']
  %s0 = inlined_call_operand.vmem [shape: bf16[512,8], index: 0, kind: input, shape index: {}]
  %s1 = inlined_call_operand.vmem [shape: bf16[72,64], index: 1, kind: input, shape index: {}]
  %s2 = inlined_call_operand.vmem [shape: bf16[576,64], index: 2, kind: input, shape index: {}]
  %s3 = inlined_call_operand.vmem [shape: bf16[576,64], index: 3, kind: input, shape index: {}]
  %s4 = inlined_call_operand.vmem [shape: bf16[576,64], index: 4, kind: input, shape index: {}]
  %s5 = inlined_call_operand.vmem [shape: f32[4,64], index: 5, kind: input, shape index: {}]
  %s6 = inlined_call_operand.vmem [shape: f32[4,64], index: 6, kind: input, shape index: {}]
  %s7 = inlined_call_operand.hbm [shape: f32[8,64], index: 7, kind: output, shape index: {}]
  %s8 = sld [smem:[#allocation0]]
  $region38: #{_lambda_.1} parent=0
    _
  %s10 = ssub.s32 1, %s8
  %s11 = scalar_select 0, %s10, %s8
  $region1: #{_lambda_.1} parent=0
    #allocation10 [shape = 'u8[4096]{0}', space=vmem, size = 0x1000, scoped, tag = 'output window, operand 0, single buffered']
    #allocation11 [shape = 's32[1]{0}', space=sflag, size = 0x4, scoped, tag = 'scoped memory for _lambda_.1']
    %12 = vsyncpa [#allocation11], 0
    // Predicated region
    $region2: #{_lambda_.1} parent=1 // pred_check
      _
    $region3: #{_lambda_.1} parent=1 // pred_check_branch
      %14 = sbr.rel (0) target = $region5
    $region4: #{_lambda_.1} parent=1 // pred_region
      _
    $region5: #{_lambda_.1} parent=1 // pred_fallthru
      _
    // Predicated region
    $region6: #{_lambda_.1} parent=1 // pred_check
      _
    $region7: #{_lambda_.1} parent=1 // pred_check_branch
      %16 = sbr.rel (0) target = $region9
    $region8: #{_lambda_.1} parent=1 // pred_region
      _
    $region9: #{_lambda_.1} parent=1 // pred_fallthru
      _
    // Predicated region
    $region10: #{_lambda_.1} parent=1 // pred_check
      _
    $region11: #{_lambda_.1} parent=1 // pred_check_branch
      %18 = sbr.rel (0) target = $region13
    $region12: #{_lambda_.1} parent=1 // pred_region
      _
    $region13: #{_lambda_.1} parent=1 // pred_fallthru
      _
    // Predicated region
    $region14: #{_lambda_.1} parent=1 // pred_check
      _
    $region15: #{_lambda_.1} parent=1 // pred_check_branch
      %20 = sbr.rel (0) target = $region17
    $region16: #{_lambda_.1} parent=1 // pred_region
      _
    $region17: #{_lambda_.1} parent=1 // pred_fallthru
      _
    // Predicated region
    $region18: #{_lambda_.1} parent=1 // pred_check
      _
    $region19: #{_lambda_.1} parent=1 // pred_check_branch
      %22 = sbr.rel (0) target = $region21
    $region20: #{_lambda_.1} parent=1 // pred_region
      _
    $region21: #{_lambda_.1} parent=1 // pred_fallthru
      _
    // Predicated region
    $region22: #{_lambda_.1} parent=1 // pred_check
      _
    $region23: #{_lambda_.1} parent=1 // pred_check_branch
      %24 = sbr.rel (0) target = $region25
    $region24: #{_lambda_.1} parent=1 // pred_region
      _
    $region25: #{_lambda_.1} parent=1 // pred_fallthru
      _
    // Predicated region
    $region26: #{_lambda_.1} parent=1 // pred_check
      _
    $region27: #{_lambda_.1} parent=1 // pred_check_branch
      %26 = sbr.rel (0) target = $region29
    $region28: #{_lambda_.1} parent=1 // pred_region
      _
    $region29: #{_lambda_.1} parent=1 // pred_fallthru
      _
    %v28 = vld [vmem:[%s5] sm:$0x1]
    %v29 = vld [vmem:[%s6] sm:$0x1]
    %v30 = vld [vmem:[%s0] sm:$0xf]
    %v31 = vld [vmem:[%s0 + $0x4] sm:$0xf]
    %v32 = vld [vmem:[%s0 + $0x8] sm:$0xf]
    %v33 = vld [vmem:[%s0 + $0xc] sm:$0xf]
    %v34 = vld [vmem:[%s0 + $0x10] sm:$0xf]
    %v35 = vld [vmem:[%s0 + $0x14] sm:$0xf]
    %v36 = vld [vmem:[%s0 + $0x18] sm:$0xf]
    %v37 = vld [vmem:[%s0 + $0x1c] sm:$0xf]
    %v38 = vld [vmem:[%s0 + $0x20] sm:$0xf]
    %v39 = vld [vmem:[%s0 + $0x24] sm:$0xf]
    %v40 = vld [vmem:[%s0 + $0x28] sm:$0xf]
    %v41 = vld [vmem:[%s0 + $0x2c] sm:$0xf]
    %v42 = vld [vmem:[%s0 + $0x30] sm:$0xf]
    %v43 = vld [vmem:[%s0 + $0x34] sm:$0xf]
    %v44 = vld [vmem:[%s0 + $0x38] sm:$0xf]
    %v45 = vld [vmem:[%s0 + $0x3c] sm:$0xf]
    %v46 = vld [vmem:[%s0 + $0x40] sm:$0xf]
    %v47 = vld [vmem:[%s0 + $0x44] sm:$0xf]
    %v48 = vld [vmem:[%s0 + $0x48] sm:$0xf]
    %v49 = vld [vmem:[%s0 + $0x4c] sm:$0xf]
    %v50 = vld [vmem:[%s0 + $0x50] sm:$0xf]
    %v51 = vld [vmem:[%s0 + $0x54] sm:$0xf]
    %v52 = vld [vmem:[%s0 + $0x58] sm:$0xf]
    %v53 = vld [vmem:[%s0 + $0x5c] sm:$0xf]
    %v54 = vld [vmem:[%s0 + $0x60] sm:$0xf]
    %v55 = vld [vmem:[%s0 + $0x64] sm:$0xf]
    %v56 = vld [vmem:[%s0 + $0x68] sm:$0xf]
    %v57 = vld [vmem:[%s0 + $0x6c] sm:$0xf]
    %v58 = vld [vmem:[%s0 + $0x70] sm:$0xf]
    %v59 = vld [vmem:[%s0 + $0x74] sm:$0xf]
    %v60 = vld [vmem:[%s0 + $0x78] sm:$0xf]
    %v61 = vld [vmem:[%s0 + $0x7c] sm:$0xf]
    %v62 = vld [vmem:[%s0 + $0x80] sm:$0xf]
    %v63 = vld [vmem:[%s0 + $0x84] sm:$0xf]
    %v64 = vld [vmem:[%s0 + $0x88] sm:$0xf]
    %v65 = vld [vmem:[%s0 + $0x8c] sm:$0xf]
    %v66 = vld [vmem:[%s0 + $0x90] sm:$0xf]
    %v67 = vld [vmem:[%s0 + $0x94] sm:$0xf]
    %v68 = vld [vmem:[%s0 + $0x98] sm:$0xf]
    %v69 = vld [vmem:[%s0 + $0x9c] sm:$0xf]
    %v70 = vld [vmem:[%s0 + $0xa0] sm:$0xf]
    %v71 = vld [vmem:[%s0 + $0xa4] sm:$0xf]
    %v72 = vld [vmem:[%s0 + $0xa8] sm:$0xf]
    %v73 = vld [vmem:[%s0 + $0xac] sm:$0xf]
    %v74 = vld [vmem:[%s0 + $0xb0] sm:$0xf]
    %v75 = vld [vmem:[%s0 + $0xb4] sm:$0xf]
    %v76 = vld [vmem:[%s0 + $0xb8] sm:$0xf]
    %v77 = vld [vmem:[%s0 + $0xbc] sm:$0xf]
    %v78 = vld [vmem:[%s0 + $0xc0] sm:$0xf]
    %v79 = vld [vmem:[%s0 + $0xc4] sm:$0xf]
    %v80 = vld [vmem:[%s0 + $0xc8] sm:$0xf]
    %v81 = vld [vmem:[%s0 + $0xcc] sm:$0xf]
    %v82 = vld [vmem:[%s0 + $0xd0] sm:$0xf]
    %v83 = vld [vmem:[%s0 + $0xd4] sm:$0xf]
    %v84 = vld [vmem:[%s0 + $0xd8] sm:$0xf]
    %v85 = vld [vmem:[%s0 + $0xdc] sm:$0xf]
    %v86 = vld [vmem:[%s0 + $0xe0] sm:$0xf]
    %v87 = vld [vmem:[%s0 + $0xe4] sm:$0xf]
    %v88 = vld [vmem:[%s0 + $0xe8] sm:$0xf]
    %v89 = vld [vmem:[%s0 + $0xec] sm:$0x7]
    %vm90 = vcmask 60416
    %91 = vst.msk [vmem:[#allocation2] sm:$0xf] %vm90, %v30
    %92 = vst.msk [vmem:[#allocation2 + $0x4] sm:$0xf] %vm90, %v31
    %93 = vst.msk [vmem:[#allocation2 + $0x8] sm:$0xf] %vm90, %v32
    %94 = vst.msk [vmem:[#allocation2 + $0xc] sm:$0xf] %vm90, %v33
    %95 = vst.msk [vmem:[#allocation2 + $0x10] sm:$0xf] %vm90, %v34
    %96 = vst.msk [vmem:[#allocation2 + $0x14] sm:$0xf] %vm90, %v35
    %97 = vst.msk [vmem:[#allocation2 + $0x18] sm:$0xf] %vm90, %v36
    %98 = vst.msk [vmem:[#allocation2 + $0x1c] sm:$0xf] %vm90, %v37
    %99 = vst.msk [vmem:[#allocation2 + $0x20] sm:$0xf] %vm90, %v38
    %100 = vst.msk [vmem:[#allocation2 + $0x24] sm:$0xf] %vm90, %v39
    %101 = vst.msk [vmem:[#allocation2 + $0x28] sm:$0xf] %vm90, %v40
    %102 = vst.msk [vmem:[#allocation2 + $0x2c] sm:$0xf] %vm90, %v41
    %103 = vst.msk [vmem:[#allocation2 + $0x30] sm:$0xf] %vm90, %v42
    %104 = vst.msk [vmem:[#allocation2 + $0x34] sm:$0xf] %vm90, %v43
    %105 = vst.msk [vmem:[#allocation2 + $0x38] sm:$0xf] %vm90, %v44
    %106 = vst.msk [vmem:[#allocation2 + $0x3c] sm:$0xf] %vm90, %v45
    %107 = vst.msk [vmem:[#allocation2 + $0x40] sm:$0xf] %vm90, %v46
    %108 = vst.msk [vmem:[#allocation2 + $0x44] sm:$0xf] %vm90, %v47
    %109 = vst.msk [vmem:[#allocation2 + $0x48] sm:$0xf] %vm90, %v48
    %110 = vst.msk [vmem:[#allocation2 + $0x4c] sm:$0xf] %vm90, %v49
    %111 = vst.msk [vmem:[#allocation2 + $0x50] sm:$0xf] %vm90, %v50
    %112 = vst.msk [vmem:[#allocation2 + $0x54] sm:$0xf] %vm90, %v51
    %113 = vst.msk [vmem:[#allocation2 + $0x58] sm:$0xf] %vm90, %v52
    %114 = vst.msk [vmem:[#allocation2 + $0x5c] sm:$0xf] %vm90, %v53
    %115 = vst.msk [vmem:[#allocation2 + $0x60] sm:$0xf] %vm90, %v54
    %116 = vst.msk [vmem:[#allocation2 + $0x64] sm:$0xf] %vm90, %v55
    %117 = vst.msk [vmem:[#allocation2 + $0x68] sm:$0xf] %vm90, %v56
    %118 = vst.msk [vmem:[#allocation2 + $0x6c] sm:$0xf] %vm90, %v57
    %119 = vst.msk [vmem:[#allocation2 + $0x70] sm:$0xf] %vm90, %v58
    %120 = vst.msk [vmem:[#allocation2 + $0x74] sm:$0xf] %vm90, %v59
    %121 = vst.msk [vmem:[#allocation2 + $0x78] sm:$0xf] %vm90, %v60
    %122 = vst.msk [vmem:[#allocation2 + $0x7c] sm:$0xf] %vm90, %v61
    %123 = vst.msk [vmem:[#allocation2 + $0x80] sm:$0xf] %vm90, %v62
    %124 = vst.msk [vmem:[#allocation2 + $0x84] sm:$0xf] %vm90, %v63
    %125 = vst.msk [vmem:[#allocation2 + $0x88] sm:$0xf] %vm90, %v64
    %126 = vst.msk [vmem:[#allocation2 + $0x8c] sm:$0xf] %vm90, %v65
    %127 = vst.msk [vmem:[#allocation2 + $0x90] sm:$0xf] %vm90, %v66
    %128 = vst.msk [vmem:[#allocation2 + $0x94] sm:$0xf] %vm90, %v67
    %129 = vst.msk [vmem:[#allocation2 + $0x98] sm:$0xf] %vm90, %v68
    %130 = vst.msk [vmem:[#allocation2 + $0x9c] sm:$0xf] %vm90, %v69
    %131 = vst.msk [vmem:[#allocation2 + $0xa0] sm:$0xf] %vm90, %v70
    %132 = vst.msk [vmem:[#allocation2 + $0xa4] sm:$0xf] %vm90, %v71
    %133 = vst.msk [vmem:[#allocation2 + $0xa8] sm:$0xf] %vm90, %v72
    %134 = vst.msk [vmem:[#allocation2 + $0xac] sm:$0xf] %vm90, %v73
    %135 = vst.msk [vmem:[#allocation2 + $0xb0] sm:$0xf] %vm90, %v74
    %136 = vst.msk [vmem:[#allocation2 + $0xb4] sm:$0xf] %vm90, %v75
    %137 = vst.msk [vmem:[#allocation2 + $0xb8] sm:$0xf] %vm90, %v76
    %138 = vst.msk [vmem:[#allocation2 + $0xbc] sm:$0xf] %vm90, %v77
    %139 = vst.msk [vmem:[#allocation2 + $0xc0] sm:$0xf] %vm90, %v78
    %140 = vst.msk [vmem:[#allocation2 + $0xc4] sm:$0xf] %vm90, %v79
    %141 = vst.msk [vmem:[#allocation2 + $0xc8] sm:$0xf] %vm90, %v80
    %142 = vst.msk [vmem:[#allocation2 + $0xcc] sm:$0xf] %vm90, %v81
    %143 = vst.msk [vmem:[#allocation2 + $0xd0] sm:$0xf] %vm90, %v82
    %144 = vst.msk [vmem:[#allocation2 + $0xd4] sm:$0xf] %vm90, %v83
    %145 = vst.msk [vmem:[#allocation2 + $0xd8] sm:$0xf] %vm90, %v84
    %146 = vst.msk [vmem:[#allocation2 + $0xdc] sm:$0xf] %vm90, %v85
    %147 = vst.msk [vmem:[#allocation2 + $0xe0] sm:$0xf] %vm90, %v86
    %148 = vst.msk [vmem:[#allocation2 + $0xe4] sm:$0xf] %vm90, %v87
    %149 = vst.msk [vmem:[#allocation2 + $0xe8] sm:$0xf] %vm90, %v88
    %vm150 = vcmask 59392
    %151 = vst.msk [vmem:[#allocation2 + $0xec] sm:$0x7] %vm150, %v89
    %v152 = vld [vmem:[%s0] sm:$0xf]
    %v153 = vld [vmem:[%s0 + $0x4] sm:$0xf]
    %v154 = vld [vmem:[%s0 + $0x8] sm:$0xf]
    %v155 = vld [vmem:[%s0 + $0xc] sm:$0xf]
    %v156 = vld [vmem:[%s0 + $0x10] sm:$0xf]
    %v157 = vld [vmem:[%s0 + $0x14] sm:$0xf]
    %v158 = vld [vmem:[%s0 + $0x18] sm:$0xf]
    %v159 = vld [vmem:[%s0 + $0x1c] sm:$0xf]
    %v160 = vld [vmem:[%s0 + $0x20] sm:$0xf]
    %v161 = vld [vmem:[%s0 + $0x24] sm:$0xf]
    %v162 = vld [vmem:[%s0 + $0x28] sm:$0xf]
    %v163 = vld [vmem:[%s0 + $0x2c] sm:$0xf]
    %v164 = vld [vmem:[%s0 + $0x30] sm:$0xf]
    %v165 = vld [vmem:[%s0 + $0x34] sm:$0xf]
    %v166 = vld [vmem:[%s0 + $0x38] sm:$0xf]
    %v167 = vld [vmem:[%s0 + $0x3c] sm:$0xf]
    %v168 = vld [vmem:[%s0 + $0x40] sm:$0xf]
    %v169 = vld [vmem:[%s0 + $0x44] sm:$0xf]
    %v170 = vld [vmem:[%s0 + $0x48] sm:$0xf]
    %v171 = vld [vmem:[%s0 + $0x4c] sm:$0xf]
    %v172 = vld [vmem:[%s0 + $0x50] sm:$0xf]
    %v173 = vld [vmem:[%s0 + $0x54] sm:$0xf]
    %v174 = vld [vmem:[%s0 + $0x58] sm:$0xf]
    %v175 = vld [vmem:[%s0 + $0x5c] sm:$0xf]
    %v176 = vld [vmem:[%s0 + $0x60] sm:$0xf]
    %v177 = vld [vmem:[%s0 + $0x64] sm:$0xf]
    %v178 = vld [vmem:[%s0 + $0x68] sm:$0xf]
    %v179 = vld [vmem:[%s0 + $0x6c] sm:$0xf]
    %v180 = vld [vmem:[%s0 + $0x70] sm:$0xf]
    %v181 = vld [vmem:[%s0 + $0x74] sm:$0xf]
    %v182 = vld [vmem:[%s0 + $0x78] sm:$0xf]
    %v183 = vld [vmem:[%s0 + $0x7c] sm:$0xf]
    %v184 = vld [vmem:[%s0 + $0x80] sm:$0xf]
    %v185 = vld [vmem:[%s0 + $0x84] sm:$0xf]
    %v186 = vld [vmem:[%s0 + $0x88] sm:$0xf]
    %v187 = vld [vmem:[%s0 + $0x8c] sm:$0xf]
    %v188 = vld [vmem:[%s0 + $0x90] sm:$0xf]
    %v189 = vld [vmem:[%s0 + $0x94] sm:$0xf]
    %v190 = vld [vmem:[%s0 + $0x98] sm:$0xf]
    %v191 = vld [vmem:[%s0 + $0x9c] sm:$0xf]
    %v192 = vld [vmem:[%s0 + $0xa0] sm:$0xf]
    %v193 = vld [vmem:[%s0 + $0xa4] sm:$0xf]
    %v194 = vld [vmem:[%s0 + $0xa8] sm:$0xf]
    %v195 = vld [vmem:[%s0 + $0xac] sm:$0xf]
    %v196 = vld [vmem:[%s0 + $0xb0] sm:$0xf]
    %v197 = vld [vmem:[%s0 + $0xb4] sm:$0xf]
    %v198 = vld [vmem:[%s0 + $0xb8] sm:$0xf]
    %v199 = vld [vmem:[%s0 + $0xbc] sm:$0xf]
    %v200 = vld [vmem:[%s0 + $0xc0] sm:$0xf]
    %v201 = vld [vmem:[%s0 + $0xc4] sm:$0xf]
    %v202 = vld [vmem:[%s0 + $0xc8] sm:$0xf]
    %v203 = vld [vmem:[%s0 + $0xcc] sm:$0xf]
    %v204 = vld [vmem:[%s0 + $0xd0] sm:$0xf]
    %v205 = vld [vmem:[%s0 + $0xd4] sm:$0xf]
    %v206 = vld [vmem:[%s0 + $0xd8] sm:$0xf]
    %v207 = vld [vmem:[%s0 + $0xdc] sm:$0xf]
    %v208 = vld [vmem:[%s0 + $0xe0] sm:$0xf]
    %v209 = vld [vmem:[%s0 + $0xe4] sm:$0xf]
    %v210 = vld [vmem:[%s0 + $0xe8] sm:$0xf]
    %v211 = vld [vmem:[%s0 + $0xec] sm:$0xf]
    %vm212 = vsmask.f32 3328
    %vm213 = vsmask.f32 7440
    %vm214 = vmor %vm212, %vm213
    %v216 = vshrl.u32 %v152, 16
    %v218 = vrot.slane %v216, 4
    %v219 = vshll.u32 %v152, 16
    %v221 = vrot.slane %v219, 5
    %v222 = vor.u32 %v218, %v221
    %v223 = vrot.slane %v222, 4
    %v225 = vshll.u32 %v153, 16
    %v227 = vrot.slane %v225, 5
    %v228 = vsel %vm214, %v223, %v227
    %v229 = vshrl.u32 %v153, 16
    %v231 = vrot.slane %v229, 4
    %v232 = vor.u32 %v231, %v227
    %v233 = vrot.slane %v232, 4
    %v235 = vshll.u32 %v154, 16
    %v237 = vrot.slane %v235, 5
    %v238 = vsel %vm214, %v233, %v237
    %v239 = vshrl.u32 %v154, 16
    %v241 = vrot.slane %v239, 4
    %v242 = vor.u32 %v241, %v237
    %v243 = vrot.slane %v242, 4
    %v245 = vshll.u32 %v155, 16
    %v247 = vrot.slane %v245, 5
    %v248 = vsel %vm214, %v243, %v247
    %v249 = vshrl.u32 %v155, 16
    %v251 = vrot.slane %v249, 4
    %v252 = vor.u32 %v251, %v247
    %v253 = vrot.slane %v252, 4
    %v255 = vshll.u32 %v156, 16
    %v257 = vrot.slane %v255, 5
    %v258 = vsel %vm214, %v253, %v257
    %v259 = vshrl.u32 %v156, 16
    %v261 = vrot.slane %v259, 4
    %v262 = vor.u32 %v261, %v257
    %v263 = vrot.slane %v262, 4
    %v265 = vshll.u32 %v157, 16
    %v267 = vrot.slane %v265, 5
    %v268 = vsel %vm214, %v263, %v267
    %v269 = vshrl.u32 %v157, 16
    %v271 = vrot.slane %v269, 4
    %v272 = vor.u32 %v271, %v267
    %v273 = vrot.slane %v272, 4
    %v275 = vshll.u32 %v158, 16
    %v277 = vrot.slane %v275, 5
    %v278 = vsel %vm214, %v273, %v277
    %v279 = vshrl.u32 %v158, 16
    %v281 = vrot.slane %v279, 4
    %v282 = vor.u32 %v281, %v277
    %v283 = vrot.slane %v282, 4
    %v285 = vshll.u32 %v159, 16
    %v287 = vrot.slane %v285, 5
    %v288 = vsel %vm214, %v283, %v287
    %v289 = vshrl.u32 %v159, 16
    %v291 = vrot.slane %v289, 4
    %v292 = vor.u32 %v291, %v287
    %v293 = vrot.slane %v292, 4
    %v295 = vshll.u32 %v160, 16
    %v297 = vrot.slane %v295, 5
    %v298 = vsel %vm214, %v293, %v297
    %v299 = vshrl.u32 %v160, 16
    %v301 = vrot.slane %v299, 4
    %v302 = vor.u32 %v301, %v297
    %v303 = vrot.slane %v302, 4
    %v305 = vshll.u32 %v161, 16
    %v307 = vrot.slane %v305, 5
    %v308 = vsel %vm214, %v303, %v307
    %v309 = vshrl.u32 %v161, 16
    %v311 = vrot.slane %v309, 4
    %v312 = vor.u32 %v311, %v307
    %v313 = vrot.slane %v312, 4
    %v315 = vshll.u32 %v162, 16
    %v317 = vrot.slane %v315, 5
    %v318 = vsel %vm214, %v313, %v317
    %v319 = vshrl.u32 %v162, 16
    %v321 = vrot.slane %v319, 4
    %v322 = vor.u32 %v321, %v317
    %v323 = vrot.slane %v322, 4
    %v325 = vshll.u32 %v163, 16
    %v327 = vrot.slane %v325, 5
    %v328 = vsel %vm214, %v323, %v327
    %v329 = vshrl.u32 %v163, 16
    %v331 = vrot.slane %v329, 4
    %v332 = vor.u32 %v331, %v327
    %v333 = vrot.slane %v332, 4
    %v335 = vshll.u32 %v164, 16
    %v337 = vrot.slane %v335, 5
    %v338 = vsel %vm214, %v333, %v337
    %v339 = vshrl.u32 %v164, 16
    %v341 = vrot.slane %v339, 4
    %v342 = vor.u32 %v341, %v337
    %v343 = vrot.slane %v342, 4
    %v345 = vshll.u32 %v165, 16
    %v347 = vrot.slane %v345, 5
    %v348 = vsel %vm214, %v343, %v347
    %v349 = vshrl.u32 %v165, 16
    %v351 = vrot.slane %v349, 4
    %v352 = vor.u32 %v351, %v347
    %v353 = vrot.slane %v352, 4
    %v355 = vshll.u32 %v166, 16
    %v357 = vrot.slane %v355, 5
    %v358 = vsel %vm214, %v353, %v357
    %v359 = vshrl.u32 %v166, 16
    %v361 = vrot.slane %v359, 4
    %v362 = vor.u32 %v361, %v357
    %v363 = vrot.slane %v362, 4
    %v365 = vshll.u32 %v167, 16
    %v367 = vrot.slane %v365, 5
    %v368 = vsel %vm214, %v363, %v367
    %v369 = vshrl.u32 %v167, 16
    %v371 = vrot.slane %v369, 4
    %v372 = vor.u32 %v371, %v367
    %v373 = vrot.slane %v372, 4
    %v375 = vshll.u32 %v168, 16
    %v377 = vrot.slane %v375, 5
    %v378 = vsel %vm214, %v373, %v377
    %v379 = vshrl.u32 %v168, 16
    %v381 = vrot.slane %v379, 4
    %v382 = vor.u32 %v381, %v377
    %v383 = vrot.slane %v382, 4
    %v385 = vshll.u32 %v169, 16
    %v387 = vrot.slane %v385, 5
    %v388 = vsel %vm214, %v383, %v387
    %v389 = vshrl.u32 %v169, 16
    %v391 = vrot.slane %v389, 4
    %v392 = vor.u32 %v391, %v387
    %v393 = vrot.slane %v392, 4
    %v395 = vshll.u32 %v170, 16
    %v397 = vrot.slane %v395, 5
    %v398 = vsel %vm214, %v393, %v397
    %v399 = vshrl.u32 %v170, 16
    %v401 = vrot.slane %v399, 4
    %v402 = vor.u32 %v401, %v397
    %v403 = vrot.slane %v402, 4
    %v405 = vshll.u32 %v171, 16
    %v407 = vrot.slane %v405, 5
    %v408 = vsel %vm214, %v403, %v407
    %v409 = vshrl.u32 %v171, 16
    %v411 = vrot.slane %v409, 4
    %v412 = vor.u32 %v411, %v407
    %v413 = vrot.slane %v412, 4
    %v415 = vshll.u32 %v172, 16
    %v417 = vrot.slane %v415, 5
    %v418 = vsel %vm214, %v413, %v417
    %v419 = vshrl.u32 %v172, 16
    %v421 = vrot.slane %v419, 4
    %v422 = vor.u32 %v421, %v417
    %v423 = vrot.slane %v422, 4
    %v425 = vshll.u32 %v173, 16
    %v427 = vrot.slane %v425, 5
    %v428 = vsel %vm214, %v423, %v427
    %v429 = vshrl.u32 %v173, 16
    %v431 = vrot.slane %v429, 4
    %v432 = vor.u32 %v431, %v427
    %v433 = vrot.slane %v432, 4
    %v435 = vshll.u32 %v174, 16
    %v437 = vrot.slane %v435, 5
    %v438 = vsel %vm214, %v433, %v437
    %v439 = vshrl.u32 %v174, 16
    %v441 = vrot.slane %v439, 4
    %v442 = vor.u32 %v441, %v437
    %v443 = vrot.slane %v442, 4
    %v445 = vshll.u32 %v175, 16
    %v447 = vrot.slane %v445, 5
    %v448 = vsel %vm214, %v443, %v447
    %v449 = vshrl.u32 %v175, 16
    %v451 = vrot.slane %v449, 4
    %v452 = vor.u32 %v451, %v447
    %v453 = vrot.slane %v452, 4
    %v455 = vshll.u32 %v176, 16
    %v457 = vrot.slane %v455, 5
    %v458 = vsel %vm214, %v453, %v457
    %v459 = vshrl.u32 %v176, 16
    %v461 = vrot.slane %v459, 4
    %v462 = vor.u32 %v461, %v457
    %v463 = vrot.slane %v462, 4
    %v465 = vshll.u32 %v177, 16
    %v467 = vrot.slane %v465, 5
    %v468 = vsel %vm214, %v463, %v467
    %v469 = vshrl.u32 %v177, 16
    %v471 = vrot.slane %v469, 4
    %v472 = vor.u32 %v471, %v467
    %v473 = vrot.slane %v472, 4
    %v475 = vshll.u32 %v178, 16
    %v477 = vrot.slane %v475, 5
    %v478 = vsel %vm214, %v473, %v477
    %v479 = vshrl.u32 %v178, 16
    %v481 = vrot.slane %v479, 4
    %v482 = vor.u32 %v481, %v477
    %v483 = vrot.slane %v482, 4
    %v485 = vshll.u32 %v179, 16
    %v487 = vrot.slane %v485, 5
    %v488 = vsel %vm214, %v483, %v487
    %v489 = vshrl.u32 %v179, 16
    %v491 = vrot.slane %v489, 4
    %v492 = vor.u32 %v491, %v487
    %v493 = vrot.slane %v492, 4
    %v495 = vshll.u32 %v180, 16
    %v497 = vrot.slane %v495, 5
    %v498 = vsel %vm214, %v493, %v497
    %v499 = vshrl.u32 %v180, 16
    %v501 = vrot.slane %v499, 4
    %v502 = vor.u32 %v501, %v497
    %v503 = vrot.slane %v502, 4
    %v505 = vshll.u32 %v181, 16
    %v507 = vrot.slane %v505, 5
    %v508 = vsel %vm214, %v503, %v507
    %v509 = vshrl.u32 %v181, 16
    %v511 = vrot.slane %v509, 4
    %v512 = vor.u32 %v511, %v507
    %v513 = vrot.slane %v512, 4
    %v515 = vshll.u32 %v182, 16
    %v517 = vrot.slane %v515, 5
    %v518 = vsel %vm214, %v513, %v517
    %v519 = vshrl.u32 %v182, 16
    %v521 = vrot.slane %v519, 4
    %v522 = vor.u32 %v521, %v517
    %v523 = vrot.slane %v522, 4
    %v525 = vshll.u32 %v183, 16
    %v527 = vrot.slane %v525, 5
    %v528 = vsel %vm214, %v523, %v527
    %v529 = vshrl.u32 %v183, 16
    %v531 = vrot.slane %v529, 4
    %v532 = vor.u32 %v531, %v527
    %v533 = vrot.slane %v532, 4
    %v535 = vshll.u32 %v184, 16
    %v537 = vrot.slane %v535, 5
    %v538 = vsel %vm214, %v533, %v537
    %v539 = vshrl.u32 %v184, 16
    %v541 = vrot.slane %v539, 4
    %v542 = vor.u32 %v541, %v537
    %v543 = vrot.slane %v542, 4
    %v545 = vshll.u32 %v185, 16
    %v547 = vrot.slane %v545, 5
    %v548 = vsel %vm214, %v543, %v547
    %v549 = vshrl.u32 %v185, 16
    %v551 = vrot.slane %v549, 4
    %v552 = vor.u32 %v551, %v547
    %v553 = vrot.slane %v552, 4
    %v555 = vshll.u32 %v186, 16
    %v557 = vrot.slane %v555, 5
    %v558 = vsel %vm214, %v553, %v557
    %v559 = vshrl.u32 %v186, 16
    %v561 = vrot.slane %v559, 4
    %v562 = vor.u32 %v561, %v557
    %v563 = vrot.slane %v562, 4
    %v565 = vshll.u32 %v187, 16
    %v567 = vrot.slane %v565, 5
    %v568 = vsel %vm214, %v563, %v567
    %v569 = vshrl.u32 %v187, 16
    %v571 = vrot.slane %v569, 4
    %v572 = vor.u32 %v571, %v567
    %v573 = vrot.slane %v572, 4
    %v575 = vshll.u32 %v188, 16
    %v577 = vrot.slane %v575, 5
    %v578 = vsel %vm214, %v573, %v577
    %v579 = vshrl.u32 %v188, 16
    %v581 = vrot.slane %v579, 4
    %v582 = vor.u32 %v581, %v577
    %v583 = vrot.slane %v582, 4
    %v585 = vshll.u32 %v189, 16
    %v587 = vrot.slane %v585, 5
    %v588 = vsel %vm214, %v583, %v587
    %v589 = vshrl.u32 %v189, 16
    %v591 = vrot.slane %v589, 4
    %v592 = vor.u32 %v591, %v587
    %v593 = vrot.slane %v592, 4
    %v595 = vshll.u32 %v190, 16
    %v597 = vrot.slane %v595, 5
    %v598 = vsel %vm214, %v593, %v597
    %v599 = vshrl.u32 %v190, 16
    %v601 = vrot.slane %v599, 4
    %v602 = vor.u32 %v601, %v597
    %v603 = vrot.slane %v602, 4
    %v605 = vshll.u32 %v191, 16
    %v607 = vrot.slane %v605, 5
    %v608 = vsel %vm214, %v603, %v607
    %v609 = vshrl.u32 %v191, 16
    %v611 = vrot.slane %v609, 4
    %v612 = vor.u32 %v611, %v607
    %v613 = vrot.slane %v612, 4
    %v615 = vshll.u32 %v192, 16
    %v617 = vrot.slane %v615, 5
    %v618 = vsel %vm214, %v613, %v617
    %v619 = vshrl.u32 %v192, 16
    %v621 = vrot.slane %v619, 4
    %v622 = vor.u32 %v621, %v617
    %v623 = vrot.slane %v622, 4
    %v625 = vshll.u32 %v193, 16
    %v627 = vrot.slane %v625, 5
    %v628 = vsel %vm214, %v623, %v627
    %v629 = vshrl.u32 %v193, 16
    %v631 = vrot.slane %v629, 4
    %v632 = vor.u32 %v631, %v627
    %v633 = vrot.slane %v632, 4
    %v635 = vshll.u32 %v194, 16
    %v637 = vrot.slane %v635, 5
    %v638 = vsel %vm214, %v633, %v637
    %v639 = vshrl.u32 %v194, 16
    %v641 = vrot.slane %v639, 4
    %v642 = vor.u32 %v641, %v637
    %v643 = vrot.slane %v642, 4
    %v645 = vshll.u32 %v195, 16
    %v647 = vrot.slane %v645, 5
    %v648 = vsel %vm214, %v643, %v647
    %v649 = vshrl.u32 %v195, 16
    %v651 = vrot.slane %v649, 4
    %v652 = vor.u32 %v651, %v647
    %v653 = vrot.slane %v652, 4
    %v655 = vshll.u32 %v196, 16
    %v657 = vrot.slane %v655, 5
    %v658 = vsel %vm214, %v653, %v657
    %v659 = vshrl.u32 %v196, 16
    %v661 = vrot.slane %v659, 4
    %v662 = vor.u32 %v661, %v657
    %v663 = vrot.slane %v662, 4
    %v665 = vshll.u32 %v197, 16
    %v667 = vrot.slane %v665, 5
    %v668 = vsel %vm214, %v663, %v667
    %v669 = vshrl.u32 %v197, 16
    %v671 = vrot.slane %v669, 4
    %v672 = vor.u32 %v671, %v667
    %v673 = vrot.slane %v672, 4
    %v675 = vshll.u32 %v198, 16
    %v677 = vrot.slane %v675, 5
    %v678 = vsel %vm214, %v673, %v677
    %v679 = vshrl.u32 %v198, 16
    %v681 = vrot.slane %v679, 4
    %v682 = vor.u32 %v681, %v677
    %v683 = vrot.slane %v682, 4
    %v685 = vshll.u32 %v199, 16
    %v687 = vrot.slane %v685, 5
    %v688 = vsel %vm214, %v683, %v687
    %v689 = vshrl.u32 %v199, 16
    %v691 = vrot.slane %v689, 4
    %v692 = vor.u32 %v691, %v687
    %v693 = vrot.slane %v692, 4
    %v695 = vshll.u32 %v200, 16
    %v697 = vrot.slane %v695, 5
    %v698 = vsel %vm214, %v693, %v697
    %v699 = vshrl.u32 %v200, 16
    %v701 = vrot.slane %v699, 4
    %v702 = vor.u32 %v701, %v697
    %v703 = vrot.slane %v702, 4
    %v705 = vshll.u32 %v201, 16
    %v707 = vrot.slane %v705, 5
    %v708 = vsel %vm214, %v703, %v707
    %v709 = vshrl.u32 %v201, 16
    %v711 = vrot.slane %v709, 4
    %v712 = vor.u32 %v711, %v707
    %v713 = vrot.slane %v712, 4
    %v715 = vshll.u32 %v202, 16
    %v717 = vrot.slane %v715, 5
    %v718 = vsel %vm214, %v713, %v717
    %v719 = vshrl.u32 %v202, 16
    %v721 = vrot.slane %v719, 4
    %v722 = vor.u32 %v721, %v717
    %v723 = vrot.slane %v722, 4
    %v725 = vshll.u32 %v203, 16
    %v727 = vrot.slane %v725, 5
    %v728 = vsel %vm214, %v723, %v727
    %v729 = vshrl.u32 %v203, 16
    %v731 = vrot.slane %v729, 4
    %v732 = vor.u32 %v731, %v727
    %v733 = vrot.slane %v732, 4
    %v735 = vshll.u32 %v204, 16
    %v737 = vrot.slane %v735, 5
    %v738 = vsel %vm214, %v733, %v737
    %v739 = vshrl.u32 %v204, 16
    %v741 = vrot.slane %v739, 4
    %v742 = vor.u32 %v741, %v737
    %v743 = vrot.slane %v742, 4
    %v745 = vshll.u32 %v205, 16
    %v747 = vrot.slane %v745, 5
    %v748 = vsel %vm214, %v743, %v747
    %v749 = vshrl.u32 %v205, 16
    %v751 = vrot.slane %v749, 4
    %v752 = vor.u32 %v751, %v747
    %v753 = vrot.slane %v752, 4
    %v755 = vshll.u32 %v206, 16
    %v757 = vrot.slane %v755, 5
    %v758 = vsel %vm214, %v753, %v757
    %v759 = vshrl.u32 %v206, 16
    %v761 = vrot.slane %v759, 4
    %v762 = vor.u32 %v761, %v757
    %v763 = vrot.slane %v762, 4
    %v765 = vshll.u32 %v207, 16
    %v767 = vrot.slane %v765, 5
    %v768 = vsel %vm214, %v763, %v767
    %v769 = vshrl.u32 %v207, 16
    %v771 = vrot.slane %v769, 4
    %v772 = vor.u32 %v771, %v767
    %v773 = vrot.slane %v772, 4
    %v775 = vshll.u32 %v208, 16
    %v777 = vrot.slane %v775, 5
    %v778 = vsel %vm214, %v773, %v777
    %v779 = vshrl.u32 %v208, 16
    %v781 = vrot.slane %v779, 4
    %v782 = vor.u32 %v781, %v777
    %v783 = vrot.slane %v782, 4
    %v785 = vshll.u32 %v209, 16
    %v787 = vrot.slane %v785, 5
    %v788 = vsel %vm214, %v783, %v787
    %v789 = vshrl.u32 %v209, 16
    %v791 = vrot.slane %v789, 4
    %v792 = vor.u32 %v791, %v787
    %v793 = vrot.slane %v792, 4
    %v795 = vshll.u32 %v210, 16
    %v797 = vrot.slane %v795, 5
    %v798 = vsel %vm214, %v793, %v797
    %v799 = vshrl.u32 %v210, 16
    %v801 = vrot.slane %v799, 4
    %v802 = vor.u32 %v801, %v797
    %v803 = vrot.slane %v802, 4
    %v805 = vshll.u32 %v211, 16
    %v807 = vrot.slane %v805, 5
    %v808 = vsel %vm214, %v803, %v807
    %v809 = vshrl.u32 %v211, 16
    %v811 = vrot.slane %v809, 4
    %v812 = vor.u32 %v811, %v807
    %v813 = vrot.slane %v812, 4
    %814 = vrot.lane.b32.xlu0 %v228, 8
    %v815 = vpop.permute.xlu0 %814
    %816 = vrot.lane.b32.xlu0 %v238, 8
    %v817 = vpop.permute.xlu0 %816
    %818 = vrot.lane.b32.xlu0 %v248, 8
    %v819 = vpop.permute.xlu0 %818
    %820 = vrot.lane.b32.xlu0 %v258, 8
    %v821 = vpop.permute.xlu0 %820
    %822 = vrot.lane.b32.xlu0 %v268, 8
    %v823 = vpop.permute.xlu0 %822
    %824 = vrot.lane.b32.xlu0 %v278, 8
    %v825 = vpop.permute.xlu0 %824
    %826 = vrot.lane.b32.xlu0 %v288, 8
    %v827 = vpop.permute.xlu0 %826
    %828 = vrot.lane.b32.xlu0 %v298, 8
    %v829 = vpop.permute.xlu0 %828
    %830 = vrot.lane.b32.xlu0 %v308, 8
    %v831 = vpop.permute.xlu0 %830
    %832 = vrot.lane.b32.xlu0 %v318, 8
    %v833 = vpop.permute.xlu0 %832
    %834 = vrot.lane.b32.xlu0 %v328, 8
    %v835 = vpop.permute.xlu0 %834
    %836 = vrot.lane.b32.xlu0 %v338, 8
    %v837 = vpop.permute.xlu0 %836
    %838 = vrot.lane.b32.xlu0 %v348, 8
    %v839 = vpop.permute.xlu0 %838
    %840 = vrot.lane.b32.xlu0 %v358, 8
    %v841 = vpop.permute.xlu0 %840
    %842 = vrot.lane.b32.xlu0 %v368, 8
    %v843 = vpop.permute.xlu0 %842
    %844 = vrot.lane.b32.xlu0 %v378, 8
    %v845 = vpop.permute.xlu0 %844
    %846 = vrot.lane.b32.xlu0 %v388, 8
    %v847 = vpop.permute.xlu0 %846
    %848 = vrot.lane.b32.xlu0 %v398, 8
    %v849 = vpop.permute.xlu0 %848
    %850 = vrot.lane.b32.xlu0 %v408, 8
    %v851 = vpop.permute.xlu0 %850
    %852 = vrot.lane.b32.xlu0 %v418, 8
    %v853 = vpop.permute.xlu0 %852
    %854 = vrot.lane.b32.xlu0 %v428, 8
    %v855 = vpop.permute.xlu0 %854
    %856 = vrot.lane.b32.xlu0 %v438, 8
    %v857 = vpop.permute.xlu0 %856
    %858 = vrot.lane.b32.xlu0 %v448, 8
    %v859 = vpop.permute.xlu0 %858
    %860 = vrot.lane.b32.xlu0 %v458, 8
    %v861 = vpop.permute.xlu0 %860
    %862 = vrot.lane.b32.xlu0 %v468, 8
    %v863 = vpop.permute.xlu0 %862
    %864 = vrot.lane.b32.xlu0 %v478, 8
    %v865 = vpop.permute.xlu0 %864
    %866 = vrot.lane.b32.xlu0 %v488, 8
    %v867 = vpop.permute.xlu0 %866
    %868 = vrot.lane.b32.xlu0 %v498, 8
    %v869 = vpop.permute.xlu0 %868
    %870 = vrot.lane.b32.xlu0 %v508, 8
    %v871 = vpop.permute.xlu0 %870
    %872 = vrot.lane.b32.xlu0 %v518, 8
    %v873 = vpop.permute.xlu0 %872
    %874 = vrot.lane.b32.xlu0 %v528, 8
    %v875 = vpop.permute.xlu0 %874
    %876 = vrot.lane.b32.xlu0 %v538, 8
    %v877 = vpop.permute.xlu0 %876
    %878 = vrot.lane.b32.xlu0 %v548, 8
    %v879 = vpop.permute.xlu0 %878
    %880 = vrot.lane.b32.xlu0 %v558, 8
    %v881 = vpop.permute.xlu0 %880
    %882 = vrot.lane.b32.xlu0 %v568, 8
    %v883 = vpop.permute.xlu0 %882
    %884 = vrot.lane.b32.xlu0 %v578, 8
    %v885 = vpop.permute.xlu0 %884
    %886 = vrot.lane.b32.xlu0 %v588, 8
    %v887 = vpop.permute.xlu0 %886
    %888 = vrot.lane.b32.xlu0 %v598, 8
    %v889 = vpop.permute.xlu0 %888
    %890 = vrot.lane.b32.xlu0 %v608, 8
    %v891 = vpop.permute.xlu0 %890
    %892 = vrot.lane.b32.xlu0 %v618, 8
    %v893 = vpop.permute.xlu0 %892
    %894 = vrot.lane.b32.xlu0 %v628, 8
    %v895 = vpop.permute.xlu0 %894
    %896 = vrot.lane.b32.xlu0 %v638, 8
    %v897 = vpop.permute.xlu0 %896
    %898 = vrot.lane.b32.xlu0 %v648, 8
    %v899 = vpop.permute.xlu0 %898
    %900 = vrot.lane.b32.xlu0 %v658, 8
    %v901 = vpop.permute.xlu0 %900
    %902 = vrot.lane.b32.xlu0 %v668, 8
    %v903 = vpop.permute.xlu0 %902
    %904 = vrot.lane.b32.xlu0 %v678, 8
    %v905 = vpop.permute.xlu0 %904
    %906 = vrot.lane.b32.xlu0 %v688, 8
    %v907 = vpop.permute.xlu0 %906
    %908 = vrot.lane.b32.xlu0 %v698, 8
    %v909 = vpop.permute.xlu0 %908
    %910 = vrot.lane.b32.xlu0 %v708, 8
    %v911 = vpop.permute.xlu0 %910
    %912 = vrot.lane.b32.xlu0 %v718, 8
    %v913 = vpop.permute.xlu0 %912
    %914 = vrot.lane.b32.xlu0 %v728, 8
    %v915 = vpop.permute.xlu0 %914
    %916 = vrot.lane.b32.xlu0 %v738, 8
    %v917 = vpop.permute.xlu0 %916
    %918 = vrot.lane.b32.xlu0 %v748, 8
    %v919 = vpop.permute.xlu0 %918
    %920 = vrot.lane.b32.xlu0 %v758, 8
    %v921 = vpop.permute.xlu0 %920
    %922 = vrot.lane.b32.xlu0 %v768, 8
    %v923 = vpop.permute.xlu0 %922
    %924 = vrot.lane.b32.xlu0 %v778, 8
    %v925 = vpop.permute.xlu0 %924
    %926 = vrot.lane.b32.xlu0 %v788, 8
    %v927 = vpop.permute.xlu0 %926
    %928 = vrot.lane.b32.xlu0 %v798, 8
    %v929 = vpop.permute.xlu0 %928
    %930 = vrot.lane.b32.xlu0 %v808, 8
    %v931 = vpop.permute.xlu0 %930
    %932 = vrot.lane.b32.xlu0 %v813, 8
    %v933 = vpop.permute.xlu0 %932
    %vm994 = vcmask 126016
    %995 = vst.msk [vmem:[#allocation2] sm:$0xf] %vm994, %v815
    %996 = vst.msk [vmem:[#allocation2 + $0x4] sm:$0xf] %vm994, %v817
    %997 = vst.msk [vmem:[#allocation2 + $0x8] sm:$0xf] %vm994, %v819
    %998 = vst.msk [vmem:[#allocation2 + $0xc] sm:$0xf] %vm994, %v821
    %999 = vst.msk [vmem:[#allocation2 + $0x10] sm:$0xf] %vm994, %v823
    %1000 = vst.msk [vmem:[#allocation2 + $0x14] sm:$0xf] %vm994, %v825
    %1001 = vst.msk [vmem:[#allocation2 + $0x18] sm:$0xf] %vm994, %v827
    %1002 = vst.msk [vmem:[#allocation2 + $0x1c] sm:$0xf] %vm994, %v829
    %1003 = vst.msk [vmem:[#allocation2 + $0x20] sm:$0xf] %vm994, %v831
    %1004 = vst.msk [vmem:[#allocation2 + $0x24] sm:$0xf] %vm994, %v833
    %1005 = vst.msk [vmem:[#allocation2 + $0x28] sm:$0xf] %vm994, %v835
    %1006 = vst.msk [vmem:[#allocation2 + $0x2c] sm:$0xf] %vm994, %v837
    %1007 = vst.msk [vmem:[#allocation2 + $0x30] sm:$0xf] %vm994, %v839
    %1008 = vst.msk [vmem:[#allocation2 + $0x34] sm:$0xf] %vm994, %v841
    %1009 = vst.msk [vmem:[#allocation2 + $0x38] sm:$0xf] %vm994, %v843
    %1010 = vst.msk [vmem:[#allocation2 + $0x3c] sm:$0xf] %vm994, %v845
    %1011 = vst.msk [vmem:[#allocation2 + $0x40] sm:$0xf] %vm994, %v847
    %1012 = vst.msk [vmem:[#allocation2 + $0x44] sm:$0xf] %vm994, %v849
    %1013 = vst.msk [vmem:[#allocation2 + $0x48] sm:$0xf] %vm994, %v851
    %1014 = vst.msk [vmem:[#allocation2 + $0x4c] sm:$0xf] %vm994, %v853
    %1015 = vst.msk [vmem:[#allocation2 + $0x50] sm:$0xf] %vm994, %v855
    %1016 = vst.msk [vmem:[#allocation2 + $0x54] sm:$0xf] %vm994, %v857
    %1017 = vst.msk [vmem:[#allocation2 + $0x58] sm:$0xf] %vm994, %v859
    %1018 = vst.msk [vmem:[#allocation2 + $0x5c] sm:$0xf] %vm994, %v861
    %1019 = vst.msk [vmem:[#allocation2 + $0x60] sm:$0xf] %vm994, %v863
    %1020 = vst.msk [vmem:[#allocation2 + $0x64] sm:$0xf] %vm994, %v865
    %1021 = vst.msk [vmem:[#allocation2 + $0x68] sm:$0xf] %vm994, %v867
    %1022 = vst.msk [vmem:[#allocation2 + $0x6c] sm:$0xf] %vm994, %v869
    %1023 = vst.msk [vmem:[#allocation2 + $0x70] sm:$0xf] %vm994, %v871
    %1024 = vst.msk [vmem:[#allocation2 + $0x74] sm:$0xf] %vm994, %v873
    %1025 = vst.msk [vmem:[#allocation2 + $0x78] sm:$0xf] %vm994, %v875
    %1026 = vst.msk [vmem:[#allocation2 + $0x7c] sm:$0xf] %vm994, %v877
    %1027 = vst.msk [vmem:[#allocation2 + $0x80] sm:$0xf] %vm994, %v879
    %1028 = vst.msk [vmem:[#allocation2 + $0x84] sm:$0xf] %vm994, %v881
    %1029 = vst.msk [vmem:[#allocation2 + $0x88] sm:$0xf] %vm994, %v883
    %1030 = vst.msk [vmem:[#allocation2 + $0x8c] sm:$0xf] %vm994, %v885
    %1031 = vst.msk [vmem:[#allocation2 + $0x90] sm:$0xf] %vm994, %v887
    %1032 = vst.msk [vmem:[#allocation2 + $0x94] sm:$0xf] %vm994, %v889
    %1033 = vst.msk [vmem:[#allocation2 + $0x98] sm:$0xf] %vm994, %v891
    %1034 = vst.msk [vmem:[#allocation2 + $0x9c] sm:$0xf] %vm994, %v893
    %1035 = vst.msk [vmem:[#allocation2 + $0xa0] sm:$0xf] %vm994, %v895
    %1036 = vst.msk [vmem:[#allocation2 + $0xa4] sm:$0xf] %vm994, %v897
    %1037 = vst.msk [vmem:[#allocation2 + $0xa8] sm:$0xf] %vm994, %v899
    %1038 = vst.msk [vmem:[#allocation2 + $0xac] sm:$0xf] %vm994, %v901
    %1039 = vst.msk [vmem:[#allocation2 + $0xb0] sm:$0xf] %vm994, %v903
    %1040 = vst.msk [vmem:[#allocation2 + $0xb4] sm:$0xf] %vm994, %v905
    %1041 = vst.msk [vmem:[#allocation2 + $0xb8] sm:$0xf] %vm994, %v907
    %1042 = vst.msk [vmem:[#allocation2 + $0xbc] sm:$0xf] %vm994, %v909
    %1043 = vst.msk [vmem:[#allocation2 + $0xc0] sm:$0xf] %vm994, %v911
    %1044 = vst.msk [vmem:[#allocation2 + $0xc4] sm:$0xf] %vm994, %v913
    %1045 = vst.msk [vmem:[#allocation2 + $0xc8] sm:$0xf] %vm994, %v915
    %1046 = vst.msk [vmem:[#allocation2 + $0xcc] sm:$0xf] %vm994, %v917
    %1047 = vst.msk [vmem:[#allocation2 + $0xd0] sm:$0xf] %vm994, %v919
    %1048 = vst.msk [vmem:[#allocation2 + $0xd4] sm:$0xf] %vm994, %v921
    %1049 = vst.msk [vmem:[#allocation2 + $0xd8] sm:$0xf] %vm994, %v923
    %1050 = vst.msk [vmem:[#allocation2 + $0xdc] sm:$0xf] %vm994, %v925
    %1051 = vst.msk [vmem:[#allocation2 + $0xe0] sm:$0xf] %vm994, %v927
    %1052 = vst.msk [vmem:[#allocation2 + $0xe4] sm:$0xf] %vm994, %v929
    %1053 = vst.msk [vmem:[#allocation2 + $0xe8] sm:$0xf] %vm994, %v931
    %vm1054 = vcmask 124992
    %1055 = vst.msk [vmem:[#allocation2 + $0xec] sm:$0x7] %vm1054, %v933
    %v1056 = vld [vmem:[%s0] sm:$0xe]
    %v1057 = vld [vmem:[%s0 + $0x4] sm:$0xf]
    %v1058 = vld [vmem:[%s0 + $0x8] sm:$0xf]
    %v1059 = vld [vmem:[%s0 + $0xc] sm:$0xf]
    %v1060 = vld [vmem:[%s0 + $0x10] sm:$0xf]
    %v1061 = vld [vmem:[%s0 + $0x14] sm:$0xf]
    %v1062 = vld [vmem:[%s0 + $0x18] sm:$0xf]
    %v1063 = vld [vmem:[%s0 + $0x1c] sm:$0xf]
    %v1064 = vld [vmem:[%s0 + $0x20] sm:$0xf]
    %v1065 = vld [vmem:[%s0 + $0x24] sm:$0xf]
    %v1066 = vld [vmem:[%s0 + $0x28] sm:$0xf]
    %v1067 = vld [vmem:[%s0 + $0x2c] sm:$0xf]
    %v1068 = vld [vmem:[%s0 + $0x30] sm:$0xf]
    %v1069 = vld [vmem:[%s0 + $0x34] sm:$0xf]
    %v1070 = vld [vmem:[%s0 + $0x38] sm:$0xf]
    %v1071 = vld [vmem:[%s0 + $0x3c] sm:$0xf]
    %v1072 = vld [vmem:[%s0 + $0x40] sm:$0xf]
    %v1073 = vld [vmem:[%s0 + $0x44] sm:$0xf]
    %v1074 = vld [vmem:[%s0 + $0x48] sm:$0xf]
    %v1075 = vld [vmem:[%s0 + $0x4c] sm:$0xf]
    %v1076 = vld [vmem:[%s0 + $0x50] sm:$0xf]
    %v1077 = vld [vmem:[%s0 + $0x54] sm:$0xf]
    %v1078 = vld [vmem:[%s0 + $0x58] sm:$0xf]
    %v1079 = vld [vmem:[%s0 + $0x5c] sm:$0xf]
    %v1080 = vld [vmem:[%s0 + $0x60] sm:$0xf]
    %v1081 = vld [vmem:[%s0 + $0x64] sm:$0xf]
    %v1082 = vld [vmem:[%s0 + $0x68] sm:$0xf]
    %v1083 = vld [vmem:[%s0 + $0x6c] sm:$0xf]
    %v1084 = vld [vmem:[%s0 + $0x70] sm:$0xf]
    %v1085 = vld [vmem:[%s0 + $0x74] sm:$0xf]
    %v1086 = vld [vmem:[%s0 + $0x78] sm:$0xf]
    %v1087 = vld [vmem:[%s0 + $0x7c] sm:$0xf]
    %v1088 = vld [vmem:[%s0 + $0x80] sm:$0xf]
    %v1089 = vld [vmem:[%s0 + $0x84] sm:$0xf]
    %v1090 = vld [vmem:[%s0 + $0x88] sm:$0xf]
    %v1091 = vld [vmem:[%s0 + $0x8c] sm:$0xf]
    %v1092 = vld [vmem:[%s0 + $0x90] sm:$0xf]
    %v1093 = vld [vmem:[%s0 + $0x94] sm:$0xf]
    %v1094 = vld [vmem:[%s0 + $0x98] sm:$0xf]
    %v1095 = vld [vmem:[%s0 + $0x9c] sm:$0xf]
    %v1096 = vld [vmem:[%s0 + $0xa0] sm:$0xf]
    %v1097 = vld [vmem:[%s0 + $0xa4] sm:$0xf]
    %v1098 = vld [vmem:[%s0 + $0xa8] sm:$0xf]
    %v1099 = vld [vmem:[%s0 + $0xac] sm:$0xf]
    %v1100 = vld [vmem:[%s0 + $0xb0] sm:$0xf]
    %v1101 = vld [vmem:[%s0 + $0xb4] sm:$0xf]
    %v1102 = vld [vmem:[%s0 + $0xb8] sm:$0xf]
    %v1103 = vld [vmem:[%s0 + $0xbc] sm:$0xf]
    %v1104 = vld [vmem:[%s0 + $0xc0] sm:$0xf]
    %v1105 = vld [vmem:[%s0 + $0xc4] sm:$0xf]
    %v1106 = vld [vmem:[%s0 + $0xc8] sm:$0xf]
    %v1107 = vld [vmem:[%s0 + $0xcc] sm:$0xf]
    %v1108 = vld [vmem:[%s0 + $0xd0] sm:$0xf]
    %v1109 = vld [vmem:[%s0 + $0xd4] sm:$0xf]
    %v1110 = vld [vmem:[%s0 + $0xd8] sm:$0xf]
    %v1111 = vld [vmem:[%s0 + $0xdc] sm:$0xf]
    %v1112 = vld [vmem:[%s0 + $0xe0] sm:$0xf]
    %v1113 = vld [vmem:[%s0 + $0xe4] sm:$0xf]
    %v1114 = vld [vmem:[%s0 + $0xe8] sm:$0xf]
    %v1115 = vld [vmem:[%s0 + $0xec] sm:$0xf]
    %vm1176 = vcmask 1042432
    %vm1177 = vcmask 1046532
    %vm1178 = vmor %vm1176, %vm1177
    %v1179 = vrot.slane %v1056, 5
    %v1180 = vrot.slane %v1179, 4
    %v1181 = vrot.slane %v1057, 5
    %v1182 = vsel %vm1178, %v1180, %v1181
    %v1183 = vrot.slane %v1181, 4
    %v1184 = vrot.slane %v1058, 5
    %v1185 = vsel %vm1178, %v1183, %v1184
    %v1186 = vrot.slane %v1184, 4
    %v1187 = vrot.slane %v1059, 5
    %v1188 = vsel %vm1178, %v1186, %v1187
    %v1189 = vrot.slane %v1187, 4
    %v1190 = vrot.slane %v1060, 5
    %v1191 = vsel %vm1178, %v1189, %v1190
    %v1192 = vrot.slane %v1190, 4
    %v1193 = vrot.slane %v1061, 5
    %v1194 = vsel %vm1178, %v1192, %v1193
    %v1195 = vrot.slane %v1193, 4
    %v1196 = vrot.slane %v1062, 5
    %v1197 = vsel %vm1178, %v1195, %v1196
    %v1198 = vrot.slane %v1196, 4
    %v1199 = vrot.slane %v1063, 5
    %v1200 = vsel %vm1178, %v1198, %v1199
    %v1201 = vrot.slane %v1199, 4
    %v1202 = vrot.slane %v1064, 5
    %v1203 = vsel %vm1178, %v1201, %v1202
    %v1204 = vrot.slane %v1202, 4
    %v1205 = vrot.slane %v1065, 5
    %v1206 = vsel %vm1178, %v1204, %v1205
    %v1207 = vrot.slane %v1205, 4
    %v1208 = vrot.slane %v1066, 5
    %v1209 = vsel %vm1178, %v1207, %v1208
    %v1210 = vrot.slane %v1208, 4
    %v1211 = vrot.slane %v1067, 5
    %v1212 = vsel %vm1178, %v1210, %v1211
    %v1213 = vrot.slane %v1211, 4
    %v1214 = vrot.slane %v1068, 5
    %v1215 = vsel %vm1178, %v1213, %v1214
    %v1216 = vrot.slane %v1214, 4
    %v1217 = vrot.slane %v1069, 5
    %v1218 = vsel %vm1178, %v1216, %v1217
    %v1219 = vrot.slane %v1217, 4
    %v1220 = vrot.slane %v1070, 5
    %v1221 = vsel %vm1178, %v1219, %v1220
    %v1222 = vrot.slane %v1220, 4
    %v1223 = vrot.slane %v1071, 5
    %v1224 = vsel %vm1178, %v1222, %v1223
    %v1225 = vrot.slane %v1223, 4
    %v1226 = vrot.slane %v1072, 5
    %v1227 = vsel %vm1178, %v1225, %v1226
    %v1228 = vrot.slane %v1226, 4
    %v1229 = vrot.slane %v1073, 5
    %v1230 = vsel %vm1178, %v1228, %v1229
    %v1231 = vrot.slane %v1229, 4
    %v1232 = vrot.slane %v1074, 5
    %v1233 = vsel %vm1178, %v1231, %v1232
    %v1234 = vrot.slane %v1232, 4
    %v1235 = vrot.slane %v1075, 5
    %v1236 = vsel %vm1178, %v1234, %v1235
    %v1237 = vrot.slane %v1235, 4
    %v1238 = vrot.slane %v1076, 5
    %v1239 = vsel %vm1178, %v1237, %v1238
    %v1240 = vrot.slane %v1238, 4
    %v1241 = vrot.slane %v1077, 5
    %v1242 = vsel %vm1178, %v1240, %v1241
    %v1243 = vrot.slane %v1241, 4
    %v1244 = vrot.slane %v1078, 5
    %v1245 = vsel %vm1178, %v1243, %v1244
    %v1246 = vrot.slane %v1244, 4
    %v1247 = vrot.slane %v1079, 5
    %v1248 = vsel %vm1178, %v1246, %v1247
    %v1249 = vrot.slane %v1247, 4
    %v1250 = vrot.slane %v1080, 5
    %v1251 = vsel %vm1178, %v1249, %v1250
    %v1252 = vrot.slane %v1250, 4
    %v1253 = vrot.slane %v1081, 5
    %v1254 = vsel %vm1178, %v1252, %v1253
    %v1255 = vrot.slane %v1253, 4
    %v1256 = vrot.slane %v1082, 5
    %v1257 = vsel %vm1178, %v1255, %v1256
    %v1258 = vrot.slane %v1256, 4
    %v1259 = vrot.slane %v1083, 5
    %v1260 = vsel %vm1178, %v1258, %v1259
    %v1261 = vrot.slane %v1259, 4
    %v1262 = vrot.slane %v1084, 5
    %v1263 = vsel %vm1178, %v1261, %v1262
    %v1264 = vrot.slane %v1262, 4
    %v1265 = vrot.slane %v1085, 5
    %v1266 = vsel %vm1178, %v1264, %v1265
    %v1267 = vrot.slane %v1265, 4
    %v1268 = vrot.slane %v1086, 5
    %v1269 = vsel %vm1178, %v1267, %v1268
    %v1270 = vrot.slane %v1268, 4
    %v1271 = vrot.slane %v1087, 5
    %v1272 = vsel %vm1178, %v1270, %v1271
    %v1273 = vrot.slane %v1271, 4
    %v1274 = vrot.slane %v1088, 5
    %v1275 = vsel %vm1178, %v1273, %v1274
    %v1276 = vrot.slane %v1274, 4
    %v1277 = vrot.slane %v1089, 5
    %v1278 = vsel %vm1178, %v1276, %v1277
    %v1279 = vrot.slane %v1277, 4
    %v1280 = vrot.slane %v1090, 5
    %v1281 = vsel %vm1178, %v1279, %v1280
    %v1282 = vrot.slane %v1280, 4
    %v1283 = vrot.slane %v1091, 5
    %v1284 = vsel %vm1178, %v1282, %v1283
    %v1285 = vrot.slane %v1283, 4
    %v1286 = vrot.slane %v1092, 5
    %v1287 = vsel %vm1178, %v1285, %v1286
    %v1288 = vrot.slane %v1286, 4
    %v1289 = vrot.slane %v1093, 5
    %v1290 = vsel %vm1178, %v1288, %v1289
    %v1291 = vrot.slane %v1289, 4
    %v1292 = vrot.slane %v1094, 5
    %v1293 = vsel %vm1178, %v1291, %v1292
    %v1294 = vrot.slane %v1292, 4
    %v1295 = vrot.slane %v1095, 5
    %v1296 = vsel %vm1178, %v1294, %v1295
    %v1297 = vrot.slane %v1295, 4
    %v1298 = vrot.slane %v1096, 5
    %v1299 = vsel %vm1178, %v1297, %v1298
    %v1300 = vrot.slane %v1298, 4
    %v1301 = vrot.slane %v1097, 5
    %v1302 = vsel %vm1178, %v1300, %v1301
    %v1303 = vrot.slane %v1301, 4
    %v1304 = vrot.slane %v1098, 5
    %v1305 = vsel %vm1178, %v1303, %v1304
    %v1306 = vrot.slane %v1304, 4
    %v1307 = vrot.slane %v1099, 5
    %v1308 = vsel %vm1178, %v1306, %v1307
    %v1309 = vrot.slane %v1307, 4
    %v1310 = vrot.slane %v1100, 5
    %v1311 = vsel %vm1178, %v1309, %v1310
    %v1312 = vrot.slane %v1310, 4
    %v1313 = vrot.slane %v1101, 5
    %v1314 = vsel %vm1178, %v1312, %v1313
    %v1315 = vrot.slane %v1313, 4
    %v1316 = vrot.slane %v1102, 5
    %v1317 = vsel %vm1178, %v1315, %v1316
    %v1318 = vrot.slane %v1316, 4
    %v1319 = vrot.slane %v1103, 5
    %v1320 = vsel %vm1178, %v1318, %v1319
    %v1321 = vrot.slane %v1319, 4
    %v1322 = vrot.slane %v1104, 5
    %v1323 = vsel %vm1178, %v1321, %v1322
    %v1324 = vrot.slane %v1322, 4
    %v1325 = vrot.slane %v1105, 5
    %v1326 = vsel %vm1178, %v1324, %v1325
    %v1327 = vrot.slane %v1325, 4
    %v1328 = vrot.slane %v1106, 5
    %v1329 = vsel %vm1178, %v1327, %v1328
    %v1330 = vrot.slane %v1328, 4
    %v1331 = vrot.slane %v1107, 5
    %v1332 = vsel %vm1178, %v1330, %v1331
    %v1333 = vrot.slane %v1331, 4
    %v1334 = vrot.slane %v1108, 5
    %v1335 = vsel %vm1178, %v1333, %v1334
    %v1336 = vrot.slane %v1334, 4
    %v1337 = vrot.slane %v1109, 5
    %v1338 = vsel %vm1178, %v1336, %v1337
    %v1339 = vrot.slane %v1337, 4
    %v1340 = vrot.slane %v1110, 5
    %v1341 = vsel %vm1178, %v1339, %v1340
    %v1342 = vrot.slane %v1340, 4
    %v1343 = vrot.slane %v1111, 5
    %v1344 = vsel %vm1178, %v1342, %v1343
    %v1345 = vrot.slane %v1343, 4
    %v1346 = vrot.slane %v1112, 5
    %v1347 = vsel %vm1178, %v1345, %v1346
    %v1348 = vrot.slane %v1346, 4
    %v1349 = vrot.slane %v1113, 5
    %v1350 = vsel %vm1178, %v1348, %v1349
    %v1351 = vrot.slane %v1349, 4
    %v1352 = vrot.slane %v1114, 5
    %v1353 = vsel %vm1178, %v1351, %v1352
    %v1354 = vrot.slane %v1352, 4
    %v1355 = vrot.slane %v1115, 5
    %v1356 = vsel %vm1178, %v1354, %v1355
    %v1357 = vrot.slane %v1355, 4
    %1358 = vrot.lane.b32.xlu0 %v1182, 16
    %v1359 = vpop.permute.xlu0 %1358
    %1360 = vrot.lane.b32.xlu0 %v1185, 16
    %v1361 = vpop.permute.xlu0 %1360
    %1362 = vrot.lane.b32.xlu0 %v1188, 16
    %v1363 = vpop.permute.xlu0 %1362
    %1364 = vrot.lane.b32.xlu0 %v1191, 16
    %v1365 = vpop.permute.xlu0 %1364
    %1366 = vrot.lane.b32.xlu0 %v1194, 16
    %v1367 = vpop.permute.xlu0 %1366
    %1368 = vrot.lane.b32.xlu0 %v1197, 16
    %v1369 = vpop.permute.xlu0 %1368
    %1370 = vrot.lane.b32.xlu0 %v1200, 16
    %v1371 = vpop.permute.xlu0 %1370
    %1372 = vrot.lane.b32.xlu0 %v1203, 16
    %v1373 = vpop.permute.xlu0 %1372
    %1374 = vrot.lane.b32.xlu0 %v1206, 16
    %v1375 = vpop.permute.xlu0 %1374
    %1376 = vrot.lane.b32.xlu0 %v1209, 16
    %v1377 = vpop.permute.xlu0 %1376
    %1378 = vrot.lane.b32.xlu0 %v1212, 16
    %v1379 = vpop.permute.xlu0 %1378
    %1380 = vrot.lane.b32.xlu0 %v1215, 16
    %v1381 = vpop.permute.xlu0 %1380
    %1382 = vrot.lane.b32.xlu0 %v1218, 16
    %v1383 = vpop.permute.xlu0 %1382
    %1384 = vrot.lane.b32.xlu0 %v1221, 16
    %v1385 = vpop.permute.xlu0 %1384
    %1386 = vrot.lane.b32.xlu0 %v1224, 16
    %v1387 = vpop.permute.xlu0 %1386
    %1388 = vrot.lane.b32.xlu0 %v1227, 16
    %v1389 = vpop.permute.xlu0 %1388
    %1390 = vrot.lane.b32.xlu0 %v1230, 16
    %v1391 = vpop.permute.xlu0 %1390
    %1392 = vrot.lane.b32.xlu0 %v1233, 16
    %v1393 = vpop.permute.xlu0 %1392
    %1394 = vrot.lane.b32.xlu0 %v1236, 16
    %v1395 = vpop.permute.xlu0 %1394
    %1396 = vrot.lane.b32.xlu0 %v1239, 16
    %v1397 = vpop.permute.xlu0 %1396
    %1398 = vrot.lane.b32.xlu0 %v1242, 16
    %v1399 = vpop.permute.xlu0 %1398
    %1400 = vrot.lane.b32.xlu0 %v1245, 16
    %v1401 = vpop.permute.xlu0 %1400
    %1402 = vrot.lane.b32.xlu0 %v1248, 16
    %v1403 = vpop.permute.xlu0 %1402
    %1404 = vrot.lane.b32.xlu0 %v1251, 16
    %v1405 = vpop.permute.xlu0 %1404
    %1406 = vrot.lane.b32.xlu0 %v1254, 16
    %v1407 = vpop.permute.xlu0 %1406
    %1408 = vrot.lane.b32.xlu0 %v1257, 16
    %v1409 = vpop.permute.xlu0 %1408
    %1410 = vrot.lane.b32.xlu0 %v1260, 16
    %v1411 = vpop.permute.xlu0 %1410
    %1412 = vrot.lane.b32.xlu0 %v1263, 16
    %v1413 = vpop.permute.xlu0 %1412
    %1414 = vrot.lane.b32.xlu0 %v1266, 16
    %v1415 = vpop.permute.xlu0 %1414
    %1416 = vrot.lane.b32.xlu0 %v1269, 16
    %v1417 = vpop.permute.xlu0 %1416
    %1418 = vrot.lane.b32.xlu0 %v1272, 16
    %v1419 = vpop.permute.xlu0 %1418
    %1420 = vrot.lane.b32.xlu0 %v1275, 16
    %v1421 = vpop.permute.xlu0 %1420
    %1422 = vrot.lane.b32.xlu0 %v1278, 16
    %v1423 = vpop.permute.xlu0 %1422
    %1424 = vrot.lane.b32.xlu0 %v1281, 16
    %v1425 = vpop.permute.xlu0 %1424
    %1426 = vrot.lane.b32.xlu0 %v1284, 16
    %v1427 = vpop.permute.xlu0 %1426
    %1428 = vrot.lane.b32.xlu0 %v1287, 16
    %v1429 = vpop.permute.xlu0 %1428
    %1430 = vrot.lane.b32.xlu0 %v1290, 16
    %v1431 = vpop.permute.xlu0 %1430
    %1432 = vrot.lane.b32.xlu0 %v1293, 16
    %v1433 = vpop.permute.xlu0 %1432
    %1434 = vrot.lane.b32.xlu0 %v1296, 16
    %v1435 = vpop.permute.xlu0 %1434
    %1436 = vrot.lane.b32.xlu0 %v1299, 16
    %v1437 = vpop.permute.xlu0 %1436
    %1438 = vrot.lane.b32.xlu0 %v1302, 16
    %v1439 = vpop.permute.xlu0 %1438
    %1440 = vrot.lane.b32.xlu0 %v1305, 16
    %v1441 = vpop.permute.xlu0 %1440
    %1442 = vrot.lane.b32.xlu0 %v1308, 16
    %v1443 = vpop.permute.xlu0 %1442
    %1444 = vrot.lane.b32.xlu0 %v1311, 16
    %v1445 = vpop.permute.xlu0 %1444
    %1446 = vrot.lane.b32.xlu0 %v1314, 16
    %v1447 = vpop.permute.xlu0 %1446
    %1448 = vrot.lane.b32.xlu0 %v1317, 16
    %v1449 = vpop.permute.xlu0 %1448
    %1450 = vrot.lane.b32.xlu0 %v1320, 16
    %v1451 = vpop.permute.xlu0 %1450
    %1452 = vrot.lane.b32.xlu0 %v1323, 16
    %v1453 = vpop.permute.xlu0 %1452
    %1454 = vrot.lane.b32.xlu0 %v1326, 16
    %v1455 = vpop.permute.xlu0 %1454
    %1456 = vrot.lane.b32.xlu0 %v1329, 16
    %v1457 = vpop.permute.xlu0 %1456
    %1458 = vrot.lane.b32.xlu0 %v1332, 16
    %v1459 = vpop.permute.xlu0 %1458
    %1460 = vrot.lane.b32.xlu0 %v1335, 16
    %v1461 = vpop.permute.xlu0 %1460
    %1462 = vrot.lane.b32.xlu0 %v1338, 16
    %v1463 = vpop.permute.xlu0 %1462
    %1464 = vrot.lane.b32.xlu0 %v1341, 16
    %v1465 = vpop.permute.xlu0 %1464
    %1466 = vrot.lane.b32.xlu0 %v1344, 16
    %v1467 = vpop.permute.xlu0 %1466
    %1468 = vrot.lane.b32.xlu0 %v1347, 16
    %v1469 = vpop.permute.xlu0 %1468
    %1470 = vrot.lane.b32.xlu0 %v1350, 16
    %v1471 = vpop.permute.xlu0 %1470
    %1472 = vrot.lane.b32.xlu0 %v1353, 16
    %v1473 = vpop.permute.xlu0 %1472
    %1474 = vrot.lane.b32.xlu0 %v1356, 16
    %v1475 = vpop.permute.xlu0 %1474
    %1476 = vrot.lane.b32.xlu0 %v1357, 16
    %v1477 = vpop.permute.xlu0 %1476
    %vm1538 = vcmask 191616
    %1539 = vst.msk [vmem:[#allocation2] sm:$0xf] %vm1538, %v1359
    %1540 = vst.msk [vmem:[#allocation2 + $0x4] sm:$0xf] %vm1538, %v1361
    %1541 = vst.msk [vmem:[#allocation2 + $0x8] sm:$0xf] %vm1538, %v1363
    %1542 = vst.msk [vmem:[#allocation2 + $0xc] sm:$0xf] %vm1538, %v1365
    %1543 = vst.msk [vmem:[#allocation2 + $0x10] sm:$0xf] %vm1538, %v1367
    %1544 = vst.msk [vmem:[#allocation2 + $0x14] sm:$0xf] %vm1538, %v1369
    %1545 = vst.msk [vmem:[#allocation2 + $0x18] sm:$0xf] %vm1538, %v1371
    %1546 = vst.msk [vmem:[#allocation2 + $0x1c] sm:$0xf] %vm1538, %v1373
    %1547 = vst.msk [vmem:[#allocation2 + $0x20] sm:$0xf] %vm1538, %v1375
    %1548 = vst.msk [vmem:[#allocation2 + $0x24] sm:$0xf] %vm1538, %v1377
    %1549 = vst.msk [vmem:[#allocation2 + $0x28] sm:$0xf] %vm1538, %v1379
    %1550 = vst.msk [vmem:[#allocation2 + $0x2c] sm:$0xf] %vm1538, %v1381
    %1551 = vst.msk [vmem:[#allocation2 + $0x30] sm:$0xf] %vm1538, %v1383
    %1552 = vst.msk [vmem:[#allocation2 + $0x34] sm:$0xf] %vm1538, %v1385
    %1553 = vst.msk [vmem:[#allocation2 + $0x38] sm:$0xf] %vm1538, %v1387
    %1554 = vst.msk [vmem:[#allocation2 + $0x3c] sm:$0xf] %vm1538, %v1389
    %1555 = vst.msk [vmem:[#allocation2 + $0x40] sm:$0xf] %vm1538, %v1391
    %1556 = vst.msk [vmem:[#allocation2 + $0x44] sm:$0xf] %vm1538, %v1393
    %1557 = vst.msk [vmem:[#allocation2 + $0x48] sm:$0xf] %vm1538, %v1395
    %1558 = vst.msk [vmem:[#allocation2 + $0x4c] sm:$0xf] %vm1538, %v1397
    %1559 = vst.msk [vmem:[#allocation2 + $0x50] sm:$0xf] %vm1538, %v1399
    %1560 = vst.msk [vmem:[#allocation2 + $0x54] sm:$0xf] %vm1538, %v1401
    %1561 = vst.msk [vmem:[#allocation2 + $0x58] sm:$0xf] %vm1538, %v1403
    %1562 = vst.msk [vmem:[#allocation2 + $0x5c] sm:$0xf] %vm1538, %v1405
    %1563 = vst.msk [vmem:[#allocation2 + $0x60] sm:$0xf] %vm1538, %v1407
    %1564 = vst.msk [vmem:[#allocation2 + $0x64] sm:$0xf] %vm1538, %v1409
    %1565 = vst.msk [vmem:[#allocation2 + $0x68] sm:$0xf] %vm1538, %v1411
    %1566 = vst.msk [vmem:[#allocation2 + $0x6c] sm:$0xf] %vm1538, %v1413
    %1567 = vst.msk [vmem:[#allocation2 + $0x70] sm:$0xf] %vm1538, %v1415
    %1568 = vst.msk [vmem:[#allocation2 + $0x74] sm:$0xf] %vm1538, %v1417
    %1569 = vst.msk [vmem:[#allocation2 + $0x78] sm:$0xf] %vm1538, %v1419
    %1570 = vst.msk [vmem:[#allocation2 + $0x7c] sm:$0xf] %vm1538, %v1421
    %1571 = vst.msk [vmem:[#allocation2 + $0x80] sm:$0xf] %vm1538, %v1423
    %1572 = vst.msk [vmem:[#allocation2 + $0x84] sm:$0xf] %vm1538, %v1425
    %1573 = vst.msk [vmem:[#allocation2 + $0x88] sm:$0xf] %vm1538, %v1427
    %1574 = vst.msk [vmem:[#allocation2 + $0x8c] sm:$0xf] %vm1538, %v1429
    %1575 = vst.msk [vmem:[#allocation2 + $0x90] sm:$0xf] %vm1538, %v1431
    %1576 = vst.msk [vmem:[#allocation2 + $0x94] sm:$0xf] %vm1538, %v1433
    %1577 = vst.msk [vmem:[#allocation2 + $0x98] sm:$0xf] %vm1538, %v1435
    %1578 = vst.msk [vmem:[#allocation2 + $0x9c] sm:$0xf] %vm1538, %v1437
    %1579 = vst.msk [vmem:[#allocation2 + $0xa0] sm:$0xf] %vm1538, %v1439
    %1580 = vst.msk [vmem:[#allocation2 + $0xa4] sm:$0xf] %vm1538, %v1441
    %1581 = vst.msk [vmem:[#allocation2 + $0xa8] sm:$0xf] %vm1538, %v1443
    %1582 = vst.msk [vmem:[#allocation2 + $0xac] sm:$0xf] %vm1538, %v1445
    %1583 = vst.msk [vmem:[#allocation2 + $0xb0] sm:$0xf] %vm1538, %v1447
    %1584 = vst.msk [vmem:[#allocation2 + $0xb4] sm:$0xf] %vm1538, %v1449
    %1585 = vst.msk [vmem:[#allocation2 + $0xb8] sm:$0xf] %vm1538, %v1451
    %1586 = vst.msk [vmem:[#allocation2 + $0xbc] sm:$0xf] %vm1538, %v1453
    %1587 = vst.msk [vmem:[#allocation2 + $0xc0] sm:$0xf] %vm1538, %v1455
    %1588 = vst.msk [vmem:[#allocation2 + $0xc4] sm:$0xf] %vm1538, %v1457
    %1589 = vst.msk [vmem:[#allocation2 + $0xc8] sm:$0xf] %vm1538, %v1459
    %1590 = vst.msk [vmem:[#allocation2 + $0xcc] sm:$0xf] %vm1538, %v1461
    %1591 = vst.msk [vmem:[#allocation2 + $0xd0] sm:$0xf] %vm1538, %v1463
    %1592 = vst.msk [vmem:[#allocation2 + $0xd4] sm:$0xf] %vm1538, %v1465
    %1593 = vst.msk [vmem:[#allocation2 + $0xd8] sm:$0xf] %vm1538, %v1467
    %1594 = vst.msk [vmem:[#allocation2 + $0xdc] sm:$0xf] %vm1538, %v1469
    %1595 = vst.msk [vmem:[#allocation2 + $0xe0] sm:$0xf] %vm1538, %v1471
    %1596 = vst.msk [vmem:[#allocation2 + $0xe4] sm:$0xf] %vm1538, %v1473
    %1597 = vst.msk [vmem:[#allocation2 + $0xe8] sm:$0xf] %vm1538, %v1475
    %vm1598 = vcmask 190592
    %1599 = vst.msk [vmem:[#allocation2 + $0xec] sm:$0x7] %vm1598, %v1477
    %v1600 = vld [vmem:[%s0 + $0x8] sm:$0xf]
    %v1601 = vld [vmem:[%s0 + $0xc] sm:$0xf]
    %v1602 = vld [vmem:[%s0 + $0x10] sm:$0xf]
    %v1603 = vld [vmem:[%s0 + $0x14] sm:$0xf]
    %v1604 = vld [vmem:[%s0 + $0x18] sm:$0xf]
    %v1605 = vld [vmem:[%s0 + $0x1c] sm:$0xf]
    %v1606 = vld [vmem:[%s0 + $0x20] sm:$0xf]
    %v1607 = vld [vmem:[%s0 + $0x24] sm:$0xf]
    %v1608 = vld [vmem:[%s0 + $0x28] sm:$0xf]
    %v1609 = vld [vmem:[%s0 + $0x2c] sm:$0xf]
    %v1610 = vld [vmem:[%s0 + $0x30] sm:$0xf]
    %v1611 = vld [vmem:[%s0 + $0x34] sm:$0xf]
    %v1612 = vld [vmem:[%s0 + $0x38] sm:$0xf]
    %v1613 = vld [vmem:[%s0 + $0x3c] sm:$0xf]
    %v1614 = vld [vmem:[%s0 + $0x40] sm:$0xf]
    %v1615 = vld [vmem:[%s0 + $0x44] sm:$0xf]
    %v1616 = vld [vmem:[%s0 + $0x48] sm:$0xf]
    %v1617 = vld [vmem:[%s0 + $0x4c] sm:$0xf]
    %v1618 = vld [vmem:[%s0 + $0x50] sm:$0xf]
    %v1619 = vld [vmem:[%s0 + $0x54] sm:$0xf]
    %v1620 = vld [vmem:[%s0 + $0x58] sm:$0xf]
    %v1621 = vld [vmem:[%s0 + $0x5c] sm:$0xf]
    %v1622 = vld [vmem:[%s0 + $0x60] sm:$0xf]
    %v1623 = vld [vmem:[%s0 + $0x64] sm:$0xf]
    %v1624 = vld [vmem:[%s0 + $0x68] sm:$0xf]
    %v1625 = vld [vmem:[%s0 + $0x6c] sm:$0xf]
    %v1626 = vld [vmem:[%s0 + $0x70] sm:$0xf]
    %v1627 = vld [vmem:[%s0 + $0x74] sm:$0xf]
    %v1628 = vld [vmem:[%s0 + $0x78] sm:$0xf]
    %v1629 = vld [vmem:[%s0 + $0x7c] sm:$0xf]
    %v1630 = vld [vmem:[%s0 + $0x80] sm:$0xf]
    %v1631 = vld [vmem:[%s0 + $0x84] sm:$0xf]
    %v1632 = vld [vmem:[%s0 + $0x88] sm:$0xf]
    %v1633 = vld [vmem:[%s0 + $0x8c] sm:$0xf]
    %v1634 = vld [vmem:[%s0 + $0x90] sm:$0xf]
    %v1635 = vld [vmem:[%s0 + $0x94] sm:$0xf]
    %v1636 = vld [vmem:[%s0 + $0x98] sm:$0xf]
    %v1637 = vld [vmem:[%s0 + $0x9c] sm:$0xf]
    %v1638 = vld [vmem:[%s0 + $0xa0] sm:$0xf]
    %v1639 = vld [vmem:[%s0 + $0xa4] sm:$0xf]
    %v1640 = vld [vmem:[%s0 + $0xa8] sm:$0xf]
    %v1641 = vld [vmem:[%s0 + $0xac] sm:$0xf]
    %v1642 = vld [vmem:[%s0 + $0xb0] sm:$0xf]
    %v1643 = vld [vmem:[%s0 + $0xb4] sm:$0xf]
    %v1644 = vld [vmem:[%s0 + $0xb8] sm:$0xf]
    %v1645 = vld [vmem:[%s0 + $0xbc] sm:$0xf]
    %v1646 = vld [vmem:[%s0 + $0xc0] sm:$0xf]
    %v1647 = vld [vmem:[%s0 + $0xc4] sm:$0xf]
    %v1648 = vld [vmem:[%s0 + $0xc8] sm:$0xf]
    %v1649 = vld [vmem:[%s0 + $0xcc] sm:$0xf]
    %v1650 = vld [vmem:[%s0 + $0xd0] sm:$0xf]
    %v1651 = vld [vmem:[%s0 + $0xd4] sm:$0xf]
    %v1652 = vld [vmem:[%s0 + $0xd8] sm:$0xf]
    %v1653 = vld [vmem:[%s0 + $0xdc] sm:$0xf]
    %v1654 = vld [vmem:[%s0 + $0xe0] sm:$0xf]
    %v1655 = vld [vmem:[%s0 + $0xe4] sm:$0xf]
    %v1656 = vld [vmem:[%s0 + $0xe8] sm:$0xf]
    %v1657 = vld [vmem:[%s0 + $0xec] sm:$0xf]
    %v1658 = vld [vmem:[%s0 + $0xf0] sm:$0xf]
    %v1659 = vld [vmem:[%s0 + $0xf4] sm:$0x7]
    %1720 = vrot.lane.b32.xlu0 %v1600, 24
    %v1721 = vpop.permute.xlu0 %1720
    %1722 = vrot.lane.b32.xlu0 %v1601, 24
    %v1723 = vpop.permute.xlu0 %1722
    %1724 = vrot.lane.b32.xlu0 %v1602, 24
    %v1725 = vpop.permute.xlu0 %1724
    %1726 = vrot.lane.b32.xlu0 %v1603, 24
    %v1727 = vpop.permute.xlu0 %1726
    %1728 = vrot.lane.b32.xlu0 %v1604, 24
    %v1729 = vpop.permute.xlu0 %1728
    %1730 = vrot.lane.b32.xlu0 %v1605, 24
    %v1731 = vpop.permute.xlu0 %1730
    %1732 = vrot.lane.b32.xlu0 %v1606, 24
    %v1733 = vpop.permute.xlu0 %1732
    %1734 = vrot.lane.b32.xlu0 %v1607, 24
    %v1735 = vpop.permute.xlu0 %1734
    %1736 = vrot.lane.b32.xlu0 %v1608, 24
    %v1737 = vpop.permute.xlu0 %1736
    %1738 = vrot.lane.b32.xlu0 %v1609, 24
    %v1739 = vpop.permute.xlu0 %1738
    %1740 = vrot.lane.b32.xlu0 %v1610, 24
    %v1741 = vpop.permute.xlu0 %1740
    %1742 = vrot.lane.b32.xlu0 %v1611, 24
    %v1743 = vpop.permute.xlu0 %1742
    %1744 = vrot.lane.b32.xlu0 %v1612, 24
    %v1745 = vpop.permute.xlu0 %1744
    %1746 = vrot.lane.b32.xlu0 %v1613, 24
    %v1747 = vpop.permute.xlu0 %1746
    %1748 = vrot.lane.b32.xlu0 %v1614, 24
    %v1749 = vpop.permute.xlu0 %1748
    %1750 = vrot.lane.b32.xlu0 %v1615, 24
    %v1751 = vpop.permute.xlu0 %1750
    %1752 = vrot.lane.b32.xlu0 %v1616, 24
    %v1753 = vpop.permute.xlu0 %1752
    %1754 = vrot.lane.b32.xlu0 %v1617, 24
    %v1755 = vpop.permute.xlu0 %1754
    %1756 = vrot.lane.b32.xlu0 %v1618, 24
    %v1757 = vpop.permute.xlu0 %1756
    %1758 = vrot.lane.b32.xlu0 %v1619, 24
    %v1759 = vpop.permute.xlu0 %1758
    %1760 = vrot.lane.b32.xlu0 %v1620, 24
    %v1761 = vpop.permute.xlu0 %1760
    %1762 = vrot.lane.b32.xlu0 %v1621, 24
    %v1763 = vpop.permute.xlu0 %1762
    %1764 = vrot.lane.b32.xlu0 %v1622, 24
    %v1765 = vpop.permute.xlu0 %1764
    %1766 = vrot.lane.b32.xlu0 %v1623, 24
    %v1767 = vpop.permute.xlu0 %1766
    %1768 = vrot.lane.b32.xlu0 %v1624, 24
    %v1769 = vpop.permute.xlu0 %1768
    %1770 = vrot.lane.b32.xlu0 %v1625, 24
    %v1771 = vpop.permute.xlu0 %1770
    %1772 = vrot.lane.b32.xlu0 %v1626, 24
    %v1773 = vpop.permute.xlu0 %1772
    %1774 = vrot.lane.b32.xlu0 %v1627, 24
    %v1775 = vpop.permute.xlu0 %1774
    %1776 = vrot.lane.b32.xlu0 %v1628, 24
    %v1777 = vpop.permute.xlu0 %1776
    %1778 = vrot.lane.b32.xlu0 %v1629, 24
    %v1779 = vpop.permute.xlu0 %1778
    %1780 = vrot.lane.b32.xlu0 %v1630, 24
    %v1781 = vpop.permute.xlu0 %1780
    %1782 = vrot.lane.b32.xlu0 %v1631, 24
    %v1783 = vpop.permute.xlu0 %1782
    %1784 = vrot.lane.b32.xlu0 %v1632, 24
    %v1785 = vpop.permute.xlu0 %1784
    %1786 = vrot.lane.b32.xlu0 %v1633, 24
    %v1787 = vpop.permute.xlu0 %1786
    %1788 = vrot.lane.b32.xlu0 %v1634, 24
    %v1789 = vpop.permute.xlu0 %1788
    %1790 = vrot.lane.b32.xlu0 %v1635, 24
    %v1791 = vpop.permute.xlu0 %1790
    %1792 = vrot.lane.b32.xlu0 %v1636, 24
    %v1793 = vpop.permute.xlu0 %1792
    %1794 = vrot.lane.b32.xlu0 %v1637, 24
    %v1795 = vpop.permute.xlu0 %1794
    %1796 = vrot.lane.b32.xlu0 %v1638, 24
    %v1797 = vpop.permute.xlu0 %1796
    %1798 = vrot.lane.b32.xlu0 %v1639, 24
    %v1799 = vpop.permute.xlu0 %1798
    %1800 = vrot.lane.b32.xlu0 %v1640, 24
    %v1801 = vpop.permute.xlu0 %1800
    %1802 = vrot.lane.b32.xlu0 %v1641, 24
    %v1803 = vpop.permute.xlu0 %1802
    %1804 = vrot.lane.b32.xlu0 %v1642, 24
    %v1805 = vpop.permute.xlu0 %1804
    %1806 = vrot.lane.b32.xlu0 %v1643, 24
    %v1807 = vpop.permute.xlu0 %1806
    %1808 = vrot.lane.b32.xlu0 %v1644, 24
    %v1809 = vpop.permute.xlu0 %1808
    %1810 = vrot.lane.b32.xlu0 %v1645, 24
    %v1811 = vpop.permute.xlu0 %1810
    %1812 = vrot.lane.b32.xlu0 %v1646, 24
    %v1813 = vpop.permute.xlu0 %1812
    %1814 = vrot.lane.b32.xlu0 %v1647, 24
    %v1815 = vpop.permute.xlu0 %1814
    %1816 = vrot.lane.b32.xlu0 %v1648, 24
    %v1817 = vpop.permute.xlu0 %1816
    %1818 = vrot.lane.b32.xlu0 %v1649, 24
    %v1819 = vpop.permute.xlu0 %1818
    %1820 = vrot.lane.b32.xlu0 %v1650, 24
    %v1821 = vpop.permute.xlu0 %1820
    %1822 = vrot.lane.b32.xlu0 %v1651, 24
    %v1823 = vpop.permute.xlu0 %1822
    %1824 = vrot.lane.b32.xlu0 %v1652, 24
    %v1825 = vpop.permute.xlu0 %1824
    %1826 = vrot.lane.b32.xlu0 %v1653, 24
    %v1827 = vpop.permute.xlu0 %1826
    %1828 = vrot.lane.b32.xlu0 %v1654, 24
    %v1829 = vpop.permute.xlu0 %1828
    %1830 = vrot.lane.b32.xlu0 %v1655, 24
    %v1831 = vpop.permute.xlu0 %1830
    %1832 = vrot.lane.b32.xlu0 %v1656, 24
    %v1833 = vpop.permute.xlu0 %1832
    %1834 = vrot.lane.b32.xlu0 %v1657, 24
    %v1835 = vpop.permute.xlu0 %1834
    %1836 = vrot.lane.b32.xlu0 %v1658, 24
    %v1837 = vpop.permute.xlu0 %1836
    %1838 = vrot.lane.b32.xlu0 %v1659, 24
    %v1839 = vpop.permute.xlu0 %1838
    %vm1900 = vcmask 257216
    %1901 = vst.msk [vmem:[#allocation2] sm:$0xf] %vm1900, %v1721
    %1902 = vst.msk [vmem:[#allocation2 + $0x4] sm:$0xf] %vm1900, %v1723
    %1903 = vst.msk [vmem:[#allocation2 + $0x8] sm:$0xf] %vm1900, %v1725
    %1904 = vst.msk [vmem:[#allocation2 + $0xc] sm:$0xf] %vm1900, %v1727
    %1905 = vst.msk [vmem:[#allocation2 + $0x10] sm:$0xf] %vm1900, %v1729
    %1906 = vst.msk [vmem:[#allocation2 + $0x14] sm:$0xf] %vm1900, %v1731
    %1907 = vst.msk [vmem:[#allocation2 + $0x18] sm:$0xf] %vm1900, %v1733
    %1908 = vst.msk [vmem:[#allocation2 + $0x1c] sm:$0xf] %vm1900, %v1735
    %1909 = vst.msk [vmem:[#allocation2 + $0x20] sm:$0xf] %vm1900, %v1737
    %1910 = vst.msk [vmem:[#allocation2 + $0x24] sm:$0xf] %vm1900, %v1739
    %1911 = vst.msk [vmem:[#allocation2 + $0x28] sm:$0xf] %vm1900, %v1741
    %1912 = vst.msk [vmem:[#allocation2 + $0x2c] sm:$0xf] %vm1900, %v1743
    %1913 = vst.msk [vmem:[#allocation2 + $0x30] sm:$0xf] %vm1900, %v1745
    %1914 = vst.msk [vmem:[#allocation2 + $0x34] sm:$0xf] %vm1900, %v1747
    %1915 = vst.msk [vmem:[#allocation2 + $0x38] sm:$0xf] %vm1900, %v1749
    %1916 = vst.msk [vmem:[#allocation2 + $0x3c] sm:$0xf] %vm1900, %v1751
    %1917 = vst.msk [vmem:[#allocation2 + $0x40] sm:$0xf] %vm1900, %v1753
    %1918 = vst.msk [vmem:[#allocation2 + $0x44] sm:$0xf] %vm1900, %v1755
    %1919 = vst.msk [vmem:[#allocation2 + $0x48] sm:$0xf] %vm1900, %v1757
    %1920 = vst.msk [vmem:[#allocation2 + $0x4c] sm:$0xf] %vm1900, %v1759
    %1921 = vst.msk [vmem:[#allocation2 + $0x50] sm:$0xf] %vm1900, %v1761
    %1922 = vst.msk [vmem:[#allocation2 + $0x54] sm:$0xf] %vm1900, %v1763
    %1923 = vst.msk [vmem:[#allocation2 + $0x58] sm:$0xf] %vm1900, %v1765
    %1924 = vst.msk [vmem:[#allocation2 + $0x5c] sm:$0xf] %vm1900, %v1767
    %1925 = vst.msk [vmem:[#allocation2 + $0x60] sm:$0xf] %vm1900, %v1769
    %1926 = vst.msk [vmem:[#allocation2 + $0x64] sm:$0xf] %vm1900, %v1771
    %1927 = vst.msk [vmem:[#allocation2 + $0x68] sm:$0xf] %vm1900, %v1773
    %1928 = vst.msk [vmem:[#allocation2 + $0x6c] sm:$0xf] %vm1900, %v1775
    %1929 = vst.msk [vmem:[#allocation2 + $0x70] sm:$0xf] %vm1900, %v1777
    %1930 = vst.msk [vmem:[#allocation2 + $0x74] sm:$0xf] %vm1900, %v1779
    %1931 = vst.msk [vmem:[#allocation2 + $0x78] sm:$0xf] %vm1900, %v1781
    %1932 = vst.msk [vmem:[#allocation2 + $0x7c] sm:$0xf] %vm1900, %v1783
    %1933 = vst.msk [vmem:[#allocation2 + $0x80] sm:$0xf] %vm1900, %v1785
    %1934 = vst.msk [vmem:[#allocation2 + $0x84] sm:$0xf] %vm1900, %v1787
    %1935 = vst.msk [vmem:[#allocation2 + $0x88] sm:$0xf] %vm1900, %v1789
    %1936 = vst.msk [vmem:[#allocation2 + $0x8c] sm:$0xf] %vm1900, %v1791
    %1937 = vst.msk [vmem:[#allocation2 + $0x90] sm:$0xf] %vm1900, %v1793
    %1938 = vst.msk [vmem:[#allocation2 + $0x94] sm:$0xf] %vm1900, %v1795
    %1939 = vst.msk [vmem:[#allocation2 + $0x98] sm:$0xf] %vm1900, %v1797
    %1940 = vst.msk [vmem:[#allocation2 + $0x9c] sm:$0xf] %vm1900, %v1799
    %1941 = vst.msk [vmem:[#allocation2 + $0xa0] sm:$0xf] %vm1900, %v1801
    %1942 = vst.msk [vmem:[#allocation2 + $0xa4] sm:$0xf] %vm1900, %v1803
    %1943 = vst.msk [vmem:[#allocation2 + $0xa8] sm:$0xf] %vm1900, %v1805
    %1944 = vst.msk [vmem:[#allocation2 + $0xac] sm:$0xf] %vm1900, %v1807
    %1945 = vst.msk [vmem:[#allocation2 + $0xb0] sm:$0xf] %vm1900, %v1809
    %1946 = vst.msk [vmem:[#allocation2 + $0xb4] sm:$0xf] %vm1900, %v1811
    %1947 = vst.msk [vmem:[#allocation2 + $0xb8] sm:$0xf] %vm1900, %v1813
    %1948 = vst.msk [vmem:[#allocation2 + $0xbc] sm:$0xf] %vm1900, %v1815
    %1949 = vst.msk [vmem:[#allocation2 + $0xc0] sm:$0xf] %vm1900, %v1817
    %1950 = vst.msk [vmem:[#allocation2 + $0xc4] sm:$0xf] %vm1900, %v1819
    %1951 = vst.msk [vmem:[#allocation2 + $0xc8] sm:$0xf] %vm1900, %v1821
    %1952 = vst.msk [vmem:[#allocation2 + $0xcc] sm:$0xf] %vm1900, %v1823
    %1953 = vst.msk [vmem:[#allocation2 + $0xd0] sm:$0xf] %vm1900, %v1825
    %1954 = vst.msk [vmem:[#allocation2 + $0xd4] sm:$0xf] %vm1900, %v1827
    %1955 = vst.msk [vmem:[#allocation2 + $0xd8] sm:$0xf] %vm1900, %v1829
    %1956 = vst.msk [vmem:[#allocation2 + $0xdc] sm:$0xf] %vm1900, %v1831
    %1957 = vst.msk [vmem:[#allocation2 + $0xe0] sm:$0xf] %vm1900, %v1833
    %1958 = vst.msk [vmem:[#allocation2 + $0xe4] sm:$0xf] %vm1900, %v1835
    %1959 = vst.msk [vmem:[#allocation2 + $0xe8] sm:$0xf] %vm1900, %v1837
    %vm1960 = vcmask 256192
    %1961 = vst.msk [vmem:[#allocation2 + $0xec] sm:$0x7] %vm1960, %v1839
    %v1962 = vld [vmem:[%s0 + $0x8] sm:$0xf]
    %v1963 = vld [vmem:[%s0 + $0xc] sm:$0xf]
    %v1964 = vld [vmem:[%s0 + $0x10] sm:$0xf]
    %v1965 = vld [vmem:[%s0 + $0x14] sm:$0xf]
    %v1966 = vld [vmem:[%s0 + $0x18] sm:$0xf]
    %v1967 = vld [vmem:[%s0 + $0x1c] sm:$0xf]
    %v1968 = vld [vmem:[%s0 + $0x20] sm:$0xf]
    %v1969 = vld [vmem:[%s0 + $0x24] sm:$0xf]
    %v1970 = vld [vmem:[%s0 + $0x28] sm:$0xf]
    %v1971 = vld [vmem:[%s0 + $0x2c] sm:$0xf]
    %v1972 = vld [vmem:[%s0 + $0x30] sm:$0xf]
    %v1973 = vld [vmem:[%s0 + $0x34] sm:$0xf]
    %v1974 = vld [vmem:[%s0 + $0x38] sm:$0xf]
    %v1975 = vld [vmem:[%s0 + $0x3c] sm:$0xf]
    %v1976 = vld [vmem:[%s0 + $0x40] sm:$0xf]
    %v1977 = vld [vmem:[%s0 + $0x44] sm:$0xf]
    %v1978 = vld [vmem:[%s0 + $0x48] sm:$0xf]
    %v1979 = vld [vmem:[%s0 + $0x4c] sm:$0xf]
    %v1980 = vld [vmem:[%s0 + $0x50] sm:$0xf]
    %v1981 = vld [vmem:[%s0 + $0x54] sm:$0xf]
    %v1982 = vld [vmem:[%s0 + $0x58] sm:$0xf]
    %v1983 = vld [vmem:[%s0 + $0x5c] sm:$0xf]
    %v1984 = vld [vmem:[%s0 + $0x60] sm:$0xf]
    %v1985 = vld [vmem:[%s0 + $0x64] sm:$0xf]
    %v1986 = vld [vmem:[%s0 + $0x68] sm:$0xf]
    %v1987 = vld [vmem:[%s0 + $0x6c] sm:$0xf]
    %v1988 = vld [vmem:[%s0 + $0x70] sm:$0xf]
    %v1989 = vld [vmem:[%s0 + $0x74] sm:$0xf]
    %v1990 = vld [vmem:[%s0 + $0x78] sm:$0xf]
    %v1991 = vld [vmem:[%s0 + $0x7c] sm:$0xf]
    %v1992 = vld [vmem:[%s0 + $0x80] sm:$0xf]
    %v1993 = vld [vmem:[%s0 + $0x84] sm:$0xf]
    %v1994 = vld [vmem:[%s0 + $0x88] sm:$0xf]
    %v1995 = vld [vmem:[%s0 + $0x8c] sm:$0xf]
    %v1996 = vld [vmem:[%s0 + $0x90] sm:$0xf]
    %v1997 = vld [vmem:[%s0 + $0x94] sm:$0xf]
    %v1998 = vld [vmem:[%s0 + $0x98] sm:$0xf]
    %v1999 = vld [vmem:[%s0 + $0x9c] sm:$0xf]
    %v2000 = vld [vmem:[%s0 + $0xa0] sm:$0xf]
    %v2001 = vld [vmem:[%s0 + $0xa4] sm:$0xf]
    %v2002 = vld [vmem:[%s0 + $0xa8] sm:$0xf]
    %v2003 = vld [vmem:[%s0 + $0xac] sm:$0xf]
    %v2004 = vld [vmem:[%s0 + $0xb0] sm:$0xf]
    %v2005 = vld [vmem:[%s0 + $0xb4] sm:$0xf]
    %v2006 = vld [vmem:[%s0 + $0xb8] sm:$0xf]
    %v2007 = vld [vmem:[%s0 + $0xbc] sm:$0xf]
    %v2008 = vld [vmem:[%s0 + $0xc0] sm:$0xf]
    %v2009 = vld [vmem:[%s0 + $0xc4] sm:$0xf]
    %v2010 = vld [vmem:[%s0 + $0xc8] sm:$0xf]
    %v2011 = vld [vmem:[%s0 + $0xcc] sm:$0xf]
    %v2012 = vld [vmem:[%s0 + $0xd0] sm:$0xf]
    %v2013 = vld [vmem:[%s0 + $0xd4] sm:$0xf]
    %v2014 = vld [vmem:[%s0 + $0xd8] sm:$0xf]
    %v2015 = vld [vmem:[%s0 + $0xdc] sm:$0xf]
    %v2016 = vld [vmem:[%s0 + $0xe0] sm:$0xf]
    %v2017 = vld [vmem:[%s0 + $0xe4] sm:$0xf]
    %v2018 = vld [vmem:[%s0 + $0xe8] sm:$0xf]
    %v2019 = vld [vmem:[%s0 + $0xec] sm:$0xf]
    %v2020 = vld [vmem:[%s0 + $0xf0] sm:$0xf]
    %v2021 = vld [vmem:[%s0 + $0xf4] sm:$0xf]
    %v2023 = vshrl.u32 %v1962, 16
    %v2025 = vrot.slane %v2023, 4
    %v2026 = vshll.u32 %v1962, 16
    %v2028 = vrot.slane %v2026, 5
    %v2029 = vor.u32 %v2025, %v2028
    %v2030 = vrot.slane %v2029, 4
    %v2032 = vshll.u32 %v1963, 16
    %v2034 = vrot.slane %v2032, 5
    %v2035 = vsel %vm214, %v2030, %v2034
    %v2036 = vshrl.u32 %v1963, 16
    %v2038 = vrot.slane %v2036, 4
    %v2039 = vor.u32 %v2038, %v2034
    %v2040 = vrot.slane %v2039, 4
    %v2042 = vshll.u32 %v1964, 16
    %v2044 = vrot.slane %v2042, 5
    %v2045 = vsel %vm214, %v2040, %v2044
    %v2046 = vshrl.u32 %v1964, 16
    %v2048 = vrot.slane %v2046, 4
    %v2049 = vor.u32 %v2048, %v2044
    %v2050 = vrot.slane %v2049, 4
    %v2052 = vshll.u32 %v1965, 16
    %v2054 = vrot.slane %v2052, 5
    %v2055 = vsel %vm214, %v2050, %v2054
    %v2056 = vshrl.u32 %v1965, 16
    %v2058 = vrot.slane %v2056, 4
    %v2059 = vor.u32 %v2058, %v2054
    %v2060 = vrot.slane %v2059, 4
    %v2062 = vshll.u32 %v1966, 16
    %v2064 = vrot.slane %v2062, 5
    %v2065 = vsel %vm214, %v2060, %v2064
    %v2066 = vshrl.u32 %v1966, 16
    %v2068 = vrot.slane %v2066, 4
    %v2069 = vor.u32 %v2068, %v2064
    %v2070 = vrot.slane %v2069, 4
    %v2072 = vshll.u32 %v1967, 16
    %v2074 = vrot.slane %v2072, 5
    %v2075 = vsel %vm214, %v2070, %v2074
    %v2076 = vshrl.u32 %v1967, 16
    %v2078 = vrot.slane %v2076, 4
    %v2079 = vor.u32 %v2078, %v2074
    %v2080 = vrot.slane %v2079, 4
    %v2082 = vshll.u32 %v1968, 16
    %v2084 = vrot.slane %v2082, 5
    %v2085 = vsel %vm214, %v2080, %v2084
    %v2086 = vshrl.u32 %v1968, 16
    %v2088 = vrot.slane %v2086, 4
    %v2089 = vor.u32 %v2088, %v2084
    %v2090 = vrot.slane %v2089, 4
    %v2092 = vshll.u32 %v1969, 16
    %v2094 = vrot.slane %v2092, 5
    %v2095 = vsel %vm214, %v2090, %v2094
    %v2096 = vshrl.u32 %v1969, 16
    %v2098 = vrot.slane %v2096, 4
    %v2099 = vor.u32 %v2098, %v2094
    %v2100 = vrot.slane %v2099, 4
    %v2102 = vshll.u32 %v1970, 16
    %v2104 = vrot.slane %v2102, 5
    %v2105 = vsel %vm214, %v2100, %v2104
    %v2106 = vshrl.u32 %v1970, 16
    %v2108 = vrot.slane %v2106, 4
    %v2109 = vor.u32 %v2108, %v2104
    %v2110 = vrot.slane %v2109, 4
    %v2112 = vshll.u32 %v1971, 16
    %v2114 = vrot.slane %v2112, 5
    %v2115 = vsel %vm214, %v2110, %v2114
    %v2116 = vshrl.u32 %v1971, 16
    %v2118 = vrot.slane %v2116, 4
    %v2119 = vor.u32 %v2118, %v2114
    %v2120 = vrot.slane %v2119, 4
    %v2122 = vshll.u32 %v1972, 16
    %v2124 = vrot.slane %v2122, 5
    %v2125 = vsel %vm214, %v2120, %v2124
    %v2126 = vshrl.u32 %v1972, 16
    %v2128 = vrot.slane %v2126, 4
    %v2129 = vor.u32 %v2128, %v2124
    %v2130 = vrot.slane %v2129, 4
    %v2132 = vshll.u32 %v1973, 16
    %v2134 = vrot.slane %v2132, 5
    %v2135 = vsel %vm214, %v2130, %v2134
    %v2136 = vshrl.u32 %v1973, 16
    %v2138 = vrot.slane %v2136, 4
    %v2139 = vor.u32 %v2138, %v2134
    %v2140 = vrot.slane %v2139, 4
    %v2142 = vshll.u32 %v1974, 16
    %v2144 = vrot.slane %v2142, 5
    %v2145 = vsel %vm214, %v2140, %v2144
    %v2146 = vshrl.u32 %v1974, 16
    %v2148 = vrot.slane %v2146, 4
    %v2149 = vor.u32 %v2148, %v2144
    %v2150 = vrot.slane %v2149, 4
    %v2152 = vshll.u32 %v1975, 16
    %v2154 = vrot.slane %v2152, 5
    %v2155 = vsel %vm214, %v2150, %v2154
    %v2156 = vshrl.u32 %v1975, 16
    %v2158 = vrot.slane %v2156, 4
    %v2159 = vor.u32 %v2158, %v2154
    %v2160 = vrot.slane %v2159, 4
    %v2162 = vshll.u32 %v1976, 16
    %v2164 = vrot.slane %v2162, 5
    %v2165 = vsel %vm214, %v2160, %v2164
    %v2166 = vshrl.u32 %v1976, 16
    %v2168 = vrot.slane %v2166, 4
    %v2169 = vor.u32 %v2168, %v2164
    %v2170 = vrot.slane %v2169, 4
    %v2172 = vshll.u32 %v1977, 16
    %v2174 = vrot.slane %v2172, 5
    %v2175 = vsel %vm214, %v2170, %v2174
    %v2176 = vshrl.u32 %v1977, 16
    %v2178 = vrot.slane %v2176, 4
    %v2179 = vor.u32 %v2178, %v2174
    %v2180 = vrot.slane %v2179, 4
    %v2182 = vshll.u32 %v1978, 16
    %v2184 = vrot.slane %v2182, 5
    %v2185 = vsel %vm214, %v2180, %v2184
    %v2186 = vshrl.u32 %v1978, 16
    %v2188 = vrot.slane %v2186, 4
    %v2189 = vor.u32 %v2188, %v2184
    %v2190 = vrot.slane %v2189, 4
    %v2192 = vshll.u32 %v1979, 16
    %v2194 = vrot.slane %v2192, 5
    %v2195 = vsel %vm214, %v2190, %v2194
    %v2196 = vshrl.u32 %v1979, 16
    %v2198 = vrot.slane %v2196, 4
    %v2199 = vor.u32 %v2198, %v2194
    %v2200 = vrot.slane %v2199, 4
    %v2202 = vshll.u32 %v1980, 16
    %v2204 = vrot.slane %v2202, 5
    %v2205 = vsel %vm214, %v2200, %v2204
    %v2206 = vshrl.u32 %v1980, 16
    %v2208 = vrot.slane %v2206, 4
    %v2209 = vor.u32 %v2208, %v2204
    %v2210 = vrot.slane %v2209, 4
    %v2212 = vshll.u32 %v1981, 16
    %v2214 = vrot.slane %v2212, 5
    %v2215 = vsel %vm214, %v2210, %v2214
    %v2216 = vshrl.u32 %v1981, 16
    %v2218 = vrot.slane %v2216, 4
    %v2219 = vor.u32 %v2218, %v2214
    %v2220 = vrot.slane %v2219, 4
    %v2222 = vshll.u32 %v1982, 16
    %v2224 = vrot.slane %v2222, 5
    %v2225 = vsel %vm214, %v2220, %v2224
    %v2226 = vshrl.u32 %v1982, 16
    %v2228 = vrot.slane %v2226, 4
    %v2229 = vor.u32 %v2228, %v2224
    %v2230 = vrot.slane %v2229, 4
    %v2232 = vshll.u32 %v1983, 16
    %v2234 = vrot.slane %v2232, 5
    %v2235 = vsel %vm214, %v2230, %v2234
    %v2236 = vshrl.u32 %v1983, 16
    %v2238 = vrot.slane %v2236, 4
    %v2239 = vor.u32 %v2238, %v2234
    %v2240 = vrot.slane %v2239, 4
    %v2242 = vshll.u32 %v1984, 16
    %v2244 = vrot.slane %v2242, 5
    %v2245 = vsel %vm214, %v2240, %v2244
    %v2246 = vshrl.u32 %v1984, 16
    %v2248 = vrot.slane %v2246, 4
    %v2249 = vor.u32 %v2248, %v2244
    %v2250 = vrot.slane %v2249, 4
    %v2252 = vshll.u32 %v1985, 16
    %v2254 = vrot.slane %v2252, 5
    %v2255 = vsel %vm214, %v2250, %v2254
    %v2256 = vshrl.u32 %v1985, 16
    %v2258 = vrot.slane %v2256, 4
    %v2259 = vor.u32 %v2258, %v2254
    %v2260 = vrot.slane %v2259, 4
    %v2262 = vshll.u32 %v1986, 16
    %v2264 = vrot.slane %v2262, 5
    %v2265 = vsel %vm214, %v2260, %v2264
    %v2266 = vshrl.u32 %v1986, 16
    %v2268 = vrot.slane %v2266, 4
    %v2269 = vor.u32 %v2268, %v2264
    %v2270 = vrot.slane %v2269, 4
    %v2272 = vshll.u32 %v1987, 16
    %v2274 = vrot.slane %v2272, 5
    %v2275 = vsel %vm214, %v2270, %v2274
    %v2276 = vshrl.u32 %v1987, 16
    %v2278 = vrot.slane %v2276, 4
    %v2279 = vor.u32 %v2278, %v2274
    %v2280 = vrot.slane %v2279, 4
    %v2282 = vshll.u32 %v1988, 16
    %v2284 = vrot.slane %v2282, 5
    %v2285 = vsel %vm214, %v2280, %v2284
    %v2286 = vshrl.u32 %v1988, 16
    %v2288 = vrot.slane %v2286, 4
    %v2289 = vor.u32 %v2288, %v2284
    %v2290 = vrot.slane %v2289, 4
    %v2292 = vshll.u32 %v1989, 16
    %v2294 = vrot.slane %v2292, 5
    %v2295 = vsel %vm214, %v2290, %v2294
    %v2296 = vshrl.u32 %v1989, 16
    %v2298 = vrot.slane %v2296, 4
    %v2299 = vor.u32 %v2298, %v2294
    %v2300 = vrot.slane %v2299, 4
    %v2302 = vshll.u32 %v1990, 16
    %v2304 = vrot.slane %v2302, 5
    %v2305 = vsel %vm214, %v2300, %v2304
    %v2306 = vshrl.u32 %v1990, 16
    %v2308 = vrot.slane %v2306, 4
    %v2309 = vor.u32 %v2308, %v2304
    %v2310 = vrot.slane %v2309, 4
    %v2312 = vshll.u32 %v1991, 16
    %v2314 = vrot.slane %v2312, 5
    %v2315 = vsel %vm214, %v2310, %v2314
    %v2316 = vshrl.u32 %v1991, 16
    %v2318 = vrot.slane %v2316, 4
    %v2319 = vor.u32 %v2318, %v2314
    %v2320 = vrot.slane %v2319, 4
    %v2322 = vshll.u32 %v1992, 16
    %v2324 = vrot.slane %v2322, 5
    %v2325 = vsel %vm214, %v2320, %v2324
    %v2326 = vshrl.u32 %v1992, 16
    %v2328 = vrot.slane %v2326, 4
    %v2329 = vor.u32 %v2328, %v2324
    %v2330 = vrot.slane %v2329, 4
    %v2332 = vshll.u32 %v1993, 16
    %v2334 = vrot.slane %v2332, 5
    %v2335 = vsel %vm214, %v2330, %v2334
    %v2336 = vshrl.u32 %v1993, 16
    %v2338 = vrot.slane %v2336, 4
    %v2339 = vor.u32 %v2338, %v2334
    %v2340 = vrot.slane %v2339, 4
    %v2342 = vshll.u32 %v1994, 16
    %v2344 = vrot.slane %v2342, 5
    %v2345 = vsel %vm214, %v2340, %v2344
    %v2346 = vshrl.u32 %v1994, 16
    %v2348 = vrot.slane %v2346, 4
    %v2349 = vor.u32 %v2348, %v2344
    %v2350 = vrot.slane %v2349, 4
    %v2352 = vshll.u32 %v1995, 16
    %v2354 = vrot.slane %v2352, 5
    %v2355 = vsel %vm214, %v2350, %v2354
    %v2356 = vshrl.u32 %v1995, 16
    %v2358 = vrot.slane %v2356, 4
    %v2359 = vor.u32 %v2358, %v2354
    %v2360 = vrot.slane %v2359, 4
    %v2362 = vshll.u32 %v1996, 16
    %v2364 = vrot.slane %v2362, 5
    %v2365 = vsel %vm214, %v2360, %v2364
    %v2366 = vshrl.u32 %v1996, 16
    %v2368 = vrot.slane %v2366, 4
    %v2369 = vor.u32 %v2368, %v2364
    %v2370 = vrot.slane %v2369, 4
    %v2372 = vshll.u32 %v1997, 16
    %v2374 = vrot.slane %v2372, 5
    %v2375 = vsel %vm214, %v2370, %v2374
    %v2376 = vshrl.u32 %v1997, 16
    %v2378 = vrot.slane %v2376, 4
    %v2379 = vor.u32 %v2378, %v2374
    %v2380 = vrot.slane %v2379, 4
    %v2382 = vshll.u32 %v1998, 16
    %v2384 = vrot.slane %v2382, 5
    %v2385 = vsel %vm214, %v2380, %v2384
    %v2386 = vshrl.u32 %v1998, 16
    %v2388 = vrot.slane %v2386, 4
    %v2389 = vor.u32 %v2388, %v2384
    %v2390 = vrot.slane %v2389, 4
    %v2392 = vshll.u32 %v1999, 16
    %v2394 = vrot.slane %v2392, 5
    %v2395 = vsel %vm214, %v2390, %v2394
    %v2396 = vshrl.u32 %v1999, 16
    %v2398 = vrot.slane %v2396, 4
    %v2399 = vor.u32 %v2398, %v2394
    %v2400 = vrot.slane %v2399, 4
    %v2402 = vshll.u32 %v2000, 16
    %v2404 = vrot.slane %v2402, 5
    %v2405 = vsel %vm214, %v2400, %v2404
    %v2406 = vshrl.u32 %v2000, 16
    %v2408 = vrot.slane %v2406, 4
    %v2409 = vor.u32 %v2408, %v2404
    %v2410 = vrot.slane %v2409, 4
    %v2412 = vshll.u32 %v2001, 16
    %v2414 = vrot.slane %v2412, 5
    %v2415 = vsel %vm214, %v2410, %v2414
    %v2416 = vshrl.u32 %v2001, 16
    %v2418 = vrot.slane %v2416, 4
    %v2419 = vor.u32 %v2418, %v2414
    %v2420 = vrot.slane %v2419, 4
    %v2422 = vshll.u32 %v2002, 16
    %v2424 = vrot.slane %v2422, 5
    %v2425 = vsel %vm214, %v2420, %v2424
    %v2426 = vshrl.u32 %v2002, 16
    %v2428 = vrot.slane %v2426, 4
    %v2429 = vor.u32 %v2428, %v2424
    %v2430 = vrot.slane %v2429, 4
    %v2432 = vshll.u32 %v2003, 16
    %v2434 = vrot.slane %v2432, 5
    %v2435 = vsel %vm214, %v2430, %v2434
    %v2436 = vshrl.u32 %v2003, 16
    %v2438 = vrot.slane %v2436, 4
    %v2439 = vor.u32 %v2438, %v2434
    %v2440 = vrot.slane %v2439, 4
    %v2442 = vshll.u32 %v2004, 16
    %v2444 = vrot.slane %v2442, 5
    %v2445 = vsel %vm214, %v2440, %v2444
    %v2446 = vshrl.u32 %v2004, 16
    %v2448 = vrot.slane %v2446, 4
    %v2449 = vor.u32 %v2448, %v2444
    %v2450 = vrot.slane %v2449, 4
    %v2452 = vshll.u32 %v2005, 16
    %v2454 = vrot.slane %v2452, 5
    %v2455 = vsel %vm214, %v2450, %v2454
    %v2456 = vshrl.u32 %v2005, 16
    %v2458 = vrot.slane %v2456, 4
    %v2459 = vor.u32 %v2458, %v2454
    %v2460 = vrot.slane %v2459, 4
    %v2462 = vshll.u32 %v2006, 16
    %v2464 = vrot.slane %v2462, 5
    %v2465 = vsel %vm214, %v2460, %v2464
    %v2466 = vshrl.u32 %v2006, 16
    %v2468 = vrot.slane %v2466, 4
    %v2469 = vor.u32 %v2468, %v2464
    %v2470 = vrot.slane %v2469, 4
    %v2472 = vshll.u32 %v2007, 16
    %v2474 = vrot.slane %v2472, 5
    %v2475 = vsel %vm214, %v2470, %v2474
    %v2476 = vshrl.u32 %v2007, 16
    %v2478 = vrot.slane %v2476, 4
    %v2479 = vor.u32 %v2478, %v2474
    %v2480 = vrot.slane %v2479, 4
    %v2482 = vshll.u32 %v2008, 16
    %v2484 = vrot.slane %v2482, 5
    %v2485 = vsel %vm214, %v2480, %v2484
    %v2486 = vshrl.u32 %v2008, 16
    %v2488 = vrot.slane %v2486, 4
    %v2489 = vor.u32 %v2488, %v2484
    %v2490 = vrot.slane %v2489, 4
    %v2492 = vshll.u32 %v2009, 16
    %v2494 = vrot.slane %v2492, 5
    %v2495 = vsel %vm214, %v2490, %v2494
    %v2496 = vshrl.u32 %v2009, 16
    %v2498 = vrot.slane %v2496, 4
    %v2499 = vor.u32 %v2498, %v2494
    %v2500 = vrot.slane %v2499, 4
    %v2502 = vshll.u32 %v2010, 16
    %v2504 = vrot.slane %v2502, 5
    %v2505 = vsel %vm214, %v2500, %v2504
    %v2506 = vshrl.u32 %v2010, 16
    %v2508 = vrot.slane %v2506, 4
    %v2509 = vor.u32 %v2508, %v2504
    %v2510 = vrot.slane %v2509, 4
    %v2512 = vshll.u32 %v2011, 16
    %v2514 = vrot.slane %v2512, 5
    %v2515 = vsel %vm214, %v2510, %v2514
    %v2516 = vshrl.u32 %v2011, 16
    %v2518 = vrot.slane %v2516, 4
    %v2519 = vor.u32 %v2518, %v2514
    %v2520 = vrot.slane %v2519, 4
    %v2522 = vshll.u32 %v2012, 16
    %v2524 = vrot.slane %v2522, 5
    %v2525 = vsel %vm214, %v2520, %v2524
    %v2526 = vshrl.u32 %v2012, 16
    %v2528 = vrot.slane %v2526, 4
    %v2529 = vor.u32 %v2528, %v2524
    %v2530 = vrot.slane %v2529, 4
    %v2532 = vshll.u32 %v2013, 16
    %v2534 = vrot.slane %v2532, 5
    %v2535 = vsel %vm214, %v2530, %v2534
    %v2536 = vshrl.u32 %v2013, 16
    %v2538 = vrot.slane %v2536, 4
    %v2539 = vor.u32 %v2538, %v2534
    %v2540 = vrot.slane %v2539, 4
    %v2542 = vshll.u32 %v2014, 16
    %v2544 = vrot.slane %v2542, 5
    %v2545 = vsel %vm214, %v2540, %v2544
    %v2546 = vshrl.u32 %v2014, 16
    %v2548 = vrot.slane %v2546, 4
    %v2549 = vor.u32 %v2548, %v2544
    %v2550 = vrot.slane %v2549, 4
    %v2552 = vshll.u32 %v2015, 16
    %v2554 = vrot.slane %v2552, 5
    %v2555 = vsel %vm214, %v2550, %v2554
    %v2556 = vshrl.u32 %v2015, 16
    %v2558 = vrot.slane %v2556, 4
    %v2559 = vor.u32 %v2558, %v2554
    %v2560 = vrot.slane %v2559, 4
    %v2562 = vshll.u32 %v2016, 16
    %v2564 = vrot.slane %v2562, 5
    %v2565 = vsel %vm214, %v2560, %v2564
    %v2566 = vshrl.u32 %v2016, 16
    %v2568 = vrot.slane %v2566, 4
    %v2569 = vor.u32 %v2568, %v2564
    %v2570 = vrot.slane %v2569, 4
    %v2572 = vshll.u32 %v2017, 16
    %v2574 = vrot.slane %v2572, 5
    %v2575 = vsel %vm214, %v2570, %v2574
    %v2576 = vshrl.u32 %v2017, 16
    %v2578 = vrot.slane %v2576, 4
    %v2579 = vor.u32 %v2578, %v2574
    %v2580 = vrot.slane %v2579, 4
    %v2582 = vshll.u32 %v2018, 16
    %v2584 = vrot.slane %v2582, 5
    %v2585 = vsel %vm214, %v2580, %v2584
    %v2586 = vshrl.u32 %v2018, 16
    %v2588 = vrot.slane %v2586, 4
    %v2589 = vor.u32 %v2588, %v2584
    %v2590 = vrot.slane %v2589, 4
    %v2592 = vshll.u32 %v2019, 16
    %v2594 = vrot.slane %v2592, 5
    %v2595 = vsel %vm214, %v2590, %v2594
    %v2596 = vshrl.u32 %v2019, 16
    %v2598 = vrot.slane %v2596, 4
    %v2599 = vor.u32 %v2598, %v2594
    %v2600 = vrot.slane %v2599, 4
    %v2602 = vshll.u32 %v2020, 16
    %v2604 = vrot.slane %v2602, 5
    %v2605 = vsel %vm214, %v2600, %v2604
    %v2606 = vshrl.u32 %v2020, 16
    %v2608 = vrot.slane %v2606, 4
    %v2609 = vor.u32 %v2608, %v2604
    %v2610 = vrot.slane %v2609, 4
    %v2612 = vshll.u32 %v2021, 16
    %v2614 = vrot.slane %v2612, 5
    %v2615 = vsel %vm214, %v2610, %v2614
    %v2616 = vshrl.u32 %v2021, 16
    %v2618 = vrot.slane %v2616, 4
    %v2619 = vor.u32 %v2618, %v2614
    %v2620 = vrot.slane %v2619, 4
    %2621 = vrot.lane.b32.xlu0 %v2035, 32
    %v2622 = vpop.permute.xlu0 %2621
    %2623 = vrot.lane.b32.xlu0 %v2045, 32
    %v2624 = vpop.permute.xlu0 %2623
    %2625 = vrot.lane.b32.xlu0 %v2055, 32
    %v2626 = vpop.permute.xlu0 %2625
    %2627 = vrot.lane.b32.xlu0 %v2065, 32
    %v2628 = vpop.permute.xlu0 %2627
    %2629 = vrot.lane.b32.xlu0 %v2075, 32
    %v2630 = vpop.permute.xlu0 %2629
    %2631 = vrot.lane.b32.xlu0 %v2085, 32
    %v2632 = vpop.permute.xlu0 %2631
    %2633 = vrot.lane.b32.xlu0 %v2095, 32
    %v2634 = vpop.permute.xlu0 %2633
    %2635 = vrot.lane.b32.xlu0 %v2105, 32
    %v2636 = vpop.permute.xlu0 %2635
    %2637 = vrot.lane.b32.xlu0 %v2115, 32
    %v2638 = vpop.permute.xlu0 %2637
    %2639 = vrot.lane.b32.xlu0 %v2125, 32
    %v2640 = vpop.permute.xlu0 %2639
    %2641 = vrot.lane.b32.xlu0 %v2135, 32
    %v2642 = vpop.permute.xlu0 %2641
    %2643 = vrot.lane.b32.xlu0 %v2145, 32
    %v2644 = vpop.permute.xlu0 %2643
    %2645 = vrot.lane.b32.xlu0 %v2155, 32
    %v2646 = vpop.permute.xlu0 %2645
    %2647 = vrot.lane.b32.xlu0 %v2165, 32
    %v2648 = vpop.permute.xlu0 %2647
    %2649 = vrot.lane.b32.xlu0 %v2175, 32
    %v2650 = vpop.permute.xlu0 %2649
    %2651 = vrot.lane.b32.xlu0 %v2185, 32
    %v2652 = vpop.permute.xlu0 %2651
    %2653 = vrot.lane.b32.xlu0 %v2195, 32
    %v2654 = vpop.permute.xlu0 %2653
    %2655 = vrot.lane.b32.xlu0 %v2205, 32
    %v2656 = vpop.permute.xlu0 %2655
    %2657 = vrot.lane.b32.xlu0 %v2215, 32
    %v2658 = vpop.permute.xlu0 %2657
    %2659 = vrot.lane.b32.xlu0 %v2225, 32
    %v2660 = vpop.permute.xlu0 %2659
    %2661 = vrot.lane.b32.xlu0 %v2235, 32
    %v2662 = vpop.permute.xlu0 %2661
    %2663 = vrot.lane.b32.xlu0 %v2245, 32
    %v2664 = vpop.permute.xlu0 %2663
    %2665 = vrot.lane.b32.xlu0 %v2255, 32
    %v2666 = vpop.permute.xlu0 %2665
    %2667 = vrot.lane.b32.xlu0 %v2265, 32
    %v2668 = vpop.permute.xlu0 %2667
    %2669 = vrot.lane.b32.xlu0 %v2275, 32
    %v2670 = vpop.permute.xlu0 %2669
    %2671 = vrot.lane.b32.xlu0 %v2285, 32
    %v2672 = vpop.permute.xlu0 %2671
    %2673 = vrot.lane.b32.xlu0 %v2295, 32
    %v2674 = vpop.permute.xlu0 %2673
    %2675 = vrot.lane.b32.xlu0 %v2305, 32
    %v2676 = vpop.permute.xlu0 %2675
    %2677 = vrot.lane.b32.xlu0 %v2315, 32
    %v2678 = vpop.permute.xlu0 %2677
    %2679 = vrot.lane.b32.xlu0 %v2325, 32
    %v2680 = vpop.permute.xlu0 %2679
    %2681 = vrot.lane.b32.xlu0 %v2335, 32
    %v2682 = vpop.permute.xlu0 %2681
    %2683 = vrot.lane.b32.xlu0 %v2345, 32
    %v2684 = vpop.permute.xlu0 %2683
    %2685 = vrot.lane.b32.xlu0 %v2355, 32
    %v2686 = vpop.permute.xlu0 %2685
    %2687 = vrot.lane.b32.xlu0 %v2365, 32
    %v2688 = vpop.permute.xlu0 %2687
    %2689 = vrot.lane.b32.xlu0 %v2375, 32
    %v2690 = vpop.permute.xlu0 %2689
    %2691 = vrot.lane.b32.xlu0 %v2385, 32
    %v2692 = vpop.permute.xlu0 %2691
    %2693 = vrot.lane.b32.xlu0 %v2395, 32
    %v2694 = vpop.permute.xlu0 %2693
    %2695 = vrot.lane.b32.xlu0 %v2405, 32
    %v2696 = vpop.permute.xlu0 %2695
    %2697 = vrot.lane.b32.xlu0 %v2415, 32
    %v2698 = vpop.permute.xlu0 %2697
    %2699 = vrot.lane.b32.xlu0 %v2425, 32
    %v2700 = vpop.permute.xlu0 %2699
    %2701 = vrot.lane.b32.xlu0 %v2435, 32
    %v2702 = vpop.permute.xlu0 %2701
    %2703 = vrot.lane.b32.xlu0 %v2445, 32
    %v2704 = vpop.permute.xlu0 %2703
    %2705 = vrot.lane.b32.xlu0 %v2455, 32
    %v2706 = vpop.permute.xlu0 %2705
    %2707 = vrot.lane.b32.xlu0 %v2465, 32
    %v2708 = vpop.permute.xlu0 %2707
    %2709 = vrot.lane.b32.xlu0 %v2475, 32
    %v2710 = vpop.permute.xlu0 %2709
    %2711 = vrot.lane.b32.xlu0 %v2485, 32
    %v2712 = vpop.permute.xlu0 %2711
    %2713 = vrot.lane.b32.xlu0 %v2495, 32
    %v2714 = vpop.permute.xlu0 %2713
    %2715 = vrot.lane.b32.xlu0 %v2505, 32
    %v2716 = vpop.permute.xlu0 %2715
    %2717 = vrot.lane.b32.xlu0 %v2515, 32
    %v2718 = vpop.permute.xlu0 %2717
    %2719 = vrot.lane.b32.xlu0 %v2525, 32
    %v2720 = vpop.permute.xlu0 %2719
    %2721 = vrot.lane.b32.xlu0 %v2535, 32
    %v2722 = vpop.permute.xlu0 %2721
    %2723 = vrot.lane.b32.xlu0 %v2545, 32
    %v2724 = vpop.permute.xlu0 %2723
    %2725 = vrot.lane.b32.xlu0 %v2555, 32
    %v2726 = vpop.permute.xlu0 %2725
    %2727 = vrot.lane.b32.xlu0 %v2565, 32
    %v2728 = vpop.permute.xlu0 %2727
    %2729 = vrot.lane.b32.xlu0 %v2575, 32
    %v2730 = vpop.permute.xlu0 %2729
    %2731 = vrot.lane.b32.xlu0 %v2585, 32
    %v2732 = vpop.permute.xlu0 %2731
    %2733 = vrot.lane.b32.xlu0 %v2595, 32
    %v2734 = vpop.permute.xlu0 %2733
    %2735 = vrot.lane.b32.xlu0 %v2605, 32
    %v2736 = vpop.permute.xlu0 %2735
    %2737 = vrot.lane.b32.xlu0 %v2615, 32
    %v2738 = vpop.permute.xlu0 %2737
    %2739 = vrot.lane.b32.xlu0 %v2620, 32
    %v2740 = vpop.permute.xlu0 %2739
    %vm2801 = vcmask 322816
    %2802 = vst.msk [vmem:[#allocation2] sm:$0xf] %vm2801, %v2622
    %2803 = vst.msk [vmem:[#allocation2 + $0x4] sm:$0xf] %vm2801, %v2624
    %2804 = vst.msk [vmem:[#allocation2 + $0x8] sm:$0xf] %vm2801, %v2626
    %2805 = vst.msk [vmem:[#allocation2 + $0xc] sm:$0xf] %vm2801, %v2628
    %2806 = vst.msk [vmem:[#allocation2 + $0x10] sm:$0xf] %vm2801, %v2630
    %2807 = vst.msk [vmem:[#allocation2 + $0x14] sm:$0xf] %vm2801, %v2632
    %2808 = vst.msk [vmem:[#allocation2 + $0x18] sm:$0xf] %vm2801, %v2634
    %2809 = vst.msk [vmem:[#allocation2 + $0x1c] sm:$0xf] %vm2801, %v2636
    %2810 = vst.msk [vmem:[#allocation2 + $0x20] sm:$0xf] %vm2801, %v2638
    %2811 = vst.msk [vmem:[#allocation2 + $0x24] sm:$0xf] %vm2801, %v2640
    %2812 = vst.msk [vmem:[#allocation2 + $0x28] sm:$0xf] %vm2801, %v2642
    %2813 = vst.msk [vmem:[#allocation2 + $0x2c] sm:$0xf] %vm2801, %v2644
    %2814 = vst.msk [vmem:[#allocation2 + $0x30] sm:$0xf] %vm2801, %v2646
    %2815 = vst.msk [vmem:[#allocation2 + $0x34] sm:$0xf] %vm2801, %v2648
    %2816 = vst.msk [vmem:[#allocation2 + $0x38] sm:$0xf] %vm2801, %v2650
    %2817 = vst.msk [vmem:[#allocation2 + $0x3c] sm:$0xf] %vm2801, %v2652
    %2818 = vst.msk [vmem:[#allocation2 + $0x40] sm:$0xf] %vm2801, %v2654
    %2819 = vst.msk [vmem:[#allocation2 + $0x44] sm:$0xf] %vm2801, %v2656
    %2820 = vst.msk [vmem:[#allocation2 + $0x48] sm:$0xf] %vm2801, %v2658
    %2821 = vst.msk [vmem:[#allocation2 + $0x4c] sm:$0xf] %vm2801, %v2660
    %2822 = vst.msk [vmem:[#allocation2 + $0x50] sm:$0xf] %vm2801, %v2662
    %2823 = vst.msk [vmem:[#allocation2 + $0x54] sm:$0xf] %vm2801, %v2664
    %2824 = vst.msk [vmem:[#allocation2 + $0x58] sm:$0xf] %vm2801, %v2666
    %2825 = vst.msk [vmem:[#allocation2 + $0x5c] sm:$0xf] %vm2801, %v2668
    %2826 = vst.msk [vmem:[#allocation2 + $0x60] sm:$0xf] %vm2801, %v2670
    %2827 = vst.msk [vmem:[#allocation2 + $0x64] sm:$0xf] %vm2801, %v2672
    %2828 = vst.msk [vmem:[#allocation2 + $0x68] sm:$0xf] %vm2801, %v2674
    %2829 = vst.msk [vmem:[#allocation2 + $0x6c] sm:$0xf] %vm2801, %v2676
    %2830 = vst.msk [vmem:[#allocation2 + $0x70] sm:$0xf] %vm2801, %v2678
    %2831 = vst.msk [vmem:[#allocation2 + $0x74] sm:$0xf] %vm2801, %v2680
    %2832 = vst.msk [vmem:[#allocation2 + $0x78] sm:$0xf] %vm2801, %v2682
    %2833 = vst.msk [vmem:[#allocation2 + $0x7c] sm:$0xf] %vm2801, %v2684
    %2834 = vst.msk [vmem:[#allocation2 + $0x80] sm:$0xf] %vm2801, %v2686
    %2835 = vst.msk [vmem:[#allocation2 + $0x84] sm:$0xf] %vm2801, %v2688
    %2836 = vst.msk [vmem:[#allocation2 + $0x88] sm:$0xf] %vm2801, %v2690
    %2837 = vst.msk [vmem:[#allocation2 + $0x8c] sm:$0xf] %vm2801, %v2692
    %2838 = vst.msk [vmem:[#allocation2 + $0x90] sm:$0xf] %vm2801, %v2694
    %2839 = vst.msk [vmem:[#allocation2 + $0x94] sm:$0xf] %vm2801, %v2696
    %2840 = vst.msk [vmem:[#allocation2 + $0x98] sm:$0xf] %vm2801, %v2698
    %2841 = vst.msk [vmem:[#allocation2 + $0x9c] sm:$0xf] %vm2801, %v2700
    %2842 = vst.msk [vmem:[#allocation2 + $0xa0] sm:$0xf] %vm2801, %v2702
    %2843 = vst.msk [vmem:[#allocation2 + $0xa4] sm:$0xf] %vm2801, %v2704
    %2844 = vst.msk [vmem:[#allocation2 + $0xa8] sm:$0xf] %vm2801, %v2706
    %2845 = vst.msk [vmem:[#allocation2 + $0xac] sm:$0xf] %vm2801, %v2708
    %2846 = vst.msk [vmem:[#allocation2 + $0xb0] sm:$0xf] %vm2801, %v2710
    %2847 = vst.msk [vmem:[#allocation2 + $0xb4] sm:$0xf] %vm2801, %v2712
    %2848 = vst.msk [vmem:[#allocation2 + $0xb8] sm:$0xf] %vm2801, %v2714
    %2849 = vst.msk [vmem:[#allocation2 + $0xbc] sm:$0xf] %vm2801, %v2716
    %2850 = vst.msk [vmem:[#allocation2 + $0xc0] sm:$0xf] %vm2801, %v2718
    %2851 = vst.msk [vmem:[#allocation2 + $0xc4] sm:$0xf] %vm2801, %v2720
    %2852 = vst.msk [vmem:[#allocation2 + $0xc8] sm:$0xf] %vm2801, %v2722
    %2853 = vst.msk [vmem:[#allocation2 + $0xcc] sm:$0xf] %vm2801, %v2724
    %2854 = vst.msk [vmem:[#allocation2 + $0xd0] sm:$0xf] %vm2801, %v2726
    %2855 = vst.msk [vmem:[#allocation2 + $0xd4] sm:$0xf] %vm2801, %v2728
    %2856 = vst.msk [vmem:[#allocation2 + $0xd8] sm:$0xf] %vm2801, %v2730
    %2857 = vst.msk [vmem:[#allocation2 + $0xdc] sm:$0xf] %vm2801, %v2732
    %2858 = vst.msk [vmem:[#allocation2 + $0xe0] sm:$0xf] %vm2801, %v2734
    %2859 = vst.msk [vmem:[#allocation2 + $0xe4] sm:$0xf] %vm2801, %v2736
    %2860 = vst.msk [vmem:[#allocation2 + $0xe8] sm:$0xf] %vm2801, %v2738
    %vm2861 = vcmask 321792
    %2862 = vst.msk [vmem:[#allocation2 + $0xec] sm:$0x7] %vm2861, %v2740
    %v2863 = vld [vmem:[%s0 + $0x8] sm:$0xe]
    %v2864 = vld [vmem:[%s0 + $0xc] sm:$0xf]
    %v2865 = vld [vmem:[%s0 + $0x10] sm:$0xf]
    %v2866 = vld [vmem:[%s0 + $0x14] sm:$0xf]
    %v2867 = vld [vmem:[%s0 + $0x18] sm:$0xf]
    %v2868 = vld [vmem:[%s0 + $0x1c] sm:$0xf]
    %v2869 = vld [vmem:[%s0 + $0x20] sm:$0xf]
    %v2870 = vld [vmem:[%s0 + $0x24] sm:$0xf]
    %v2871 = vld [vmem:[%s0 + $0x28] sm:$0xf]
    %v2872 = vld [vmem:[%s0 + $0x2c] sm:$0xf]
    %v2873 = vld [vmem:[%s0 + $0x30] sm:$0xf]
    %v2874 = vld [vmem:[%s0 + $0x34] sm:$0xf]
    %v2875 = vld [vmem:[%s0 + $0x38] sm:$0xf]
    %v2876 = vld [vmem:[%s0 + $0x3c] sm:$0xf]
    %v2877 = vld [vmem:[%s0 + $0x40] sm:$0xf]
    %v2878 = vld [vmem:[%s0 + $0x44] sm:$0xf]
    %v2879 = vld [vmem:[%s0 + $0x48] sm:$0xf]
    %v2880 = vld [vmem:[%s0 + $0x4c] sm:$0xf]
    %v2881 = vld [vmem:[%s0 + $0x50] sm:$0xf]
    %v2882 = vld [vmem:[%s0 + $0x54] sm:$0xf]
    %v2883 = vld [vmem:[%s0 + $0x58] sm:$0xf]
    %v2884 = vld [vmem:[%s0 + $0x5c] sm:$0xf]
    %v2885 = vld [vmem:[%s0 + $0x60] sm:$0xf]
    %v2886 = vld [vmem:[%s0 + $0x64] sm:$0xf]
    %v2887 = vld [vmem:[%s0 + $0x68] sm:$0xf]
    %v2888 = vld [vmem:[%s0 + $0x6c] sm:$0xf]
    %v2889 = vld [vmem:[%s0 + $0x70] sm:$0xf]
    %v2890 = vld [vmem:[%s0 + $0x74] sm:$0xf]
    %v2891 = vld [vmem:[%s0 + $0x78] sm:$0xf]
    %v2892 = vld [vmem:[%s0 + $0x7c] sm:$0xf]
    %v2893 = vld [vmem:[%s0 + $0x80] sm:$0xf]
    %v2894 = vld [vmem:[%s0 + $0x84] sm:$0xf]
    %v2895 = vld [vmem:[%s0 + $0x88] sm:$0xf]
    %v2896 = vld [vmem:[%s0 + $0x8c] sm:$0xf]
    %v2897 = vld [vmem:[%s0 + $0x90] sm:$0xf]
    %v2898 = vld [vmem:[%s0 + $0x94] sm:$0xf]
    %v2899 = vld [vmem:[%s0 + $0x98] sm:$0xf]
    %v2900 = vld [vmem:[%s0 + $0x9c] sm:$0xf]
    %v2901 = vld [vmem:[%s0 + $0xa0] sm:$0xf]
    %v2902 = vld [vmem:[%s0 + $0xa4] sm:$0xf]
    %v2903 = vld [vmem:[%s0 + $0xa8] sm:$0xf]
    %v2904 = vld [vmem:[%s0 + $0xac] sm:$0xf]
    %v2905 = vld [vmem:[%s0 + $0xb0] sm:$0xf]
    %v2906 = vld [vmem:[%s0 + $0xb4] sm:$0xf]
    %v2907 = vld [vmem:[%s0 + $0xb8] sm:$0xf]
    %v2908 = vld [vmem:[%s0 + $0xbc] sm:$0xf]
    %v2909 = vld [vmem:[%s0 + $0xc0] sm:$0xf]
    %v2910 = vld [vmem:[%s0 + $0xc4] sm:$0xf]
    %v2911 = vld [vmem:[%s0 + $0xc8] sm:$0xf]
    %v2912 = vld [vmem:[%s0 + $0xcc] sm:$0xf]
    %v2913 = vld [vmem:[%s0 + $0xd0] sm:$0xf]
    %v2914 = vld [vmem:[%s0 + $0xd4] sm:$0xf]
    %v2915 = vld [vmem:[%s0 + $0xd8] sm:$0xf]
    %v2916 = vld [vmem:[%s0 + $0xdc] sm:$0xf]
    %v2917 = vld [vmem:[%s0 + $0xe0] sm:$0xf]
    %v2918 = vld [vmem:[%s0 + $0xe4] sm:$0xf]
    %v2919 = vld [vmem:[%s0 + $0xe8] sm:$0xf]
    %v2920 = vld [vmem:[%s0 + $0xec] sm:$0xf]
    %v2921 = vld [vmem:[%s0 + $0xf0] sm:$0xf]
    %v2922 = vld [vmem:[%s0 + $0xf4] sm:$0xf]
    %v2983 = vrot.slane %v2863, 5
    %v2984 = vrot.slane %v2983, 4
    %v2985 = vrot.slane %v2864, 5
    %v2986 = vsel %vm1178, %v2984, %v2985
    %v2987 = vrot.slane %v2985, 4
    %v2988 = vrot.slane %v2865, 5
    %v2989 = vsel %vm1178, %v2987, %v2988
    %v2990 = vrot.slane %v2988, 4
    %v2991 = vrot.slane %v2866, 5
    %v2992 = vsel %vm1178, %v2990, %v2991
    %v2993 = vrot.slane %v2991, 4
    %v2994 = vrot.slane %v2867, 5
    %v2995 = vsel %vm1178, %v2993, %v2994
    %v2996 = vrot.slane %v2994, 4
    %v2997 = vrot.slane %v2868, 5
    %v2998 = vsel %vm1178, %v2996, %v2997
    %v2999 = vrot.slane %v2997, 4
    %v3000 = vrot.slane %v2869, 5
    %v3001 = vsel %vm1178, %v2999, %v3000
    %v3002 = vrot.slane %v3000, 4
    %v3003 = vrot.slane %v2870, 5
    %v3004 = vsel %vm1178, %v3002, %v3003
    %v3005 = vrot.slane %v3003, 4
    %v3006 = vrot.slane %v2871, 5
    %v3007 = vsel %vm1178, %v3005, %v3006
    %v3008 = vrot.slane %v3006, 4
    %v3009 = vrot.slane %v2872, 5
    %v3010 = vsel %vm1178, %v3008, %v3009
    %v3011 = vrot.slane %v3009, 4
    %v3012 = vrot.slane %v2873, 5
    %v3013 = vsel %vm1178, %v3011, %v3012
    %v3014 = vrot.slane %v3012, 4
    %v3015 = vrot.slane %v2874, 5
    %v3016 = vsel %vm1178, %v3014, %v3015
    %v3017 = vrot.slane %v3015, 4
    %v3018 = vrot.slane %v2875, 5
    %v3019 = vsel %vm1178, %v3017, %v3018
    %v3020 = vrot.slane %v3018, 4
    %v3021 = vrot.slane %v2876, 5
    %v3022 = vsel %vm1178, %v3020, %v3021
    %v3023 = vrot.slane %v3021, 4
    %v3024 = vrot.slane %v2877, 5
    %v3025 = vsel %vm1178, %v3023, %v3024
    %v3026 = vrot.slane %v3024, 4
    %v3027 = vrot.slane %v2878, 5
    %v3028 = vsel %vm1178, %v3026, %v3027
    %v3029 = vrot.slane %v3027, 4
    %v3030 = vrot.slane %v2879, 5
    %v3031 = vsel %vm1178, %v3029, %v3030
    %v3032 = vrot.slane %v3030, 4
    %v3033 = vrot.slane %v2880, 5
    %v3034 = vsel %vm1178, %v3032, %v3033
    %v3035 = vrot.slane %v3033, 4
    %v3036 = vrot.slane %v2881, 5
    %v3037 = vsel %vm1178, %v3035, %v3036
    %v3038 = vrot.slane %v3036, 4
    %v3039 = vrot.slane %v2882, 5
    %v3040 = vsel %vm1178, %v3038, %v3039
    %v3041 = vrot.slane %v3039, 4
    %v3042 = vrot.slane %v2883, 5
    %v3043 = vsel %vm1178, %v3041, %v3042
    %v3044 = vrot.slane %v3042, 4
    %v3045 = vrot.slane %v2884, 5
    %v3046 = vsel %vm1178, %v3044, %v3045
    %v3047 = vrot.slane %v3045, 4
    %v3048 = vrot.slane %v2885, 5
    %v3049 = vsel %vm1178, %v3047, %v3048
    %v3050 = vrot.slane %v3048, 4
    %v3051 = vrot.slane %v2886, 5
    %v3052 = vsel %vm1178, %v3050, %v3051
    %v3053 = vrot.slane %v3051, 4
    %v3054 = vrot.slane %v2887, 5
    %v3055 = vsel %vm1178, %v3053, %v3054
    %v3056 = vrot.slane %v3054, 4
    %v3057 = vrot.slane %v2888, 5
    %v3058 = vsel %vm1178, %v3056, %v3057
    %v3059 = vrot.slane %v3057, 4
    %v3060 = vrot.slane %v2889, 5
    %v3061 = vsel %vm1178, %v3059, %v3060
    %v3062 = vrot.slane %v3060, 4
    %v3063 = vrot.slane %v2890, 5
    %v3064 = vsel %vm1178, %v3062, %v3063
    %v3065 = vrot.slane %v3063, 4
    %v3066 = vrot.slane %v2891, 5
    %v3067 = vsel %vm1178, %v3065, %v3066
    %v3068 = vrot.slane %v3066, 4
    %v3069 = vrot.slane %v2892, 5
    %v3070 = vsel %vm1178, %v3068, %v3069
    %v3071 = vrot.slane %v3069, 4
    %v3072 = vrot.slane %v2893, 5
    %v3073 = vsel %vm1178, %v3071, %v3072
    %v3074 = vrot.slane %v3072, 4
    %v3075 = vrot.slane %v2894, 5
    %v3076 = vsel %vm1178, %v3074, %v3075
    %v3077 = vrot.slane %v3075, 4
    %v3078 = vrot.slane %v2895, 5
    %v3079 = vsel %vm1178, %v3077, %v3078
    %v3080 = vrot.slane %v3078, 4
    %v3081 = vrot.slane %v2896, 5
    %v3082 = vsel %vm1178, %v3080, %v3081
    %v3083 = vrot.slane %v3081, 4
    %v3084 = vrot.slane %v2897, 5
    %v3085 = vsel %vm1178, %v3083, %v3084
    %v3086 = vrot.slane %v3084, 4
    %v3087 = vrot.slane %v2898, 5
    %v3088 = vsel %vm1178, %v3086, %v3087
    %v3089 = vrot.slane %v3087, 4
    %v3090 = vrot.slane %v2899, 5
    %v3091 = vsel %vm1178, %v3089, %v3090
    %v3092 = vrot.slane %v3090, 4
    %v3093 = vrot.slane %v2900, 5
    %v3094 = vsel %vm1178, %v3092, %v3093
    %v3095 = vrot.slane %v3093, 4
    %v3096 = vrot.slane %v2901, 5
    %v3097 = vsel %vm1178, %v3095, %v3096
    %v3098 = vrot.slane %v3096, 4
    %v3099 = vrot.slane %v2902, 5
    %v3100 = vsel %vm1178, %v3098, %v3099
    %v3101 = vrot.slane %v3099, 4
    %v3102 = vrot.slane %v2903, 5
    %v3103 = vsel %vm1178, %v3101, %v3102
    %v3104 = vrot.slane %v3102, 4
    %v3105 = vrot.slane %v2904, 5
    %v3106 = vsel %vm1178, %v3104, %v3105
    %v3107 = vrot.slane %v3105, 4
    %v3108 = vrot.slane %v2905, 5
    %v3109 = vsel %vm1178, %v3107, %v3108
    %v3110 = vrot.slane %v3108, 4
    %v3111 = vrot.slane %v2906, 5
    %v3112 = vsel %vm1178, %v3110, %v3111
    %v3113 = vrot.slane %v3111, 4
    %v3114 = vrot.slane %v2907, 5
    %v3115 = vsel %vm1178, %v3113, %v3114
    %v3116 = vrot.slane %v3114, 4
    %v3117 = vrot.slane %v2908, 5
    %v3118 = vsel %vm1178, %v3116, %v3117
    %v3119 = vrot.slane %v3117, 4
    %v3120 = vrot.slane %v2909, 5
    %v3121 = vsel %vm1178, %v3119, %v3120
    %v3122 = vrot.slane %v3120, 4
    %v3123 = vrot.slane %v2910, 5
    %v3124 = vsel %vm1178, %v3122, %v3123
    %v3125 = vrot.slane %v3123, 4
    %v3126 = vrot.slane %v2911, 5
    %v3127 = vsel %vm1178, %v3125, %v3126
    %v3128 = vrot.slane %v3126, 4
    %v3129 = vrot.slane %v2912, 5
    %v3130 = vsel %vm1178, %v3128, %v3129
    %v3131 = vrot.slane %v3129, 4
    %v3132 = vrot.slane %v2913, 5
    %v3133 = vsel %vm1178, %v3131, %v3132
    %v3134 = vrot.slane %v3132, 4
    %v3135 = vrot.slane %v2914, 5
    %v3136 = vsel %vm1178, %v3134, %v3135
    %v3137 = vrot.slane %v3135, 4
    %v3138 = vrot.slane %v2915, 5
    %v3139 = vsel %vm1178, %v3137, %v3138
    %v3140 = vrot.slane %v3138, 4
    %v3141 = vrot.slane %v2916, 5
    %v3142 = vsel %vm1178, %v3140, %v3141
    %v3143 = vrot.slane %v3141, 4
    %v3144 = vrot.slane %v2917, 5
    %v3145 = vsel %vm1178, %v3143, %v3144
    %v3146 = vrot.slane %v3144, 4
    %v3147 = vrot.slane %v2918, 5
    %v3148 = vsel %vm1178, %v3146, %v3147
    %v3149 = vrot.slane %v3147, 4
    %v3150 = vrot.slane %v2919, 5
    %v3151 = vsel %vm1178, %v3149, %v3150
    %v3152 = vrot.slane %v3150, 4
    %v3153 = vrot.slane %v2920, 5
    %v3154 = vsel %vm1178, %v3152, %v3153
    %v3155 = vrot.slane %v3153, 4
    %v3156 = vrot.slane %v2921, 5
    %v3157 = vsel %vm1178, %v3155, %v3156
    %v3158 = vrot.slane %v3156, 4
    %v3159 = vrot.slane %v2922, 5
    %v3160 = vsel %vm1178, %v3158, %v3159
    %v3161 = vrot.slane %v3159, 4
    %3162 = vrot.lane.b32.xlu0 %v2986, 40
    %v3163 = vpop.permute.xlu0 %3162
    %3164 = vrot.lane.b32.xlu0 %v2989, 40
    %v3165 = vpop.permute.xlu0 %3164
    %3166 = vrot.lane.b32.xlu0 %v2992, 40
    %v3167 = vpop.permute.xlu0 %3166
    %3168 = vrot.lane.b32.xlu0 %v2995, 40
    %v3169 = vpop.permute.xlu0 %3168
    %3170 = vrot.lane.b32.xlu0 %v2998, 40
    %v3171 = vpop.permute.xlu0 %3170
    %3172 = vrot.lane.b32.xlu0 %v3001, 40
    %v3173 = vpop.permute.xlu0 %3172
    %3174 = vrot.lane.b32.xlu0 %v3004, 40
    %v3175 = vpop.permute.xlu0 %3174
    %3176 = vrot.lane.b32.xlu0 %v3007, 40
    %v3177 = vpop.permute.xlu0 %3176
    %3178 = vrot.lane.b32.xlu0 %v3010, 40
    %v3179 = vpop.permute.xlu0 %3178
    %3180 = vrot.lane.b32.xlu0 %v3013, 40
    %v3181 = vpop.permute.xlu0 %3180
    %3182 = vrot.lane.b32.xlu0 %v3016, 40
    %v3183 = vpop.permute.xlu0 %3182
    %3184 = vrot.lane.b32.xlu0 %v3019, 40
    %v3185 = vpop.permute.xlu0 %3184
    %3186 = vrot.lane.b32.xlu0 %v3022, 40
    %v3187 = vpop.permute.xlu0 %3186
    %3188 = vrot.lane.b32.xlu0 %v3025, 40
    %v3189 = vpop.permute.xlu0 %3188
    %3190 = vrot.lane.b32.xlu0 %v3028, 40
    %v3191 = vpop.permute.xlu0 %3190
    %3192 = vrot.lane.b32.xlu0 %v3031, 40
    %v3193 = vpop.permute.xlu0 %3192
    %3194 = vrot.lane.b32.xlu0 %v3034, 40
    %v3195 = vpop.permute.xlu0 %3194
    %3196 = vrot.lane.b32.xlu0 %v3037, 40
    %v3197 = vpop.permute.xlu0 %3196
    %3198 = vrot.lane.b32.xlu0 %v3040, 40
    %v3199 = vpop.permute.xlu0 %3198
    %3200 = vrot.lane.b32.xlu0 %v3043, 40
    %v3201 = vpop.permute.xlu0 %3200
    %3202 = vrot.lane.b32.xlu0 %v3046, 40
    %v3203 = vpop.permute.xlu0 %3202
    %3204 = vrot.lane.b32.xlu0 %v3049, 40
    %v3205 = vpop.permute.xlu0 %3204
    %3206 = vrot.lane.b32.xlu0 %v3052, 40
    %v3207 = vpop.permute.xlu0 %3206
    %3208 = vrot.lane.b32.xlu0 %v3055, 40
    %v3209 = vpop.permute.xlu0 %3208
    %3210 = vrot.lane.b32.xlu0 %v3058, 40
    %v3211 = vpop.permute.xlu0 %3210
    %3212 = vrot.lane.b32.xlu0 %v3061, 40
    %v3213 = vpop.permute.xlu0 %3212
    %3214 = vrot.lane.b32.xlu0 %v3064, 40
    %v3215 = vpop.permute.xlu0 %3214
    %3216 = vrot.lane.b32.xlu0 %v3067, 40
    %v3217 = vpop.permute.xlu0 %3216
    %3218 = vrot.lane.b32.xlu0 %v3070, 40
    %v3219 = vpop.permute.xlu0 %3218
    %3220 = vrot.lane.b32.xlu0 %v3073, 40
    %v3221 = vpop.permute.xlu0 %3220
    %3222 = vrot.lane.b32.xlu0 %v3076, 40
    %v3223 = vpop.permute.xlu0 %3222
    %3224 = vrot.lane.b32.xlu0 %v3079, 40
    %v3225 = vpop.permute.xlu0 %3224
    %3226 = vrot.lane.b32.xlu0 %v3082, 40
    %v3227 = vpop.permute.xlu0 %3226
    %3228 = vrot.lane.b32.xlu0 %v3085, 40
    %v3229 = vpop.permute.xlu0 %3228
    %3230 = vrot.lane.b32.xlu0 %v3088, 40
    %v3231 = vpop.permute.xlu0 %3230
    %3232 = vrot.lane.b32.xlu0 %v3091, 40
    %v3233 = vpop.permute.xlu0 %3232
    %3234 = vrot.lane.b32.xlu0 %v3094, 40
    %v3235 = vpop.permute.xlu0 %3234
    %3236 = vrot.lane.b32.xlu0 %v3097, 40
    %v3237 = vpop.permute.xlu0 %3236
    %3238 = vrot.lane.b32.xlu0 %v3100, 40
    %v3239 = vpop.permute.xlu0 %3238
    %3240 = vrot.lane.b32.xlu0 %v3103, 40
    %v3241 = vpop.permute.xlu0 %3240
    %3242 = vrot.lane.b32.xlu0 %v3106, 40
    %v3243 = vpop.permute.xlu0 %3242
    %3244 = vrot.lane.b32.xlu0 %v3109, 40
    %v3245 = vpop.permute.xlu0 %3244
    %3246 = vrot.lane.b32.xlu0 %v3112, 40
    %v3247 = vpop.permute.xlu0 %3246
    %3248 = vrot.lane.b32.xlu0 %v3115, 40
    %v3249 = vpop.permute.xlu0 %3248
    %3250 = vrot.lane.b32.xlu0 %v3118, 40
    %v3251 = vpop.permute.xlu0 %3250
    %3252 = vrot.lane.b32.xlu0 %v3121, 40
    %v3253 = vpop.permute.xlu0 %3252
    %3254 = vrot.lane.b32.xlu0 %v3124, 40
    %v3255 = vpop.permute.xlu0 %3254
    %3256 = vrot.lane.b32.xlu0 %v3127, 40
    %v3257 = vpop.permute.xlu0 %3256
    %3258 = vrot.lane.b32.xlu0 %v3130, 40
    %v3259 = vpop.permute.xlu0 %3258
    %3260 = vrot.lane.b32.xlu0 %v3133, 40
    %v3261 = vpop.permute.xlu0 %3260
    %3262 = vrot.lane.b32.xlu0 %v3136, 40
    %v3263 = vpop.permute.xlu0 %3262
    %3264 = vrot.lane.b32.xlu0 %v3139, 40
    %v3265 = vpop.permute.xlu0 %3264
    %3266 = vrot.lane.b32.xlu0 %v3142, 40
    %v3267 = vpop.permute.xlu0 %3266
    %3268 = vrot.lane.b32.xlu0 %v3145, 40
    %v3269 = vpop.permute.xlu0 %3268
    %3270 = vrot.lane.b32.xlu0 %v3148, 40
    %v3271 = vpop.permute.xlu0 %3270
    %3272 = vrot.lane.b32.xlu0 %v3151, 40
    %v3273 = vpop.permute.xlu0 %3272
    %3274 = vrot.lane.b32.xlu0 %v3154, 40
    %v3275 = vpop.permute.xlu0 %3274
    %3276 = vrot.lane.b32.xlu0 %v3157, 40
    %v3277 = vpop.permute.xlu0 %3276
    %3278 = vrot.lane.b32.xlu0 %v3160, 40
    %v3279 = vpop.permute.xlu0 %3278
    %3280 = vrot.lane.b32.xlu0 %v3161, 40
    %v3281 = vpop.permute.xlu0 %3280
    %vm3342 = vcmask 388416
    %3343 = vst.msk [vmem:[#allocation2] sm:$0xf] %vm3342, %v3163
    %3344 = vst.msk [vmem:[#allocation2 + $0x4] sm:$0xf] %vm3342, %v3165
    %3345 = vst.msk [vmem:[#allocation2 + $0x8] sm:$0xf] %vm3342, %v3167
    %3346 = vst.msk [vmem:[#allocation2 + $0xc] sm:$0xf] %vm3342, %v3169
    %3347 = vst.msk [vmem:[#allocation2 + $0x10] sm:$0xf] %vm3342, %v3171
    %3348 = vst.msk [vmem:[#allocation2 + $0x14] sm:$0xf] %vm3342, %v3173
    %3349 = vst.msk [vmem:[#allocation2 + $0x18] sm:$0xf] %vm3342, %v3175
    %3350 = vst.msk [vmem:[#allocation2 + $0x1c] sm:$0xf] %vm3342, %v3177
    %3351 = vst.msk [vmem:[#allocation2 + $0x20] sm:$0xf] %vm3342, %v3179
    %3352 = vst.msk [vmem:[#allocation2 + $0x24] sm:$0xf] %vm3342, %v3181
    %3353 = vst.msk [vmem:[#allocation2 + $0x28] sm:$0xf] %vm3342, %v3183
    %3354 = vst.msk [vmem:[#allocation2 + $0x2c] sm:$0xf] %vm3342, %v3185
    %3355 = vst.msk [vmem:[#allocation2 + $0x30] sm:$0xf] %vm3342, %v3187
    %3356 = vst.msk [vmem:[#allocation2 + $0x34] sm:$0xf] %vm3342, %v3189
    %3357 = vst.msk [vmem:[#allocation2 + $0x38] sm:$0xf] %vm3342, %v3191
    %3358 = vst.msk [vmem:[#allocation2 + $0x3c] sm:$0xf] %vm3342, %v3193
    %3359 = vst.msk [vmem:[#allocation2 + $0x40] sm:$0xf] %vm3342, %v3195
    %3360 = vst.msk [vmem:[#allocation2 + $0x44] sm:$0xf] %vm3342, %v3197
    %3361 = vst.msk [vmem:[#allocation2 + $0x48] sm:$0xf] %vm3342, %v3199
    %3362 = vst.msk [vmem:[#allocation2 + $0x4c] sm:$0xf] %vm3342, %v3201
    %3363 = vst.msk [vmem:[#allocation2 + $0x50] sm:$0xf] %vm3342, %v3203
    %3364 = vst.msk [vmem:[#allocation2 + $0x54] sm:$0xf] %vm3342, %v3205
    %3365 = vst.msk [vmem:[#allocation2 + $0x58] sm:$0xf] %vm3342, %v3207
    %3366 = vst.msk [vmem:[#allocation2 + $0x5c] sm:$0xf] %vm3342, %v3209
    %3367 = vst.msk [vmem:[#allocation2 + $0x60] sm:$0xf] %vm3342, %v3211
    %3368 = vst.msk [vmem:[#allocation2 + $0x64] sm:$0xf] %vm3342, %v3213
    %3369 = vst.msk [vmem:[#allocation2 + $0x68] sm:$0xf] %vm3342, %v3215
    %3370 = vst.msk [vmem:[#allocation2 + $0x6c] sm:$0xf] %vm3342, %v3217
    %3371 = vst.msk [vmem:[#allocation2 + $0x70] sm:$0xf] %vm3342, %v3219
    %3372 = vst.msk [vmem:[#allocation2 + $0x74] sm:$0xf] %vm3342, %v3221
    %3373 = vst.msk [vmem:[#allocation2 + $0x78] sm:$0xf] %vm3342, %v3223
    %3374 = vst.msk [vmem:[#allocation2 + $0x7c] sm:$0xf] %vm3342, %v3225
    %3375 = vst.msk [vmem:[#allocation2 + $0x80] sm:$0xf] %vm3342, %v3227
    %3376 = vst.msk [vmem:[#allocation2 + $0x84] sm:$0xf] %vm3342, %v3229
    %3377 = vst.msk [vmem:[#allocation2 + $0x88] sm:$0xf] %vm3342, %v3231
    %3378 = vst.msk [vmem:[#allocation2 + $0x8c] sm:$0xf] %vm3342, %v3233
    %3379 = vst.msk [vmem:[#allocation2 + $0x90] sm:$0xf] %vm3342, %v3235
    %3380 = vst.msk [vmem:[#allocation2 + $0x94] sm:$0xf] %vm3342, %v3237
    %3381 = vst.msk [vmem:[#allocation2 + $0x98] sm:$0xf] %vm3342, %v3239
    %3382 = vst.msk [vmem:[#allocation2 + $0x9c] sm:$0xf] %vm3342, %v3241
    %3383 = vst.msk [vmem:[#allocation2 + $0xa0] sm:$0xf] %vm3342, %v3243
    %3384 = vst.msk [vmem:[#allocation2 + $0xa4] sm:$0xf] %vm3342, %v3245
    %3385 = vst.msk [vmem:[#allocation2 + $0xa8] sm:$0xf] %vm3342, %v3247
    %3386 = vst.msk [vmem:[#allocation2 + $0xac] sm:$0xf] %vm3342, %v3249
    %3387 = vst.msk [vmem:[#allocation2 + $0xb0] sm:$0xf] %vm3342, %v3251
    %3388 = vst.msk [vmem:[#allocation2 + $0xb4] sm:$0xf] %vm3342, %v3253
    %3389 = vst.msk [vmem:[#allocation2 + $0xb8] sm:$0xf] %vm3342, %v3255
    %3390 = vst.msk [vmem:[#allocation2 + $0xbc] sm:$0xf] %vm3342, %v3257
    %3391 = vst.msk [vmem:[#allocation2 + $0xc0] sm:$0xf] %vm3342, %v3259
    %3392 = vst.msk [vmem:[#allocation2 + $0xc4] sm:$0xf] %vm3342, %v3261
    %3393 = vst.msk [vmem:[#allocation2 + $0xc8] sm:$0xf] %vm3342, %v3263
    %3394 = vst.msk [vmem:[#allocation2 + $0xcc] sm:$0xf] %vm3342, %v3265
    %3395 = vst.msk [vmem:[#allocation2 + $0xd0] sm:$0xf] %vm3342, %v3267
    %3396 = vst.msk [vmem:[#allocation2 + $0xd4] sm:$0xf] %vm3342, %v3269
    %3397 = vst.msk [vmem:[#allocation2 + $0xd8] sm:$0xf] %vm3342, %v3271
    %3398 = vst.msk [vmem:[#allocation2 + $0xdc] sm:$0xf] %vm3342, %v3273
    %3399 = vst.msk [vmem:[#allocation2 + $0xe0] sm:$0xf] %vm3342, %v3275
    %3400 = vst.msk [vmem:[#allocation2 + $0xe4] sm:$0xf] %vm3342, %v3277
    %3401 = vst.msk [vmem:[#allocation2 + $0xe8] sm:$0xf] %vm3342, %v3279
    %vm3402 = vcmask 387392
    %3403 = vst.msk [vmem:[#allocation2 + $0xec] sm:$0x7] %vm3402, %v3281
    %v3404 = vld [vmem:[%s0 + $0x10] sm:$0xf]
    %v3405 = vld [vmem:[%s0 + $0x14] sm:$0xf]
    %v3406 = vld [vmem:[%s0 + $0x18] sm:$0xf]
    %v3407 = vld [vmem:[%s0 + $0x1c] sm:$0xf]
    %v3408 = vld [vmem:[%s0 + $0x20] sm:$0xf]
    %v3409 = vld [vmem:[%s0 + $0x24] sm:$0xf]
    %v3410 = vld [vmem:[%s0 + $0x28] sm:$0xf]
    %v3411 = vld [vmem:[%s0 + $0x2c] sm:$0xf]
    %v3412 = vld [vmem:[%s0 + $0x30] sm:$0xf]
    %v3413 = vld [vmem:[%s0 + $0x34] sm:$0xf]
    %v3414 = vld [vmem:[%s0 + $0x38] sm:$0xf]
    %v3415 = vld [vmem:[%s0 + $0x3c] sm:$0xf]
    %v3416 = vld [vmem:[%s0 + $0x40] sm:$0xf]
    %v3417 = vld [vmem:[%s0 + $0x44] sm:$0xf]
    %v3418 = vld [vmem:[%s0 + $0x48] sm:$0xf]
    %v3419 = vld [vmem:[%s0 + $0x4c] sm:$0xf]
    %v3420 = vld [vmem:[%s0 + $0x50] sm:$0xf]
    %v3421 = vld [vmem:[%s0 + $0x54] sm:$0xf]
    %v3422 = vld [vmem:[%s0 + $0x58] sm:$0xf]
    %v3423 = vld [vmem:[%s0 + $0x5c] sm:$0xf]
    %v3424 = vld [vmem:[%s0 + $0x60] sm:$0xf]
    %v3425 = vld [vmem:[%s0 + $0x64] sm:$0xf]
    %v3426 = vld [vmem:[%s0 + $0x68] sm:$0xf]
    %v3427 = vld [vmem:[%s0 + $0x6c] sm:$0xf]
    %v3428 = vld [vmem:[%s0 + $0x70] sm:$0xf]
    %v3429 = vld [vmem:[%s0 + $0x74] sm:$0xf]
    %v3430 = vld [vmem:[%s0 + $0x78] sm:$0xf]
    %v3431 = vld [vmem:[%s0 + $0x7c] sm:$0xf]
    %v3432 = vld [vmem:[%s0 + $0x80] sm:$0xf]
    %v3433 = vld [vmem:[%s0 + $0x84] sm:$0xf]
    %v3434 = vld [vmem:[%s0 + $0x88] sm:$0xf]
    %v3435 = vld [vmem:[%s0 + $0x8c] sm:$0xf]
    %v3436 = vld [vmem:[%s0 + $0x90] sm:$0xf]
    %v3437 = vld [vmem:[%s0 + $0x94] sm:$0xf]
    %v3438 = vld [vmem:[%s0 + $0x98] sm:$0xf]
    %v3439 = vld [vmem:[%s0 + $0x9c] sm:$0xf]
    %v3440 = vld [vmem:[%s0 + $0xa0] sm:$0xf]
    %v3441 = vld [vmem:[%s0 + $0xa4] sm:$0xf]
    %v3442 = vld [vmem:[%s0 + $0xa8] sm:$0xf]
    %v3443 = vld [vmem:[%s0 + $0xac] sm:$0xf]
    %v3444 = vld [vmem:[%s0 + $0xb0] sm:$0xf]
    %v3445 = vld [vmem:[%s0 + $0xb4] sm:$0xf]
    %v3446 = vld [vmem:[%s0 + $0xb8] sm:$0xf]
    %v3447 = vld [vmem:[%s0 + $0xbc] sm:$0xf]
    %v3448 = vld [vmem:[%s0 + $0xc0] sm:$0xf]
    %v3449 = vld [vmem:[%s0 + $0xc4] sm:$0xf]
    %v3450 = vld [vmem:[%s0 + $0xc8] sm:$0xf]
    %v3451 = vld [vmem:[%s0 + $0xcc] sm:$0xf]
    %v3452 = vld [vmem:[%s0 + $0xd0] sm:$0xf]
    %v3453 = vld [vmem:[%s0 + $0xd4] sm:$0xf]
    %v3454 = vld [vmem:[%s0 + $0xd8] sm:$0xf]
    %v3455 = vld [vmem:[%s0 + $0xdc] sm:$0xf]
    %v3456 = vld [vmem:[%s0 + $0xe0] sm:$0xf]
    %v3457 = vld [vmem:[%s0 + $0xe4] sm:$0xf]
    %v3458 = vld [vmem:[%s0 + $0xe8] sm:$0xf]
    %v3459 = vld [vmem:[%s0 + $0xec] sm:$0xf]
    %v3460 = vld [vmem:[%s0 + $0xf0] sm:$0xf]
    %v3461 = vld [vmem:[%s0 + $0xf4] sm:$0xf]
    %v3462 = vld [vmem:[%s0 + $0xf8] sm:$0xf]
    %v3463 = vld [vmem:[%s0 + $0xfc] sm:$0x7]
    %3524 = vrot.lane.b32.xlu0 %v3404, 48
    %v3525 = vpop.permute.xlu0 %3524
    %3526 = vrot.lane.b32.xlu0 %v3405, 48
    %v3527 = vpop.permute.xlu0 %3526
    %3528 = vrot.lane.b32.xlu0 %v3406, 48
    %v3529 = vpop.permute.xlu0 %3528
    %3530 = vrot.lane.b32.xlu0 %v3407, 48
    %v3531 = vpop.permute.xlu0 %3530
    %3532 = vrot.lane.b32.xlu0 %v3408, 48
    %v3533 = vpop.permute.xlu0 %3532
    %3534 = vrot.lane.b32.xlu0 %v3409, 48
    %v3535 = vpop.permute.xlu0 %3534
    %3536 = vrot.lane.b32.xlu0 %v3410, 48
    %v3537 = vpop.permute.xlu0 %3536
    %3538 = vrot.lane.b32.xlu0 %v3411, 48
    %v3539 = vpop.permute.xlu0 %3538
    %3540 = vrot.lane.b32.xlu0 %v3412, 48
    %v3541 = vpop.permute.xlu0 %3540
    %3542 = vrot.lane.b32.xlu0 %v3413, 48
    %v3543 = vpop.permute.xlu0 %3542
    %3544 = vrot.lane.b32.xlu0 %v3414, 48
    %v3545 = vpop.permute.xlu0 %3544
    %3546 = vrot.lane.b32.xlu0 %v3415, 48
    %v3547 = vpop.permute.xlu0 %3546
    %3548 = vrot.lane.b32.xlu0 %v3416, 48
    %v3549 = vpop.permute.xlu0 %3548
    %3550 = vrot.lane.b32.xlu0 %v3417, 48
    %v3551 = vpop.permute.xlu0 %3550
    %3552 = vrot.lane.b32.xlu0 %v3418, 48
    %v3553 = vpop.permute.xlu0 %3552
    %3554 = vrot.lane.b32.xlu0 %v3419, 48
    %v3555 = vpop.permute.xlu0 %3554
    %3556 = vrot.lane.b32.xlu0 %v3420, 48
    %v3557 = vpop.permute.xlu0 %3556
    %3558 = vrot.lane.b32.xlu0 %v3421, 48
    %v3559 = vpop.permute.xlu0 %3558
    %3560 = vrot.lane.b32.xlu0 %v3422, 48
    %v3561 = vpop.permute.xlu0 %3560
    %3562 = vrot.lane.b32.xlu0 %v3423, 48
    %v3563 = vpop.permute.xlu0 %3562
    %3564 = vrot.lane.b32.xlu0 %v3424, 48
    %v3565 = vpop.permute.xlu0 %3564
    %3566 = vrot.lane.b32.xlu0 %v3425, 48
    %v3567 = vpop.permute.xlu0 %3566
    %3568 = vrot.lane.b32.xlu0 %v3426, 48
    %v3569 = vpop.permute.xlu0 %3568
    %3570 = vrot.lane.b32.xlu0 %v3427, 48
    %v3571 = vpop.permute.xlu0 %3570
    %3572 = vrot.lane.b32.xlu0 %v3428, 48
    %v3573 = vpop.permute.xlu0 %3572
    %3574 = vrot.lane.b32.xlu0 %v3429, 48
    %v3575 = vpop.permute.xlu0 %3574
    %3576 = vrot.lane.b32.xlu0 %v3430, 48
    %v3577 = vpop.permute.xlu0 %3576
    %3578 = vrot.lane.b32.xlu0 %v3431, 48
    %v3579 = vpop.permute.xlu0 %3578
    %3580 = vrot.lane.b32.xlu0 %v3432, 48
    %v3581 = vpop.permute.xlu0 %3580
    %3582 = vrot.lane.b32.xlu0 %v3433, 48
    %v3583 = vpop.permute.xlu0 %3582
    %3584 = vrot.lane.b32.xlu0 %v3434, 48
    %v3585 = vpop.permute.xlu0 %3584
    %3586 = vrot.lane.b32.xlu0 %v3435, 48
    %v3587 = vpop.permute.xlu0 %3586
    %3588 = vrot.lane.b32.xlu0 %v3436, 48
    %v3589 = vpop.permute.xlu0 %3588
    %3590 = vrot.lane.b32.xlu0 %v3437, 48
    %v3591 = vpop.permute.xlu0 %3590
    %3592 = vrot.lane.b32.xlu0 %v3438, 48
    %v3593 = vpop.permute.xlu0 %3592
    %3594 = vrot.lane.b32.xlu0 %v3439, 48
    %v3595 = vpop.permute.xlu0 %3594
    %3596 = vrot.lane.b32.xlu0 %v3440, 48
    %v3597 = vpop.permute.xlu0 %3596
    %3598 = vrot.lane.b32.xlu0 %v3441, 48
    %v3599 = vpop.permute.xlu0 %3598
    %3600 = vrot.lane.b32.xlu0 %v3442, 48
    %v3601 = vpop.permute.xlu0 %3600
    %3602 = vrot.lane.b32.xlu0 %v3443, 48
    %v3603 = vpop.permute.xlu0 %3602
    %3604 = vrot.lane.b32.xlu0 %v3444, 48
    %v3605 = vpop.permute.xlu0 %3604
    %3606 = vrot.lane.b32.xlu0 %v3445, 48
    %v3607 = vpop.permute.xlu0 %3606
    %3608 = vrot.lane.b32.xlu0 %v3446, 48
    %v3609 = vpop.permute.xlu0 %3608
    %3610 = vrot.lane.b32.xlu0 %v3447, 48
    %v3611 = vpop.permute.xlu0 %3610
    %3612 = vrot.lane.b32.xlu0 %v3448, 48
    %v3613 = vpop.permute.xlu0 %3612
    %3614 = vrot.lane.b32.xlu0 %v3449, 48
    %v3615 = vpop.permute.xlu0 %3614
    %3616 = vrot.lane.b32.xlu0 %v3450, 48
    %v3617 = vpop.permute.xlu0 %3616
    %3618 = vrot.lane.b32.xlu0 %v3451, 48
    %v3619 = vpop.permute.xlu0 %3618
    %3620 = vrot.lane.b32.xlu0 %v3452, 48
    %v3621 = vpop.permute.xlu0 %3620
    %3622 = vrot.lane.b32.xlu0 %v3453, 48
    %v3623 = vpop.permute.xlu0 %3622
    %3624 = vrot.lane.b32.xlu0 %v3454, 48
    %v3625 = vpop.permute.xlu0 %3624
    %3626 = vrot.lane.b32.xlu0 %v3455, 48
    %v3627 = vpop.permute.xlu0 %3626
    %3628 = vrot.lane.b32.xlu0 %v3456, 48
    %v3629 = vpop.permute.xlu0 %3628
    %3630 = vrot.lane.b32.xlu0 %v3457, 48
    %v3631 = vpop.permute.xlu0 %3630
    %3632 = vrot.lane.b32.xlu0 %v3458, 48
    %v3633 = vpop.permute.xlu0 %3632
    %3634 = vrot.lane.b32.xlu0 %v3459, 48
    %v3635 = vpop.permute.xlu0 %3634
    %3636 = vrot.lane.b32.xlu0 %v3460, 48
    %v3637 = vpop.permute.xlu0 %3636
    %3638 = vrot.lane.b32.xlu0 %v3461, 48
    %v3639 = vpop.permute.xlu0 %3638
    %3640 = vrot.lane.b32.xlu0 %v3462, 48
    %v3641 = vpop.permute.xlu0 %3640
    %3642 = vrot.lane.b32.xlu0 %v3463, 48
    %v3643 = vpop.permute.xlu0 %3642
    %vm3704 = vcmask 454016
    %3705 = vst.msk [vmem:[#allocation2] sm:$0xf] %vm3704, %v3525
    %3706 = vst.msk [vmem:[#allocation2 + $0x4] sm:$0xf] %vm3704, %v3527
    %3707 = vst.msk [vmem:[#allocation2 + $0x8] sm:$0xf] %vm3704, %v3529
    %3708 = vst.msk [vmem:[#allocation2 + $0xc] sm:$0xf] %vm3704, %v3531
    %3709 = vst.msk [vmem:[#allocation2 + $0x10] sm:$0xf] %vm3704, %v3533
    %3710 = vst.msk [vmem:[#allocation2 + $0x14] sm:$0xf] %vm3704, %v3535
    %3711 = vst.msk [vmem:[#allocation2 + $0x18] sm:$0xf] %vm3704, %v3537
    %3712 = vst.msk [vmem:[#allocation2 + $0x1c] sm:$0xf] %vm3704, %v3539
    %3713 = vst.msk [vmem:[#allocation2 + $0x20] sm:$0xf] %vm3704, %v3541
    %3714 = vst.msk [vmem:[#allocation2 + $0x24] sm:$0xf] %vm3704, %v3543
    %3715 = vst.msk [vmem:[#allocation2 + $0x28] sm:$0xf] %vm3704, %v3545
    %3716 = vst.msk [vmem:[#allocation2 + $0x2c] sm:$0xf] %vm3704, %v3547
    %3717 = vst.msk [vmem:[#allocation2 + $0x30] sm:$0xf] %vm3704, %v3549
    %3718 = vst.msk [vmem:[#allocation2 + $0x34] sm:$0xf] %vm3704, %v3551
    %3719 = vst.msk [vmem:[#allocation2 + $0x38] sm:$0xf] %vm3704, %v3553
    %3720 = vst.msk [vmem:[#allocation2 + $0x3c] sm:$0xf] %vm3704, %v3555
    %3721 = vst.msk [vmem:[#allocation2 + $0x40] sm:$0xf] %vm3704, %v3557
    %3722 = vst.msk [vmem:[#allocation2 + $0x44] sm:$0xf] %vm3704, %v3559
    %3723 = vst.msk [vmem:[#allocation2 + $0x48] sm:$0xf] %vm3704, %v3561
    %3724 = vst.msk [vmem:[#allocation2 + $0x4c] sm:$0xf] %vm3704, %v3563
    %3725 = vst.msk [vmem:[#allocation2 + $0x50] sm:$0xf] %vm3704, %v3565
    %3726 = vst.msk [vmem:[#allocation2 + $0x54] sm:$0xf] %vm3704, %v3567
    %3727 = vst.msk [vmem:[#allocation2 + $0x58] sm:$0xf] %vm3704, %v3569
    %3728 = vst.msk [vmem:[#allocation2 + $0x5c] sm:$0xf] %vm3704, %v3571
    %3729 = vst.msk [vmem:[#allocation2 + $0x60] sm:$0xf] %vm3704, %v3573
    %3730 = vst.msk [vmem:[#allocation2 + $0x64] sm:$0xf] %vm3704, %v3575
    %3731 = vst.msk [vmem:[#allocation2 + $0x68] sm:$0xf] %vm3704, %v3577
    %3732 = vst.msk [vmem:[#allocation2 + $0x6c] sm:$0xf] %vm3704, %v3579
    %3733 = vst.msk [vmem:[#allocation2 + $0x70] sm:$0xf] %vm3704, %v3581
    %3734 = vst.msk [vmem:[#allocation2 + $0x74] sm:$0xf] %vm3704, %v3583
    %3735 = vst.msk [vmem:[#allocation2 + $0x78] sm:$0xf] %vm3704, %v3585
    %3736 = vst.msk [vmem:[#allocation2 + $0x7c] sm:$0xf] %vm3704, %v3587
    %3737 = vst.msk [vmem:[#allocation2 + $0x80] sm:$0xf] %vm3704, %v3589
    %3738 = vst.msk [vmem:[#allocation2 + $0x84] sm:$0xf] %vm3704, %v3591
    %3739 = vst.msk [vmem:[#allocation2 + $0x88] sm:$0xf] %vm3704, %v3593
    %3740 = vst.msk [vmem:[#allocation2 + $0x8c] sm:$0xf] %vm3704, %v3595
    %3741 = vst.msk [vmem:[#allocation2 + $0x90] sm:$0xf] %vm3704, %v3597
    %3742 = vst.msk [vmem:[#allocation2 + $0x94] sm:$0xf] %vm3704, %v3599
    %3743 = vst.msk [vmem:[#allocation2 + $0x98] sm:$0xf] %vm3704, %v3601
    %3744 = vst.msk [vmem:[#allocation2 + $0x9c] sm:$0xf] %vm3704, %v3603
    %3745 = vst.msk [vmem:[#allocation2 + $0xa0] sm:$0xf] %vm3704, %v3605
    %3746 = vst.msk [vmem:[#allocation2 + $0xa4] sm:$0xf] %vm3704, %v3607
    %3747 = vst.msk [vmem:[#allocation2 + $0xa8] sm:$0xf] %vm3704, %v3609
    %3748 = vst.msk [vmem:[#allocation2 + $0xac] sm:$0xf] %vm3704, %v3611
    %3749 = vst.msk [vmem:[#allocation2 + $0xb0] sm:$0xf] %vm3704, %v3613
    %3750 = vst.msk [vmem:[#allocation2 + $0xb4] sm:$0xf] %vm3704, %v3615
    %3751 = vst.msk [vmem:[#allocation2 + $0xb8] sm:$0xf] %vm3704, %v3617
    %3752 = vst.msk [vmem:[#allocation2 + $0xbc] sm:$0xf] %vm3704, %v3619
    %3753 = vst.msk [vmem:[#allocation2 + $0xc0] sm:$0xf] %vm3704, %v3621
    %3754 = vst.msk [vmem:[#allocation2 + $0xc4] sm:$0xf] %vm3704, %v3623
    %3755 = vst.msk [vmem:[#allocation2 + $0xc8] sm:$0xf] %vm3704, %v3625
    %3756 = vst.msk [vmem:[#allocation2 + $0xcc] sm:$0xf] %vm3704, %v3627
    %3757 = vst.msk [vmem:[#allocation2 + $0xd0] sm:$0xf] %vm3704, %v3629
    %3758 = vst.msk [vmem:[#allocation2 + $0xd4] sm:$0xf] %vm3704, %v3631
    %3759 = vst.msk [vmem:[#allocation2 + $0xd8] sm:$0xf] %vm3704, %v3633
    %3760 = vst.msk [vmem:[#allocation2 + $0xdc] sm:$0xf] %vm3704, %v3635
    %3761 = vst.msk [vmem:[#allocation2 + $0xe0] sm:$0xf] %vm3704, %v3637
    %3762 = vst.msk [vmem:[#allocation2 + $0xe4] sm:$0xf] %vm3704, %v3639
    %3763 = vst.msk [vmem:[#allocation2 + $0xe8] sm:$0xf] %vm3704, %v3641
    %vm3764 = vcmask 452992
    %3765 = vst.msk [vmem:[#allocation2 + $0xec] sm:$0x7] %vm3764, %v3643
    %v3766 = vld [vmem:[%s0 + $0x10] sm:$0xf]
    %v3767 = vld [vmem:[%s0 + $0x14] sm:$0xf]
    %v3768 = vld [vmem:[%s0 + $0x18] sm:$0xf]
    %v3769 = vld [vmem:[%s0 + $0x1c] sm:$0xf]
    %v3770 = vld [vmem:[%s0 + $0x20] sm:$0xf]
    %v3771 = vld [vmem:[%s0 + $0x24] sm:$0xf]
    %v3772 = vld [vmem:[%s0 + $0x28] sm:$0xf]
    %v3773 = vld [vmem:[%s0 + $0x2c] sm:$0xf]
    %v3774 = vld [vmem:[%s0 + $0x30] sm:$0xf]
    %v3775 = vld [vmem:[%s0 + $0x34] sm:$0xf]
    %v3776 = vld [vmem:[%s0 + $0x38] sm:$0xf]
    %v3777 = vld [vmem:[%s0 + $0x3c] sm:$0xf]
    %v3778 = vld [vmem:[%s0 + $0x40] sm:$0xf]
    %v3779 = vld [vmem:[%s0 + $0x44] sm:$0xf]
    %v3780 = vld [vmem:[%s0 + $0x48] sm:$0xf]
    %v3781 = vld [vmem:[%s0 + $0x4c] sm:$0xf]
    %v3782 = vld [vmem:[%s0 + $0x50] sm:$0xf]
    %v3783 = vld [vmem:[%s0 + $0x54] sm:$0xf]
    %v3784 = vld [vmem:[%s0 + $0x58] sm:$0xf]
    %v3785 = vld [vmem:[%s0 + $0x5c] sm:$0xf]
    %v3786 = vld [vmem:[%s0 + $0x60] sm:$0xf]
    %v3787 = vld [vmem:[%s0 + $0x64] sm:$0xf]
    %v3788 = vld [vmem:[%s0 + $0x68] sm:$0xf]
    %v3789 = vld [vmem:[%s0 + $0x6c] sm:$0xf]
    %v3790 = vld [vmem:[%s0 + $0x70] sm:$0xf]
    %v3791 = vld [vmem:[%s0 + $0x74] sm:$0xf]
    %v3792 = vld [vmem:[%s0 + $0x78] sm:$0xf]
    %v3793 = vld [vmem:[%s0 + $0x7c] sm:$0xf]
    %v3794 = vld [vmem:[%s0 + $0x80] sm:$0xf]
    %v3795 = vld [vmem:[%s0 + $0x84] sm:$0xf]
    %v3796 = vld [vmem:[%s0 + $0x88] sm:$0xf]
    %v3797 = vld [vmem:[%s0 + $0x8c] sm:$0xf]
    %v3798 = vld [vmem:[%s0 + $0x90] sm:$0xf]
    %v3799 = vld [vmem:[%s0 + $0x94] sm:$0xf]
    %v3800 = vld [vmem:[%s0 + $0x98] sm:$0xf]
    %v3801 = vld [vmem:[%s0 + $0x9c] sm:$0xf]
    %v3802 = vld [vmem:[%s0 + $0xa0] sm:$0xf]
    %v3803 = vld [vmem:[%s0 + $0xa4] sm:$0xf]
    %v3804 = vld [vmem:[%s0 + $0xa8] sm:$0xf]
    %v3805 = vld [vmem:[%s0 + $0xac] sm:$0xf]
    %v3806 = vld [vmem:[%s0 + $0xb0] sm:$0xf]
    %v3807 = vld [vmem:[%s0 + $0xb4] sm:$0xf]
    %v3808 = vld [vmem:[%s0 + $0xb8] sm:$0xf]
    %v3809 = vld [vmem:[%s0 + $0xbc] sm:$0xf]
    %v3810 = vld [vmem:[%s0 + $0xc0] sm:$0xf]
    %v3811 = vld [vmem:[%s0 + $0xc4] sm:$0xf]
    %v3812 = vld [vmem:[%s0 + $0xc8] sm:$0xf]
    %v3813 = vld [vmem:[%s0 + $0xcc] sm:$0xf]
    %v3814 = vld [vmem:[%s0 + $0xd0] sm:$0xf]
    %v3815 = vld [vmem:[%s0 + $0xd4] sm:$0xf]
    %v3816 = vld [vmem:[%s0 + $0xd8] sm:$0xf]
    %v3817 = vld [vmem:[%s0 + $0xdc] sm:$0xf]
    %v3818 = vld [vmem:[%s0 + $0xe0] sm:$0xf]
    %v3819 = vld [vmem:[%s0 + $0xe4] sm:$0xf]
    %v3820 = vld [vmem:[%s0 + $0xe8] sm:$0xf]
    %v3821 = vld [vmem:[%s0 + $0xec] sm:$0xf]
    %v3822 = vld [vmem:[%s0 + $0xf0] sm:$0xf]
    %v3823 = vld [vmem:[%s0 + $0xf4] sm:$0xf]
    %v3824 = vld [vmem:[%s0 + $0xf8] sm:$0xf]
    %v3825 = vld [vmem:[%s0 + $0xfc] sm:$0xf]
    %v3827 = vshrl.u32 %v3766, 16
    %v3829 = vrot.slane %v3827, 4
    %v3830 = vshll.u32 %v3766, 16
    %v3832 = vrot.slane %v3830, 5
    %v3833 = vor.u32 %v3829, %v3832
    %v3834 = vrot.slane %v3833, 4
    %v3836 = vshll.u32 %v3767, 16
    %v3838 = vrot.slane %v3836, 5
    %v3839 = vsel %vm214, %v3834, %v3838
    %v3840 = vshrl.u32 %v3767, 16
    %v3842 = vrot.slane %v3840, 4
    %v3843 = vor.u32 %v3842, %v3838
    %v3844 = vrot.slane %v3843, 4
    %v3846 = vshll.u32 %v3768, 16
    %v3848 = vrot.slane %v3846, 5
    %v3849 = vsel %vm214, %v3844, %v3848
    %v3850 = vshrl.u32 %v3768, 16
    %v3852 = vrot.slane %v3850, 4
    %v3853 = vor.u32 %v3852, %v3848
    %v3854 = vrot.slane %v3853, 4
    %v3856 = vshll.u32 %v3769, 16
    %v3858 = vrot.slane %v3856, 5
    %v3859 = vsel %vm214, %v3854, %v3858
    %v3860 = vshrl.u32 %v3769, 16
    %v3862 = vrot.slane %v3860, 4
    %v3863 = vor.u32 %v3862, %v3858
    %v3864 = vrot.slane %v3863, 4
    %v3866 = vshll.u32 %v3770, 16
    %v3868 = vrot.slane %v3866, 5
    %v3869 = vsel %vm214, %v3864, %v3868
    %v3870 = vshrl.u32 %v3770, 16
    %v3872 = vrot.slane %v3870, 4
    %v3873 = vor.u32 %v3872, %v3868
    %v3874 = vrot.slane %v3873, 4
    %v3876 = vshll.u32 %v3771, 16
    %v3878 = vrot.slane %v3876, 5
    %v3879 = vsel %vm214, %v3874, %v3878
    %v3880 = vshrl.u32 %v3771, 16
    %v3882 = vrot.slane %v3880, 4
    %v3883 = vor.u32 %v3882, %v3878
    %v3884 = vrot.slane %v3883, 4
    %v3886 = vshll.u32 %v3772, 16
    %v3888 = vrot.slane %v3886, 5
    %v3889 = vsel %vm214, %v3884, %v3888
    %v3890 = vshrl.u32 %v3772, 16
    %v3892 = vrot.slane %v3890, 4
    %v3893 = vor.u32 %v3892, %v3888
    %v3894 = vrot.slane %v3893, 4
    %v3896 = vshll.u32 %v3773, 16
    %v3898 = vrot.slane %v3896, 5
    %v3899 = vsel %vm214, %v3894, %v3898
    %v3900 = vshrl.u32 %v3773, 16
    %v3902 = vrot.slane %v3900, 4
    %v3903 = vor.u32 %v3902, %v3898
    %v3904 = vrot.slane %v3903, 4
    %v3906 = vshll.u32 %v3774, 16
    %v3908 = vrot.slane %v3906, 5
    %v3909 = vsel %vm214, %v3904, %v3908
    %v3910 = vshrl.u32 %v3774, 16
    %v3912 = vrot.slane %v3910, 4
    %v3913 = vor.u32 %v3912, %v3908
    %v3914 = vrot.slane %v3913, 4
    %v3916 = vshll.u32 %v3775, 16
    %v3918 = vrot.slane %v3916, 5
    %v3919 = vsel %vm214, %v3914, %v3918
    %v3920 = vshrl.u32 %v3775, 16
    %v3922 = vrot.slane %v3920, 4
    %v3923 = vor.u32 %v3922, %v3918
    %v3924 = vrot.slane %v3923, 4
    %v3926 = vshll.u32 %v3776, 16
    %v3928 = vrot.slane %v3926, 5
    %v3929 = vsel %vm214, %v3924, %v3928
    %v3930 = vshrl.u32 %v3776, 16
    %v3932 = vrot.slane %v3930, 4
    %v3933 = vor.u32 %v3932, %v3928
    %v3934 = vrot.slane %v3933, 4
    %v3936 = vshll.u32 %v3777, 16
    %v3938 = vrot.slane %v3936, 5
    %v3939 = vsel %vm214, %v3934, %v3938
    %v3940 = vshrl.u32 %v3777, 16
    %v3942 = vrot.slane %v3940, 4
    %v3943 = vor.u32 %v3942, %v3938
    %v3944 = vrot.slane %v3943, 4
    %v3946 = vshll.u32 %v3778, 16
    %v3948 = vrot.slane %v3946, 5
    %v3949 = vsel %vm214, %v3944, %v3948
    %v3950 = vshrl.u32 %v3778, 16
    %v3952 = vrot.slane %v3950, 4
    %v3953 = vor.u32 %v3952, %v3948
    %v3954 = vrot.slane %v3953, 4
    %v3956 = vshll.u32 %v3779, 16
    %v3958 = vrot.slane %v3956, 5
    %v3959 = vsel %vm214, %v3954, %v3958
    %v3960 = vshrl.u32 %v3779, 16
    %v3962 = vrot.slane %v3960, 4
    %v3963 = vor.u32 %v3962, %v3958
    %v3964 = vrot.slane %v3963, 4
    %v3966 = vshll.u32 %v3780, 16
    %v3968 = vrot.slane %v3966, 5
    %v3969 = vsel %vm214, %v3964, %v3968
    %v3970 = vshrl.u32 %v3780, 16
    %v3972 = vrot.slane %v3970, 4
    %v3973 = vor.u32 %v3972, %v3968
    %v3974 = vrot.slane %v3973, 4
    %v3976 = vshll.u32 %v3781, 16
    %v3978 = vrot.slane %v3976, 5
    %v3979 = vsel %vm214, %v3974, %v3978
    %v3980 = vshrl.u32 %v3781, 16
    %v3982 = vrot.slane %v3980, 4
    %v3983 = vor.u32 %v3982, %v3978
    %v3984 = vrot.slane %v3983, 4
    %v3986 = vshll.u32 %v3782, 16
    %v3988 = vrot.slane %v3986, 5
    %v3989 = vsel %vm214, %v3984, %v3988
    %v3990 = vshrl.u32 %v3782, 16
    %v3992 = vrot.slane %v3990, 4
    %v3993 = vor.u32 %v3992, %v3988
    %v3994 = vrot.slane %v3993, 4
    %v3996 = vshll.u32 %v3783, 16
    %v3998 = vrot.slane %v3996, 5
    %v3999 = vsel %vm214, %v3994, %v3998
    %v4000 = vshrl.u32 %v3783, 16
    %v4002 = vrot.slane %v4000, 4
    %v4003 = vor.u32 %v4002, %v3998
    %v4004 = vrot.slane %v4003, 4
    %v4006 = vshll.u32 %v3784, 16
    %v4008 = vrot.slane %v4006, 5
    %v4009 = vsel %vm214, %v4004, %v4008
    %v4010 = vshrl.u32 %v3784, 16
    %v4012 = vrot.slane %v4010, 4
    %v4013 = vor.u32 %v4012, %v4008
    %v4014 = vrot.slane %v4013, 4
    %v4016 = vshll.u32 %v3785, 16
    %v4018 = vrot.slane %v4016, 5
    %v4019 = vsel %vm214, %v4014, %v4018
    %v4020 = vshrl.u32 %v3785, 16
    %v4022 = vrot.slane %v4020, 4
    %v4023 = vor.u32 %v4022, %v4018
    %v4024 = vrot.slane %v4023, 4
    %v4026 = vshll.u32 %v3786, 16
    %v4028 = vrot.slane %v4026, 5
    %v4029 = vsel %vm214, %v4024, %v4028
    %v4030 = vshrl.u32 %v3786, 16
    %v4032 = vrot.slane %v4030, 4
    %v4033 = vor.u32 %v4032, %v4028
    %v4034 = vrot.slane %v4033, 4
    %v4036 = vshll.u32 %v3787, 16
    %v4038 = vrot.slane %v4036, 5
    %v4039 = vsel %vm214, %v4034, %v4038
    %v4040 = vshrl.u32 %v3787, 16
    %v4042 = vrot.slane %v4040, 4
    %v4043 = vor.u32 %v4042, %v4038
    %v4044 = vrot.slane %v4043, 4
    %v4046 = vshll.u32 %v3788, 16
    %v4048 = vrot.slane %v4046, 5
    %v4049 = vsel %vm214, %v4044, %v4048
    %v4050 = vshrl.u32 %v3788, 16
    %v4052 = vrot.slane %v4050, 4
    %v4053 = vor.u32 %v4052, %v4048
    %v4054 = vrot.slane %v4053, 4
    %v4056 = vshll.u32 %v3789, 16
    %v4058 = vrot.slane %v4056, 5
    %v4059 = vsel %vm214, %v4054, %v4058
    %v4060 = vshrl.u32 %v3789, 16
    %v4062 = vrot.slane %v4060, 4
    %v4063 = vor.u32 %v4062, %v4058
    %v4064 = vrot.slane %v4063, 4
    %v4066 = vshll.u32 %v3790, 16
    %v4068 = vrot.slane %v4066, 5
    %v4069 = vsel %vm214, %v4064, %v4068
    %v4070 = vshrl.u32 %v3790, 16
    %v4072 = vrot.slane %v4070, 4
    %v4073 = vor.u32 %v4072, %v4068
    %v4074 = vrot.slane %v4073, 4
    %v4076 = vshll.u32 %v3791, 16
    %v4078 = vrot.slane %v4076, 5
    %v4079 = vsel %vm214, %v4074, %v4078
    %v4080 = vshrl.u32 %v3791, 16
    %v4082 = vrot.slane %v4080, 4
    %v4083 = vor.u32 %v4082, %v4078
    %v4084 = vrot.slane %v4083, 4
    %v4086 = vshll.u32 %v3792, 16
    %v4088 = vrot.slane %v4086, 5
    %v4089 = vsel %vm214, %v4084, %v4088
    %v4090 = vshrl.u32 %v3792, 16
    %v4092 = vrot.slane %v4090, 4
    %v4093 = vor.u32 %v4092, %v4088
    %v4094 = vrot.slane %v4093, 4
    %v4096 = vshll.u32 %v3793, 16
    %v4098 = vrot.slane %v4096, 5
    %v4099 = vsel %vm214, %v4094, %v4098
    %v4100 = vshrl.u32 %v3793, 16
    %v4102 = vrot.slane %v4100, 4
    %v4103 = vor.u32 %v4102, %v4098
    %v4104 = vrot.slane %v4103, 4
    %v4106 = vshll.u32 %v3794, 16
    %v4108 = vrot.slane %v4106, 5
    %v4109 = vsel %vm214, %v4104, %v4108
    %v4110 = vshrl.u32 %v3794, 16
    %v4112 = vrot.slane %v4110, 4
    %v4113 = vor.u32 %v4112, %v4108
    %v4114 = vrot.slane %v4113, 4
    %v4116 = vshll.u32 %v3795, 16
    %v4118 = vrot.slane %v4116, 5
    %v4119 = vsel %vm214, %v4114, %v4118
    %v4120 = vshrl.u32 %v3795, 16
    %v4122 = vrot.slane %v4120, 4
    %v4123 = vor.u32 %v4122, %v4118
    %v4124 = vrot.slane %v4123, 4
    %v4126 = vshll.u32 %v3796, 16
    %v4128 = vrot.slane %v4126, 5
    %v4129 = vsel %vm214, %v4124, %v4128
    %v4130 = vshrl.u32 %v3796, 16
    %v4132 = vrot.slane %v4130, 4
    %v4133 = vor.u32 %v4132, %v4128
    %v4134 = vrot.slane %v4133, 4
    %v4136 = vshll.u32 %v3797, 16
    %v4138 = vrot.slane %v4136, 5
    %v4139 = vsel %vm214, %v4134, %v4138
    %v4140 = vshrl.u32 %v3797, 16
    %v4142 = vrot.slane %v4140, 4
    %v4143 = vor.u32 %v4142, %v4138
    %v4144 = vrot.slane %v4143, 4
    %v4146 = vshll.u32 %v3798, 16
    %v4148 = vrot.slane %v4146, 5
    %v4149 = vsel %vm214, %v4144, %v4148
    %v4150 = vshrl.u32 %v3798, 16
    %v4152 = vrot.slane %v4150, 4
    %v4153 = vor.u32 %v4152, %v4148
    %v4154 = vrot.slane %v4153, 4
    %v4156 = vshll.u32 %v3799, 16
    %v4158 = vrot.slane %v4156, 5
    %v4159 = vsel %vm214, %v4154, %v4158
    %v4160 = vshrl.u32 %v3799, 16
    %v4162 = vrot.slane %v4160, 4
    %v4163 = vor.u32 %v4162, %v4158
    %v4164 = vrot.slane %v4163, 4
    %v4166 = vshll.u32 %v3800, 16
    %v4168 = vrot.slane %v4166, 5
    %v4169 = vsel %vm214, %v4164, %v4168
    %v4170 = vshrl.u32 %v3800, 16
    %v4172 = vrot.slane %v4170, 4
    %v4173 = vor.u32 %v4172, %v4168
    %v4174 = vrot.slane %v4173, 4
    %v4176 = vshll.u32 %v3801, 16
    %v4178 = vrot.slane %v4176, 5
    %v4179 = vsel %vm214, %v4174, %v4178
    %v4180 = vshrl.u32 %v3801, 16
    %v4182 = vrot.slane %v4180, 4
    %v4183 = vor.u32 %v4182, %v4178
    %v4184 = vrot.slane %v4183, 4
    %v4186 = vshll.u32 %v3802, 16
    %v4188 = vrot.slane %v4186, 5
    %v4189 = vsel %vm214, %v4184, %v4188
    %v4190 = vshrl.u32 %v3802, 16
    %v4192 = vrot.slane %v4190, 4
    %v4193 = vor.u32 %v4192, %v4188
    %v4194 = vrot.slane %v4193, 4
    %v4196 = vshll.u32 %v3803, 16
    %v4198 = vrot.slane %v4196, 5
    %v4199 = vsel %vm214, %v4194, %v4198
    %v4200 = vshrl.u32 %v3803, 16
    %v4202 = vrot.slane %v4200, 4
    %v4203 = vor.u32 %v4202, %v4198
    %v4204 = vrot.slane %v4203, 4
    %v4206 = vshll.u32 %v3804, 16
    %v4208 = vrot.slane %v4206, 5
    %v4209 = vsel %vm214, %v4204, %v4208
    %v4210 = vshrl.u32 %v3804, 16
    %v4212 = vrot.slane %v4210, 4
    %v4213 = vor.u32 %v4212, %v4208
    %v4214 = vrot.slane %v4213, 4
    %v4216 = vshll.u32 %v3805, 16
    %v4218 = vrot.slane %v4216, 5
    %v4219 = vsel %vm214, %v4214, %v4218
    %v4220 = vshrl.u32 %v3805, 16
    %v4222 = vrot.slane %v4220, 4
    %v4223 = vor.u32 %v4222, %v4218
    %v4224 = vrot.slane %v4223, 4
    %v4226 = vshll.u32 %v3806, 16
    %v4228 = vrot.slane %v4226, 5
    %v4229 = vsel %vm214, %v4224, %v4228
    %v4230 = vshrl.u32 %v3806, 16
    %v4232 = vrot.slane %v4230, 4
    %v4233 = vor.u32 %v4232, %v4228
    %v4234 = vrot.slane %v4233, 4
    %v4236 = vshll.u32 %v3807, 16
    %v4238 = vrot.slane %v4236, 5
    %v4239 = vsel %vm214, %v4234, %v4238
    %v4240 = vshrl.u32 %v3807, 16
    %v4242 = vrot.slane %v4240, 4
    %v4243 = vor.u32 %v4242, %v4238
    %v4244 = vrot.slane %v4243, 4
    %v4246 = vshll.u32 %v3808, 16
    %v4248 = vrot.slane %v4246, 5
    %v4249 = vsel %vm214, %v4244, %v4248
    %v4250 = vshrl.u32 %v3808, 16
    %v4252 = vrot.slane %v4250, 4
    %v4253 = vor.u32 %v4252, %v4248
    %v4254 = vrot.slane %v4253, 4
    %v4256 = vshll.u32 %v3809, 16
    %v4258 = vrot.slane %v4256, 5
    %v4259 = vsel %vm214, %v4254, %v4258
    %v4260 = vshrl.u32 %v3809, 16
    %v4262 = vrot.slane %v4260, 4
    %v4263 = vor.u32 %v4262, %v4258
    %v4264 = vrot.slane %v4263, 4
    %v4266 = vshll.u32 %v3810, 16
    %v4268 = vrot.slane %v4266, 5
    %v4269 = vsel %vm214, %v4264, %v4268
    %v4270 = vshrl.u32 %v3810, 16
    %v4272 = vrot.slane %v4270, 4
    %v4273 = vor.u32 %v4272, %v4268
    %v4274 = vrot.slane %v4273, 4
    %v4276 = vshll.u32 %v3811, 16
    %v4278 = vrot.slane %v4276, 5
    %v4279 = vsel %vm214, %v4274, %v4278
    %v4280 = vshrl.u32 %v3811, 16
    %v4282 = vrot.slane %v4280, 4
    %v4283 = vor.u32 %v4282, %v4278
    %v4284 = vrot.slane %v4283, 4
    %v4286 = vshll.u32 %v3812, 16
    %v4288 = vrot.slane %v4286, 5
    %v4289 = vsel %vm214, %v4284, %v4288
    %v4290 = vshrl.u32 %v3812, 16
    %v4292 = vrot.slane %v4290, 4
    %v4293 = vor.u32 %v4292, %v4288
    %v4294 = vrot.slane %v4293, 4
    %v4296 = vshll.u32 %v3813, 16
    %v4298 = vrot.slane %v4296, 5
    %v4299 = vsel %vm214, %v4294, %v4298
    %v4300 = vshrl.u32 %v3813, 16
    %v4302 = vrot.slane %v4300, 4
    %v4303 = vor.u32 %v4302, %v4298
    %v4304 = vrot.slane %v4303, 4
    %v4306 = vshll.u32 %v3814, 16
    %v4308 = vrot.slane %v4306, 5
    %v4309 = vsel %vm214, %v4304, %v4308
    %v4310 = vshrl.u32 %v3814, 16
    %v4312 = vrot.slane %v4310, 4
    %v4313 = vor.u32 %v4312, %v4308
    %v4314 = vrot.slane %v4313, 4
    %v4316 = vshll.u32 %v3815, 16
    %v4318 = vrot.slane %v4316, 5
    %v4319 = vsel %vm214, %v4314, %v4318
    %v4320 = vshrl.u32 %v3815, 16
    %v4322 = vrot.slane %v4320, 4
    %v4323 = vor.u32 %v4322, %v4318
    %v4324 = vrot.slane %v4323, 4
    %v4326 = vshll.u32 %v3816, 16
    %v4328 = vrot.slane %v4326, 5
    %v4329 = vsel %vm214, %v4324, %v4328
    %v4330 = vshrl.u32 %v3816, 16
    %v4332 = vrot.slane %v4330, 4
    %v4333 = vor.u32 %v4332, %v4328
    %v4334 = vrot.slane %v4333, 4
    %v4336 = vshll.u32 %v3817, 16
    %v4338 = vrot.slane %v4336, 5
    %v4339 = vsel %vm214, %v4334, %v4338
    %v4340 = vshrl.u32 %v3817, 16
    %v4342 = vrot.slane %v4340, 4
    %v4343 = vor.u32 %v4342, %v4338
    %v4344 = vrot.slane %v4343, 4
    %v4346 = vshll.u32 %v3818, 16
    %v4348 = vrot.slane %v4346, 5
    %v4349 = vsel %vm214, %v4344, %v4348
    %v4350 = vshrl.u32 %v3818, 16
    %v4352 = vrot.slane %v4350, 4
    %v4353 = vor.u32 %v4352, %v4348
    %v4354 = vrot.slane %v4353, 4
    %v4356 = vshll.u32 %v3819, 16
    %v4358 = vrot.slane %v4356, 5
    %v4359 = vsel %vm214, %v4354, %v4358
    %v4360 = vshrl.u32 %v3819, 16
    %v4362 = vrot.slane %v4360, 4
    %v4363 = vor.u32 %v4362, %v4358
    %v4364 = vrot.slane %v4363, 4
    %v4366 = vshll.u32 %v3820, 16
    %v4368 = vrot.slane %v4366, 5
    %v4369 = vsel %vm214, %v4364, %v4368
    %v4370 = vshrl.u32 %v3820, 16
    %v4372 = vrot.slane %v4370, 4
    %v4373 = vor.u32 %v4372, %v4368
    %v4374 = vrot.slane %v4373, 4
    %v4376 = vshll.u32 %v3821, 16
    %v4378 = vrot.slane %v4376, 5
    %v4379 = vsel %vm214, %v4374, %v4378
    %v4380 = vshrl.u32 %v3821, 16
    %v4382 = vrot.slane %v4380, 4
    %v4383 = vor.u32 %v4382, %v4378
    %v4384 = vrot.slane %v4383, 4
    %v4386 = vshll.u32 %v3822, 16
    %v4388 = vrot.slane %v4386, 5
    %v4389 = vsel %vm214, %v4384, %v4388
    %v4390 = vshrl.u32 %v3822, 16
    %v4392 = vrot.slane %v4390, 4
    %v4393 = vor.u32 %v4392, %v4388
    %v4394 = vrot.slane %v4393, 4
    %v4396 = vshll.u32 %v3823, 16
    %v4398 = vrot.slane %v4396, 5
    %v4399 = vsel %vm214, %v4394, %v4398
    %v4400 = vshrl.u32 %v3823, 16
    %v4402 = vrot.slane %v4400, 4
    %v4403 = vor.u32 %v4402, %v4398
    %v4404 = vrot.slane %v4403, 4
    %v4406 = vshll.u32 %v3824, 16
    %v4408 = vrot.slane %v4406, 5
    %v4409 = vsel %vm214, %v4404, %v4408
    %v4410 = vshrl.u32 %v3824, 16
    %v4412 = vrot.slane %v4410, 4
    %v4413 = vor.u32 %v4412, %v4408
    %v4414 = vrot.slane %v4413, 4
    %v4416 = vshll.u32 %v3825, 16
    %v4418 = vrot.slane %v4416, 5
    %v4419 = vsel %vm214, %v4414, %v4418
    %v4420 = vshrl.u32 %v3825, 16
    %v4422 = vrot.slane %v4420, 4
    %v4423 = vor.u32 %v4422, %v4418
    %v4424 = vrot.slane %v4423, 4
    %4425 = vrot.lane.b32.xlu0 %v3839, 56
    %v4426 = vpop.permute.xlu0 %4425
    %4427 = vrot.lane.b32.xlu0 %v3849, 56
    %v4428 = vpop.permute.xlu0 %4427
    %4429 = vrot.lane.b32.xlu0 %v3859, 56
    %v4430 = vpop.permute.xlu0 %4429
    %4431 = vrot.lane.b32.xlu0 %v3869, 56
    %v4432 = vpop.permute.xlu0 %4431
    %4433 = vrot.lane.b32.xlu0 %v3879, 56
    %v4434 = vpop.permute.xlu0 %4433
    %4435 = vrot.lane.b32.xlu0 %v3889, 56
    %v4436 = vpop.permute.xlu0 %4435
    %4437 = vrot.lane.b32.xlu0 %v3899, 56
    %v4438 = vpop.permute.xlu0 %4437
    %4439 = vrot.lane.b32.xlu0 %v3909, 56
    %v4440 = vpop.permute.xlu0 %4439
    %4441 = vrot.lane.b32.xlu0 %v3919, 56
    %v4442 = vpop.permute.xlu0 %4441
    %4443 = vrot.lane.b32.xlu0 %v3929, 56
    %v4444 = vpop.permute.xlu0 %4443
    %4445 = vrot.lane.b32.xlu0 %v3939, 56
    %v4446 = vpop.permute.xlu0 %4445
    %4447 = vrot.lane.b32.xlu0 %v3949, 56
    %v4448 = vpop.permute.xlu0 %4447
    %4449 = vrot.lane.b32.xlu0 %v3959, 56
    %v4450 = vpop.permute.xlu0 %4449
    %4451 = vrot.lane.b32.xlu0 %v3969, 56
    %v4452 = vpop.permute.xlu0 %4451
    %4453 = vrot.lane.b32.xlu0 %v3979, 56
    %v4454 = vpop.permute.xlu0 %4453
    %4455 = vrot.lane.b32.xlu0 %v3989, 56
    %v4456 = vpop.permute.xlu0 %4455
    %4457 = vrot.lane.b32.xlu0 %v3999, 56
    %v4458 = vpop.permute.xlu0 %4457
    %4459 = vrot.lane.b32.xlu0 %v4009, 56
    %v4460 = vpop.permute.xlu0 %4459
    %4461 = vrot.lane.b32.xlu0 %v4019, 56
    %v4462 = vpop.permute.xlu0 %4461
    %4463 = vrot.lane.b32.xlu0 %v4029, 56
    %v4464 = vpop.permute.xlu0 %4463
    %4465 = vrot.lane.b32.xlu0 %v4039, 56
    %v4466 = vpop.permute.xlu0 %4465
    %4467 = vrot.lane.b32.xlu0 %v4049, 56
    %v4468 = vpop.permute.xlu0 %4467
    %4469 = vrot.lane.b32.xlu0 %v4059, 56
    %v4470 = vpop.permute.xlu0 %4469
    %4471 = vrot.lane.b32.xlu0 %v4069, 56
    %v4472 = vpop.permute.xlu0 %4471
    %4473 = vrot.lane.b32.xlu0 %v4079, 56
    %v4474 = vpop.permute.xlu0 %4473
    %4475 = vrot.lane.b32.xlu0 %v4089, 56
    %v4476 = vpop.permute.xlu0 %4475
    %4477 = vrot.lane.b32.xlu0 %v4099, 56
    %v4478 = vpop.permute.xlu0 %4477
    %4479 = vrot.lane.b32.xlu0 %v4109, 56
    %v4480 = vpop.permute.xlu0 %4479
    %4481 = vrot.lane.b32.xlu0 %v4119, 56
    %v4482 = vpop.permute.xlu0 %4481
    %4483 = vrot.lane.b32.xlu0 %v4129, 56
    %v4484 = vpop.permute.xlu0 %4483
    %4485 = vrot.lane.b32.xlu0 %v4139, 56
    %v4486 = vpop.permute.xlu0 %4485
    %4487 = vrot.lane.b32.xlu0 %v4149, 56
    %v4488 = vpop.permute.xlu0 %4487
    %4489 = vrot.lane.b32.xlu0 %v4159, 56
    %v4490 = vpop.permute.xlu0 %4489
    %4491 = vrot.lane.b32.xlu0 %v4169, 56
    %v4492 = vpop.permute.xlu0 %4491
    %4493 = vrot.lane.b32.xlu0 %v4179, 56
    %v4494 = vpop.permute.xlu0 %4493
    %4495 = vrot.lane.b32.xlu0 %v4189, 56
    %v4496 = vpop.permute.xlu0 %4495
    %4497 = vrot.lane.b32.xlu0 %v4199, 56
    %v4498 = vpop.permute.xlu0 %4497
    %4499 = vrot.lane.b32.xlu0 %v4209, 56
    %v4500 = vpop.permute.xlu0 %4499
    %4501 = vrot.lane.b32.xlu0 %v4219, 56
    %v4502 = vpop.permute.xlu0 %4501
    %4503 = vrot.lane.b32.xlu0 %v4229, 56
    %v4504 = vpop.permute.xlu0 %4503
    %4505 = vrot.lane.b32.xlu0 %v4239, 56
    %v4506 = vpop.permute.xlu0 %4505
    %4507 = vrot.lane.b32.xlu0 %v4249, 56
    %v4508 = vpop.permute.xlu0 %4507
    %4509 = vrot.lane.b32.xlu0 %v4259, 56
    %v4510 = vpop.permute.xlu0 %4509
    %4511 = vrot.lane.b32.xlu0 %v4269, 56
    %v4512 = vpop.permute.xlu0 %4511
    %4513 = vrot.lane.b32.xlu0 %v4279, 56
    %v4514 = vpop.permute.xlu0 %4513
    %4515 = vrot.lane.b32.xlu0 %v4289, 56
    %v4516 = vpop.permute.xlu0 %4515
    %4517 = vrot.lane.b32.xlu0 %v4299, 56
    %v4518 = vpop.permute.xlu0 %4517
    %4519 = vrot.lane.b32.xlu0 %v4309, 56
    %v4520 = vpop.permute.xlu0 %4519
    %4521 = vrot.lane.b32.xlu0 %v4319, 56
    %v4522 = vpop.permute.xlu0 %4521
    %4523 = vrot.lane.b32.xlu0 %v4329, 56
    %v4524 = vpop.permute.xlu0 %4523
    %4525 = vrot.lane.b32.xlu0 %v4339, 56
    %v4526 = vpop.permute.xlu0 %4525
    %4527 = vrot.lane.b32.xlu0 %v4349, 56
    %v4528 = vpop.permute.xlu0 %4527
    %4529 = vrot.lane.b32.xlu0 %v4359, 56
    %v4530 = vpop.permute.xlu0 %4529
    %4531 = vrot.lane.b32.xlu0 %v4369, 56
    %v4532 = vpop.permute.xlu0 %4531
    %4533 = vrot.lane.b32.xlu0 %v4379, 56
    %v4534 = vpop.permute.xlu0 %4533
    %4535 = vrot.lane.b32.xlu0 %v4389, 56
    %v4536 = vpop.permute.xlu0 %4535
    %4537 = vrot.lane.b32.xlu0 %v4399, 56
    %v4538 = vpop.permute.xlu0 %4537
    %4539 = vrot.lane.b32.xlu0 %v4409, 56
    %v4540 = vpop.permute.xlu0 %4539
    %4541 = vrot.lane.b32.xlu0 %v4419, 56
    %v4542 = vpop.permute.xlu0 %4541
    %4543 = vrot.lane.b32.xlu0 %v4424, 56
    %v4544 = vpop.permute.xlu0 %4543
    %vm4605 = vcmask 519616
    %4606 = vst.msk [vmem:[#allocation2] sm:$0xf] %vm4605, %v4426
    %4607 = vst.msk [vmem:[#allocation2 + $0x4] sm:$0xf] %vm4605, %v4428
    %4608 = vst.msk [vmem:[#allocation2 + $0x8] sm:$0xf] %vm4605, %v4430
    %4609 = vst.msk [vmem:[#allocation2 + $0xc] sm:$0xf] %vm4605, %v4432
    %4610 = vst.msk [vmem:[#allocation2 + $0x10] sm:$0xf] %vm4605, %v4434
    %4611 = vst.msk [vmem:[#allocation2 + $0x14] sm:$0xf] %vm4605, %v4436
    %4612 = vst.msk [vmem:[#allocation2 + $0x18] sm:$0xf] %vm4605, %v4438
    %4613 = vst.msk [vmem:[#allocation2 + $0x1c] sm:$0xf] %vm4605, %v4440
    %4614 = vst.msk [vmem:[#allocation2 + $0x20] sm:$0xf] %vm4605, %v4442
    %4615 = vst.msk [vmem:[#allocation2 + $0x24] sm:$0xf] %vm4605, %v4444
    %4616 = vst.msk [vmem:[#allocation2 + $0x28] sm:$0xf] %vm4605, %v4446
    %4617 = vst.msk [vmem:[#allocation2 + $0x2c] sm:$0xf] %vm4605, %v4448
    %4618 = vst.msk [vmem:[#allocation2 + $0x30] sm:$0xf] %vm4605, %v4450
    %4619 = vst.msk [vmem:[#allocation2 + $0x34] sm:$0xf] %vm4605, %v4452
    %4620 = vst.msk [vmem:[#allocation2 + $0x38] sm:$0xf] %vm4605, %v4454
    %4621 = vst.msk [vmem:[#allocation2 + $0x3c] sm:$0xf] %vm4605, %v4456
    %4622 = vst.msk [vmem:[#allocation2 + $0x40] sm:$0xf] %vm4605, %v4458
    %4623 = vst.msk [vmem:[#allocation2 + $0x44] sm:$0xf] %vm4605, %v4460
    %4624 = vst.msk [vmem:[#allocation2 + $0x48] sm:$0xf] %vm4605, %v4462
    %4625 = vst.msk [vmem:[#allocation2 + $0x4c] sm:$0xf] %vm4605, %v4464
    %4626 = vst.msk [vmem:[#allocation2 + $0x50] sm:$0xf] %vm4605, %v4466
    %4627 = vst.msk [vmem:[#allocation2 + $0x54] sm:$0xf] %vm4605, %v4468
    %4628 = vst.msk [vmem:[#allocation2 + $0x58] sm:$0xf] %vm4605, %v4470
    %4629 = vst.msk [vmem:[#allocation2 + $0x5c] sm:$0xf] %vm4605, %v4472
    %4630 = vst.msk [vmem:[#allocation2 + $0x60] sm:$0xf] %vm4605, %v4474
    %4631 = vst.msk [vmem:[#allocation2 + $0x64] sm:$0xf] %vm4605, %v4476
    %4632 = vst.msk [vmem:[#allocation2 + $0x68] sm:$0xf] %vm4605, %v4478
    %4633 = vst.msk [vmem:[#allocation2 + $0x6c] sm:$0xf] %vm4605, %v4480
    %4634 = vst.msk [vmem:[#allocation2 + $0x70] sm:$0xf] %vm4605, %v4482
    %4635 = vst.msk [vmem:[#allocation2 + $0x74] sm:$0xf] %vm4605, %v4484
    %4636 = vst.msk [vmem:[#allocation2 + $0x78] sm:$0xf] %vm4605, %v4486
    %4637 = vst.msk [vmem:[#allocation2 + $0x7c] sm:$0xf] %vm4605, %v4488
    %4638 = vst.msk [vmem:[#allocation2 + $0x80] sm:$0xf] %vm4605, %v4490
    %4639 = vst.msk [vmem:[#allocation2 + $0x84] sm:$0xf] %vm4605, %v4492
    %4640 = vst.msk [vmem:[#allocation2 + $0x88] sm:$0xf] %vm4605, %v4494
    %4641 = vst.msk [vmem:[#allocation2 + $0x8c] sm:$0xf] %vm4605, %v4496
    %4642 = vst.msk [vmem:[#allocation2 + $0x90] sm:$0xf] %vm4605, %v4498
    %4643 = vst.msk [vmem:[#allocation2 + $0x94] sm:$0xf] %vm4605, %v4500
    %4644 = vst.msk [vmem:[#allocation2 + $0x98] sm:$0xf] %vm4605, %v4502
    %4645 = vst.msk [vmem:[#allocation2 + $0x9c] sm:$0xf] %vm4605, %v4504
    %4646 = vst.msk [vmem:[#allocation2 + $0xa0] sm:$0xf] %vm4605, %v4506
    %4647 = vst.msk [vmem:[#allocation2 + $0xa4] sm:$0xf] %vm4605, %v4508
    %4648 = vst.msk [vmem:[#allocation2 + $0xa8] sm:$0xf] %vm4605, %v4510
    %4649 = vst.msk [vmem:[#allocation2 + $0xac] sm:$0xf] %vm4605, %v4512
    %4650 = vst.msk [vmem:[#allocation2 + $0xb0] sm:$0xf] %vm4605, %v4514
    %4651 = vst.msk [vmem:[#allocation2 + $0xb4] sm:$0xf] %vm4605, %v4516
    %4652 = vst.msk [vmem:[#allocation2 + $0xb8] sm:$0xf] %vm4605, %v4518
    %4653 = vst.msk [vmem:[#allocation2 + $0xbc] sm:$0xf] %vm4605, %v4520
    %4654 = vst.msk [vmem:[#allocation2 + $0xc0] sm:$0xf] %vm4605, %v4522
    %4655 = vst.msk [vmem:[#allocation2 + $0xc4] sm:$0xf] %vm4605, %v4524
    %4656 = vst.msk [vmem:[#allocation2 + $0xc8] sm:$0xf] %vm4605, %v4526
    %4657 = vst.msk [vmem:[#allocation2 + $0xcc] sm:$0xf] %vm4605, %v4528
    %4658 = vst.msk [vmem:[#allocation2 + $0xd0] sm:$0xf] %vm4605, %v4530
    %4659 = vst.msk [vmem:[#allocation2 + $0xd4] sm:$0xf] %vm4605, %v4532
    %4660 = vst.msk [vmem:[#allocation2 + $0xd8] sm:$0xf] %vm4605, %v4534
    %4661 = vst.msk [vmem:[#allocation2 + $0xdc] sm:$0xf] %vm4605, %v4536
    %4662 = vst.msk [vmem:[#allocation2 + $0xe0] sm:$0xf] %vm4605, %v4538
    %4663 = vst.msk [vmem:[#allocation2 + $0xe4] sm:$0xf] %vm4605, %v4540
    %4664 = vst.msk [vmem:[#allocation2 + $0xe8] sm:$0xf] %vm4605, %v4542
    %vm4665 = vcmask 518592
    %4666 = vst.msk [vmem:[#allocation2 + $0xec] sm:$0x7] %vm4665, %v4544
    %v4667 = vld [vmem:[%s0 + $0x10] sm:$0xe]
    %v4668 = vld [vmem:[%s0 + $0x14] sm:$0xf]
    %v4669 = vld [vmem:[%s0 + $0x18] sm:$0xf]
    %v4670 = vld [vmem:[%s0 + $0x1c] sm:$0xf]
    %v4671 = vld [vmem:[%s0 + $0x20] sm:$0xf]
    %v4672 = vld [vmem:[%s0 + $0x24] sm:$0xf]
    %v4673 = vld [vmem:[%s0 + $0x28] sm:$0xf]
    %v4674 = vld [vmem:[%s0 + $0x2c] sm:$0xf]
    %v4675 = vld [vmem:[%s0 + $0x30] sm:$0xf]
    %v4676 = vld [vmem:[%s0 + $0x34] sm:$0xf]
    %v4677 = vld [vmem:[%s0 + $0x38] sm:$0xf]
    %v4678 = vld [vmem:[%s0 + $0x3c] sm:$0xf]
    %v4679 = vld [vmem:[%s0 + $0x40] sm:$0xf]
    %v4680 = vld [vmem:[%s0 + $0x44] sm:$0xf]
    %v4681 = vld [vmem:[%s0 + $0x48] sm:$0xf]
    %v4682 = vld [vmem:[%s0 + $0x4c] sm:$0xf]
    %v4683 = vld [vmem:[%s0 + $0x50] sm:$0xf]
    %v4684 = vld [vmem:[%s0 + $0x54] sm:$0xf]
    %v4685 = vld [vmem:[%s0 + $0x58] sm:$0xf]
    %v4686 = vld [vmem:[%s0 + $0x5c] sm:$0xf]
    %v4687 = vld [vmem:[%s0 + $0x60] sm:$0xf]
    %v4688 = vld [vmem:[%s0 + $0x64] sm:$0xf]
    %v4689 = vld [vmem:[%s0 + $0x68] sm:$0xf]
    %v4690 = vld [vmem:[%s0 + $0x6c] sm:$0xf]
    %v4691 = vld [vmem:[%s0 + $0x70] sm:$0xf]
    %v4692 = vld [vmem:[%s0 + $0x74] sm:$0xf]
    %v4693 = vld [vmem:[%s0 + $0x78] sm:$0xf]
    %v4694 = vld [vmem:[%s0 + $0x7c] sm:$0xf]
    %v4695 = vld [vmem:[%s0 + $0x80] sm:$0xf]
    %v4696 = vld [vmem:[%s0 + $0x84] sm:$0xf]
    %v4697 = vld [vmem:[%s0 + $0x88] sm:$0xf]
    %v4698 = vld [vmem:[%s0 + $0x8c] sm:$0xf]
    %v4699 = vld [vmem:[%s0 + $0x90] sm:$0xf]
    %v4700 = vld [vmem:[%s0 + $0x94] sm:$0xf]
    %v4701 = vld [vmem:[%s0 + $0x98] sm:$0xf]
    %v4702 = vld [vmem:[%s0 + $0x9c] sm:$0xf]
    %v4703 = vld [vmem:[%s0 + $0xa0] sm:$0xf]
    %v4704 = vld [vmem:[%s0 + $0xa4] sm:$0xf]
    %v4705 = vld [vmem:[%s0 + $0xa8] sm:$0xf]
    %v4706 = vld [vmem:[%s0 + $0xac] sm:$0xf]
    %v4707 = vld [vmem:[%s0 + $0xb0] sm:$0xf]
    %v4708 = vld [vmem:[%s0 + $0xb4] sm:$0xf]
    %v4709 = vld [vmem:[%s0 + $0xb8] sm:$0xf]
    %v4710 = vld [vmem:[%s0 + $0xbc] sm:$0xf]
    %v4711 = vld [vmem:[%s0 + $0xc0] sm:$0xf]
    %v4712 = vld [vmem:[%s0 + $0xc4] sm:$0xf]
    %v4713 = vld [vmem:[%s0 + $0xc8] sm:$0xf]
    %v4714 = vld [vmem:[%s0 + $0xcc] sm:$0xf]
    %v4715 = vld [vmem:[%s0 + $0xd0] sm:$0xf]
    %v4716 = vld [vmem:[%s0 + $0xd4] sm:$0xf]
    %v4717 = vld [vmem:[%s0 + $0xd8] sm:$0xf]
    %v4718 = vld [vmem:[%s0 + $0xdc] sm:$0xf]
    %v4719 = vld [vmem:[%s0 + $0xe0] sm:$0xf]
    %v4720 = vld [vmem:[%s0 + $0xe4] sm:$0xf]
    %v4721 = vld [vmem:[%s0 + $0xe8] sm:$0xf]
    %v4722 = vld [vmem:[%s0 + $0xec] sm:$0xf]
    %v4723 = vld [vmem:[%s0 + $0xf0] sm:$0xf]
    %v4724 = vld [vmem:[%s0 + $0xf4] sm:$0xf]
    %v4725 = vld [vmem:[%s0 + $0xf8] sm:$0xf]
    %v4726 = vld [vmem:[%s0 + $0xfc] sm:$0xf]
    %v4787 = vrot.slane %v4667, 5
    %v4788 = vrot.slane %v4787, 4
    %v4789 = vrot.slane %v4668, 5
    %v4790 = vsel %vm1178, %v4788, %v4789
    %v4791 = vrot.slane %v4789, 4
    %v4792 = vrot.slane %v4669, 5
    %v4793 = vsel %vm1178, %v4791, %v4792
    %v4794 = vrot.slane %v4792, 4
    %v4795 = vrot.slane %v4670, 5
    %v4796 = vsel %vm1178, %v4794, %v4795
    %v4797 = vrot.slane %v4795, 4
    %v4798 = vrot.slane %v4671, 5
    %v4799 = vsel %vm1178, %v4797, %v4798
    %v4800 = vrot.slane %v4798, 4
    %v4801 = vrot.slane %v4672, 5
    %v4802 = vsel %vm1178, %v4800, %v4801
    %v4803 = vrot.slane %v4801, 4
    %v4804 = vrot.slane %v4673, 5
    %v4805 = vsel %vm1178, %v4803, %v4804
    %v4806 = vrot.slane %v4804, 4
    %v4807 = vrot.slane %v4674, 5
    %v4808 = vsel %vm1178, %v4806, %v4807
    %v4809 = vrot.slane %v4807, 4
    %v4810 = vrot.slane %v4675, 5
    %v4811 = vsel %vm1178, %v4809, %v4810
    %v4812 = vrot.slane %v4810, 4
    %v4813 = vrot.slane %v4676, 5
    %v4814 = vsel %vm1178, %v4812, %v4813
    %v4815 = vrot.slane %v4813, 4
    %v4816 = vrot.slane %v4677, 5
    %v4817 = vsel %vm1178, %v4815, %v4816
    %v4818 = vrot.slane %v4816, 4
    %v4819 = vrot.slane %v4678, 5
    %v4820 = vsel %vm1178, %v4818, %v4819
    %v4821 = vrot.slane %v4819, 4
    %v4822 = vrot.slane %v4679, 5
    %v4823 = vsel %vm1178, %v4821, %v4822
    %v4824 = vrot.slane %v4822, 4
    %v4825 = vrot.slane %v4680, 5
    %v4826 = vsel %vm1178, %v4824, %v4825
    %v4827 = vrot.slane %v4825, 4
    %v4828 = vrot.slane %v4681, 5
    %v4829 = vsel %vm1178, %v4827, %v4828
    %v4830 = vrot.slane %v4828, 4
    %v4831 = vrot.slane %v4682, 5
    %v4832 = vsel %vm1178, %v4830, %v4831
    %v4833 = vrot.slane %v4831, 4
    %v4834 = vrot.slane %v4683, 5
    %v4835 = vsel %vm1178, %v4833, %v4834
    %v4836 = vrot.slane %v4834, 4
    %v4837 = vrot.slane %v4684, 5
    %v4838 = vsel %vm1178, %v4836, %v4837
    %v4839 = vrot.slane %v4837, 4
    %v4840 = vrot.slane %v4685, 5
    %v4841 = vsel %vm1178, %v4839, %v4840
    %v4842 = vrot.slane %v4840, 4
    %v4843 = vrot.slane %v4686, 5
    %v4844 = vsel %vm1178, %v4842, %v4843
    %v4845 = vrot.slane %v4843, 4
    %v4846 = vrot.slane %v4687, 5
    %v4847 = vsel %vm1178, %v4845, %v4846
    %v4848 = vrot.slane %v4846, 4
    %v4849 = vrot.slane %v4688, 5
    %v4850 = vsel %vm1178, %v4848, %v4849
    %v4851 = vrot.slane %v4849, 4
    %v4852 = vrot.slane %v4689, 5
    %v4853 = vsel %vm1178, %v4851, %v4852
    %v4854 = vrot.slane %v4852, 4
    %v4855 = vrot.slane %v4690, 5
    %v4856 = vsel %vm1178, %v4854, %v4855
    %v4857 = vrot.slane %v4855, 4
    %v4858 = vrot.slane %v4691, 5
    %v4859 = vsel %vm1178, %v4857, %v4858
    %v4860 = vrot.slane %v4858, 4
    %v4861 = vrot.slane %v4692, 5
    %v4862 = vsel %vm1178, %v4860, %v4861
    %v4863 = vrot.slane %v4861, 4
    %v4864 = vrot.slane %v4693, 5
    %v4865 = vsel %vm1178, %v4863, %v4864
    %v4866 = vrot.slane %v4864, 4
    %v4867 = vrot.slane %v4694, 5
    %v4868 = vsel %vm1178, %v4866, %v4867
    %v4869 = vrot.slane %v4867, 4
    %v4870 = vrot.slane %v4695, 5
    %v4871 = vsel %vm1178, %v4869, %v4870
    %v4872 = vrot.slane %v4870, 4
    %v4873 = vrot.slane %v4696, 5
    %v4874 = vsel %vm1178, %v4872, %v4873
    %v4875 = vrot.slane %v4873, 4
    %v4876 = vrot.slane %v4697, 5
    %v4877 = vsel %vm1178, %v4875, %v4876
    %v4878 = vrot.slane %v4876, 4
    %v4879 = vrot.slane %v4698, 5
    %v4880 = vsel %vm1178, %v4878, %v4879
    %v4881 = vrot.slane %v4879, 4
    %v4882 = vrot.slane %v4699, 5
    %v4883 = vsel %vm1178, %v4881, %v4882
    %v4884 = vrot.slane %v4882, 4
    %v4885 = vrot.slane %v4700, 5
    %v4886 = vsel %vm1178, %v4884, %v4885
    %v4887 = vrot.slane %v4885, 4
    %v4888 = vrot.slane %v4701, 5
    %v4889 = vsel %vm1178, %v4887, %v4888
    %v4890 = vrot.slane %v4888, 4
    %v4891 = vrot.slane %v4702, 5
    %v4892 = vsel %vm1178, %v4890, %v4891
    %v4893 = vrot.slane %v4891, 4
    %v4894 = vrot.slane %v4703, 5
    %v4895 = vsel %vm1178, %v4893, %v4894
    %v4896 = vrot.slane %v4894, 4
    %v4897 = vrot.slane %v4704, 5
    %v4898 = vsel %vm1178, %v4896, %v4897
    %v4899 = vrot.slane %v4897, 4
    %v4900 = vrot.slane %v4705, 5
    %v4901 = vsel %vm1178, %v4899, %v4900
    %v4902 = vrot.slane %v4900, 4
    %v4903 = vrot.slane %v4706, 5
    %v4904 = vsel %vm1178, %v4902, %v4903
    %v4905 = vrot.slane %v4903, 4
    %v4906 = vrot.slane %v4707, 5
    %v4907 = vsel %vm1178, %v4905, %v4906
    %v4908 = vrot.slane %v4906, 4
    %v4909 = vrot.slane %v4708, 5
    %v4910 = vsel %vm1178, %v4908, %v4909
    %v4911 = vrot.slane %v4909, 4
    %v4912 = vrot.slane %v4709, 5
    %v4913 = vsel %vm1178, %v4911, %v4912
    %v4914 = vrot.slane %v4912, 4
    %v4915 = vrot.slane %v4710, 5
    %v4916 = vsel %vm1178, %v4914, %v4915
    %v4917 = vrot.slane %v4915, 4
    %v4918 = vrot.slane %v4711, 5
    %v4919 = vsel %vm1178, %v4917, %v4918
    %v4920 = vrot.slane %v4918, 4
    %v4921 = vrot.slane %v4712, 5
    %v4922 = vsel %vm1178, %v4920, %v4921
    %v4923 = vrot.slane %v4921, 4
    %v4924 = vrot.slane %v4713, 5
    %v4925 = vsel %vm1178, %v4923, %v4924
    %v4926 = vrot.slane %v4924, 4
    %v4927 = vrot.slane %v4714, 5
    %v4928 = vsel %vm1178, %v4926, %v4927
    %v4929 = vrot.slane %v4927, 4
    %v4930 = vrot.slane %v4715, 5
    %v4931 = vsel %vm1178, %v4929, %v4930
    %v4932 = vrot.slane %v4930, 4
    %v4933 = vrot.slane %v4716, 5
    %v4934 = vsel %vm1178, %v4932, %v4933
    %v4935 = vrot.slane %v4933, 4
    %v4936 = vrot.slane %v4717, 5
    %v4937 = vsel %vm1178, %v4935, %v4936
    %v4938 = vrot.slane %v4936, 4
    %v4939 = vrot.slane %v4718, 5
    %v4940 = vsel %vm1178, %v4938, %v4939
    %v4941 = vrot.slane %v4939, 4
    %v4942 = vrot.slane %v4719, 5
    %v4943 = vsel %vm1178, %v4941, %v4942
    %v4944 = vrot.slane %v4942, 4
    %v4945 = vrot.slane %v4720, 5
    %v4946 = vsel %vm1178, %v4944, %v4945
    %v4947 = vrot.slane %v4945, 4
    %v4948 = vrot.slane %v4721, 5
    %v4949 = vsel %vm1178, %v4947, %v4948
    %v4950 = vrot.slane %v4948, 4
    %v4951 = vrot.slane %v4722, 5
    %v4952 = vsel %vm1178, %v4950, %v4951
    %v4953 = vrot.slane %v4951, 4
    %v4954 = vrot.slane %v4723, 5
    %v4955 = vsel %vm1178, %v4953, %v4954
    %v4956 = vrot.slane %v4954, 4
    %v4957 = vrot.slane %v4724, 5
    %v4958 = vsel %vm1178, %v4956, %v4957
    %v4959 = vrot.slane %v4957, 4
    %v4960 = vrot.slane %v4725, 5
    %v4961 = vsel %vm1178, %v4959, %v4960
    %v4962 = vrot.slane %v4960, 4
    %v4963 = vrot.slane %v4726, 5
    %v4964 = vsel %vm1178, %v4962, %v4963
    %v4965 = vrot.slane %v4963, 4
    %4966 = vrot.lane.b32.xlu0 %v4790, 64
    %v4967 = vpop.permute.xlu0 %4966
    %4968 = vrot.lane.b32.xlu0 %v4793, 64
    %v4969 = vpop.permute.xlu0 %4968
    %4970 = vrot.lane.b32.xlu0 %v4796, 64
    %v4971 = vpop.permute.xlu0 %4970
    %4972 = vrot.lane.b32.xlu0 %v4799, 64
    %v4973 = vpop.permute.xlu0 %4972
    %4974 = vrot.lane.b32.xlu0 %v4802, 64
    %v4975 = vpop.permute.xlu0 %4974
    %4976 = vrot.lane.b32.xlu0 %v4805, 64
    %v4977 = vpop.permute.xlu0 %4976
    %4978 = vrot.lane.b32.xlu0 %v4808, 64
    %v4979 = vpop.permute.xlu0 %4978
    %4980 = vrot.lane.b32.xlu0 %v4811, 64
    %v4981 = vpop.permute.xlu0 %4980
    %4982 = vrot.lane.b32.xlu0 %v4814, 64
    %v4983 = vpop.permute.xlu0 %4982
    %4984 = vrot.lane.b32.xlu0 %v4817, 64
    %v4985 = vpop.permute.xlu0 %4984
    %4986 = vrot.lane.b32.xlu0 %v4820, 64
    %v4987 = vpop.permute.xlu0 %4986
    %4988 = vrot.lane.b32.xlu0 %v4823, 64
    %v4989 = vpop.permute.xlu0 %4988
    %4990 = vrot.lane.b32.xlu0 %v4826, 64
    %v4991 = vpop.permute.xlu0 %4990
    %4992 = vrot.lane.b32.xlu0 %v4829, 64
    %v4993 = vpop.permute.xlu0 %4992
    %4994 = vrot.lane.b32.xlu0 %v4832, 64
    %v4995 = vpop.permute.xlu0 %4994
    %4996 = vrot.lane.b32.xlu0 %v4835, 64
    %v4997 = vpop.permute.xlu0 %4996
    %4998 = vrot.lane.b32.xlu0 %v4838, 64
    %v4999 = vpop.permute.xlu0 %4998
    %5000 = vrot.lane.b32.xlu0 %v4841, 64
    %v5001 = vpop.permute.xlu0 %5000
    %5002 = vrot.lane.b32.xlu0 %v4844, 64
    %v5003 = vpop.permute.xlu0 %5002
    %5004 = vrot.lane.b32.xlu0 %v4847, 64
    %v5005 = vpop.permute.xlu0 %5004
    %5006 = vrot.lane.b32.xlu0 %v4850, 64
    %v5007 = vpop.permute.xlu0 %5006
    %5008 = vrot.lane.b32.xlu0 %v4853, 64
    %v5009 = vpop.permute.xlu0 %5008
    %5010 = vrot.lane.b32.xlu0 %v4856, 64
    %v5011 = vpop.permute.xlu0 %5010
    %5012 = vrot.lane.b32.xlu0 %v4859, 64
    %v5013 = vpop.permute.xlu0 %5012
    %5014 = vrot.lane.b32.xlu0 %v4862, 64
    %v5015 = vpop.permute.xlu0 %5014
    %5016 = vrot.lane.b32.xlu0 %v4865, 64
    %v5017 = vpop.permute.xlu0 %5016
    %5018 = vrot.lane.b32.xlu0 %v4868, 64
    %v5019 = vpop.permute.xlu0 %5018
    %5020 = vrot.lane.b32.xlu0 %v4871, 64
    %v5021 = vpop.permute.xlu0 %5020
    %5022 = vrot.lane.b32.xlu0 %v4874, 64
    %v5023 = vpop.permute.xlu0 %5022
    %5024 = vrot.lane.b32.xlu0 %v4877, 64
    %v5025 = vpop.permute.xlu0 %5024
    %5026 = vrot.lane.b32.xlu0 %v4880, 64
    %v5027 = vpop.permute.xlu0 %5026
    %5028 = vrot.lane.b32.xlu0 %v4883, 64
    %v5029 = vpop.permute.xlu0 %5028
    %5030 = vrot.lane.b32.xlu0 %v4886, 64
    %v5031 = vpop.permute.xlu0 %5030
    %5032 = vrot.lane.b32.xlu0 %v4889, 64
    %v5033 = vpop.permute.xlu0 %5032
    %5034 = vrot.lane.b32.xlu0 %v4892, 64
    %v5035 = vpop.permute.xlu0 %5034
    %5036 = vrot.lane.b32.xlu0 %v4895, 64
    %v5037 = vpop.permute.xlu0 %5036
    %5038 = vrot.lane.b32.xlu0 %v4898, 64
    %v5039 = vpop.permute.xlu0 %5038
    %5040 = vrot.lane.b32.xlu0 %v4901, 64
    %v5041 = vpop.permute.xlu0 %5040
    %5042 = vrot.lane.b32.xlu0 %v4904, 64
    %v5043 = vpop.permute.xlu0 %5042
    %5044 = vrot.lane.b32.xlu0 %v4907, 64
    %v5045 = vpop.permute.xlu0 %5044
    %5046 = vrot.lane.b32.xlu0 %v4910, 64
    %v5047 = vpop.permute.xlu0 %5046
    %5048 = vrot.lane.b32.xlu0 %v4913, 64
    %v5049 = vpop.permute.xlu0 %5048
    %5050 = vrot.lane.b32.xlu0 %v4916, 64
    %v5051 = vpop.permute.xlu0 %5050
    %5052 = vrot.lane.b32.xlu0 %v4919, 64
    %v5053 = vpop.permute.xlu0 %5052
    %5054 = vrot.lane.b32.xlu0 %v4922, 64
    %v5055 = vpop.permute.xlu0 %5054
    %5056 = vrot.lane.b32.xlu0 %v4925, 64
    %v5057 = vpop.permute.xlu0 %5056
    %5058 = vrot.lane.b32.xlu0 %v4928, 64
    %v5059 = vpop.permute.xlu0 %5058
    %5060 = vrot.lane.b32.xlu0 %v4931, 64
    %v5061 = vpop.permute.xlu0 %5060
    %5062 = vrot.lane.b32.xlu0 %v4934, 64
    %v5063 = vpop.permute.xlu0 %5062
    %5064 = vrot.lane.b32.xlu0 %v4937, 64
    %v5065 = vpop.permute.xlu0 %5064
    %5066 = vrot.lane.b32.xlu0 %v4940, 64
    %v5067 = vpop.permute.xlu0 %5066
    %5068 = vrot.lane.b32.xlu0 %v4943, 64
    %v5069 = vpop.permute.xlu0 %5068
    %5070 = vrot.lane.b32.xlu0 %v4946, 64
    %v5071 = vpop.permute.xlu0 %5070
    %5072 = vrot.lane.b32.xlu0 %v4949, 64
    %v5073 = vpop.permute.xlu0 %5072
    %5074 = vrot.lane.b32.xlu0 %v4952, 64
    %v5075 = vpop.permute.xlu0 %5074
    %5076 = vrot.lane.b32.xlu0 %v4955, 64
    %v5077 = vpop.permute.xlu0 %5076
    %5078 = vrot.lane.b32.xlu0 %v4958, 64
    %v5079 = vpop.permute.xlu0 %5078
    %5080 = vrot.lane.b32.xlu0 %v4961, 64
    %v5081 = vpop.permute.xlu0 %5080
    %5082 = vrot.lane.b32.xlu0 %v4964, 64
    %v5083 = vpop.permute.xlu0 %5082
    %5084 = vrot.lane.b32.xlu0 %v4965, 64
    %v5085 = vpop.permute.xlu0 %5084
    %vm5146 = vcmask 585216
    %5147 = vst.msk [vmem:[#allocation2] sm:$0xf] %vm5146, %v4967
    %5148 = vst.msk [vmem:[#allocation2 + $0x4] sm:$0xf] %vm5146, %v4969
    %5149 = vst.msk [vmem:[#allocation2 + $0x8] sm:$0xf] %vm5146, %v4971
    %5150 = vst.msk [vmem:[#allocation2 + $0xc] sm:$0xf] %vm5146, %v4973
    %5151 = vst.msk [vmem:[#allocation2 + $0x10] sm:$0xf] %vm5146, %v4975
    %5152 = vst.msk [vmem:[#allocation2 + $0x14] sm:$0xf] %vm5146, %v4977
    %5153 = vst.msk [vmem:[#allocation2 + $0x18] sm:$0xf] %vm5146, %v4979
    %5154 = vst.msk [vmem:[#allocation2 + $0x1c] sm:$0xf] %vm5146, %v4981
    %5155 = vst.msk [vmem:[#allocation2 + $0x20] sm:$0xf] %vm5146, %v4983
    %5156 = vst.msk [vmem:[#allocation2 + $0x24] sm:$0xf] %vm5146, %v4985
    %5157 = vst.msk [vmem:[#allocation2 + $0x28] sm:$0xf] %vm5146, %v4987
    %5158 = vst.msk [vmem:[#allocation2 + $0x2c] sm:$0xf] %vm5146, %v4989
    %5159 = vst.msk [vmem:[#allocation2 + $0x30] sm:$0xf] %vm5146, %v4991
    %5160 = vst.msk [vmem:[#allocation2 + $0x34] sm:$0xf] %vm5146, %v4993
    %5161 = vst.msk [vmem:[#allocation2 + $0x38] sm:$0xf] %vm5146, %v4995
    %5162 = vst.msk [vmem:[#allocation2 + $0x3c] sm:$0xf] %vm5146, %v4997
    %5163 = vst.msk [vmem:[#allocation2 + $0x40] sm:$0xf] %vm5146, %v4999
    %5164 = vst.msk [vmem:[#allocation2 + $0x44] sm:$0xf] %vm5146, %v5001
    %5165 = vst.msk [vmem:[#allocation2 + $0x48] sm:$0xf] %vm5146, %v5003
    %5166 = vst.msk [vmem:[#allocation2 + $0x4c] sm:$0xf] %vm5146, %v5005
    %5167 = vst.msk [vmem:[#allocation2 + $0x50] sm:$0xf] %vm5146, %v5007
    %5168 = vst.msk [vmem:[#allocation2 + $0x54] sm:$0xf] %vm5146, %v5009
    %5169 = vst.msk [vmem:[#allocation2 + $0x58] sm:$0xf] %vm5146, %v5011
    %5170 = vst.msk [vmem:[#allocation2 + $0x5c] sm:$0xf] %vm5146, %v5013
    %5171 = vst.msk [vmem:[#allocation2 + $0x60] sm:$0xf] %vm5146, %v5015
    %5172 = vst.msk [vmem:[#allocation2 + $0x64] sm:$0xf] %vm5146, %v5017
    %5173 = vst.msk [vmem:[#allocation2 + $0x68] sm:$0xf] %vm5146, %v5019
    %5174 = vst.msk [vmem:[#allocation2 + $0x6c] sm:$0xf] %vm5146, %v5021
    %5175 = vst.msk [vmem:[#allocation2 + $0x70] sm:$0xf] %vm5146, %v5023
    %5176 = vst.msk [vmem:[#allocation2 + $0x74] sm:$0xf] %vm5146, %v5025
    %5177 = vst.msk [vmem:[#allocation2 + $0x78] sm:$0xf] %vm5146, %v5027
    %5178 = vst.msk [vmem:[#allocation2 + $0x7c] sm:$0xf] %vm5146, %v5029
    %5179 = vst.msk [vmem:[#allocation2 + $0x80] sm:$0xf] %vm5146, %v5031
    %5180 = vst.msk [vmem:[#allocation2 + $0x84] sm:$0xf] %vm5146, %v5033
    %5181 = vst.msk [vmem:[#allocation2 + $0x88] sm:$0xf] %vm5146, %v5035
    %5182 = vst.msk [vmem:[#allocation2 + $0x8c] sm:$0xf] %vm5146, %v5037
    %5183 = vst.msk [vmem:[#allocation2 + $0x90] sm:$0xf] %vm5146, %v5039
    %5184 = vst.msk [vmem:[#allocation2 + $0x94] sm:$0xf] %vm5146, %v5041
    %5185 = vst.msk [vmem:[#allocation2 + $0x98] sm:$0xf] %vm5146, %v5043
    %5186 = vst.msk [vmem:[#allocation2 + $0x9c] sm:$0xf] %vm5146, %v5045
    %5187 = vst.msk [vmem:[#allocation2 + $0xa0] sm:$0xf] %vm5146, %v5047
    %5188 = vst.msk [vmem:[#allocation2 + $0xa4] sm:$0xf] %vm5146, %v5049
    %5189 = vst.msk [vmem:[#allocation2 + $0xa8] sm:$0xf] %vm5146, %v5051
    %5190 = vst.msk [vmem:[#allocation2 + $0xac] sm:$0xf] %vm5146, %v5053
    %5191 = vst.msk [vmem:[#allocation2 + $0xb0] sm:$0xf] %vm5146, %v5055
    %5192 = vst.msk [vmem:[#allocation2 + $0xb4] sm:$0xf] %vm5146, %v5057
    %5193 = vst.msk [vmem:[#allocation2 + $0xb8] sm:$0xf] %vm5146, %v5059
    %5194 = vst.msk [vmem:[#allocation2 + $0xbc] sm:$0xf] %vm5146, %v5061
    %5195 = vst.msk [vmem:[#allocation2 + $0xc0] sm:$0xf] %vm5146, %v5063
    %5196 = vst.msk [vmem:[#allocation2 + $0xc4] sm:$0xf] %vm5146, %v5065
    %5197 = vst.msk [vmem:[#allocation2 + $0xc8] sm:$0xf] %vm5146, %v5067
    %5198 = vst.msk [vmem:[#allocation2 + $0xcc] sm:$0xf] %vm5146, %v5069
    %5199 = vst.msk [vmem:[#allocation2 + $0xd0] sm:$0xf] %vm5146, %v5071
    %5200 = vst.msk [vmem:[#allocation2 + $0xd4] sm:$0xf] %vm5146, %v5073
    %5201 = vst.msk [vmem:[#allocation2 + $0xd8] sm:$0xf] %vm5146, %v5075
    %5202 = vst.msk [vmem:[#allocation2 + $0xdc] sm:$0xf] %vm5146, %v5077
    %5203 = vst.msk [vmem:[#allocation2 + $0xe0] sm:$0xf] %vm5146, %v5079
    %5204 = vst.msk [vmem:[#allocation2 + $0xe4] sm:$0xf] %vm5146, %v5081
    %5205 = vst.msk [vmem:[#allocation2 + $0xe8] sm:$0xf] %vm5146, %v5083
    %vm5206 = vcmask 584192
    %5207 = vst.msk [vmem:[#allocation2 + $0xec] sm:$0x7] %vm5206, %v5085
    %v5208 = vld [vmem:[#allocation2] sm:$0xf]
    %v5209 = vld [vmem:[#allocation2 + $0x4] sm:$0xf]
    %v5210 = vld [vmem:[#allocation2 + $0x8] sm:$0xf]
    %v5211 = vld [vmem:[#allocation2 + $0xc] sm:$0xf]
    %v5212 = vld [vmem:[#allocation2 + $0x10] sm:$0xf]
    %v5213 = vld [vmem:[#allocation2 + $0x14] sm:$0xf]
    %v5214 = vld [vmem:[#allocation2 + $0x18] sm:$0xf]
    %v5215 = vld [vmem:[#allocation2 + $0x1c] sm:$0xf]
    %v5216 = vld [vmem:[#allocation2 + $0x20] sm:$0xf]
    %v5217 = vld [vmem:[#allocation2 + $0x24] sm:$0xf]
    %v5218 = vld [vmem:[#allocation2 + $0x28] sm:$0xf]
    %v5219 = vld [vmem:[#allocation2 + $0x2c] sm:$0xf]
    %v5220 = vld [vmem:[#allocation2 + $0x30] sm:$0xf]
    %v5221 = vld [vmem:[#allocation2 + $0x34] sm:$0xf]
    %v5222 = vld [vmem:[#allocation2 + $0x38] sm:$0xf]
    %v5223 = vld [vmem:[#allocation2 + $0x3c] sm:$0xf]
    %v5224 = vld [vmem:[#allocation2 + $0x40] sm:$0xf]
    %v5225 = vld [vmem:[#allocation2 + $0x44] sm:$0xf]
    %v5226 = vld [vmem:[#allocation2 + $0x48] sm:$0xf]
    %v5227 = vld [vmem:[#allocation2 + $0x4c] sm:$0xf]
    %v5228 = vld [vmem:[#allocation2 + $0x50] sm:$0xf]
    %v5229 = vld [vmem:[#allocation2 + $0x54] sm:$0xf]
    %v5230 = vld [vmem:[#allocation2 + $0x58] sm:$0xf]
    %v5231 = vld [vmem:[#allocation2 + $0x5c] sm:$0xf]
    %v5232 = vld [vmem:[#allocation2 + $0x60] sm:$0xf]
    %v5233 = vld [vmem:[#allocation2 + $0x64] sm:$0xf]
    %v5234 = vld [vmem:[#allocation2 + $0x68] sm:$0xf]
    %v5235 = vld [vmem:[#allocation2 + $0x6c] sm:$0xf]
    %v5236 = vld [vmem:[#allocation2 + $0x70] sm:$0xf]
    %v5237 = vld [vmem:[#allocation2 + $0x74] sm:$0xf]
    %v5238 = vld [vmem:[#allocation2 + $0x78] sm:$0xf]
    %v5239 = vld [vmem:[#allocation2 + $0x7c] sm:$0xf]
    %v5240 = vld [vmem:[#allocation2 + $0x80] sm:$0xf]
    %v5241 = vld [vmem:[#allocation2 + $0x84] sm:$0xf]
    %v5242 = vld [vmem:[#allocation2 + $0x88] sm:$0xf]
    %v5243 = vld [vmem:[#allocation2 + $0x8c] sm:$0xf]
    %v5244 = vld [vmem:[#allocation2 + $0x90] sm:$0xf]
    %v5245 = vld [vmem:[#allocation2 + $0x94] sm:$0xf]
    %v5246 = vld [vmem:[#allocation2 + $0x98] sm:$0xf]
    %v5247 = vld [vmem:[#allocation2 + $0x9c] sm:$0xf]
    %v5248 = vld [vmem:[#allocation2 + $0xa0] sm:$0xf]
    %v5249 = vld [vmem:[#allocation2 + $0xa4] sm:$0xf]
    %v5250 = vld [vmem:[#allocation2 + $0xa8] sm:$0xf]
    %v5251 = vld [vmem:[#allocation2 + $0xac] sm:$0xf]
    %v5252 = vld [vmem:[#allocation2 + $0xb0] sm:$0xf]
    %v5253 = vld [vmem:[#allocation2 + $0xb4] sm:$0xf]
    %v5254 = vld [vmem:[#allocation2 + $0xb8] sm:$0xf]
    %v5255 = vld [vmem:[#allocation2 + $0xbc] sm:$0xf]
    %v5256 = vld [vmem:[#allocation2 + $0xc0] sm:$0xf]
    %v5257 = vld [vmem:[#allocation2 + $0xc4] sm:$0xf]
    %v5258 = vld [vmem:[#allocation2 + $0xc8] sm:$0xf]
    %v5259 = vld [vmem:[#allocation2 + $0xcc] sm:$0xf]
    %v5260 = vld [vmem:[#allocation2 + $0xd0] sm:$0xf]
    %v5261 = vld [vmem:[#allocation2 + $0xd4] sm:$0xf]
    %v5262 = vld [vmem:[#allocation2 + $0xd8] sm:$0xf]
    %v5263 = vld [vmem:[#allocation2 + $0xdc] sm:$0xf]
    %v5264 = vld [vmem:[#allocation2 + $0xe0] sm:$0xf]
    %v5265 = vld [vmem:[#allocation2 + $0xe4] sm:$0xf]
    %v5266 = vld [vmem:[#allocation2 + $0xe8] sm:$0xf]
    %v5267 = vld [vmem:[#allocation2 + $0xec] sm:$0x7]
    %v5268 = vld [vmem:[%s1] sm:$0xf]
    %v5269 = vld [vmem:[%s1 + $0x4] sm:$0xf]
    %v5270 = vld [vmem:[%s1 + $0x8] sm:$0xf]
    %v5271 = vld [vmem:[%s1 + $0xc] sm:$0xf]
    %v5272 = vld [vmem:[%s1 + $0x10] sm:$0xf]
    %v5273 = vld [vmem:[%s1 + $0x14] sm:$0xf]
    %v5274 = vld [vmem:[%s1 + $0x18] sm:$0xf]
    %v5275 = vld [vmem:[%s1 + $0x1c] sm:$0xf]
    %v5276 = vld [vmem:[%s1 + $0x20] sm:$0xf]
    %v5337 = vunpack.c.l.b16 %v5208
    %v5338 = vunpack.c.l.b16 %v5209
    %v5339 = vunpack.c.l.b16 %v5210
    %v5340 = vunpack.c.l.b16 %v5211
    %v5341 = vunpack.c.l.b16 %v5212
    %v5342 = vunpack.c.l.b16 %v5213
    %v5343 = vunpack.c.l.b16 %v5214
    %v5344 = vunpack.c.l.b16 %v5215
    %v5345 = vunpack.c.l.b16 %v5216
    %v5346 = vunpack.c.l.b16 %v5217
    %v5347 = vunpack.c.l.b16 %v5218
    %v5348 = vunpack.c.l.b16 %v5219
    %v5349 = vunpack.c.l.b16 %v5220
    %v5350 = vunpack.c.l.b16 %v5221
    %v5351 = vunpack.c.l.b16 %v5222
    %v5352 = vunpack.c.l.b16 %v5223
    %v5353 = vunpack.c.l.b16 %v5224
    %v5354 = vunpack.c.l.b16 %v5225
    %v5355 = vunpack.c.l.b16 %v5226
    %v5356 = vunpack.c.l.b16 %v5227
    %v5357 = vunpack.c.l.b16 %v5228
    %v5358 = vunpack.c.l.b16 %v5229
    %v5359 = vunpack.c.l.b16 %v5230
    %v5360 = vunpack.c.l.b16 %v5231
    %v5361 = vunpack.c.l.b16 %v5232
    %v5362 = vunpack.c.l.b16 %v5233
    %v5363 = vunpack.c.l.b16 %v5234
    %v5364 = vunpack.c.l.b16 %v5235
    %v5365 = vunpack.c.l.b16 %v5236
    %v5366 = vunpack.c.l.b16 %v5237
    %v5367 = vunpack.c.l.b16 %v5238
    %v5368 = vunpack.c.l.b16 %v5239
    %v5369 = vunpack.c.l.b16 %v5240
    %v5370 = vunpack.c.l.b16 %v5241
    %v5371 = vunpack.c.l.b16 %v5242
    %v5372 = vunpack.c.l.b16 %v5243
    %v5373 = vunpack.c.l.b16 %v5244
    %v5374 = vunpack.c.l.b16 %v5245
    %v5375 = vunpack.c.l.b16 %v5246
    %v5376 = vunpack.c.l.b16 %v5247
    %v5377 = vunpack.c.l.b16 %v5248
    %v5378 = vunpack.c.l.b16 %v5249
    %v5379 = vunpack.c.l.b16 %v5250
    %v5380 = vunpack.c.l.b16 %v5251
    %v5381 = vunpack.c.l.b16 %v5252
    %v5382 = vunpack.c.l.b16 %v5253
    %v5383 = vunpack.c.l.b16 %v5254
    %v5384 = vunpack.c.l.b16 %v5255
    %v5385 = vunpack.c.l.b16 %v5256
    %v5386 = vunpack.c.l.b16 %v5257
    %v5387 = vunpack.c.l.b16 %v5258
    %v5388 = vunpack.c.l.b16 %v5259
    %v5389 = vunpack.c.l.b16 %v5260
    %v5390 = vunpack.c.l.b16 %v5261
    %v5391 = vunpack.c.l.b16 %v5262
    %v5392 = vunpack.c.l.b16 %v5263
    %v5393 = vunpack.c.l.b16 %v5264
    %v5394 = vunpack.c.l.b16 %v5265
    %v5395 = vunpack.c.l.b16 %v5266
    %v5396 = vunpack.c.l.b16 %v5267
    %v5397 = vpack.c.b16 %v5338, %v5337
    %v5398 = vpack.c.b16 %v5340, %v5339
    %v5399 = vpack.c.b16 %v5342, %v5341
    %v5400 = vpack.c.b16 %v5344, %v5343
    %v5401 = vpack.c.b16 %v5346, %v5345
    %v5402 = vpack.c.b16 %v5348, %v5347
    %v5403 = vpack.c.b16 %v5350, %v5349
    %v5404 = vpack.c.b16 %v5352, %v5351
    %v5405 = vpack.c.b16 %v5354, %v5353
    %v5406 = vpack.c.b16 %v5356, %v5355
    %v5407 = vpack.c.b16 %v5358, %v5357
    %v5408 = vpack.c.b16 %v5360, %v5359
    %v5409 = vpack.c.b16 %v5362, %v5361
    %v5410 = vpack.c.b16 %v5364, %v5363
    %v5411 = vpack.c.b16 %v5366, %v5365
    %v5412 = vpack.c.b16 %v5368, %v5367
    %v5413 = vpack.c.b16 %v5370, %v5369
    %v5414 = vpack.c.b16 %v5372, %v5371
    %v5415 = vpack.c.b16 %v5374, %v5373
    %v5416 = vpack.c.b16 %v5376, %v5375
    %v5417 = vpack.c.b16 %v5378, %v5377
    %v5418 = vpack.c.b16 %v5380, %v5379
    %v5419 = vpack.c.b16 %v5382, %v5381
    %v5420 = vpack.c.b16 %v5384, %v5383
    %v5421 = vpack.c.b16 %v5386, %v5385
    %v5422 = vpack.c.b16 %v5388, %v5387
    %v5423 = vpack.c.b16 %v5390, %v5389
    %v5424 = vpack.c.b16 %v5392, %v5391
    %v5425 = vpack.c.b16 %v5394, %v5393
    %v5426 = vpack.c.b16 %v5396, %v5395
    %v5436 = vunpack.c.l.b16 %v5268
    %v5437 = vunpack.c.l.b16 %v5269
    %v5438 = vunpack.c.l.b16 %v5270
    %v5439 = vunpack.c.l.b16 %v5271
    %v5440 = vunpack.c.l.b16 %v5272
    %v5441 = vunpack.c.l.b16 %v5273
    %v5442 = vunpack.c.l.b16 %v5274
    %v5443 = vunpack.c.l.b16 %v5275
    %v5444 = vunpack.c.l.b16 %v5276
    %v5445 = vpack.c.b16 %v5437, %v5436
    %v5446 = vpack.c.b16 %v5439, %v5438
    %v5447 = vpack.c.b16 %v5441, %v5440
    %v5448 = vpack.c.b16 %v5443, %v5442
    %v5449 = vpack.c.b16 %v5444, %v5444
    %vm5454 = vcmask 588800
    %v5456 = vsel %vm5454, %v5397, 0
    %v5459 = vsel %vm5454, %v5398, 0
    %v5462 = vsel %vm5454, %v5399, 0
    %v5465 = vsel %vm5454, %v5400, 0
    %v5468 = vsel %vm5454, %v5401, 0
    %v5471 = vsel %vm5454, %v5402, 0
    %v5474 = vsel %vm5454, %v5403, 0
    %v5477 = vsel %vm5454, %v5404, 0
    %v5480 = vsel %vm5454, %v5405, 0
    %v5483 = vsel %vm5454, %v5406, 0
    %v5486 = vsel %vm5454, %v5407, 0
    %v5489 = vsel %vm5454, %v5408, 0
    %v5492 = vsel %vm5454, %v5409, 0
    %v5495 = vsel %vm5454, %v5410, 0
    %v5498 = vsel %vm5454, %v5411, 0
    %v5501 = vsel %vm5454, %v5412, 0
    %v5504 = vsel %vm5454, %v5413, 0
    %v5507 = vsel %vm5454, %v5414, 0
    %v5510 = vsel %vm5454, %v5415, 0
    %v5513 = vsel %vm5454, %v5416, 0
    %v5516 = vsel %vm5454, %v5417, 0
    %v5519 = vsel %vm5454, %v5418, 0
    %v5522 = vsel %vm5454, %v5419, 0
    %v5525 = vsel %vm5454, %v5420, 0
    %v5528 = vsel %vm5454, %v5421, 0
    %v5531 = vsel %vm5454, %v5422, 0
    %v5534 = vsel %vm5454, %v5423, 0
    %v5537 = vsel %vm5454, %v5424, 0
    %v5540 = vsel %vm5454, %v5425, 0
    %v5543 = vsel %vm5454, %v5426, 0
    %vm5545 = vcmask 1043456
    %v5547 = vsel %vm5545, %v5449, 0
    %5549 = vmatprep.subr.bf16.mxu0 0
    %5550 = vmatpush1.bf16.msra.mxu0 0
    %5551 = vmatprep.subr.bf16.mxu0 0
    %5552 = vmatpush1.bf16.msra.mxu0 0
    %5553 = vmatprep.subr.bf16.mxu0 0
    %5554 = vmatpush1.bf16.msra.mxu0 0
    %5555 = vmatprep.subr.bf16.mxu0 0
    %5556 = vmatpush1.bf16.msra.mxu0 %v5547
    %5557 = vmatprep.subr.bf16.mxu0 0
    %5558 = vmatpush1.bf16.msra.mxu0 %v5448
    %5559 = vmatprep.subr.bf16.mxu0 0
    %5560 = vmatpush1.bf16.msra.mxu0 %v5447
    %5561 = vmatprep.subr.bf16.mxu0 0
    %5562 = vmatpush1.bf16.msra.mxu0 %v5446
    %5563 = vmatprep.subr.bf16.mxu0 0
    %5564 = vmatpush1.bf16.msra.mxu0 %v5445
    %5565 = vmatprep.subr.bf16.mxu0 0
    %5566 = vmatpush2.bf16.msra.mxu0 0
    %5567 = vmatprep.subr.bf16.mxu0 0
    %5568 = vmatpush2.bf16.msra.mxu0 0
    %5569 = vmatprep.subr.bf16.mxu0 0
    %5570 = vmatpush2.bf16.msra.mxu0 0
    %5571 = vmatprep.subr.bf16.mxu0 0
    %5572 = vmatpush2.bf16.msra.mxu0 0
    %5573 = vmatprep.subr.bf16.mxu0 0
    %5574 = vmatpush2.bf16.msra.mxu0 0
    %5575 = vmatprep.subr.bf16.mxu0 0
    %5576 = vmatpush2.bf16.msra.mxu0 0
    %5577 = vmatprep.subr.bf16.mxu0 0
    %5578 = vmatpush2.bf16.msra.mxu0 0
    %5579 = vmatprep.subr.bf16.mxu0 0
    %5580 = vmatpush2.bf16.msra.mxu0 0
    %5581 = vmatprep.mubr.bf16.mxu0 0
    %5582 = vmatmul.mubr.bf16.gmra.mxu0 %v5456
    %v5583 = vpop.f32.mrf.mxu0
    %v5584 = vadd.f32 0.0, %v5583
    %v5585 = vpop.f32.mrf.mxu0
    %v5586 = vpop.f32.mrf.mxu0
    %v5587 = vadd.f32 0.0, %v5586
    %v5588 = vpop.f32.mrf.mxu0
    %5589 = vmatprep.mubr.bf16.mxu0 0
    %5590 = vmatmul.mubr.bf16.gmra.mxu0 %v5459
    %v5591 = vpop.f32.mrf.mxu0
    %v5592 = vadd.f32 0.0, %v5591
    %v5593 = vpop.f32.mrf.mxu0
    %v5594 = vpop.f32.mrf.mxu0
    %v5595 = vadd.f32 0.0, %v5594
    %v5596 = vpop.f32.mrf.mxu0
    %5597 = vmatprep.mubr.bf16.mxu0 0
    %5598 = vmatmul.mubr.bf16.gmra.mxu0 %v5462
    %v5599 = vpop.f32.mrf.mxu0
    %v5600 = vadd.f32 0.0, %v5599
    %v5601 = vpop.f32.mrf.mxu0
    %v5602 = vpop.f32.mrf.mxu0
    %v5603 = vadd.f32 0.0, %v5602
    %v5604 = vpop.f32.mrf.mxu0
    %5605 = vmatprep.mubr.bf16.mxu0 0
    %5606 = vmatmul.mubr.bf16.gmra.mxu0 %v5465
    %v5607 = vpop.f32.mrf.mxu0
    %v5608 = vadd.f32 0.0, %v5607
    %v5609 = vpop.f32.mrf.mxu0
    %v5610 = vpop.f32.mrf.mxu0
    %v5611 = vadd.f32 0.0, %v5610
    %v5612 = vpop.f32.mrf.mxu0
    %5613 = vmatprep.mubr.bf16.mxu0 0
    %5614 = vmatmul.mubr.bf16.gmra.mxu0 %v5468
    %v5615 = vpop.f32.mrf.mxu0
    %v5616 = vadd.f32 0.0, %v5615
    %v5617 = vpop.f32.mrf.mxu0
    %v5618 = vpop.f32.mrf.mxu0
    %v5619 = vadd.f32 0.0, %v5618
    %v5620 = vpop.f32.mrf.mxu0
    %5621 = vmatprep.mubr.bf16.mxu0 0
    %5622 = vmatmul.mubr.bf16.gmra.mxu0 %v5471
    %v5623 = vpop.f32.mrf.mxu0
    %v5624 = vadd.f32 0.0, %v5623
    %v5625 = vpop.f32.mrf.mxu0
    %v5626 = vpop.f32.mrf.mxu0
    %v5627 = vadd.f32 0.0, %v5626
    %v5628 = vpop.f32.mrf.mxu0
    %5629 = vmatprep.mubr.bf16.mxu0 0
    %5630 = vmatmul.mubr.bf16.gmra.mxu0 %v5474
    %v5631 = vpop.f32.mrf.mxu0
    %v5632 = vadd.f32 0.0, %v5631
    %v5633 = vpop.f32.mrf.mxu0
    %v5634 = vpop.f32.mrf.mxu0
    %v5635 = vadd.f32 0.0, %v5634
    %v5636 = vpop.f32.mrf.mxu0
    %5637 = vmatprep.mubr.bf16.mxu0 0
    %5638 = vmatmul.mubr.bf16.gmra.mxu0 %v5477
    %v5639 = vpop.f32.mrf.mxu0
    %v5640 = vadd.f32 0.0, %v5639
    %v5641 = vpop.f32.mrf.mxu0
    %v5642 = vpop.f32.mrf.mxu0
    %v5643 = vadd.f32 0.0, %v5642
    %v5644 = vpop.f32.mrf.mxu0
    %5645 = vmatprep.mubr.bf16.mxu0 0
    %5646 = vmatmul.mubr.bf16.gmra.mxu0 %v5480
    %v5647 = vpop.f32.mrf.mxu0
    %v5648 = vadd.f32 0.0, %v5647
    %v5649 = vpop.f32.mrf.mxu0
    %v5650 = vpop.f32.mrf.mxu0
    %v5651 = vadd.f32 0.0, %v5650
    %v5652 = vpop.f32.mrf.mxu0
    %5653 = vmatprep.mubr.bf16.mxu0 0
    %5654 = vmatmul.mubr.bf16.gmra.mxu0 %v5483
    %v5655 = vpop.f32.mrf.mxu0
    %v5656 = vadd.f32 0.0, %v5655
    %v5657 = vpop.f32.mrf.mxu0
    %v5658 = vpop.f32.mrf.mxu0
    %v5659 = vadd.f32 0.0, %v5658
    %v5660 = vpop.f32.mrf.mxu0
    %5661 = vmatprep.mubr.bf16.mxu0 0
    %5662 = vmatmul.mubr.bf16.gmra.mxu0 %v5486
    %v5663 = vpop.f32.mrf.mxu0
    %v5664 = vadd.f32 0.0, %v5663
    %v5665 = vpop.f32.mrf.mxu0
    %v5666 = vpop.f32.mrf.mxu0
    %v5667 = vadd.f32 0.0, %v5666
    %v5668 = vpop.f32.mrf.mxu0
    %5669 = vmatprep.mubr.bf16.mxu0 0
    %5670 = vmatmul.mubr.bf16.gmra.mxu0 %v5489
    %v5671 = vpop.f32.mrf.mxu0
    %v5672 = vadd.f32 0.0, %v5671
    %v5673 = vpop.f32.mrf.mxu0
    %v5674 = vpop.f32.mrf.mxu0
    %v5675 = vadd.f32 0.0, %v5674
    %v5676 = vpop.f32.mrf.mxu0
    %5677 = vmatprep.mubr.bf16.mxu0 0
    %5678 = vmatmul.mubr.bf16.gmra.mxu0 %v5492
    %v5679 = vpop.f32.mrf.mxu0
    %v5680 = vadd.f32 0.0, %v5679
    %v5681 = vpop.f32.mrf.mxu0
    %v5682 = vpop.f32.mrf.mxu0
    %v5683 = vadd.f32 0.0, %v5682
    %v5684 = vpop.f32.mrf.mxu0
    %5685 = vmatprep.mubr.bf16.mxu0 0
    %5686 = vmatmul.mubr.bf16.gmra.mxu0 %v5495
    %v5687 = vpop.f32.mrf.mxu0
    %v5688 = vadd.f32 0.0, %v5687
    %v5689 = vpop.f32.mrf.mxu0
    %v5690 = vpop.f32.mrf.mxu0
    %v5691 = vadd.f32 0.0, %v5690
    %v5692 = vpop.f32.mrf.mxu0
    %5693 = vmatprep.mubr.bf16.mxu0 0
    %5694 = vmatmul.mubr.bf16.gmra.mxu0 %v5498
    %v5695 = vpop.f32.mrf.mxu0
    %v5696 = vadd.f32 0.0, %v5695
    %v5697 = vpop.f32.mrf.mxu0
    %v5698 = vpop.f32.mrf.mxu0
    %v5699 = vadd.f32 0.0, %v5698
    %v5700 = vpop.f32.mrf.mxu0
    %5701 = vmatprep.mubr.bf16.mxu0 0
    %5702 = vmatmul.mubr.bf16.gmra.mxu0 %v5501
    %v5703 = vpop.f32.mrf.mxu0
    %v5704 = vadd.f32 0.0, %v5703
    %v5705 = vpop.f32.mrf.mxu0
    %v5706 = vpop.f32.mrf.mxu0
    %v5707 = vadd.f32 0.0, %v5706
    %v5708 = vpop.f32.mrf.mxu0
    %5709 = vmatprep.mubr.bf16.mxu0 0
    %5710 = vmatmul.mubr.bf16.gmra.mxu0 %v5504
    %v5711 = vpop.f32.mrf.mxu0
    %v5712 = vadd.f32 0.0, %v5711
    %v5713 = vpop.f32.mrf.mxu0
    %v5714 = vpop.f32.mrf.mxu0
    %v5715 = vadd.f32 0.0, %v5714
    %v5716 = vpop.f32.mrf.mxu0
    %5717 = vmatprep.mubr.bf16.mxu0 0
    %5718 = vmatmul.mubr.bf16.gmra.mxu0 %v5507
    %v5719 = vpop.f32.mrf.mxu0
    %v5720 = vadd.f32 0.0, %v5719
    %v5721 = vpop.f32.mrf.mxu0
    %v5722 = vpop.f32.mrf.mxu0
    %v5723 = vadd.f32 0.0, %v5722
    %v5724 = vpop.f32.mrf.mxu0
    %5725 = vmatprep.mubr.bf16.mxu0 0
    %5726 = vmatmul.mubr.bf16.gmra.mxu0 %v5510
    %v5727 = vpop.f32.mrf.mxu0
    %v5728 = vadd.f32 0.0, %v5727
    %v5729 = vpop.f32.mrf.mxu0
    %v5730 = vpop.f32.mrf.mxu0
    %v5731 = vadd.f32 0.0, %v5730
    %v5732 = vpop.f32.mrf.mxu0
    %5733 = vmatprep.mubr.bf16.mxu0 0
    %5734 = vmatmul.mubr.bf16.gmra.mxu0 %v5513
    %v5735 = vpop.f32.mrf.mxu0
    %v5736 = vadd.f32 0.0, %v5735
    %v5737 = vpop.f32.mrf.mxu0
    %v5738 = vpop.f32.mrf.mxu0
    %v5739 = vadd.f32 0.0, %v5738
    %v5740 = vpop.f32.mrf.mxu0
    %5741 = vmatprep.mubr.bf16.mxu0 0
    %5742 = vmatmul.mubr.bf16.gmra.mxu0 %v5516
    %v5743 = vpop.f32.mrf.mxu0
    %v5744 = vadd.f32 0.0, %v5743
    %v5745 = vpop.f32.mrf.mxu0
    %v5746 = vpop.f32.mrf.mxu0
    %v5747 = vadd.f32 0.0, %v5746
    %v5748 = vpop.f32.mrf.mxu0
    %5749 = vmatprep.mubr.bf16.mxu0 0
    %5750 = vmatmul.mubr.bf16.gmra.mxu0 %v5519
    %v5751 = vpop.f32.mrf.mxu0
    %v5752 = vadd.f32 0.0, %v5751
    %v5753 = vpop.f32.mrf.mxu0
    %v5754 = vpop.f32.mrf.mxu0
    %v5755 = vadd.f32 0.0, %v5754
    %v5756 = vpop.f32.mrf.mxu0
    %5757 = vmatprep.mubr.bf16.mxu0 0
    %5758 = vmatmul.mubr.bf16.gmra.mxu0 %v5522
    %v5759 = vpop.f32.mrf.mxu0
    %v5760 = vadd.f32 0.0, %v5759
    %v5761 = vpop.f32.mrf.mxu0
    %v5762 = vpop.f32.mrf.mxu0
    %v5763 = vadd.f32 0.0, %v5762
    %v5764 = vpop.f32.mrf.mxu0
    %5765 = vmatprep.mubr.bf16.mxu0 0
    %5766 = vmatmul.mubr.bf16.gmra.mxu0 %v5525
    %v5767 = vpop.f32.mrf.mxu0
    %v5768 = vadd.f32 0.0, %v5767
    %v5769 = vpop.f32.mrf.mxu0
    %v5770 = vpop.f32.mrf.mxu0
    %v5771 = vadd.f32 0.0, %v5770
    %v5772 = vpop.f32.mrf.mxu0
    %5773 = vmatprep.mubr.bf16.mxu0 0
    %5774 = vmatmul.mubr.bf16.gmra.mxu0 %v5528
    %v5775 = vpop.f32.mrf.mxu0
    %v5776 = vadd.f32 0.0, %v5775
    %v5777 = vpop.f32.mrf.mxu0
    %v5778 = vpop.f32.mrf.mxu0
    %v5779 = vadd.f32 0.0, %v5778
    %v5780 = vpop.f32.mrf.mxu0
    %5781 = vmatprep.mubr.bf16.mxu0 0
    %5782 = vmatmul.mubr.bf16.gmra.mxu0 %v5531
    %v5783 = vpop.f32.mrf.mxu0
    %v5784 = vadd.f32 0.0, %v5783
    %v5785 = vpop.f32.mrf.mxu0
    %v5786 = vpop.f32.mrf.mxu0
    %v5787 = vadd.f32 0.0, %v5786
    %v5788 = vpop.f32.mrf.mxu0
    %5789 = vmatprep.mubr.bf16.mxu0 0
    %5790 = vmatmul.mubr.bf16.gmra.mxu0 %v5534
    %v5791 = vpop.f32.mrf.mxu0
    %v5792 = vadd.f32 0.0, %v5791
    %v5793 = vpop.f32.mrf.mxu0
    %v5794 = vpop.f32.mrf.mxu0
    %v5795 = vadd.f32 0.0, %v5794
    %v5796 = vpop.f32.mrf.mxu0
    %5797 = vmatprep.mubr.bf16.mxu0 0
    %5798 = vmatmul.mubr.bf16.gmra.mxu0 %v5537
    %v5799 = vpop.f32.mrf.mxu0
    %v5800 = vadd.f32 0.0, %v5799
    %v5801 = vpop.f32.mrf.mxu0
    %v5802 = vpop.f32.mrf.mxu0
    %v5803 = vadd.f32 0.0, %v5802
    %v5804 = vpop.f32.mrf.mxu0
    %5805 = vmatprep.mubr.bf16.mxu0 0
    %5806 = vmatmul.mubr.bf16.gmra.mxu0 %v5540
    %v5807 = vpop.f32.mrf.mxu0
    %v5808 = vadd.f32 0.0, %v5807
    %v5809 = vpop.f32.mrf.mxu0
    %v5810 = vpop.f32.mrf.mxu0
    %v5811 = vadd.f32 0.0, %v5810
    %v5812 = vpop.f32.mrf.mxu0
    %5813 = vmatprep.mubr.bf16.mxu0 0
    %5814 = vmatmul.mubr.bf16.gmra.mxu0 %v5543
    %v5815 = vpop.f32.mrf.mxu0
    %v5816 = vadd.f32 0.0, %v5815
    %v5817 = vpop.f32.mrf.mxu0
    %v5818 = vpop.f32.mrf.mxu0
    %v5819 = vadd.f32 0.0, %v5818
    %v5820 = vpop.f32.mrf.mxu0
    %5821 = vdwg.mxu0
    %v5822 = vlaneseq
    %v5823 = vand.u32 %v5822, 127
    %v5824 = vadd.s32 %v5823, 128
    %v5825 = vadd.s32 %v5823, 256
    %v5826 = vadd.s32 %v5823, 384
    %v5827 = vand.u32 %v5823, 255
    %v5828 = vand.u32 %v5824, 255
    %v5829 = vand.u32 %v5825, 255
    %v5830 = vand.u32 %v5826, 255
    %v5831 = vshrl.u32 %v5827, 4
    %v5832 = vshrl.u32 %v5828, 4
    %v5833 = vshrl.u32 %v5829, 4
    %v5834 = vshrl.u32 %v5830, 4
    %vm5835 = vcmp.lt.s32.totalorder %v5831, 14
    %vm5836 = vcmp.lt.s32.totalorder %v5832, 14
    %vm5837 = vcmp.lt.s32.totalorder %v5833, 14
    %vm5838 = vcmp.lt.s32.totalorder %v5834, 14
    %v5839 = vand.u32 %v5827, 15
    %v5840 = vand.u32 %v5828, 15
    %v5841 = vand.u32 %v5829, 15
    %v5842 = vand.u32 %v5830, 15
    %vm5843 = vcmp.lt.s32.totalorder %v5839, 14
    %vm5844 = vcmp.lt.s32.totalorder %v5840, 14
    %vm5845 = vcmp.lt.s32.totalorder %v5841, 14
    %vm5846 = vcmp.lt.s32.totalorder %v5842, 14
    %vm5847 = vmand %vm5835, %vm5843
    %vm5848 = vmand %vm5836, %vm5844
    %vm5849 = vmand %vm5837, %vm5845
    %vm5850 = vmand %vm5838, %vm5846
    %v5851 = vsel %vm5847, 1, 0
    %v5852 = vsel %vm5848, 1, 0
    %v5853 = vsel %vm5849, 1, 0
    %v5854 = vsel %vm5850, 1, 0
    %v5855 = vcvt.s32.f32 %v5851
    %v5856 = vcvt.s32.f32 %v5852
    %v5857 = vcvt.s32.f32 %v5853
    %v5858 = vcvt.s32.f32 %v5854
    %vm5859 = vcmask 769024
    %v5861 = vsel %vm5859, %v5858, 0
    %vm5863 = vcmask 1045504
    %v5865 = vsel %vm5863, %v5819, 0
    %5867 = vmatprep.subr.mxu0 0.0
    %5868 = vmatpush1.msra.mxu0 %v5643
    %5869 = vmatprep.subr.mxu0 0.0
    %5870 = vmatpush1.msra.mxu0 %v5640
    %5871 = vmatprep.subr.mxu0 0.0
    %5872 = vmatpush1.msra.mxu0 %v5635
    %5873 = vmatprep.subr.mxu0 0.0
    %5874 = vmatpush1.msra.mxu0 %v5632
    %5875 = vmatprep.subr.mxu0 0.0
    %5876 = vmatpush1.msra.mxu0 %v5627
    %5877 = vmatprep.subr.mxu0 0.0
    %5878 = vmatpush1.msra.mxu0 %v5624
    %5879 = vmatprep.subr.mxu0 0.0
    %5880 = vmatpush1.msra.mxu0 %v5619
    %5881 = vmatprep.subr.mxu0 0.0
    %5882 = vmatpush1.msra.mxu0 %v5616
    %5883 = vmatprep.subr.mxu0 0.0
    %5884 = vmatpush1.msra.mxu0 %v5611
    %5885 = vmatprep.subr.mxu0 0.0
    %5886 = vmatpush1.msra.mxu0 %v5608
    %5887 = vmatprep.subr.mxu0 0.0
    %5888 = vmatpush1.msra.mxu0 %v5603
    %5889 = vmatprep.subr.mxu0 0.0
    %5890 = vmatpush1.msra.mxu0 %v5600
    %5891 = vmatprep.subr.mxu0 0.0
    %5892 = vmatpush1.msra.mxu0 %v5595
    %5893 = vmatprep.subr.mxu0 0.0
    %5894 = vmatpush1.msra.mxu0 %v5592
    %5895 = vmatprep.subr.mxu0 0.0
    %5896 = vmatpush1.msra.mxu0 %v5587
    %5897 = vmatprep.subr.mxu0 0.0
    %5898 = vmatpush1.msra.mxu0 %v5584
    %5899 = vmatprep.subr.mxu0 0.0
    %5900 = vmatpush2.msra.mxu0 %v5707
    %5901 = vmatprep.subr.mxu0 0.0
    %5902 = vmatpush2.msra.mxu0 %v5704
    %5903 = vmatprep.subr.mxu0 0.0
    %5904 = vmatpush2.msra.mxu0 %v5699
    %5905 = vmatprep.subr.mxu0 0.0
    %5906 = vmatpush2.msra.mxu0 %v5696
    %5907 = vmatprep.subr.mxu0 0.0
    %5908 = vmatpush2.msra.mxu0 %v5691
    %5909 = vmatprep.subr.mxu0 0.0
    %5910 = vmatpush2.msra.mxu0 %v5688
    %5911 = vmatprep.subr.mxu0 0.0
    %5912 = vmatpush2.msra.mxu0 %v5683
    %5913 = vmatprep.subr.mxu0 0.0
    %5914 = vmatpush2.msra.mxu0 %v5680
    %5915 = vmatprep.subr.mxu0 0.0
    %5916 = vmatpush2.msra.mxu0 %v5675
    %5917 = vmatprep.subr.mxu0 0.0
    %5918 = vmatpush2.msra.mxu0 %v5672
    %5919 = vmatprep.subr.mxu0 0.0
    %5920 = vmatpush2.msra.mxu0 %v5667
    %5921 = vmatprep.subr.mxu0 0.0
    %5922 = vmatpush2.msra.mxu0 %v5664
    %5923 = vmatprep.subr.mxu0 0.0
    %5924 = vmatpush2.msra.mxu0 %v5659
    %5925 = vmatprep.subr.mxu0 0.0
    %5926 = vmatpush2.msra.mxu0 %v5656
    %5927 = vmatprep.subr.mxu0 0.0
    %5928 = vmatpush2.msra.mxu0 %v5651
    %5929 = vmatprep.subr.mxu0 0.0
    %5930 = vmatpush2.msra.mxu0 %v5648
    %5931 = vmatprep.mubr.f32.mxu0 %v5856
    %5932 = vmatmul.mubr.f32.gmra.mxu0 %v5855
    %v5933 = vpop.f32.mrf.mxu0
    %v5934 = vadd.f32 0.0, %v5933
    %v5935 = vpop.f32.mrf.mxu0
    %5936 = vdwg.mxu0
    %5937 = vmatprep.subr.mxu0 0.0
    %5938 = vmatpush1.msra.mxu0 %v5771
    %5939 = vmatprep.subr.mxu0 0.0
    %5940 = vmatpush1.msra.mxu0 %v5768
    %5941 = vmatprep.subr.mxu0 0.0
    %5942 = vmatpush1.msra.mxu0 %v5763
    %5943 = vmatprep.subr.mxu0 0.0
    %5944 = vmatpush1.msra.mxu0 %v5760
    %5945 = vmatprep.subr.mxu0 0.0
    %5946 = vmatpush1.msra.mxu0 %v5755
    %5947 = vmatprep.subr.mxu0 0.0
    %5948 = vmatpush1.msra.mxu0 %v5752
    %5949 = vmatprep.subr.mxu0 0.0
    %5950 = vmatpush1.msra.mxu0 %v5747
    %5951 = vmatprep.subr.mxu0 0.0
    %5952 = vmatpush1.msra.mxu0 %v5744
    %5953 = vmatprep.subr.mxu0 0.0
    %5954 = vmatpush1.msra.mxu0 %v5739
    %5955 = vmatprep.subr.mxu0 0.0
    %5956 = vmatpush1.msra.mxu0 %v5736
    %5957 = vmatprep.subr.mxu0 0.0
    %5958 = vmatpush1.msra.mxu0 %v5731
    %5959 = vmatprep.subr.mxu0 0.0
    %5960 = vmatpush1.msra.mxu0 %v5728
    %5961 = vmatprep.subr.mxu0 0.0
    %5962 = vmatpush1.msra.mxu0 %v5723
    %5963 = vmatprep.subr.mxu0 0.0
    %5964 = vmatpush1.msra.mxu0 %v5720
    %5965 = vmatprep.subr.mxu0 0.0
    %5966 = vmatpush1.msra.mxu0 %v5715
    %5967 = vmatprep.subr.mxu0 0.0
    %5968 = vmatpush1.msra.mxu0 %v5712
    %5969 = vmatprep.subr.mxu0 0.0
    %5970 = vmatpush2.msra.mxu0 0.0
    %5971 = vmatprep.subr.mxu0 0.0
    %5972 = vmatpush2.msra.mxu0 0.0
    %5973 = vmatprep.subr.mxu0 0.0
    %5974 = vmatpush2.msra.mxu0 0.0
    %5975 = vmatprep.subr.mxu0 0.0
    %5976 = vmatpush2.msra.mxu0 0.0
    %5977 = vmatprep.subr.mxu0 0.0
    %5978 = vmatpush2.msra.mxu0 %v5865
    %5979 = vmatprep.subr.mxu0 0.0
    %5980 = vmatpush2.msra.mxu0 %v5816
    %5981 = vmatprep.subr.mxu0 0.0
    %5982 = vmatpush2.msra.mxu0 %v5811
    %5983 = vmatprep.subr.mxu0 0.0
    %5984 = vmatpush2.msra.mxu0 %v5808
    %5985 = vmatprep.subr.mxu0 0.0
    %5986 = vmatpush2.msra.mxu0 %v5803
    %5987 = vmatprep.subr.mxu0 0.0
    %5988 = vmatpush2.msra.mxu0 %v5800
    %5989 = vmatprep.subr.mxu0 0.0
    %5990 = vmatpush2.msra.mxu0 %v5795
    %5991 = vmatprep.subr.mxu0 0.0
    %5992 = vmatpush2.msra.mxu0 %v5792
    %5993 = vmatprep.subr.mxu0 0.0
    %5994 = vmatpush2.msra.mxu0 %v5787
    %5995 = vmatprep.subr.mxu0 0.0
    %5996 = vmatpush2.msra.mxu0 %v5784
    %5997 = vmatprep.subr.mxu0 0.0
    %5998 = vmatpush2.msra.mxu0 %v5779
    %5999 = vmatprep.subr.mxu0 0.0
    %6000 = vmatpush2.msra.mxu0 %v5776
    %6001 = vmatprep.mubr.f32.mxu0 %v5861
    %6002 = vmatmul.mubr.f32.gmra.mxu0 %v5857
    %v6003 = vpop.f32.mrf.mxu0
    %v6004 = vadd.f32 %v5934, %v6003
    %v6005 = vpop.f32.mrf.mxu0
    %6006 = vdwg.mxu0
    %v6007 = vmul.f32 %v6004, 0.0025510204
    %v6008 = vlaneseq
    %v6009 = vshrl.u32 %v6008, 7
    %v6010 = vsub.s32 0, %v6009
    %v6011 = vrot.slane %v6007, %v6010
    %v6012 = vsub.f32 %v5584, %v6011
    %v6013 = vsub.f32 %v5587, %v6011
    %v6014 = vsub.f32 %v5592, %v6011
    %v6015 = vsub.f32 %v5595, %v6011
    %v6016 = vsub.f32 %v5600, %v6011
    %v6017 = vsub.f32 %v5603, %v6011
    %v6018 = vsub.f32 %v5608, %v6011
    %v6019 = vsub.f32 %v5611, %v6011
    %v6020 = vsub.f32 %v5616, %v6011
    %v6021 = vsub.f32 %v5619, %v6011
    %v6022 = vsub.f32 %v5624, %v6011
    %v6023 = vsub.f32 %v5627, %v6011
    %v6024 = vsub.f32 %v5632, %v6011
    %v6025 = vsub.f32 %v5635, %v6011
    %v6026 = vsub.f32 %v5640, %v6011
    %v6027 = vsub.f32 %v5643, %v6011
    %v6028 = vsub.f32 %v5648, %v6011
    %v6029 = vsub.f32 %v5651, %v6011
    %v6030 = vsub.f32 %v5656, %v6011
    %v6031 = vsub.f32 %v5659, %v6011
    %v6032 = vsub.f32 %v5664, %v6011
    %v6033 = vsub.f32 %v5667, %v6011
    %v6034 = vsub.f32 %v5672, %v6011
    %v6035 = vsub.f32 %v5675, %v6011
    %v6036 = vsub.f32 %v5680, %v6011
    %v6037 = vsub.f32 %v5683, %v6011
    %v6038 = vsub.f32 %v5688, %v6011
    %v6039 = vsub.f32 %v5691, %v6011
    %v6040 = vsub.f32 %v5696, %v6011
    %v6041 = vsub.f32 %v5699, %v6011
    %v6042 = vsub.f32 %v5704, %v6011
    %v6043 = vsub.f32 %v5707, %v6011
    %v6044 = vsub.f32 %v5712, %v6011
    %v6045 = vsub.f32 %v5715, %v6011
    %v6046 = vsub.f32 %v5720, %v6011
    %v6047 = vsub.f32 %v5723, %v6011
    %v6048 = vsub.f32 %v5728, %v6011
    %v6049 = vsub.f32 %v5731, %v6011
    %v6050 = vsub.f32 %v5736, %v6011
    %v6051 = vsub.f32 %v5739, %v6011
    %v6052 = vsub.f32 %v5744, %v6011
    %v6053 = vsub.f32 %v5747, %v6011
    %v6054 = vsub.f32 %v5752, %v6011
    %v6055 = vsub.f32 %v5755, %v6011
    %v6056 = vsub.f32 %v5760, %v6011
    %v6057 = vsub.f32 %v5763, %v6011
    %v6058 = vsub.f32 %v5768, %v6011
    %v6059 = vsub.f32 %v5771, %v6011
    %v6060 = vsub.f32 %v5776, %v6011
    %v6061 = vsub.f32 %v5779, %v6011
    %v6062 = vsub.f32 %v5784, %v6011
    %v6063 = vsub.f32 %v5787, %v6011
    %v6064 = vsub.f32 %v5792, %v6011
    %v6065 = vsub.f32 %v5795, %v6011
    %v6066 = vsub.f32 %v5800, %v6011
    %v6067 = vsub.f32 %v5803, %v6011
    %v6068 = vsub.f32 %v5808, %v6011
    %v6069 = vsub.f32 %v5811, %v6011
    %v6070 = vsub.f32 %v5816, %v6011
    %v6071 = vsub.f32 %v5819, %v6011
    %v6072 = vmul.f32 %v6012, %v6012
    %v6073 = vmul.f32 %v6013, %v6013
    %v6074 = vmul.f32 %v6014, %v6014
    %v6075 = vmul.f32 %v6015, %v6015
    %v6076 = vmul.f32 %v6016, %v6016
    %v6077 = vmul.f32 %v6017, %v6017
    %v6078 = vmul.f32 %v6018, %v6018
    %v6079 = vmul.f32 %v6019, %v6019
    %v6080 = vmul.f32 %v6020, %v6020
    %v6081 = vmul.f32 %v6021, %v6021
    %v6082 = vmul.f32 %v6022, %v6022
    %v6083 = vmul.f32 %v6023, %v6023
    %v6084 = vmul.f32 %v6024, %v6024
    %v6085 = vmul.f32 %v6025, %v6025
    %v6086 = vmul.f32 %v6026, %v6026
    %v6087 = vmul.f32 %v6027, %v6027
    %v6088 = vmul.f32 %v6028, %v6028
    %v6089 = vmul.f32 %v6029, %v6029
    %v6090 = vmul.f32 %v6030, %v6030
    %v6091 = vmul.f32 %v6031, %v6031
    %v6092 = vmul.f32 %v6032, %v6032
    %v6093 = vmul.f32 %v6033, %v6033
    %v6094 = vmul.f32 %v6034, %v6034
    %v6095 = vmul.f32 %v6035, %v6035
    %v6096 = vmul.f32 %v6036, %v6036
    %v6097 = vmul.f32 %v6037, %v6037
    %v6098 = vmul.f32 %v6038, %v6038
    %v6099 = vmul.f32 %v6039, %v6039
    %v6100 = vmul.f32 %v6040, %v6040
    %v6101 = vmul.f32 %v6041, %v6041
    %v6102 = vmul.f32 %v6042, %v6042
    %v6103 = vmul.f32 %v6043, %v6043
    %v6104 = vmul.f32 %v6044, %v6044
    %v6105 = vmul.f32 %v6045, %v6045
    %v6106 = vmul.f32 %v6046, %v6046
    %v6107 = vmul.f32 %v6047, %v6047
    %v6108 = vmul.f32 %v6048, %v6048
    %v6109 = vmul.f32 %v6049, %v6049
    %v6110 = vmul.f32 %v6050, %v6050
    %v6111 = vmul.f32 %v6051, %v6051
    %v6112 = vmul.f32 %v6052, %v6052
    %v6113 = vmul.f32 %v6053, %v6053
    %v6114 = vmul.f32 %v6054, %v6054
    %v6115 = vmul.f32 %v6055, %v6055
    %v6116 = vmul.f32 %v6056, %v6056
    %v6117 = vmul.f32 %v6057, %v6057
    %v6118 = vmul.f32 %v6058, %v6058
    %v6119 = vmul.f32 %v6059, %v6059
    %v6120 = vmul.f32 %v6060, %v6060
    %v6121 = vmul.f32 %v6061, %v6061
    %v6122 = vmul.f32 %v6062, %v6062
    %v6123 = vmul.f32 %v6063, %v6063
    %v6124 = vmul.f32 %v6064, %v6064
    %v6125 = vmul.f32 %v6065, %v6065
    %v6126 = vmul.f32 %v6066, %v6066
    %v6127 = vmul.f32 %v6067, %v6067
    %v6128 = vmul.f32 %v6068, %v6068
    %v6129 = vmul.f32 %v6069, %v6069
    %v6130 = vmul.f32 %v6070, %v6070
    %v6131 = vmul.f32 %v6071, %v6071
    %v6133 = vsel %vm5863, %v6131, 0
    %6135 = vmatprep.subr.mxu0 0.0
    %6136 = vmatpush1.msra.mxu0 %v6087
    %6137 = vmatprep.subr.mxu0 0.0
    %6138 = vmatpush1.msra.mxu0 %v6086
    %6139 = vmatprep.subr.mxu0 0.0
    %6140 = vmatpush1.msra.mxu0 %v6085
    %6141 = vmatprep.subr.mxu0 0.0
    %6142 = vmatpush1.msra.mxu0 %v6084
    %6143 = vmatprep.subr.mxu0 0.0
    %6144 = vmatpush1.msra.mxu0 %v6083
    %6145 = vmatprep.subr.mxu0 0.0
    %6146 = vmatpush1.msra.mxu0 %v6082
    %6147 = vmatprep.subr.mxu0 0.0
    %6148 = vmatpush1.msra.mxu0 %v6081
    %6149 = vmatprep.subr.mxu0 0.0
    %6150 = vmatpush1.msra.mxu0 %v6080
    %6151 = vmatprep.subr.mxu0 0.0
    %6152 = vmatpush1.msra.mxu0 %v6079
    %6153 = vmatprep.subr.mxu0 0.0
    %6154 = vmatpush1.msra.mxu0 %v6078
    %6155 = vmatprep.subr.mxu0 0.0
    %6156 = vmatpush1.msra.mxu0 %v6077
    %6157 = vmatprep.subr.mxu0 0.0
    %6158 = vmatpush1.msra.mxu0 %v6076
    %6159 = vmatprep.subr.mxu0 0.0
    %6160 = vmatpush1.msra.mxu0 %v6075
    %6161 = vmatprep.subr.mxu0 0.0
    %6162 = vmatpush1.msra.mxu0 %v6074
    %6163 = vmatprep.subr.mxu0 0.0
    %6164 = vmatpush1.msra.mxu0 %v6073
    %6165 = vmatprep.subr.mxu0 0.0
    %6166 = vmatpush1.msra.mxu0 %v6072
    %6167 = vmatprep.subr.mxu0 0.0
    %6168 = vmatpush2.msra.mxu0 %v6103
    %6169 = vmatprep.subr.mxu0 0.0
    %6170 = vmatpush2.msra.mxu0 %v6102
    %6171 = vmatprep.subr.mxu0 0.0
    %6172 = vmatpush2.msra.mxu0 %v6101
    %6173 = vmatprep.subr.mxu0 0.0
    %6174 = vmatpush2.msra.mxu0 %v6100
    %6175 = vmatprep.subr.mxu0 0.0
    %6176 = vmatpush2.msra.mxu0 %v6099
    %6177 = vmatprep.subr.mxu0 0.0
    %6178 = vmatpush2.msra.mxu0 %v6098
    %6179 = vmatprep.subr.mxu0 0.0
    %6180 = vmatpush2.msra.mxu0 %v6097
    %6181 = vmatprep.subr.mxu0 0.0
    %6182 = vmatpush2.msra.mxu0 %v6096
    %6183 = vmatprep.subr.mxu0 0.0
    %6184 = vmatpush2.msra.mxu0 %v6095
    %6185 = vmatprep.subr.mxu0 0.0
    %6186 = vmatpush2.msra.mxu0 %v6094
    %6187 = vmatprep.subr.mxu0 0.0
    %6188 = vmatpush2.msra.mxu0 %v6093
    %6189 = vmatprep.subr.mxu0 0.0
    %6190 = vmatpush2.msra.mxu0 %v6092
    %6191 = vmatprep.subr.mxu0 0.0
    %6192 = vmatpush2.msra.mxu0 %v6091
    %6193 = vmatprep.subr.mxu0 0.0
    %6194 = vmatpush2.msra.mxu0 %v6090
    %6195 = vmatprep.subr.mxu0 0.0
    %6196 = vmatpush2.msra.mxu0 %v6089
    %6197 = vmatprep.subr.mxu0 0.0
    %6198 = vmatpush2.msra.mxu0 %v6088
    %6199 = vmatprep.mubr.f32.mxu0 %v5856
    %6200 = vmatmul.mubr.f32.gmra.mxu0 %v5855
    %v6201 = vpop.f32.mrf.mxu0
    %v6202 = vadd.f32 0.0, %v6201
    %v6203 = vpop.f32.mrf.mxu0
    %6204 = vdwg.mxu0
    %6205 = vmatprep.subr.mxu0 0.0
    %6206 = vmatpush1.msra.mxu0 %v6119
    %6207 = vmatprep.subr.mxu0 0.0
    %6208 = vmatpush1.msra.mxu0 %v6118
    %6209 = vmatprep.subr.mxu0 0.0
    %6210 = vmatpush1.msra.mxu0 %v6117
    %6211 = vmatprep.subr.mxu0 0.0
    %6212 = vmatpush1.msra.mxu0 %v6116
    %6213 = vmatprep.subr.mxu0 0.0
    %6214 = vmatpush1.msra.mxu0 %v6115
    %6215 = vmatprep.subr.mxu0 0.0
    %6216 = vmatpush1.msra.mxu0 %v6114
    %6217 = vmatprep.subr.mxu0 0.0
    %6218 = vmatpush1.msra.mxu0 %v6113
    %6219 = vmatprep.subr.mxu0 0.0
    %6220 = vmatpush1.msra.mxu0 %v6112
    %6221 = vmatprep.subr.mxu0 0.0
    %6222 = vmatpush1.msra.mxu0 %v6111
    %6223 = vmatprep.subr.mxu0 0.0
    %6224 = vmatpush1.msra.mxu0 %v6110
    %6225 = vmatprep.subr.mxu0 0.0
    %6226 = vmatpush1.msra.mxu0 %v6109
    %6227 = vmatprep.subr.mxu0 0.0
    %6228 = vmatpush1.msra.mxu0 %v6108
    %6229 = vmatprep.subr.mxu0 0.0
    %6230 = vmatpush1.msra.mxu0 %v6107
    %6231 = vmatprep.subr.mxu0 0.0
    %6232 = vmatpush1.msra.mxu0 %v6106
    %6233 = vmatprep.subr.mxu0 0.0
    %6234 = vmatpush1.msra.mxu0 %v6105
    %6235 = vmatprep.subr.mxu0 0.0
    %6236 = vmatpush1.msra.mxu0 %v6104
    %6237 = vmatprep.subr.mxu0 0.0
    %6238 = vmatpush2.msra.mxu0 0.0
    %6239 = vmatprep.subr.mxu0 0.0
    %6240 = vmatpush2.msra.mxu0 0.0
    %6241 = vmatprep.subr.mxu0 0.0
    %6242 = vmatpush2.msra.mxu0 0.0
    %6243 = vmatprep.subr.mxu0 0.0
    %6244 = vmatpush2.msra.mxu0 0.0
    %6245 = vmatprep.subr.mxu0 0.0
    %6246 = vmatpush2.msra.mxu0 %v6133
    %6247 = vmatprep.subr.mxu0 0.0
    %6248 = vmatpush2.msra.mxu0 %v6130
    %6249 = vmatprep.subr.mxu0 0.0
    %6250 = vmatpush2.msra.mxu0 %v6129
    %6251 = vmatprep.subr.mxu0 0.0
    %6252 = vmatpush2.msra.mxu0 %v6128
    %6253 = vmatprep.subr.mxu0 0.0
    %6254 = vmatpush2.msra.mxu0 %v6127
    %6255 = vmatprep.subr.mxu0 0.0
    %6256 = vmatpush2.msra.mxu0 %v6126
    %6257 = vmatprep.subr.mxu0 0.0
    %6258 = vmatpush2.msra.mxu0 %v6125
    %6259 = vmatprep.subr.mxu0 0.0
    %6260 = vmatpush2.msra.mxu0 %v6124
    %6261 = vmatprep.subr.mxu0 0.0
    %6262 = vmatpush2.msra.mxu0 %v6123
    %6263 = vmatprep.subr.mxu0 0.0
    %6264 = vmatpush2.msra.mxu0 %v6122
    %6265 = vmatprep.subr.mxu0 0.0
    %6266 = vmatpush2.msra.mxu0 %v6121
    %6267 = vmatprep.subr.mxu0 0.0
    %6268 = vmatpush2.msra.mxu0 %v6120
    %6269 = vmatprep.mubr.f32.mxu0 %v5861
    %6270 = vmatmul.mubr.f32.gmra.mxu0 %v5857
    %v6271 = vpop.f32.mrf.mxu0
    %v6272 = vadd.f32 %v6202, %v6271
    %v6273 = vpop.f32.mrf.mxu0
    %6274 = vdwg.mxu0
    %v6275 = vmul.f32 %v6272, 0.0025510204
    %v6276 = vadd.f32 %v6275, 1e-05
    %v6277 = vrsqrt.pop %v6276
    %v6278 = vmul.f32 %v28, %v6277
    %v6279 = vlaneseq
    %v6280 = vshrl.u32 %v6279, 7
    %v6281 = vsub.s32 0, %v6280
    %v6282 = vrot.slane %v6278, %v6281
    %v6283 = vmul.f32 %v6012, %v6282
    %v6284 = vmul.f32 %v6013, %v6282
    %v6285 = vmul.f32 %v6014, %v6282
    %v6286 = vmul.f32 %v6015, %v6282
    %v6287 = vmul.f32 %v6016, %v6282
    %v6288 = vmul.f32 %v6017, %v6282
    %v6289 = vmul.f32 %v6018, %v6282
    %v6290 = vmul.f32 %v6019, %v6282
    %v6291 = vmul.f32 %v6020, %v6282
    %v6292 = vmul.f32 %v6021, %v6282
    %v6293 = vmul.f32 %v6022, %v6282
    %v6294 = vmul.f32 %v6023, %v6282
    %v6295 = vmul.f32 %v6024, %v6282
    %v6296 = vmul.f32 %v6025, %v6282
    %v6297 = vmul.f32 %v6026, %v6282
    %v6298 = vmul.f32 %v6027, %v6282
    %v6299 = vmul.f32 %v6028, %v6282
    %v6300 = vmul.f32 %v6029, %v6282
    %v6301 = vmul.f32 %v6030, %v6282
    %v6302 = vmul.f32 %v6031, %v6282
    %v6303 = vmul.f32 %v6032, %v6282
    %v6304 = vmul.f32 %v6033, %v6282
    %v6305 = vmul.f32 %v6034, %v6282
    %v6306 = vmul.f32 %v6035, %v6282
    %v6307 = vmul.f32 %v6036, %v6282
    %v6308 = vmul.f32 %v6037, %v6282
    %v6309 = vmul.f32 %v6038, %v6282
    %v6310 = vmul.f32 %v6039, %v6282
    %v6311 = vmul.f32 %v6040, %v6282
    %v6312 = vmul.f32 %v6041, %v6282
    %v6313 = vmul.f32 %v6042, %v6282
    %v6314 = vmul.f32 %v6043, %v6282
    %v6315 = vmul.f32 %v6044, %v6282
    %v6316 = vmul.f32 %v6045, %v6282
    %v6317 = vmul.f32 %v6046, %v6282
    %v6318 = vmul.f32 %v6047, %v6282
    %v6319 = vmul.f32 %v6048, %v6282
    %v6320 = vmul.f32 %v6049, %v6282
    %v6321 = vmul.f32 %v6050, %v6282
    %v6322 = vmul.f32 %v6051, %v6282
    %v6323 = vmul.f32 %v6052, %v6282
    %v6324 = vmul.f32 %v6053, %v6282
    %v6325 = vmul.f32 %v6054, %v6282
    %v6326 = vmul.f32 %v6055, %v6282
    %v6327 = vmul.f32 %v6056, %v6282
    %v6328 = vmul.f32 %v6057, %v6282
    %v6329 = vmul.f32 %v6058, %v6282
    %v6330 = vmul.f32 %v6059, %v6282
    %v6331 = vmul.f32 %v6060, %v6282
    %v6332 = vmul.f32 %v6061, %v6282
    %v6333 = vmul.f32 %v6062, %v6282
    %v6334 = vmul.f32 %v6063, %v6282
    %v6335 = vmul.f32 %v6064, %v6282
    %v6336 = vmul.f32 %v6065, %v6282
    %v6337 = vmul.f32 %v6066, %v6282
    %v6338 = vmul.f32 %v6067, %v6282
    %v6339 = vmul.f32 %v6068, %v6282
    %v6340 = vmul.f32 %v6069, %v6282
    %v6341 = vmul.f32 %v6070, %v6282
    %v6342 = vmul.f32 %v6071, %v6282
    %v6343 = vlaneseq
    %v6344 = vshrl.u32 %v6343, 7
    %v6345 = vsub.s32 0, %v6344
    %v6346 = vrot.slane %v29, %v6345
    %v6347 = vadd.f32 %v6283, %v6346
    %v6348 = vadd.f32 %v6284, %v6346
    %v6349 = vadd.f32 %v6285, %v6346
    %v6350 = vadd.f32 %v6286, %v6346
    %v6351 = vadd.f32 %v6287, %v6346
    %v6352 = vadd.f32 %v6288, %v6346
    %v6353 = vadd.f32 %v6289, %v6346
    %v6354 = vadd.f32 %v6290, %v6346
    %v6355 = vadd.f32 %v6291, %v6346
    %v6356 = vadd.f32 %v6292, %v6346
    %v6357 = vadd.f32 %v6293, %v6346
    %v6358 = vadd.f32 %v6294, %v6346
    %v6359 = vadd.f32 %v6295, %v6346
    %v6360 = vadd.f32 %v6296, %v6346
    %v6361 = vadd.f32 %v6297, %v6346
    %v6362 = vadd.f32 %v6298, %v6346
    %v6363 = vadd.f32 %v6299, %v6346
    %v6364 = vadd.f32 %v6300, %v6346
    %v6365 = vadd.f32 %v6301, %v6346
    %v6366 = vadd.f32 %v6302, %v6346
    %v6367 = vadd.f32 %v6303, %v6346
    %v6368 = vadd.f32 %v6304, %v6346
    %v6369 = vadd.f32 %v6305, %v6346
    %v6370 = vadd.f32 %v6306, %v6346
    %v6371 = vadd.f32 %v6307, %v6346
    %v6372 = vadd.f32 %v6308, %v6346
    %v6373 = vadd.f32 %v6309, %v6346
    %v6374 = vadd.f32 %v6310, %v6346
    %v6375 = vadd.f32 %v6311, %v6346
    %v6376 = vadd.f32 %v6312, %v6346
    %v6377 = vadd.f32 %v6313, %v6346
    %v6378 = vadd.f32 %v6314, %v6346
    %v6379 = vadd.f32 %v6315, %v6346
    %v6380 = vadd.f32 %v6316, %v6346
    %v6381 = vadd.f32 %v6317, %v6346
    %v6382 = vadd.f32 %v6318, %v6346
    %v6383 = vadd.f32 %v6319, %v6346
    %v6384 = vadd.f32 %v6320, %v6346
    %v6385 = vadd.f32 %v6321, %v6346
    %v6386 = vadd.f32 %v6322, %v6346
    %v6387 = vadd.f32 %v6323, %v6346
    %v6388 = vadd.f32 %v6324, %v6346
    %v6389 = vadd.f32 %v6325, %v6346
    %v6390 = vadd.f32 %v6326, %v6346
    %v6391 = vadd.f32 %v6327, %v6346
    %v6392 = vadd.f32 %v6328, %v6346
    %v6393 = vadd.f32 %v6329, %v6346
    %v6394 = vadd.f32 %v6330, %v6346
    %v6395 = vadd.f32 %v6331, %v6346
    %v6396 = vadd.f32 %v6332, %v6346
    %v6397 = vadd.f32 %v6333, %v6346
    %v6398 = vadd.f32 %v6334, %v6346
    %v6399 = vadd.f32 %v6335, %v6346
    %v6400 = vadd.f32 %v6336, %v6346
    %v6401 = vadd.f32 %v6337, %v6346
    %v6402 = vadd.f32 %v6338, %v6346
    %v6403 = vadd.f32 %v6339, %v6346
    %v6404 = vadd.f32 %v6340, %v6346
    %v6405 = vadd.f32 %v6341, %v6346
    %v6406 = vadd.f32 %v6342, %v6346
    %v6407 = vmax.f32 %v6347, 0.0
    %v6408 = vmax.f32 %v6348, 0.0
    %v6409 = vmax.f32 %v6349, 0.0
    %v6410 = vmax.f32 %v6350, 0.0
    %v6411 = vmax.f32 %v6351, 0.0
    %v6412 = vmax.f32 %v6352, 0.0
    %v6413 = vmax.f32 %v6353, 0.0
    %v6414 = vmax.f32 %v6354, 0.0
    %v6415 = vmax.f32 %v6355, 0.0
    %v6416 = vmax.f32 %v6356, 0.0
    %v6417 = vmax.f32 %v6357, 0.0
    %v6418 = vmax.f32 %v6358, 0.0
    %v6419 = vmax.f32 %v6359, 0.0
    %v6420 = vmax.f32 %v6360, 0.0
    %v6421 = vmax.f32 %v6361, 0.0
    %v6422 = vmax.f32 %v6362, 0.0
    %v6423 = vmax.f32 %v6363, 0.0
    %v6424 = vmax.f32 %v6364, 0.0
    %v6425 = vmax.f32 %v6365, 0.0
    %v6426 = vmax.f32 %v6366, 0.0
    %v6427 = vmax.f32 %v6367, 0.0
    %v6428 = vmax.f32 %v6368, 0.0
    %v6429 = vmax.f32 %v6369, 0.0
    %v6430 = vmax.f32 %v6370, 0.0
    %v6431 = vmax.f32 %v6371, 0.0
    %v6432 = vmax.f32 %v6372, 0.0
    %v6433 = vmax.f32 %v6373, 0.0
    %v6434 = vmax.f32 %v6374, 0.0
    %v6435 = vmax.f32 %v6375, 0.0
    %v6436 = vmax.f32 %v6376, 0.0
    %v6437 = vmax.f32 %v6377, 0.0
    %v6438 = vmax.f32 %v6378, 0.0
    %v6439 = vmax.f32 %v6379, 0.0
    %v6440 = vmax.f32 %v6380, 0.0
    %v6441 = vmax.f32 %v6381, 0.0
    %v6442 = vmax.f32 %v6382, 0.0
    %v6443 = vmax.f32 %v6383, 0.0
    %v6444 = vmax.f32 %v6384, 0.0
    %v6445 = vmax.f32 %v6385, 0.0
    %v6446 = vmax.f32 %v6386, 0.0
    %v6447 = vmax.f32 %v6387, 0.0
    %v6448 = vmax.f32 %v6388, 0.0
    %v6449 = vmax.f32 %v6389, 0.0
    %v6450 = vmax.f32 %v6390, 0.0
    %v6451 = vmax.f32 %v6391, 0.0
    %v6452 = vmax.f32 %v6392, 0.0
    %v6453 = vmax.f32 %v6393, 0.0
    %v6454 = vmax.f32 %v6394, 0.0
    %v6455 = vmax.f32 %v6395, 0.0
    %v6456 = vmax.f32 %v6396, 0.0
    %v6457 = vmax.f32 %v6397, 0.0
    %v6458 = vmax.f32 %v6398, 0.0
    %v6459 = vmax.f32 %v6399, 0.0
    %v6460 = vmax.f32 %v6400, 0.0
    %v6461 = vmax.f32 %v6401, 0.0
    %v6462 = vmax.f32 %v6402, 0.0
    %v6463 = vmax.f32 %v6403, 0.0
    %v6464 = vmax.f32 %v6404, 0.0
    %v6465 = vmax.f32 %v6405, 0.0
    %v6466 = vmax.f32 %v6406, 0.0
    %vm6467 = vcmask 523264
    %6468 = vst.msk [vmem:[#allocation4] sm:$0xff] %vm6467, %v6407
    %6469 = vst.msk [vmem:[#allocation4 + $0x8] sm:$0xff] %vm6467, %v6408
    %6470 = vst.msk [vmem:[#allocation4 + $0x10] sm:$0xff] %vm6467, %v6409
    %6471 = vst.msk [vmem:[#allocation4 + $0x18] sm:$0xff] %vm6467, %v6410
    %6472 = vst.msk [vmem:[#allocation4 + $0x20] sm:$0xff] %vm6467, %v6411
    %6473 = vst.msk [vmem:[#allocation4 + $0x28] sm:$0xff] %vm6467, %v6412
    %6474 = vst.msk [vmem:[#allocation4 + $0x30] sm:$0xff] %vm6467, %v6413
    %6475 = vst.msk [vmem:[#allocation4 + $0x38] sm:$0xff] %vm6467, %v6414
    %6476 = vst.msk [vmem:[#allocation4 + $0x40] sm:$0xff] %vm6467, %v6415
    %6477 = vst.msk [vmem:[#allocation4 + $0x48] sm:$0xff] %vm6467, %v6416
    %6478 = vst.msk [vmem:[#allocation4 + $0x50] sm:$0xff] %vm6467, %v6417
    %6479 = vst.msk [vmem:[#allocation4 + $0x58] sm:$0xff] %vm6467, %v6418
    %6480 = vst.msk [vmem:[#allocation4 + $0x60] sm:$0xff] %vm6467, %v6419
    %6481 = vst.msk [vmem:[#allocation4 + $0x68] sm:$0xff] %vm6467, %v6420
    %6482 = vst.msk [vmem:[#allocation4 + $0x70] sm:$0xff] %vm6467, %v6421
    %6483 = vst.msk [vmem:[#allocation4 + $0x78] sm:$0xff] %vm6467, %v6422
    %6484 = vst.msk [vmem:[#allocation4 + $0x80] sm:$0xff] %vm6467, %v6423
    %6485 = vst.msk [vmem:[#allocation4 + $0x88] sm:$0xff] %vm6467, %v6424
    %6486 = vst.msk [vmem:[#allocation4 + $0x90] sm:$0xff] %vm6467, %v6425
    %6487 = vst.msk [vmem:[#allocation4 + $0x98] sm:$0xff] %vm6467, %v6426
    %6488 = vst.msk [vmem:[#allocation4 + $0xa0] sm:$0xff] %vm6467, %v6427
    %6489 = vst.msk [vmem:[#allocation4 + $0xa8] sm:$0xff] %vm6467, %v6428
    %6490 = vst.msk [vmem:[#allocation4 + $0xb0] sm:$0xff] %vm6467, %v6429
    %6491 = vst.msk [vmem:[#allocation4 + $0xb8] sm:$0xff] %vm6467, %v6430
    %6492 = vst.msk [vmem:[#allocation4 + $0xc0] sm:$0xff] %vm6467, %v6431
    %6493 = vst.msk [vmem:[#allocation4 + $0xc8] sm:$0xff] %vm6467, %v6432
    %6494 = vst.msk [vmem:[#allocation4 + $0xd0] sm:$0xff] %vm6467, %v6433
    %6495 = vst.msk [vmem:[#allocation4 + $0xd8] sm:$0xff] %vm6467, %v6434
    %6496 = vst.msk [vmem:[#allocation4 + $0xe0] sm:$0xff] %vm6467, %v6435
    %6497 = vst.msk [vmem:[#allocation4 + $0xe8] sm:$0xff] %vm6467, %v6436
    %6498 = vst.msk [vmem:[#allocation4 + $0xf0] sm:$0xff] %vm6467, %v6437
    %6499 = vst.msk [vmem:[#allocation4 + $0xf8] sm:$0xff] %vm6467, %v6438
    %6500 = vst.msk [vmem:[#allocation4 + $0x100] sm:$0xff] %vm6467, %v6439
    %6501 = vst.msk [vmem:[#allocation4 + $0x108] sm:$0xff] %vm6467, %v6440
    %6502 = vst.msk [vmem:[#allocation4 + $0x110] sm:$0xff] %vm6467, %v6441
    %6503 = vst.msk [vmem:[#allocation4 + $0x118] sm:$0xff] %vm6467, %v6442
    %6504 = vst.msk [vmem:[#allocation4 + $0x120] sm:$0xff] %vm6467, %v6443
    %6505 = vst.msk [vmem:[#allocation4 + $0x128] sm:$0xff] %vm6467, %v6444
    %6506 = vst.msk [vmem:[#allocation4 + $0x130] sm:$0xff] %vm6467, %v6445
    %6507 = vst.msk [vmem:[#allocation4 + $0x138] sm:$0xff] %vm6467, %v6446
    %6508 = vst.msk [vmem:[#allocation4 + $0x140] sm:$0xff] %vm6467, %v6447
    %6509 = vst.msk [vmem:[#allocation4 + $0x148] sm:$0xff] %vm6467, %v6448
    %6510 = vst.msk [vmem:[#allocation4 + $0x150] sm:$0xff] %vm6467, %v6449
    %6511 = vst.msk [vmem:[#allocation4 + $0x158] sm:$0xff] %vm6467, %v6450
    %6512 = vst.msk [vmem:[#allocation4 + $0x160] sm:$0xff] %vm6467, %v6451
    %6513 = vst.msk [vmem:[#allocation4 + $0x168] sm:$0xff] %vm6467, %v6452
    %6514 = vst.msk [vmem:[#allocation4 + $0x170] sm:$0xff] %vm6467, %v6453
    %6515 = vst.msk [vmem:[#allocation4 + $0x178] sm:$0xff] %vm6467, %v6454
    %6516 = vst.msk [vmem:[#allocation4 + $0x180] sm:$0xff] %vm6467, %v6455
    %6517 = vst.msk [vmem:[#allocation4 + $0x188] sm:$0xff] %vm6467, %v6456
    %6518 = vst.msk [vmem:[#allocation4 + $0x190] sm:$0xff] %vm6467, %v6457
    %6519 = vst.msk [vmem:[#allocation4 + $0x198] sm:$0xff] %vm6467, %v6458
    %6520 = vst.msk [vmem:[#allocation4 + $0x1a0] sm:$0xff] %vm6467, %v6459
    %6521 = vst.msk [vmem:[#allocation4 + $0x1a8] sm:$0xff] %vm6467, %v6460
    %6522 = vst.msk [vmem:[#allocation4 + $0x1b0] sm:$0xff] %vm6467, %v6461
    %6523 = vst.msk [vmem:[#allocation4 + $0x1b8] sm:$0xff] %vm6467, %v6462
    %6524 = vst.msk [vmem:[#allocation4 + $0x1c0] sm:$0xff] %vm6467, %v6463
    %6525 = vst.msk [vmem:[#allocation4 + $0x1c8] sm:$0xff] %vm6467, %v6464
    %6526 = vst.msk [vmem:[#allocation4 + $0x1d0] sm:$0xff] %vm6467, %v6465
    %vm6527 = vcmask 521216
    %6528 = vst.msk [vmem:[#allocation4 + $0x1d8] sm:$0x3f] %vm6527, %v6466
    %6529 = vst.msk [vmem:[#allocation4 + $0x1de] sm:$0xff] %vm6467, 0.0
    %6530 = vst.msk [vmem:[#allocation4 + $0x1e6] sm:$0xff] %vm6467, 0.0
    %6531 = vst.msk [vmem:[#allocation4 + $0x1ee] sm:$0xff] %vm6467, 0.0
    %6532 = vst.msk [vmem:[#allocation4 + $0x1f6] sm:$0xff] %vm6467, 0.0
    %vm6533 = vcmask 517120
    %6534 = vst.msk [vmem:[#allocation4 + $0x1fe] sm:$0x3] %vm6533, 0.0
    %v6535 = vld [vmem:[#allocation4] sm:$0xff]
    %v6536 = vld [vmem:[#allocation4 + $0x8] sm:$0xff]
    %v6537 = vld [vmem:[#allocation4 + $0x10] sm:$0xff]
    %v6538 = vld [vmem:[#allocation4 + $0x18] sm:$0xff]
    %v6539 = vld [vmem:[#allocation4 + $0x20] sm:$0xff]
    %v6540 = vld [vmem:[#allocation4 + $0x28] sm:$0xff]
    %v6541 = vld [vmem:[#allocation4 + $0x30] sm:$0xff]
    %v6542 = vld [vmem:[#allocation4 + $0x38] sm:$0xff]
    %v6543 = vld [vmem:[#allocation4 + $0x40] sm:$0xff]
    %v6544 = vld [vmem:[#allocation4 + $0x48] sm:$0xff]
    %v6545 = vld [vmem:[#allocation4 + $0x50] sm:$0xff]
    %v6546 = vld [vmem:[#allocation4 + $0x58] sm:$0xff]
    %v6547 = vld [vmem:[#allocation4 + $0x60] sm:$0xff]
    %v6548 = vld [vmem:[#allocation4 + $0x68] sm:$0xff]
    %v6549 = vld [vmem:[#allocation4 + $0x70] sm:$0xff]
    %v6550 = vld [vmem:[#allocation4 + $0x78] sm:$0xff]
    %v6551 = vld [vmem:[#allocation4 + $0x80] sm:$0xff]
    %v6552 = vld [vmem:[#allocation4 + $0x88] sm:$0xff]
    %v6553 = vld [vmem:[#allocation4 + $0x90] sm:$0xff]
    %v6554 = vld [vmem:[#allocation4 + $0x98] sm:$0xff]
    %v6555 = vld [vmem:[#allocation4 + $0xa0] sm:$0xff]
    %v6556 = vld [vmem:[#allocation4 + $0xa8] sm:$0xff]
    %v6557 = vld [vmem:[#allocation4 + $0xb0] sm:$0xff]
    %v6558 = vld [vmem:[#allocation4 + $0xb8] sm:$0xff]
    %v6559 = vld [vmem:[#allocation4 + $0xc0] sm:$0xff]
    %v6560 = vld [vmem:[#allocation4 + $0xc8] sm:$0xff]
    %v6561 = vld [vmem:[#allocation4 + $0xd0] sm:$0xff]
    %v6562 = vld [vmem:[#allocation4 + $0xd8] sm:$0xff]
    %v6563 = vld [vmem:[#allocation4 + $0xe0] sm:$0xff]
    %v6564 = vld [vmem:[#allocation4 + $0xe8] sm:$0xff]
    %v6565 = vld [vmem:[#allocation4 + $0xf0] sm:$0xff]
    %v6566 = vld [vmem:[#allocation4 + $0xf8] sm:$0xff]
    %v6567 = vld [vmem:[#allocation4 + $0x100] sm:$0xff]
    %v6568 = vld [vmem:[#allocation4 + $0x108] sm:$0xff]
    %v6569 = vld [vmem:[#allocation4 + $0x110] sm:$0xff]
    %v6570 = vld [vmem:[#allocation4 + $0x118] sm:$0xff]
    %v6571 = vld [vmem:[#allocation4 + $0x120] sm:$0xff]
    %v6572 = vld [vmem:[#allocation4 + $0x128] sm:$0xff]
    %v6573 = vld [vmem:[#allocation4 + $0x130] sm:$0xff]
    %v6574 = vld [vmem:[#allocation4 + $0x138] sm:$0xff]
    %v6575 = vld [vmem:[#allocation4 + $0x140] sm:$0xff]
    %v6576 = vld [vmem:[#allocation4 + $0x148] sm:$0xff]
    %v6577 = vld [vmem:[#allocation4 + $0x150] sm:$0xff]
    %v6578 = vld [vmem:[#allocation4 + $0x158] sm:$0xff]
    %v6579 = vld [vmem:[#allocation4 + $0x160] sm:$0xff]
    %v6580 = vld [vmem:[#allocation4 + $0x168] sm:$0xff]
    %v6581 = vld [vmem:[#allocation4 + $0x170] sm:$0xff]
    %v6582 = vld [vmem:[#allocation4 + $0x178] sm:$0xff]
    %v6583 = vld [vmem:[#allocation4 + $0x180] sm:$0xff]
    %v6584 = vld [vmem:[#allocation4 + $0x188] sm:$0xff]
    %v6585 = vld [vmem:[#allocation4 + $0x190] sm:$0xff]
    %v6586 = vld [vmem:[#allocation4 + $0x198] sm:$0xff]
    %v6587 = vld [vmem:[#allocation4 + $0x1a0] sm:$0xff]
    %v6588 = vld [vmem:[#allocation4 + $0x1a8] sm:$0xff]
    %v6589 = vld [vmem:[#allocation4 + $0x1b0] sm:$0xff]
    %v6590 = vld [vmem:[#allocation4 + $0x1b8] sm:$0xff]
    %v6591 = vld [vmem:[#allocation4 + $0x1c0] sm:$0xff]
    %v6592 = vld [vmem:[#allocation4 + $0x1c8] sm:$0xff]
    %v6593 = vld [vmem:[#allocation4 + $0x1d0] sm:$0xff]
    %v6594 = vld [vmem:[#allocation4 + $0x1d8] sm:$0xff]
    %v6595 = vld [vmem:[#allocation4 + $0x1e0] sm:$0xff]
    %v6596 = vld [vmem:[#allocation4 + $0x1e8] sm:$0xff]
    %v6597 = vld [vmem:[#allocation4 + $0x1f0] sm:$0xff]
    %v6598 = vld [vmem:[#allocation4 + $0x1f8] sm:$0x7f]
    %v6599 = vld [vmem:[#allocation4 + $0x1] sm:$0xff]
    %v6600 = vld [vmem:[#allocation4 + $0x9] sm:$0xff]
    %v6601 = vld [vmem:[#allocation4 + $0x11] sm:$0xff]
    %v6602 = vld [vmem:[#allocation4 + $0x19] sm:$0xff]
    %v6603 = vld [vmem:[#allocation4 + $0x21] sm:$0xff]
    %v6604 = vld [vmem:[#allocation4 + $0x29] sm:$0xff]
    %v6605 = vld [vmem:[#allocation4 + $0x31] sm:$0xff]
    %v6606 = vld [vmem:[#allocation4 + $0x39] sm:$0xff]
    %v6607 = vld [vmem:[#allocation4 + $0x41] sm:$0xff]
    %v6608 = vld [vmem:[#allocation4 + $0x49] sm:$0xff]
    %v6609 = vld [vmem:[#allocation4 + $0x51] sm:$0xff]
    %v6610 = vld [vmem:[#allocation4 + $0x59] sm:$0xff]
    %v6611 = vld [vmem:[#allocation4 + $0x61] sm:$0xff]
    %v6612 = vld [vmem:[#allocation4 + $0x69] sm:$0xff]
    %v6613 = vld [vmem:[#allocation4 + $0x71] sm:$0xff]
    %v6614 = vld [vmem:[#allocation4 + $0x79] sm:$0xff]
    %v6615 = vld [vmem:[#allocation4 + $0x81] sm:$0xff]
    %v6616 = vld [vmem:[#allocation4 + $0x89] sm:$0xff]
    %v6617 = vld [vmem:[#allocation4 + $0x91] sm:$0xff]
    %v6618 = vld [vmem:[#allocation4 + $0x99] sm:$0xff]
    %v6619 = vld [vmem:[#allocation4 + $0xa1] sm:$0xff]
    %v6620 = vld [vmem:[#allocation4 + $0xa9] sm:$0xff]
    %v6621 = vld [vmem:[#allocation4 + $0xb1] sm:$0xff]
    %v6622 = vld [vmem:[#allocation4 + $0xb9] sm:$0xff]
    %v6623 = vld [vmem:[#allocation4 + $0xc1] sm:$0xff]
    %v6624 = vld [vmem:[#allocation4 + $0xc9] sm:$0xff]
    %v6625 = vld [vmem:[#allocation4 + $0xd1] sm:$0xff]
    %v6626 = vld [vmem:[#allocation4 + $0xd9] sm:$0xff]
    %v6627 = vld [vmem:[#allocation4 + $0xe1] sm:$0xff]
    %v6628 = vld [vmem:[#allocation4 + $0xe9] sm:$0xff]
    %v6629 = vld [vmem:[#allocation4 + $0xf1] sm:$0xff]
    %v6630 = vld [vmem:[#allocation4 + $0xf9] sm:$0xff]
    %v6631 = vld [vmem:[#allocation4 + $0x101] sm:$0xff]
    %v6632 = vld [vmem:[#allocation4 + $0x109] sm:$0xff]
    %v6633 = vld [vmem:[#allocation4 + $0x111] sm:$0xff]
    %v6634 = vld [vmem:[#allocation4 + $0x119] sm:$0xff]
    %v6635 = vld [vmem:[#allocation4 + $0x121] sm:$0xff]
    %v6636 = vld [vmem:[#allocation4 + $0x129] sm:$0xff]
    %v6637 = vld [vmem:[#allocation4 + $0x131] sm:$0xff]
    %v6638 = vld [vmem:[#allocation4 + $0x139] sm:$0xff]
    %v6639 = vld [vmem:[#allocation4 + $0x141] sm:$0xff]
    %v6640 = vld [vmem:[#allocation4 + $0x149] sm:$0xff]
    %v6641 = vld [vmem:[#allocation4 + $0x151] sm:$0xff]
    %v6642 = vld [vmem:[#allocation4 + $0x159] sm:$0xff]
    %v6643 = vld [vmem:[#allocation4 + $0x161] sm:$0xff]
    %v6644 = vld [vmem:[#allocation4 + $0x169] sm:$0xff]
    %v6645 = vld [vmem:[#allocation4 + $0x171] sm:$0xff]
    %v6646 = vld [vmem:[#allocation4 + $0x179] sm:$0xff]
    %v6647 = vld [vmem:[#allocation4 + $0x181] sm:$0xff]
    %v6648 = vld [vmem:[#allocation4 + $0x189] sm:$0xff]
    %v6649 = vld [vmem:[#allocation4 + $0x191] sm:$0xff]
    %v6650 = vld [vmem:[#allocation4 + $0x199] sm:$0xff]
    %v6651 = vld [vmem:[#allocation4 + $0x1a1] sm:$0xff]
    %v6652 = vld [vmem:[#allocation4 + $0x1a9] sm:$0xff]
    %v6653 = vld [vmem:[#allocation4 + $0x1b1] sm:$0xff]
    %v6654 = vld [vmem:[#allocation4 + $0x1b9] sm:$0xff]
    %v6655 = vld [vmem:[#allocation4 + $0x1c1] sm:$0xff]
    %v6656 = vld [vmem:[#allocation4 + $0x1c9] sm:$0xff]
    %v6657 = vld [vmem:[#allocation4 + $0x1d1] sm:$0xff]
    %v6658 = vld [vmem:[#allocation4 + $0x1d9] sm:$0xff]
    %v6659 = vld [vmem:[#allocation4 + $0x1e1] sm:$0xff]
    %v6660 = vld [vmem:[#allocation4 + $0x1e9] sm:$0xff]
    %v6661 = vld [vmem:[#allocation4 + $0x1f1] sm:$0xff]
    %v6662 = vld [vmem:[#allocation4 + $0x1f9] sm:$0x7f]
    %v6663 = vmax.f32 %v6535, %v6599
    %v6664 = vmax.f32 %v6536, %v6600
    %v6665 = vmax.f32 %v6537, %v6601
    %v6666 = vmax.f32 %v6538, %v6602
    %v6667 = vmax.f32 %v6539, %v6603
    %v6668 = vmax.f32 %v6540, %v6604
    %v6669 = vmax.f32 %v6541, %v6605
    %v6670 = vmax.f32 %v6542, %v6606
    %v6671 = vmax.f32 %v6543, %v6607
    %v6672 = vmax.f32 %v6544, %v6608
    %v6673 = vmax.f32 %v6545, %v6609
    %v6674 = vmax.f32 %v6546, %v6610
    %v6675 = vmax.f32 %v6547, %v6611
    %v6676 = vmax.f32 %v6548, %v6612
    %v6677 = vmax.f32 %v6549, %v6613
    %v6678 = vmax.f32 %v6550, %v6614
    %v6679 = vmax.f32 %v6551, %v6615
    %v6680 = vmax.f32 %v6552, %v6616
    %v6681 = vmax.f32 %v6553, %v6617
    %v6682 = vmax.f32 %v6554, %v6618
    %v6683 = vmax.f32 %v6555, %v6619
    %v6684 = vmax.f32 %v6556, %v6620
    %v6685 = vmax.f32 %v6557, %v6621
    %v6686 = vmax.f32 %v6558, %v6622
    %v6687 = vmax.f32 %v6559, %v6623
    %v6688 = vmax.f32 %v6560, %v6624
    %v6689 = vmax.f32 %v6561, %v6625
    %v6690 = vmax.f32 %v6562, %v6626
    %v6691 = vmax.f32 %v6563, %v6627
    %v6692 = vmax.f32 %v6564, %v6628
    %v6693 = vmax.f32 %v6565, %v6629
    %v6694 = vmax.f32 %v6566, %v6630
    %v6695 = vmax.f32 %v6567, %v6631
    %v6696 = vmax.f32 %v6568, %v6632
    %v6697 = vmax.f32 %v6569, %v6633
    %v6698 = vmax.f32 %v6570, %v6634
    %v6699 = vmax.f32 %v6571, %v6635
    %v6700 = vmax.f32 %v6572, %v6636
    %v6701 = vmax.f32 %v6573, %v6637
    %v6702 = vmax.f32 %v6574, %v6638
    %v6703 = vmax.f32 %v6575, %v6639
    %v6704 = vmax.f32 %v6576, %v6640
    %v6705 = vmax.f32 %v6577, %v6641
    %v6706 = vmax.f32 %v6578, %v6642
    %v6707 = vmax.f32 %v6579, %v6643
    %v6708 = vmax.f32 %v6580, %v6644
    %v6709 = vmax.f32 %v6581, %v6645
    %v6710 = vmax.f32 %v6582, %v6646
    %v6711 = vmax.f32 %v6583, %v6647
    %v6712 = vmax.f32 %v6584, %v6648
    %v6713 = vmax.f32 %v6585, %v6649
    %v6714 = vmax.f32 %v6586, %v6650
    %v6715 = vmax.f32 %v6587, %v6651
    %v6716 = vmax.f32 %v6588, %v6652
    %v6717 = vmax.f32 %v6589, %v6653
    %v6718 = vmax.f32 %v6590, %v6654
    %v6719 = vmax.f32 %v6591, %v6655
    %v6720 = vmax.f32 %v6592, %v6656
    %v6721 = vmax.f32 %v6593, %v6657
    %v6722 = vmax.f32 %v6594, %v6658
    %v6723 = vmax.f32 %v6595, %v6659
    %v6724 = vmax.f32 %v6596, %v6660
    %v6725 = vmax.f32 %v6597, %v6661
    %v6726 = vmax.f32 %v6598, %v6662
    %6727 = vst.msk [vmem:[#allocation5] sm:$0xff] %vm6467, %v6663
    %6728 = vst.msk [vmem:[#allocation5 + $0x8] sm:$0xff] %vm6467, %v6664
    %6729 = vst.msk [vmem:[#allocation5 + $0x10] sm:$0xff] %vm6467, %v6665
    %6730 = vst.msk [vmem:[#allocation5 + $0x18] sm:$0xff] %vm6467, %v6666
    %6731 = vst.msk [vmem:[#allocation5 + $0x20] sm:$0xff] %vm6467, %v6667
    %6732 = vst.msk [vmem:[#allocation5 + $0x28] sm:$0xff] %vm6467, %v6668
    %6733 = vst.msk [vmem:[#allocation5 + $0x30] sm:$0xff] %vm6467, %v6669
    %6734 = vst.msk [vmem:[#allocation5 + $0x38] sm:$0xff] %vm6467, %v6670
    %6735 = vst.msk [vmem:[#allocation5 + $0x40] sm:$0xff] %vm6467, %v6671
    %6736 = vst.msk [vmem:[#allocation5 + $0x48] sm:$0xff] %vm6467, %v6672
    %6737 = vst.msk [vmem:[#allocation5 + $0x50] sm:$0xff] %vm6467, %v6673
    %6738 = vst.msk [vmem:[#allocation5 + $0x58] sm:$0xff] %vm6467, %v6674
    %6739 = vst.msk [vmem:[#allocation5 + $0x60] sm:$0xff] %vm6467, %v6675
    %6740 = vst.msk [vmem:[#allocation5 + $0x68] sm:$0xff] %vm6467, %v6676
    %6741 = vst.msk [vmem:[#allocation5 + $0x70] sm:$0xff] %vm6467, %v6677
    %6742 = vst.msk [vmem:[#allocation5 + $0x78] sm:$0xff] %vm6467, %v6678
    %6743 = vst.msk [vmem:[#allocation5 + $0x80] sm:$0xff] %vm6467, %v6679
    %6744 = vst.msk [vmem:[#allocation5 + $0x88] sm:$0xff] %vm6467, %v6680
    %6745 = vst.msk [vmem:[#allocation5 + $0x90] sm:$0xff] %vm6467, %v6681
    %6746 = vst.msk [vmem:[#allocation5 + $0x98] sm:$0xff] %vm6467, %v6682
    %6747 = vst.msk [vmem:[#allocation5 + $0xa0] sm:$0xff] %vm6467, %v6683
    %6748 = vst.msk [vmem:[#allocation5 + $0xa8] sm:$0xff] %vm6467, %v6684
    %6749 = vst.msk [vmem:[#allocation5 + $0xb0] sm:$0xff] %vm6467, %v6685
    %6750 = vst.msk [vmem:[#allocation5 + $0xb8] sm:$0xff] %vm6467, %v6686
    %6751 = vst.msk [vmem:[#allocation5 + $0xc0] sm:$0xff] %vm6467, %v6687
    %6752 = vst.msk [vmem:[#allocation5 + $0xc8] sm:$0xff] %vm6467, %v6688
    %6753 = vst.msk [vmem:[#allocation5 + $0xd0] sm:$0xff] %vm6467, %v6689
    %6754 = vst.msk [vmem:[#allocation5 + $0xd8] sm:$0xff] %vm6467, %v6690
    %6755 = vst.msk [vmem:[#allocation5 + $0xe0] sm:$0xff] %vm6467, %v6691
    %6756 = vst.msk [vmem:[#allocation5 + $0xe8] sm:$0xff] %vm6467, %v6692
    %6757 = vst.msk [vmem:[#allocation5 + $0xf0] sm:$0xff] %vm6467, %v6693
    %6758 = vst.msk [vmem:[#allocation5 + $0xf8] sm:$0xff] %vm6467, %v6694
    %6759 = vst.msk [vmem:[#allocation5 + $0x100] sm:$0xff] %vm6467, %v6695
    %6760 = vst.msk [vmem:[#allocation5 + $0x108] sm:$0xff] %vm6467, %v6696
    %6761 = vst.msk [vmem:[#allocation5 + $0x110] sm:$0xff] %vm6467, %v6697
    %6762 = vst.msk [vmem:[#allocation5 + $0x118] sm:$0xff] %vm6467, %v6698
    %6763 = vst.msk [vmem:[#allocation5 + $0x120] sm:$0xff] %vm6467, %v6699
    %6764 = vst.msk [vmem:[#allocation5 + $0x128] sm:$0xff] %vm6467, %v6700
    %6765 = vst.msk [vmem:[#allocation5 + $0x130] sm:$0xff] %vm6467, %v6701
    %6766 = vst.msk [vmem:[#allocation5 + $0x138] sm:$0xff] %vm6467, %v6702
    %6767 = vst.msk [vmem:[#allocation5 + $0x140] sm:$0xff] %vm6467, %v6703
    %6768 = vst.msk [vmem:[#allocation5 + $0x148] sm:$0xff] %vm6467, %v6704
    %6769 = vst.msk [vmem:[#allocation5 + $0x150] sm:$0xff] %vm6467, %v6705
    %6770 = vst.msk [vmem:[#allocation5 + $0x158] sm:$0xff] %vm6467, %v6706
    %6771 = vst.msk [vmem:[#allocation5 + $0x160] sm:$0xff] %vm6467, %v6707
    %6772 = vst.msk [vmem:[#allocation5 + $0x168] sm:$0xff] %vm6467, %v6708
    %6773 = vst.msk [vmem:[#allocation5 + $0x170] sm:$0xff] %vm6467, %v6709
    %6774 = vst.msk [vmem:[#allocation5 + $0x178] sm:$0xff] %vm6467, %v6710
    %6775 = vst.msk [vmem:[#allocation5 + $0x180] sm:$0xff] %vm6467, %v6711
    %6776 = vst.msk [vmem:[#allocation5 + $0x188] sm:$0xff] %vm6467, %v6712
    %6777 = vst.msk [vmem:[#allocation5 + $0x190] sm:$0xff] %vm6467, %v6713
    %6778 = vst.msk [vmem:[#allocation5 + $0x198] sm:$0xff] %vm6467, %v6714
    %6779 = vst.msk [vmem:[#allocation5 + $0x1a0] sm:$0xff] %vm6467, %v6715
    %6780 = vst.msk [vmem:[#allocation5 + $0x1a8] sm:$0xff] %vm6467, %v6716
    %6781 = vst.msk [vmem:[#allocation5 + $0x1b0] sm:$0xff] %vm6467, %v6717
    %6782 = vst.msk [vmem:[#allocation5 + $0x1b8] sm:$0xff] %vm6467, %v6718
    %6783 = vst.msk [vmem:[#allocation5 + $0x1c0] sm:$0xff] %vm6467, %v6719
    %6784 = vst.msk [vmem:[#allocation5 + $0x1c8] sm:$0xff] %vm6467, %v6720
    %6785 = vst.msk [vmem:[#allocation5 + $0x1d0] sm:$0xff] %vm6467, %v6721
    %6786 = vst.msk [vmem:[#allocation5 + $0x1d8] sm:$0xff] %vm6467, %v6722
    %6787 = vst.msk [vmem:[#allocation5 + $0x1e0] sm:$0xff] %vm6467, %v6723
    %6788 = vst.msk [vmem:[#allocation5 + $0x1e8] sm:$0xff] %vm6467, %v6724
    %6789 = vst.msk [vmem:[#allocation5 + $0x1f0] sm:$0xff] %vm6467, %v6725
    %vm6790 = vcmask 522240
    %6791 = vst.msk [vmem:[#allocation5 + $0x1f8] sm:$0x7f] %vm6790, %v6726
    %v6792 = vld [vmem:[#allocation5] ss:$2 sm:$0xff]
    %s6793 = scalar_lea.vmem [#allocation5], 16
    %v6794 = vld [vmem:[%s6793] ss:$2 sm:$0xff]
    %s6795 = scalar_lea.vmem [#allocation5], 32
    %v6796 = vld [vmem:[%s6795] ss:$2 sm:$0xff]
    %s6797 = scalar_lea.vmem [#allocation5], 48
    %v6798 = vld [vmem:[%s6797] ss:$2 sm:$0xff]
    %s6799 = scalar_lea.vmem [#allocation5], 64
    %v6800 = vld [vmem:[%s6799] ss:$2 sm:$0xff]
    %s6801 = scalar_lea.vmem [#allocation5], 80
    %v6802 = vld [vmem:[%s6801] ss:$2 sm:$0xff]
    %s6803 = scalar_lea.vmem [#allocation5], 96
    %v6804 = vld [vmem:[%s6803] ss:$2 sm:$0xff]
    %s6805 = scalar_lea.vmem [#allocation5], 112
    %v6806 = vld [vmem:[%s6805] ss:$2 sm:$0xff]
    %s6807 = scalar_lea.vmem [#allocation5], 128
    %v6808 = vld [vmem:[%s6807] ss:$2 sm:$0xff]
    %s6809 = scalar_lea.vmem [#allocation5], 144
    %v6810 = vld [vmem:[%s6809] ss:$2 sm:$0xff]
    %s6811 = scalar_lea.vmem [#allocation5], 160
    %v6812 = vld [vmem:[%s6811] ss:$2 sm:$0xff]
    %s6813 = scalar_lea.vmem [#allocation5], 176
    %v6814 = vld [vmem:[%s6813] ss:$2 sm:$0xff]
    %s6815 = scalar_lea.vmem [#allocation5], 192
    %v6816 = vld [vmem:[%s6815] ss:$2 sm:$0xff]
    %s6817 = scalar_lea.vmem [#allocation5], 208
    %v6818 = vld [vmem:[%s6817] ss:$2 sm:$0xff]
    %s6819 = scalar_lea.vmem [#allocation5], 224
    %v6820 = vld [vmem:[%s6819] ss:$2 sm:$0xff]
    %s6821 = scalar_lea.vmem [#allocation5], 240
    %v6822 = vld [vmem:[%s6821] ss:$2 sm:$0xff]
    %6823 = vst.msk [vmem:[#allocation6] sm:$0xff] %vm6467, %v6792
    %6824 = vst.msk [vmem:[#allocation6 + $0x8] sm:$0xff] %vm6467, %v6794
    %6825 = vst.msk [vmem:[#allocation6 + $0x10] sm:$0xff] %vm6467, %v6796
    %6826 = vst.msk [vmem:[#allocation6 + $0x18] sm:$0xff] %vm6467, %v6798
    %6827 = vst.msk [vmem:[#allocation6 + $0x20] sm:$0xff] %vm6467, %v6800
    %6828 = vst.msk [vmem:[#allocation6 + $0x28] sm:$0xff] %vm6467, %v6802
    %6829 = vst.msk [vmem:[#allocation6 + $0x30] sm:$0xff] %vm6467, %v6804
    %6830 = vst.msk [vmem:[#allocation6 + $0x38] sm:$0xff] %vm6467, %v6806
    %6831 = vst.msk [vmem:[#allocation6 + $0x40] sm:$0xff] %vm6467, %v6808
    %6832 = vst.msk [vmem:[#allocation6 + $0x48] sm:$0xff] %vm6467, %v6810
    %6833 = vst.msk [vmem:[#allocation6 + $0x50] sm:$0xff] %vm6467, %v6812
    %6834 = vst.msk [vmem:[#allocation6 + $0x58] sm:$0xff] %vm6467, %v6814
    %6835 = vst.msk [vmem:[#allocation6 + $0x60] sm:$0xff] %vm6467, %v6816
    %6836 = vst.msk [vmem:[#allocation6 + $0x68] sm:$0xff] %vm6467, %v6818
    %6837 = vst.msk [vmem:[#allocation6 + $0x70] sm:$0xff] %vm6467, %v6820
    %6838 = vst.msk [vmem:[#allocation6 + $0x78] sm:$0xff] %vm6467, %v6822
    %v6839 = vld [vmem:[#allocation6] sm:$0xff]
    %v6840 = vld [vmem:[#allocation6 + $0x8] sm:$0xff]
    %v6841 = vmax.f32 %v6839, %v6840
    %v6842 = vpack.c.bf16 %v6841, %v6841
    %vm6843 = vcmask 519168
    %6844 = vst.msk [vmem:[#allocation7] sm:$0xf] %vm6843, %v6842
    %v6845 = vld [vmem:[#allocation6 + $0x10] sm:$0xff]
    %v6846 = vld [vmem:[#allocation6 + $0x18] sm:$0xff]
    %v6847 = vmax.f32 %v6845, %v6846
    %v6848 = vpack.c.bf16 %v6847, %v6847
    %6849 = vst.msk [vmem:[#allocation7 + $0x4] sm:$0xf] %vm6843, %v6848
    %v6850 = vld [vmem:[#allocation6 + $0x20] sm:$0xff]
    %v6851 = vld [vmem:[#allocation6 + $0x28] sm:$0xff]
    %v6852 = vmax.f32 %v6850, %v6851
    %v6853 = vpack.c.bf16 %v6852, %v6852
    %6854 = vst.msk [vmem:[#allocation7 + $0x8] sm:$0xf] %vm6843, %v6853
    %v6855 = vld [vmem:[#allocation6 + $0x30] sm:$0xff]
    %v6856 = vld [vmem:[#allocation6 + $0x38] sm:$0xff]
    %v6857 = vmax.f32 %v6855, %v6856
    %v6858 = vpack.c.bf16 %v6857, %v6857
    %6859 = vst.msk [vmem:[#allocation7 + $0xc] sm:$0xf] %vm6843, %v6858
    %v6860 = vld [vmem:[#allocation6 + $0x40] sm:$0xff]
    %v6861 = vld [vmem:[#allocation6 + $0x48] sm:$0xff]
    %v6862 = vmax.f32 %v6860, %v6861
    %v6863 = vpack.c.bf16 %v6862, %v6862
    %6864 = vst.msk [vmem:[#allocation7 + $0x10] sm:$0xf] %vm6843, %v6863
    %v6865 = vld [vmem:[#allocation6 + $0x50] sm:$0xff]
    %v6866 = vld [vmem:[#allocation6 + $0x58] sm:$0xff]
    %v6867 = vmax.f32 %v6865, %v6866
    %v6868 = vpack.c.bf16 %v6867, %v6867
    %6869 = vst.msk [vmem:[#allocation7 + $0x14] sm:$0xf] %vm6843, %v6868
    %v6870 = vld [vmem:[#allocation6 + $0x60] sm:$0xff]
    %v6871 = vld [vmem:[#allocation6 + $0x68] sm:$0xff]
    %v6872 = vmax.f32 %v6870, %v6871
    %v6873 = vpack.c.bf16 %v6872, %v6872
    %6874 = vst.msk [vmem:[#allocation7 + $0x18] sm:$0xf] %vm6843, %v6873
    %v6875 = vld [vmem:[#allocation6 + $0x70] sm:$0xff]
    %v6876 = vld [vmem:[#allocation6 + $0x78] sm:$0xff]
    %v6877 = vmax.f32 %v6875, %v6876
    %v6878 = vpack.c.bf16 %v6877, %v6877
    %6879 = vst.msk [vmem:[#allocation7 + $0x1c] sm:$0xf] %vm6843, %v6878
    %s6880 = scalar_lea.vmem [#allocation5], 256
    %v6881 = vld [vmem:[%s6880] ss:$2 sm:$0xff]
    %s6882 = scalar_lea.vmem [#allocation5], 272
    %v6883 = vld [vmem:[%s6882] ss:$2 sm:$0xff]
    %s6884 = scalar_lea.vmem [#allocation5], 288
    %v6885 = vld [vmem:[%s6884] ss:$2 sm:$0xff]
    %s6886 = scalar_lea.vmem [#allocation5], 304
    %v6887 = vld [vmem:[%s6886] ss:$2 sm:$0xff]
    %s6888 = scalar_lea.vmem [#allocation5], 320
    %v6889 = vld [vmem:[%s6888] ss:$2 sm:$0xff]
    %s6890 = scalar_lea.vmem [#allocation5], 336
    %v6891 = vld [vmem:[%s6890] ss:$2 sm:$0xff]
    %s6892 = scalar_lea.vmem [#allocation5], 352
    %v6893 = vld [vmem:[%s6892] ss:$2 sm:$0xff]
    %s6894 = scalar_lea.vmem [#allocation5], 368
    %v6895 = vld [vmem:[%s6894] ss:$2 sm:$0xff]
    %s6896 = scalar_lea.vmem [#allocation5], 384
    %v6897 = vld [vmem:[%s6896] ss:$2 sm:$0xff]
    %s6898 = scalar_lea.vmem [#allocation5], 400
    %v6899 = vld [vmem:[%s6898] ss:$2 sm:$0xff]
    %s6900 = scalar_lea.vmem [#allocation5], 416
    %v6901 = vld [vmem:[%s6900] ss:$2 sm:$0xff]
    %s6902 = scalar_lea.vmem [#allocation5], 432
    %v6903 = vld [vmem:[%s6902] ss:$2 sm:$0xff]
    %s6904 = scalar_lea.vmem [#allocation5], 448
    %v6905 = vld [vmem:[%s6904] ss:$2 sm:$0xff]
    %s6906 = scalar_lea.vmem [#allocation5], 464
    %v6907 = vld [vmem:[%s6906] ss:$2 sm:$0xff]
    %s6908 = scalar_lea.vmem [#allocation5], 480
    %v6909 = vld [vmem:[%s6908] ss:$2 sm:$0xff]
    %s6910 = scalar_lea.vmem [#allocation5], 496
    %v6911 = vld [vmem:[%s6910] ss:$2 sm:$0xff]
    %6912 = vst.msk [vmem:[#allocation6] sm:$0xff] %vm6467, %v6881
    %6913 = vst.msk [vmem:[#allocation6 + $0x8] sm:$0xff] %vm6467, %v6883
    %6914 = vst.msk [vmem:[#allocation6 + $0x10] sm:$0xff] %vm6467, %v6885
    %6915 = vst.msk [vmem:[#allocation6 + $0x18] sm:$0xff] %vm6467, %v6887
    %6916 = vst.msk [vmem:[#allocation6 + $0x20] sm:$0xff] %vm6467, %v6889
    %6917 = vst.msk [vmem:[#allocation6 + $0x28] sm:$0xff] %vm6467, %v6891
    %6918 = vst.msk [vmem:[#allocation6 + $0x30] sm:$0xff] %vm6467, %v6893
    %6919 = vst.msk [vmem:[#allocation6 + $0x38] sm:$0xff] %vm6467, %v6895
    %6920 = vst.msk [vmem:[#allocation6 + $0x40] sm:$0xff] %vm6467, %v6897
    %6921 = vst.msk [vmem:[#allocation6 + $0x48] sm:$0xff] %vm6467, %v6899
    %6922 = vst.msk [vmem:[#allocation6 + $0x50] sm:$0xff] %vm6467, %v6901
    %6923 = vst.msk [vmem:[#allocation6 + $0x58] sm:$0xff] %vm6467, %v6903
    %6924 = vst.msk [vmem:[#allocation6 + $0x60] sm:$0xff] %vm6467, %v6905
    %6925 = vst.msk [vmem:[#allocation6 + $0x68] sm:$0xff] %vm6467, %v6907
    %6926 = vst.msk [vmem:[#allocation6 + $0x70] sm:$0xff] %vm6467, %v6909
    %6927 = vst.msk [vmem:[#allocation6 + $0x78] sm:$0xff] %vm6467, %v6911
    %v6928 = vld [vmem:[#allocation6] sm:$0xff]
    %v6929 = vld [vmem:[#allocation6 + $0x8] sm:$0xff]
    %v6930 = vmax.f32 %v6928, %v6929
    %v6931 = vpack.c.bf16 %v6930, %v6930
    %6932 = vst.msk [vmem:[#allocation7 + $0x20] sm:$0xf] %vm6843, %v6931
    %v6933 = vld [vmem:[#allocation6 + $0x10] sm:$0xff]
    %v6934 = vld [vmem:[#allocation6 + $0x18] sm:$0xff]
    %v6935 = vmax.f32 %v6933, %v6934
    %v6936 = vpack.c.bf16 %v6935, %v6935
    %6937 = vst.msk [vmem:[#allocation7 + $0x24] sm:$0xf] %vm6843, %v6936
    %v6938 = vld [vmem:[#allocation6 + $0x20] sm:$0xff]
    %v6939 = vld [vmem:[#allocation6 + $0x28] sm:$0xff]
    %v6940 = vmax.f32 %v6938, %v6939
    %v6941 = vpack.c.bf16 %v6940, %v6940
    %6942 = vst.msk [vmem:[#allocation7 + $0x28] sm:$0xf] %vm6843, %v6941
    %v6943 = vld [vmem:[#allocation6 + $0x30] sm:$0xff]
    %v6944 = vld [vmem:[#allocation6 + $0x38] sm:$0xff]
    %v6945 = vmax.f32 %v6943, %v6944
    %v6946 = vpack.c.bf16 %v6945, %v6945
    %6947 = vst.msk [vmem:[#allocation7 + $0x2c] sm:$0xf] %vm6843, %v6946
    %v6948 = vld [vmem:[#allocation6 + $0x40] sm:$0xff]
    %v6949 = vld [vmem:[#allocation6 + $0x48] sm:$0xff]
    %v6950 = vmax.f32 %v6948, %v6949
    %v6951 = vpack.c.bf16 %v6950, %v6950
    %6952 = vst.msk [vmem:[#allocation7 + $0x30] sm:$0xf] %vm6843, %v6951
    %v6953 = vld [vmem:[#allocation6 + $0x50] sm:$0xff]
    %v6954 = vld [vmem:[#allocation6 + $0x58] sm:$0xff]
    %v6955 = vmax.f32 %v6953, %v6954
    %v6956 = vpack.c.bf16 %v6955, %v6955
    %6957 = vst.msk [vmem:[#allocation7 + $0x34] sm:$0xf] %vm6843, %v6956
    %v6958 = vld [vmem:[#allocation6 + $0x60] sm:$0xff]
    %v6959 = vld [vmem:[#allocation6 + $0x68] sm:$0xff]
    %v6960 = vmax.f32 %v6958, %v6959
    %v6961 = vpack.c.bf16 %v6960, %v6960
    %6962 = vst.msk [vmem:[#allocation7 + $0x38] sm:$0xf] %vm6843, %v6961
    %v6963 = vld [vmem:[#allocation6 + $0x70] sm:$0xff]
    %v6964 = vld [vmem:[#allocation6 + $0x78] sm:$0xff]
    %v6965 = vmax.f32 %v6963, %v6964
    %v6966 = vpack.c.bf16 %v6965, %v6965
    %6967 = vst.msk [vmem:[#allocation7 + $0x3c] sm:$0xf] %vm6843, %v6966
    %v6968 = vld [vmem:[%s5 + $0x1] sm:$0x1]
    %v6969 = vld [vmem:[%s6 + $0x1] sm:$0x1]
    %v6970 = vld [vmem:[#allocation7] sm:$0xf]
    %v6971 = vld [vmem:[#allocation7 + $0x4] sm:$0xf]
    %v6972 = vld [vmem:[#allocation7 + $0x8] sm:$0xf]
    %v6973 = vld [vmem:[#allocation7 + $0xc] sm:$0xf]
    %v6974 = vld [vmem:[#allocation7 + $0x10] sm:$0xf]
    %v6975 = vld [vmem:[#allocation7 + $0x14] sm:$0xf]
    %v6976 = vld [vmem:[#allocation7 + $0x18] sm:$0xf]
    %v6977 = vld [vmem:[#allocation7 + $0x1c] sm:$0xf]
    %v6978 = vld [vmem:[#allocation7 + $0x20] sm:$0xf]
    %v6979 = vld [vmem:[#allocation7 + $0x24] sm:$0xf]
    %v6980 = vld [vmem:[#allocation7 + $0x28] sm:$0xf]
    %v6981 = vld [vmem:[#allocation7 + $0x2c] sm:$0xf]
    %v6982 = vld [vmem:[#allocation7 + $0x30] sm:$0xf]
    %v6983 = vld [vmem:[#allocation7 + $0x34] sm:$0x7]
    %6984 = vst.msk [vmem:[#allocation3] sm:$0xf] %vm6843, %v6970
    %6985 = vst.msk [vmem:[#allocation3 + $0x14] sm:$0xf] %vm6843, %v6971
    %6986 = vst.msk [vmem:[#allocation3 + $0x28] sm:$0xf] %vm6843, %v6972
    %6987 = vst.msk [vmem:[#allocation3 + $0x3c] sm:$0xf] %vm6843, %v6973
    %6988 = vst.msk [vmem:[#allocation3 + $0x50] sm:$0xf] %vm6843, %v6974
    %6989 = vst.msk [vmem:[#allocation3 + $0x64] sm:$0xf] %vm6843, %v6975
    %6990 = vst.msk [vmem:[#allocation3 + $0x78] sm:$0xf] %vm6843, %v6976
    %6991 = vst.msk [vmem:[#allocation3 + $0x8c] sm:$0xf] %vm6843, %v6977
    %6992 = vst.msk [vmem:[#allocation3 + $0xa0] sm:$0xf] %vm6843, %v6978
    %6993 = vst.msk [vmem:[#allocation3 + $0xb4] sm:$0xf] %vm6843, %v6979
    %6994 = vst.msk [vmem:[#allocation3 + $0xc8] sm:$0xf] %vm6843, %v6980
    %6995 = vst.msk [vmem:[#allocation3 + $0xdc] sm:$0xf] %vm6843, %v6981
    %6996 = vst.msk [vmem:[#allocation3 + $0xf0] sm:$0xf] %vm6843, %v6982
    %vm6997 = vcmask 518144
    %6998 = vst.msk [vmem:[#allocation3 + $0x104] sm:$0x7] %vm6997, %v6983
    %v6999 = vld [vmem:[#allocation7] sm:$0xf]
    %v7000 = vld [vmem:[#allocation7 + $0x4] sm:$0xf]
    %v7001 = vld [vmem:[#allocation7 + $0x8] sm:$0xf]
    %v7002 = vld [vmem:[#allocation7 + $0xc] sm:$0xf]
    %v7003 = vld [vmem:[#allocation7 + $0x10] sm:$0xf]
    %v7004 = vld [vmem:[#allocation7 + $0x14] sm:$0xf]
    %v7005 = vld [vmem:[#allocation7 + $0x18] sm:$0xf]
    %v7006 = vld [vmem:[#allocation7 + $0x1c] sm:$0xf]
    %v7007 = vld [vmem:[#allocation7 + $0x20] sm:$0xf]
    %v7008 = vld [vmem:[#allocation7 + $0x24] sm:$0xf]
    %v7009 = vld [vmem:[#allocation7 + $0x28] sm:$0xf]
    %v7010 = vld [vmem:[#allocation7 + $0x2c] sm:$0xf]
    %v7011 = vld [vmem:[#allocation7 + $0x30] sm:$0xf]
    %v7012 = vld [vmem:[#allocation7 + $0x34] sm:$0xf]
    %v7014 = vshrl.u32 %v6999, 16
    %v7016 = vrot.slane %v7014, 4
    %v7017 = vshll.u32 %v6999, 16
    %v7019 = vrot.slane %v7017, 5
    %v7020 = vor.u32 %v7016, %v7019
    %v7021 = vrot.slane %v7020, 4
    %v7023 = vshll.u32 %v7000, 16
    %v7025 = vrot.slane %v7023, 5
    %v7026 = vsel %vm214, %v7021, %v7025
    %v7027 = vshrl.u32 %v7000, 16
    %v7029 = vrot.slane %v7027, 4
    %v7030 = vor.u32 %v7029, %v7025
    %v7031 = vrot.slane %v7030, 4
    %v7033 = vshll.u32 %v7001, 16
    %v7035 = vrot.slane %v7033, 5
    %v7036 = vsel %vm214, %v7031, %v7035
    %v7037 = vshrl.u32 %v7001, 16
    %v7039 = vrot.slane %v7037, 4
    %v7040 = vor.u32 %v7039, %v7035
    %v7041 = vrot.slane %v7040, 4
    %v7043 = vshll.u32 %v7002, 16
    %v7045 = vrot.slane %v7043, 5
    %v7046 = vsel %vm214, %v7041, %v7045
    %v7047 = vshrl.u32 %v7002, 16
    %v7049 = vrot.slane %v7047, 4
    %v7050 = vor.u32 %v7049, %v7045
    %v7051 = vrot.slane %v7050, 4
    %v7053 = vshll.u32 %v7003, 16
    %v7055 = vrot.slane %v7053, 5
    %v7056 = vsel %vm214, %v7051, %v7055
    %v7057 = vshrl.u32 %v7003, 16
    %v7059 = vrot.slane %v7057, 4
    %v7060 = vor.u32 %v7059, %v7055
    %v7061 = vrot.slane %v7060, 4
    %v7063 = vshll.u32 %v7004, 16
    %v7065 = vrot.slane %v7063, 5
    %v7066 = vsel %vm214, %v7061, %v7065
    %v7067 = vshrl.u32 %v7004, 16
    %v7069 = vrot.slane %v7067, 4
    %v7070 = vor.u32 %v7069, %v7065
    %v7071 = vrot.slane %v7070, 4
    %v7073 = vshll.u32 %v7005, 16
    %v7075 = vrot.slane %v7073, 5
    %v7076 = vsel %vm214, %v7071, %v7075
    %v7077 = vshrl.u32 %v7005, 16
    %v7079 = vrot.slane %v7077, 4
    %v7080 = vor.u32 %v7079, %v7075
    %v7081 = vrot.slane %v7080, 4
    %v7083 = vshll.u32 %v7006, 16
    %v7085 = vrot.slane %v7083, 5
    %v7086 = vsel %vm214, %v7081, %v7085
    %v7087 = vshrl.u32 %v7006, 16
    %v7089 = vrot.slane %v7087, 4
    %v7090 = vor.u32 %v7089, %v7085
    %v7091 = vrot.slane %v7090, 4
    %v7093 = vshll.u32 %v7007, 16
    %v7095 = vrot.slane %v7093, 5
    %v7096 = vsel %vm214, %v7091, %v7095
    %v7097 = vshrl.u32 %v7007, 16
    %v7099 = vrot.slane %v7097, 4
    %v7100 = vor.u32 %v7099, %v7095
    %v7101 = vrot.slane %v7100, 4
    %v7103 = vshll.u32 %v7008, 16
    %v7105 = vrot.slane %v7103, 5
    %v7106 = vsel %vm214, %v7101, %v7105
    %v7107 = vshrl.u32 %v7008, 16
    %v7109 = vrot.slane %v7107, 4
    %v7110 = vor.u32 %v7109, %v7105
    %v7111 = vrot.slane %v7110, 4
    %v7113 = vshll.u32 %v7009, 16
    %v7115 = vrot.slane %v7113, 5
    %v7116 = vsel %vm214, %v7111, %v7115
    %v7117 = vshrl.u32 %v7009, 16
    %v7119 = vrot.slane %v7117, 4
    %v7120 = vor.u32 %v7119, %v7115
    %v7121 = vrot.slane %v7120, 4
    %v7123 = vshll.u32 %v7010, 16
    %v7125 = vrot.slane %v7123, 5
    %v7126 = vsel %vm214, %v7121, %v7125
    %v7127 = vshrl.u32 %v7010, 16
    %v7129 = vrot.slane %v7127, 4
    %v7130 = vor.u32 %v7129, %v7125
    %v7131 = vrot.slane %v7130, 4
    %v7133 = vshll.u32 %v7011, 16
    %v7135 = vrot.slane %v7133, 5
    %v7136 = vsel %vm214, %v7131, %v7135
    %v7137 = vshrl.u32 %v7011, 16
    %v7139 = vrot.slane %v7137, 4
    %v7140 = vor.u32 %v7139, %v7135
    %v7141 = vrot.slane %v7140, 4
    %v7143 = vshll.u32 %v7012, 16
    %v7145 = vrot.slane %v7143, 5
    %v7146 = vsel %vm214, %v7141, %v7145
    %v7147 = vshrl.u32 %v7012, 16
    %v7149 = vrot.slane %v7147, 4
    %v7150 = vor.u32 %v7149, %v7145
    %v7151 = vrot.slane %v7150, 4
    %7152 = vrot.lane.b32.xlu0 %v7026, 64
    %v7153 = vpop.permute.xlu0 %7152
    %7154 = vrot.lane.b32.xlu0 %v7036, 64
    %v7155 = vpop.permute.xlu0 %7154
    %7156 = vrot.lane.b32.xlu0 %v7046, 64
    %v7157 = vpop.permute.xlu0 %7156
    %7158 = vrot.lane.b32.xlu0 %v7056, 64
    %v7159 = vpop.permute.xlu0 %7158
    %7160 = vrot.lane.b32.xlu0 %v7066, 64
    %v7161 = vpop.permute.xlu0 %7160
    %7162 = vrot.lane.b32.xlu0 %v7076, 64
    %v7163 = vpop.permute.xlu0 %7162
    %7164 = vrot.lane.b32.xlu0 %v7086, 64
    %v7165 = vpop.permute.xlu0 %7164
    %7166 = vrot.lane.b32.xlu0 %v7096, 64
    %v7167 = vpop.permute.xlu0 %7166
    %7168 = vrot.lane.b32.xlu0 %v7106, 64
    %v7169 = vpop.permute.xlu0 %7168
    %7170 = vrot.lane.b32.xlu0 %v7116, 64
    %v7171 = vpop.permute.xlu0 %7170
    %7172 = vrot.lane.b32.xlu0 %v7126, 64
    %v7173 = vpop.permute.xlu0 %7172
    %7174 = vrot.lane.b32.xlu0 %v7136, 64
    %v7175 = vpop.permute.xlu0 %7174
    %7176 = vrot.lane.b32.xlu0 %v7146, 64
    %v7177 = vpop.permute.xlu0 %7176
    %7178 = vrot.lane.b32.xlu0 %v7151, 64
    %v7179 = vpop.permute.xlu0 %7178
    %vm7194 = vcmask 1043968
    %7195 = vst.msk [vmem:[#allocation3] sm:$0xf] %vm7194, %v7153
    %7196 = vst.msk [vmem:[#allocation3 + $0x14] sm:$0xf] %vm7194, %v7155
    %7197 = vst.msk [vmem:[#allocation3 + $0x28] sm:$0xf] %vm7194, %v7157
    %7198 = vst.msk [vmem:[#allocation3 + $0x3c] sm:$0xf] %vm7194, %v7159
    %7199 = vst.msk [vmem:[#allocation3 + $0x50] sm:$0xf] %vm7194, %v7161
    %7200 = vst.msk [vmem:[#allocation3 + $0x64] sm:$0xf] %vm7194, %v7163
    %7201 = vst.msk [vmem:[#allocation3 + $0x78] sm:$0xf] %vm7194, %v7165
    %7202 = vst.msk [vmem:[#allocation3 + $0x8c] sm:$0xf] %vm7194, %v7167
    %7203 = vst.msk [vmem:[#allocation3 + $0xa0] sm:$0xf] %vm7194, %v7169
    %7204 = vst.msk [vmem:[#allocation3 + $0xb4] sm:$0xf] %vm7194, %v7171
    %7205 = vst.msk [vmem:[#allocation3 + $0xc8] sm:$0xf] %vm7194, %v7173
    %7206 = vst.msk [vmem:[#allocation3 + $0xdc] sm:$0xf] %vm7194, %v7175
    %7207 = vst.msk [vmem:[#allocation3 + $0xf0] sm:$0xf] %vm7194, %v7177
    %vm7208 = vcmask 1042944
    %7209 = vst.msk [vmem:[#allocation3 + $0x104] sm:$0x7] %vm7208, %v7179
    %v7210 = vld [vmem:[#allocation7] sm:$0xe]
    %v7211 = vld [vmem:[#allocation7 + $0x4] sm:$0xf]
    %v7212 = vld [vmem:[#allocation7 + $0x8] sm:$0xf]
    %v7213 = vld [vmem:[#allocation7 + $0xc] sm:$0xf]
    %v7214 = vld [vmem:[#allocation7 + $0x10] sm:$0xf]
    %v7215 = vld [vmem:[#allocation7 + $0x14] sm:$0xf]
    %v7216 = vld [vmem:[#allocation7 + $0x18] sm:$0xf]
    %v7217 = vld [vmem:[#allocation7 + $0x1c] sm:$0xf]
    %v7218 = vld [vmem:[#allocation7 + $0x20] sm:$0xf]
    %v7219 = vld [vmem:[#allocation7 + $0x24] sm:$0xf]
    %v7220 = vld [vmem:[#allocation7 + $0x28] sm:$0xf]
    %v7221 = vld [vmem:[#allocation7 + $0x2c] sm:$0xf]
    %v7222 = vld [vmem:[#allocation7 + $0x30] sm:$0xf]
    %v7223 = vld [vmem:[#allocation7 + $0x34] sm:$0xf]
    %v7238 = vrot.slane %v7210, 5
    %v7239 = vrot.slane %v7238, 4
    %v7240 = vrot.slane %v7211, 5
    %v7241 = vsel %vm1178, %v7239, %v7240
    %v7242 = vrot.slane %v7240, 4
    %v7243 = vrot.slane %v7212, 5
    %v7244 = vsel %vm1178, %v7242, %v7243
    %v7245 = vrot.slane %v7243, 4
    %v7246 = vrot.slane %v7213, 5
    %v7247 = vsel %vm1178, %v7245, %v7246
    %v7248 = vrot.slane %v7246, 4
    %v7249 = vrot.slane %v7214, 5
    %v7250 = vsel %vm1178, %v7248, %v7249
    %v7251 = vrot.slane %v7249, 4
    %v7252 = vrot.slane %v7215, 5
    %v7253 = vsel %vm1178, %v7251, %v7252
    %v7254 = vrot.slane %v7252, 4
    %v7255 = vrot.slane %v7216, 5
    %v7256 = vsel %vm1178, %v7254, %v7255
    %v7257 = vrot.slane %v7255, 4
    %v7258 = vrot.slane %v7217, 5
    %v7259 = vsel %vm1178, %v7257, %v7258
    %v7260 = vrot.slane %v7258, 4
    %v7261 = vrot.slane %v7218, 5
    %v7262 = vsel %vm1178, %v7260, %v7261
    %v7263 = vrot.slane %v7261, 4
    %v7264 = vrot.slane %v7219, 5
    %v7265 = vsel %vm1178, %v7263, %v7264
    %v7266 = vrot.slane %v7264, 4
    %v7267 = vrot.slane %v7220, 5
    %v7268 = vsel %vm1178, %v7266, %v7267
    %v7269 = vrot.slane %v7267, 4
    %v7270 = vrot.slane %v7221, 5
    %v7271 = vsel %vm1178, %v7269, %v7270
    %v7272 = vrot.slane %v7270, 4
    %v7273 = vrot.slane %v7222, 5
    %v7274 = vsel %vm1178, %v7272, %v7273
    %v7275 = vrot.slane %v7273, 4
    %v7276 = vrot.slane %v7223, 5
    %v7277 = vsel %vm1178, %v7275, %v7276
    %v7278 = vrot.slane %v7276, 4
    %7293 = vst.msk [vmem:[#allocation3 + $0x4] sm:$0xf] %vm6843, %v7241
    %7294 = vst.msk [vmem:[#allocation3 + $0x18] sm:$0xf] %vm6843, %v7244
    %7295 = vst.msk [vmem:[#allocation3 + $0x2c] sm:$0xf] %vm6843, %v7247
    %7296 = vst.msk [vmem:[#allocation3 + $0x40] sm:$0xf] %vm6843, %v7250
    %7297 = vst.msk [vmem:[#allocation3 + $0x54] sm:$0xf] %vm6843, %v7253
    %7298 = vst.msk [vmem:[#allocation3 + $0x68] sm:$0xf] %vm6843, %v7256
    %7299 = vst.msk [vmem:[#allocation3 + $0x7c] sm:$0xf] %vm6843, %v7259
    %7300 = vst.msk [vmem:[#allocation3 + $0x90] sm:$0xf] %vm6843, %v7262
    %7301 = vst.msk [vmem:[#allocation3 + $0xa4] sm:$0xf] %vm6843, %v7265
    %7302 = vst.msk [vmem:[#allocation3 + $0xb8] sm:$0xf] %vm6843, %v7268
    %7303 = vst.msk [vmem:[#allocation3 + $0xcc] sm:$0xf] %vm6843, %v7271
    %7304 = vst.msk [vmem:[#allocation3 + $0xe0] sm:$0xf] %vm6843, %v7274
    %7305 = vst.msk [vmem:[#allocation3 + $0xf4] sm:$0xf] %vm6843, %v7277
    %7306 = vst.msk [vmem:[#allocation3 + $0x108] sm:$0x7] %vm6997, %v7278
    %v7307 = vld [vmem:[#allocation7 + $0x4] sm:$0xf]
    %v7308 = vld [vmem:[#allocation7 + $0x8] sm:$0xf]
    %v7309 = vld [vmem:[#allocation7 + $0xc] sm:$0xf]
    %v7310 = vld [vmem:[#allocation7 + $0x10] sm:$0xf]
    %v7311 = vld [vmem:[#allocation7 + $0x14] sm:$0xf]
    %v7312 = vld [vmem:[#allocation7 + $0x18] sm:$0xf]
    %v7313 = vld [vmem:[#allocation7 + $0x1c] sm:$0xf]
    %v7314 = vld [vmem:[#allocation7 + $0x20] sm:$0xf]
    %v7315 = vld [vmem:[#allocation7 + $0x24] sm:$0xf]
    %v7316 = vld [vmem:[#allocation7 + $0x28] sm:$0xf]
    %v7317 = vld [vmem:[#allocation7 + $0x2c] sm:$0xf]
    %v7318 = vld [vmem:[#allocation7 + $0x30] sm:$0xf]
    %v7319 = vld [vmem:[#allocation7 + $0x34] sm:$0xf]
    %v7320 = vld [vmem:[#allocation7 + $0x38] sm:$0x7]
    %7335 = vrot.lane.b32.xlu0 %v7307, 64
    %v7336 = vpop.permute.xlu0 %7335
    %7337 = vrot.lane.b32.xlu0 %v7308, 64
    %v7338 = vpop.permute.xlu0 %7337
    %7339 = vrot.lane.b32.xlu0 %v7309, 64
    %v7340 = vpop.permute.xlu0 %7339
    %7341 = vrot.lane.b32.xlu0 %v7310, 64
    %v7342 = vpop.permute.xlu0 %7341
    %7343 = vrot.lane.b32.xlu0 %v7311, 64
    %v7344 = vpop.permute.xlu0 %7343
    %7345 = vrot.lane.b32.xlu0 %v7312, 64
    %v7346 = vpop.permute.xlu0 %7345
    %7347 = vrot.lane.b32.xlu0 %v7313, 64
    %v7348 = vpop.permute.xlu0 %7347
    %7349 = vrot.lane.b32.xlu0 %v7314, 64
    %v7350 = vpop.permute.xlu0 %7349
    %7351 = vrot.lane.b32.xlu0 %v7315, 64
    %v7352 = vpop.permute.xlu0 %7351
    %7353 = vrot.lane.b32.xlu0 %v7316, 64
    %v7354 = vpop.permute.xlu0 %7353
    %7355 = vrot.lane.b32.xlu0 %v7317, 64
    %v7356 = vpop.permute.xlu0 %7355
    %7357 = vrot.lane.b32.xlu0 %v7318, 64
    %v7358 = vpop.permute.xlu0 %7357
    %7359 = vrot.lane.b32.xlu0 %v7319, 64
    %v7360 = vpop.permute.xlu0 %7359
    %7361 = vrot.lane.b32.xlu0 %v7320, 64
    %v7362 = vpop.permute.xlu0 %7361
    %7377 = vst.msk [vmem:[#allocation3 + $0x4] sm:$0xf] %vm7194, %v7336
    %7378 = vst.msk [vmem:[#allocation3 + $0x18] sm:$0xf] %vm7194, %v7338
    %7379 = vst.msk [vmem:[#allocation3 + $0x2c] sm:$0xf] %vm7194, %v7340
    %7380 = vst.msk [vmem:[#allocation3 + $0x40] sm:$0xf] %vm7194, %v7342
    %7381 = vst.msk [vmem:[#allocation3 + $0x54] sm:$0xf] %vm7194, %v7344
    %7382 = vst.msk [vmem:[#allocation3 + $0x68] sm:$0xf] %vm7194, %v7346
    %7383 = vst.msk [vmem:[#allocation3 + $0x7c] sm:$0xf] %vm7194, %v7348
    %7384 = vst.msk [vmem:[#allocation3 + $0x90] sm:$0xf] %vm7194, %v7350
    %7385 = vst.msk [vmem:[#allocation3 + $0xa4] sm:$0xf] %vm7194, %v7352
    %7386 = vst.msk [vmem:[#allocation3 + $0xb8] sm:$0xf] %vm7194, %v7354
    %7387 = vst.msk [vmem:[#allocation3 + $0xcc] sm:$0xf] %vm7194, %v7356
    %7388 = vst.msk [vmem:[#allocation3 + $0xe0] sm:$0xf] %vm7194, %v7358
    %7389 = vst.msk [vmem:[#allocation3 + $0xf4] sm:$0xf] %vm7194, %v7360
    %7390 = vst.msk [vmem:[#allocation3 + $0x108] sm:$0x7] %vm7208, %v7362
    %v7391 = vld [vmem:[#allocation7 + $0x4] sm:$0xf]
    %v7392 = vld [vmem:[#allocation7 + $0x8] sm:$0xf]
    %v7393 = vld [vmem:[#allocation7 + $0xc] sm:$0xf]
    %v7394 = vld [vmem:[#allocation7 + $0x10] sm:$0xf]
    %v7395 = vld [vmem:[#allocation7 + $0x14] sm:$0xf]
    %v7396 = vld [vmem:[#allocation7 + $0x18] sm:$0xf]
    %v7397 = vld [vmem:[#allocation7 + $0x1c] sm:$0xf]
    %v7398 = vld [vmem:[#allocation7 + $0x20] sm:$0xf]
    %v7399 = vld [vmem:[#allocation7 + $0x24] sm:$0xf]
    %v7400 = vld [vmem:[#allocation7 + $0x28] sm:$0xf]
    %v7401 = vld [vmem:[#allocation7 + $0x2c] sm:$0xf]
    %v7402 = vld [vmem:[#allocation7 + $0x30] sm:$0xf]
    %v7403 = vld [vmem:[#allocation7 + $0x34] sm:$0xf]
    %v7404 = vld [vmem:[#allocation7 + $0x38] sm:$0xf]
    %v7406 = vshrl.u32 %v7391, 16
    %v7408 = vrot.slane %v7406, 4
    %v7409 = vshll.u32 %v7391, 16
    %v7411 = vrot.slane %v7409, 5
    %v7412 = vor.u32 %v7408, %v7411
    %v7413 = vrot.slane %v7412, 4
    %v7415 = vshll.u32 %v7392, 16
    %v7417 = vrot.slane %v7415, 5
    %v7418 = vsel %vm214, %v7413, %v7417
    %v7419 = vshrl.u32 %v7392, 16
    %v7421 = vrot.slane %v7419, 4
    %v7422 = vor.u32 %v7421, %v7417
    %v7423 = vrot.slane %v7422, 4
    %v7425 = vshll.u32 %v7393, 16
    %v7427 = vrot.slane %v7425, 5
    %v7428 = vsel %vm214, %v7423, %v7427
    %v7429 = vshrl.u32 %v7393, 16
    %v7431 = vrot.slane %v7429, 4
    %v7432 = vor.u32 %v7431, %v7427
    %v7433 = vrot.slane %v7432, 4
    %v7435 = vshll.u32 %v7394, 16
    %v7437 = vrot.slane %v7435, 5
    %v7438 = vsel %vm214, %v7433, %v7437
    %v7439 = vshrl.u32 %v7394, 16
    %v7441 = vrot.slane %v7439, 4
    %v7442 = vor.u32 %v7441, %v7437
    %v7443 = vrot.slane %v7442, 4
    %v7445 = vshll.u32 %v7395, 16
    %v7447 = vrot.slane %v7445, 5
    %v7448 = vsel %vm214, %v7443, %v7447
    %v7449 = vshrl.u32 %v7395, 16
    %v7451 = vrot.slane %v7449, 4
    %v7452 = vor.u32 %v7451, %v7447
    %v7453 = vrot.slane %v7452, 4
    %v7455 = vshll.u32 %v7396, 16
    %v7457 = vrot.slane %v7455, 5
    %v7458 = vsel %vm214, %v7453, %v7457
    %v7459 = vshrl.u32 %v7396, 16
    %v7461 = vrot.slane %v7459, 4
    %v7462 = vor.u32 %v7461, %v7457
    %v7463 = vrot.slane %v7462, 4
    %v7465 = vshll.u32 %v7397, 16
    %v7467 = vrot.slane %v7465, 5
    %v7468 = vsel %vm214, %v7463, %v7467
    %v7469 = vshrl.u32 %v7397, 16
    %v7471 = vrot.slane %v7469, 4
    %v7472 = vor.u32 %v7471, %v7467
    %v7473 = vrot.slane %v7472, 4
    %v7475 = vshll.u32 %v7398, 16
    %v7477 = vrot.slane %v7475, 5
    %v7478 = vsel %vm214, %v7473, %v7477
    %v7479 = vshrl.u32 %v7398, 16
    %v7481 = vrot.slane %v7479, 4
    %v7482 = vor.u32 %v7481, %v7477
    %v7483 = vrot.slane %v7482, 4
    %v7485 = vshll.u32 %v7399, 16
    %v7487 = vrot.slane %v7485, 5
    %v7488 = vsel %vm214, %v7483, %v7487
    %v7489 = vshrl.u32 %v7399, 16
    %v7491 = vrot.slane %v7489, 4
    %v7492 = vor.u32 %v7491, %v7487
    %v7493 = vrot.slane %v7492, 4
    %v7495 = vshll.u32 %v7400, 16
    %v7497 = vrot.slane %v7495, 5
    %v7498 = vsel %vm214, %v7493, %v7497
    %v7499 = vshrl.u32 %v7400, 16
    %v7501 = vrot.slane %v7499, 4
    %v7502 = vor.u32 %v7501, %v7497
    %v7503 = vrot.slane %v7502, 4
    %v7505 = vshll.u32 %v7401, 16
    %v7507 = vrot.slane %v7505, 5
    %v7508 = vsel %vm214, %v7503, %v7507
    %v7509 = vshrl.u32 %v7401, 16
    %v7511 = vrot.slane %v7509, 4
    %v7512 = vor.u32 %v7511, %v7507
    %v7513 = vrot.slane %v7512, 4
    %v7515 = vshll.u32 %v7402, 16
    %v7517 = vrot.slane %v7515, 5
    %v7518 = vsel %vm214, %v7513, %v7517
    %v7519 = vshrl.u32 %v7402, 16
    %v7521 = vrot.slane %v7519, 4
    %v7522 = vor.u32 %v7521, %v7517
    %v7523 = vrot.slane %v7522, 4
    %v7525 = vshll.u32 %v7403, 16
    %v7527 = vrot.slane %v7525, 5
    %v7528 = vsel %vm214, %v7523, %v7527
    %v7529 = vshrl.u32 %v7403, 16
    %v7531 = vrot.slane %v7529, 4
    %v7532 = vor.u32 %v7531, %v7527
    %v7533 = vrot.slane %v7532, 4
    %v7535 = vshll.u32 %v7404, 16
    %v7537 = vrot.slane %v7535, 5
    %v7538 = vsel %vm214, %v7533, %v7537
    %v7539 = vshrl.u32 %v7404, 16
    %v7541 = vrot.slane %v7539, 4
    %v7542 = vor.u32 %v7541, %v7537
    %v7543 = vrot.slane %v7542, 4
    %7558 = vst.msk [vmem:[#allocation3 + $0x8] sm:$0xf] %vm6843, %v7418
    %7559 = vst.msk [vmem:[#allocation3 + $0x1c] sm:$0xf] %vm6843, %v7428
    %7560 = vst.msk [vmem:[#allocation3 + $0x30] sm:$0xf] %vm6843, %v7438
    %7561 = vst.msk [vmem:[#allocation3 + $0x44] sm:$0xf] %vm6843, %v7448
    %7562 = vst.msk [vmem:[#allocation3 + $0x58] sm:$0xf] %vm6843, %v7458
    %7563 = vst.msk [vmem:[#allocation3 + $0x6c] sm:$0xf] %vm6843, %v7468
    %7564 = vst.msk [vmem:[#allocation3 + $0x80] sm:$0xf] %vm6843, %v7478
    %7565 = vst.msk [vmem:[#allocation3 + $0x94] sm:$0xf] %vm6843, %v7488
    %7566 = vst.msk [vmem:[#allocation3 + $0xa8] sm:$0xf] %vm6843, %v7498
    %7567 = vst.msk [vmem:[#allocation3 + $0xbc] sm:$0xf] %vm6843, %v7508
    %7568 = vst.msk [vmem:[#allocation3 + $0xd0] sm:$0xf] %vm6843, %v7518
    %7569 = vst.msk [vmem:[#allocation3 + $0xe4] sm:$0xf] %vm6843, %v7528
    %7570 = vst.msk [vmem:[#allocation3 + $0xf8] sm:$0xf] %vm6843, %v7538
    %7571 = vst.msk [vmem:[#allocation3 + $0x10c] sm:$0x7] %vm6997, %v7543
    %v7572 = vld [vmem:[#allocation7 + $0x4] sm:$0xe]
    %v7573 = vld [vmem:[#allocation7 + $0x8] sm:$0xf]
    %v7574 = vld [vmem:[#allocation7 + $0xc] sm:$0xf]
    %v7575 = vld [vmem:[#allocation7 + $0x10] sm:$0xf]
    %v7576 = vld [vmem:[#allocation7 + $0x14] sm:$0xf]
    %v7577 = vld [vmem:[#allocation7 + $0x18] sm:$0xf]
    %v7578 = vld [vmem:[#allocation7 + $0x1c] sm:$0xf]
    %v7579 = vld [vmem:[#allocation7 + $0x20] sm:$0xf]
    %v7580 = vld [vmem:[#allocation7 + $0x24] sm:$0xf]
    %v7581 = vld [vmem:[#allocation7 + $0x28] sm:$0xf]
    %v7582 = vld [vmem:[#allocation7 + $0x2c] sm:$0xf]
    %v7583 = vld [vmem:[#allocation7 + $0x30] sm:$0xf]
    %v7584 = vld [vmem:[#allocation7 + $0x34] sm:$0xf]
    %v7585 = vld [vmem:[#allocation7 + $0x38] sm:$0xf]
    %v7600 = vrot.slane %v7572, 5
    %v7601 = vrot.slane %v7600, 4
    %v7602 = vrot.slane %v7573, 5
    %v7603 = vsel %vm1178, %v7601, %v7602
    %v7604 = vrot.slane %v7602, 4
    %v7605 = vrot.slane %v7574, 5
    %v7606 = vsel %vm1178, %v7604, %v7605
    %v7607 = vrot.slane %v7605, 4
    %v7608 = vrot.slane %v7575, 5
    %v7609 = vsel %vm1178, %v7607, %v7608
    %v7610 = vrot.slane %v7608, 4
    %v7611 = vrot.slane %v7576, 5
    %v7612 = vsel %vm1178, %v7610, %v7611
    %v7613 = vrot.slane %v7611, 4
    %v7614 = vrot.slane %v7577, 5
    %v7615 = vsel %vm1178, %v7613, %v7614
    %v7616 = vrot.slane %v7614, 4
    %v7617 = vrot.slane %v7578, 5
    %v7618 = vsel %vm1178, %v7616, %v7617
    %v7619 = vrot.slane %v7617, 4
    %v7620 = vrot.slane %v7579, 5
    %v7621 = vsel %vm1178, %v7619, %v7620
    %v7622 = vrot.slane %v7620, 4
    %v7623 = vrot.slane %v7580, 5
    %v7624 = vsel %vm1178, %v7622, %v7623
    %v7625 = vrot.slane %v7623, 4
    %v7626 = vrot.slane %v7581, 5
    %v7627 = vsel %vm1178, %v7625, %v7626
    %v7628 = vrot.slane %v7626, 4
    %v7629 = vrot.slane %v7582, 5
    %v7630 = vsel %vm1178, %v7628, %v7629
    %v7631 = vrot.slane %v7629, 4
    %v7632 = vrot.slane %v7583, 5
    %v7633 = vsel %vm1178, %v7631, %v7632
    %v7634 = vrot.slane %v7632, 4
    %v7635 = vrot.slane %v7584, 5
    %v7636 = vsel %vm1178, %v7634, %v7635
    %v7637 = vrot.slane %v7635, 4
    %v7638 = vrot.slane %v7585, 5
    %v7639 = vsel %vm1178, %v7637, %v7638
    %v7640 = vrot.slane %v7638, 4
    %7641 = vrot.lane.b32.xlu0 %v7603, 64
    %v7642 = vpop.permute.xlu0 %7641
    %7643 = vrot.lane.b32.xlu0 %v7606, 64
    %v7644 = vpop.permute.xlu0 %7643
    %7645 = vrot.lane.b32.xlu0 %v7609, 64
    %v7646 = vpop.permute.xlu0 %7645
    %7647 = vrot.lane.b32.xlu0 %v7612, 64
    %v7648 = vpop.permute.xlu0 %7647
    %7649 = vrot.lane.b32.xlu0 %v7615, 64
    %v7650 = vpop.permute.xlu0 %7649
    %7651 = vrot.lane.b32.xlu0 %v7618, 64
    %v7652 = vpop.permute.xlu0 %7651
    %7653 = vrot.lane.b32.xlu0 %v7621, 64
    %v7654 = vpop.permute.xlu0 %7653
    %7655 = vrot.lane.b32.xlu0 %v7624, 64
    %v7656 = vpop.permute.xlu0 %7655
    %7657 = vrot.lane.b32.xlu0 %v7627, 64
    %v7658 = vpop.permute.xlu0 %7657
    %7659 = vrot.lane.b32.xlu0 %v7630, 64
    %v7660 = vpop.permute.xlu0 %7659
    %7661 = vrot.lane.b32.xlu0 %v7633, 64
    %v7662 = vpop.permute.xlu0 %7661
    %7663 = vrot.lane.b32.xlu0 %v7636, 64
    %v7664 = vpop.permute.xlu0 %7663
    %7665 = vrot.lane.b32.xlu0 %v7639, 64
    %v7666 = vpop.permute.xlu0 %7665
    %7667 = vrot.lane.b32.xlu0 %v7640, 64
    %v7668 = vpop.permute.xlu0 %7667
    %7683 = vst.msk [vmem:[#allocation3 + $0x8] sm:$0xf] %vm7194, %v7642
    %7684 = vst.msk [vmem:[#allocation3 + $0x1c] sm:$0xf] %vm7194, %v7644
    %7685 = vst.msk [vmem:[#allocation3 + $0x30] sm:$0xf] %vm7194, %v7646
    %7686 = vst.msk [vmem:[#allocation3 + $0x44] sm:$0xf] %vm7194, %v7648
    %7687 = vst.msk [vmem:[#allocation3 + $0x58] sm:$0xf] %vm7194, %v7650
    %7688 = vst.msk [vmem:[#allocation3 + $0x6c] sm:$0xf] %vm7194, %v7652
    %7689 = vst.msk [vmem:[#allocation3 + $0x80] sm:$0xf] %vm7194, %v7654
    %7690 = vst.msk [vmem:[#allocation3 + $0x94] sm:$0xf] %vm7194, %v7656
    %7691 = vst.msk [vmem:[#allocation3 + $0xa8] sm:$0xf] %vm7194, %v7658
    %7692 = vst.msk [vmem:[#allocation3 + $0xbc] sm:$0xf] %vm7194, %v7660
    %7693 = vst.msk [vmem:[#allocation3 + $0xd0] sm:$0xf] %vm7194, %v7662
    %7694 = vst.msk [vmem:[#allocation3 + $0xe4] sm:$0xf] %vm7194, %v7664
    %7695 = vst.msk [vmem:[#allocation3 + $0xf8] sm:$0xf] %vm7194, %v7666
    %7696 = vst.msk [vmem:[#allocation3 + $0x10c] sm:$0x7] %vm7208, %v7668
    %v7697 = vld [vmem:[#allocation7 + $0x8] sm:$0xf]
    %v7698 = vld [vmem:[#allocation7 + $0xc] sm:$0xf]
    %v7699 = vld [vmem:[#allocation7 + $0x10] sm:$0xf]
    %v7700 = vld [vmem:[#allocation7 + $0x14] sm:$0xf]
    %v7701 = vld [vmem:[#allocation7 + $0x18] sm:$0xf]
    %v7702 = vld [vmem:[#allocation7 + $0x1c] sm:$0xf]
    %v7703 = vld [vmem:[#allocation7 + $0x20] sm:$0xf]
    %v7704 = vld [vmem:[#allocation7 + $0x24] sm:$0xf]
    %v7705 = vld [vmem:[#allocation7 + $0x28] sm:$0xf]
    %v7706 = vld [vmem:[#allocation7 + $0x2c] sm:$0xf]
    %v7707 = vld [vmem:[#allocation7 + $0x30] sm:$0xf]
    %v7708 = vld [vmem:[#allocation7 + $0x34] sm:$0xf]
    %v7709 = vld [vmem:[#allocation7 + $0x38] sm:$0xf]
    %v7710 = vld [vmem:[#allocation7 + $0x3c] sm:$0x7]
    %7711 = vst.msk [vmem:[#allocation3 + $0xc] sm:$0xf] %vm6843, %v7697
    %7712 = vst.msk [vmem:[#allocation3 + $0x20] sm:$0xf] %vm6843, %v7698
    %7713 = vst.msk [vmem:[#allocation3 + $0x34] sm:$0xf] %vm6843, %v7699
    %7714 = vst.msk [vmem:[#allocation3 + $0x48] sm:$0xf] %vm6843, %v7700
    %7715 = vst.msk [vmem:[#allocation3 + $0x5c] sm:$0xf] %vm6843, %v7701
    %7716 = vst.msk [vmem:[#allocation3 + $0x70] sm:$0xf] %vm6843, %v7702
    %7717 = vst.msk [vmem:[#allocation3 + $0x84] sm:$0xf] %vm6843, %v7703
    %7718 = vst.msk [vmem:[#allocation3 + $0x98] sm:$0xf] %vm6843, %v7704
    %7719 = vst.msk [vmem:[#allocation3 + $0xac] sm:$0xf] %vm6843, %v7705
    %7720 = vst.msk [vmem:[#allocation3 + $0xc0] sm:$0xf] %vm6843, %v7706
    %7721 = vst.msk [vmem:[#allocation3 + $0xd4] sm:$0xf] %vm6843, %v7707
    %7722 = vst.msk [vmem:[#allocation3 + $0xe8] sm:$0xf] %vm6843, %v7708
    %7723 = vst.msk [vmem:[#allocation3 + $0xfc] sm:$0xf] %vm6843, %v7709
    %7724 = vst.msk [vmem:[#allocation3 + $0x110] sm:$0x7] %vm6997, %v7710
    %v7725 = vld [vmem:[#allocation7 + $0x8] sm:$0xf]
    %v7726 = vld [vmem:[#allocation7 + $0xc] sm:$0xf]
    %v7727 = vld [vmem:[#allocation7 + $0x10] sm:$0xf]
    %v7728 = vld [vmem:[#allocation7 + $0x14] sm:$0xf]
    %v7729 = vld [vmem:[#allocation7 + $0x18] sm:$0xf]
    %v7730 = vld [vmem:[#allocation7 + $0x1c] sm:$0xf]
    %v7731 = vld [vmem:[#allocation7 + $0x20] sm:$0xf]
    %v7732 = vld [vmem:[#allocation7 + $0x24] sm:$0xf]
    %v7733 = vld [vmem:[#allocation7 + $0x28] sm:$0xf]
    %v7734 = vld [vmem:[#allocation7 + $0x2c] sm:$0xf]
    %v7735 = vld [vmem:[#allocation7 + $0x30] sm:$0xf]
    %v7736 = vld [vmem:[#allocation7 + $0x34] sm:$0xf]
    %v7737 = vld [vmem:[#allocation7 + $0x38] sm:$0xf]
    %v7738 = vld [vmem:[#allocation7 + $0x3c] sm:$0xf]
    %v7740 = vshrl.u32 %v7725, 16
    %v7742 = vrot.slane %v7740, 4
    %v7743 = vshll.u32 %v7725, 16
    %v7745 = vrot.slane %v7743, 5
    %v7746 = vor.u32 %v7742, %v7745
    %v7747 = vrot.slane %v7746, 4
    %v7749 = vshll.u32 %v7726, 16
    %v7751 = vrot.slane %v7749, 5
    %v7752 = vsel %vm214, %v7747, %v7751
    %v7753 = vshrl.u32 %v7726, 16
    %v7755 = vrot.slane %v7753, 4
    %v7756 = vor.u32 %v7755, %v7751
    %v7757 = vrot.slane %v7756, 4
    %v7759 = vshll.u32 %v7727, 16
    %v7761 = vrot.slane %v7759, 5
    %v7762 = vsel %vm214, %v7757, %v7761
    %v7763 = vshrl.u32 %v7727, 16
    %v7765 = vrot.slane %v7763, 4
    %v7766 = vor.u32 %v7765, %v7761
    %v7767 = vrot.slane %v7766, 4
    %v7769 = vshll.u32 %v7728, 16
    %v7771 = vrot.slane %v7769, 5
    %v7772 = vsel %vm214, %v7767, %v7771
    %v7773 = vshrl.u32 %v7728, 16
    %v7775 = vrot.slane %v7773, 4
    %v7776 = vor.u32 %v7775, %v7771
    %v7777 = vrot.slane %v7776, 4
    %v7779 = vshll.u32 %v7729, 16
    %v7781 = vrot.slane %v7779, 5
    %v7782 = vsel %vm214, %v7777, %v7781
    %v7783 = vshrl.u32 %v7729, 16
    %v7785 = vrot.slane %v7783, 4
    %v7786 = vor.u32 %v7785, %v7781
    %v7787 = vrot.slane %v7786, 4
    %v7789 = vshll.u32 %v7730, 16
    %v7791 = vrot.slane %v7789, 5
    %v7792 = vsel %vm214, %v7787, %v7791
    %v7793 = vshrl.u32 %v7730, 16
    %v7795 = vrot.slane %v7793, 4
    %v7796 = vor.u32 %v7795, %v7791
    %v7797 = vrot.slane %v7796, 4
    %v7799 = vshll.u32 %v7731, 16
    %v7801 = vrot.slane %v7799, 5
    %v7802 = vsel %vm214, %v7797, %v7801
    %v7803 = vshrl.u32 %v7731, 16
    %v7805 = vrot.slane %v7803, 4
    %v7806 = vor.u32 %v7805, %v7801
    %v7807 = vrot.slane %v7806, 4
    %v7809 = vshll.u32 %v7732, 16
    %v7811 = vrot.slane %v7809, 5
    %v7812 = vsel %vm214, %v7807, %v7811
    %v7813 = vshrl.u32 %v7732, 16
    %v7815 = vrot.slane %v7813, 4
    %v7816 = vor.u32 %v7815, %v7811
    %v7817 = vrot.slane %v7816, 4
    %v7819 = vshll.u32 %v7733, 16
    %v7821 = vrot.slane %v7819, 5
    %v7822 = vsel %vm214, %v7817, %v7821
    %v7823 = vshrl.u32 %v7733, 16
    %v7825 = vrot.slane %v7823, 4
    %v7826 = vor.u32 %v7825, %v7821
    %v7827 = vrot.slane %v7826, 4
    %v7829 = vshll.u32 %v7734, 16
    %v7831 = vrot.slane %v7829, 5
    %v7832 = vsel %vm214, %v7827, %v7831
    %v7833 = vshrl.u32 %v7734, 16
    %v7835 = vrot.slane %v7833, 4
    %v7836 = vor.u32 %v7835, %v7831
    %v7837 = vrot.slane %v7836, 4
    %v7839 = vshll.u32 %v7735, 16
    %v7841 = vrot.slane %v7839, 5
    %v7842 = vsel %vm214, %v7837, %v7841
    %v7843 = vshrl.u32 %v7735, 16
    %v7845 = vrot.slane %v7843, 4
    %v7846 = vor.u32 %v7845, %v7841
    %v7847 = vrot.slane %v7846, 4
    %v7849 = vshll.u32 %v7736, 16
    %v7851 = vrot.slane %v7849, 5
    %v7852 = vsel %vm214, %v7847, %v7851
    %v7853 = vshrl.u32 %v7736, 16
    %v7855 = vrot.slane %v7853, 4
    %v7856 = vor.u32 %v7855, %v7851
    %v7857 = vrot.slane %v7856, 4
    %v7859 = vshll.u32 %v7737, 16
    %v7861 = vrot.slane %v7859, 5
    %v7862 = vsel %vm214, %v7857, %v7861
    %v7863 = vshrl.u32 %v7737, 16
    %v7865 = vrot.slane %v7863, 4
    %v7866 = vor.u32 %v7865, %v7861
    %v7867 = vrot.slane %v7866, 4
    %v7869 = vshll.u32 %v7738, 16
    %v7871 = vrot.slane %v7869, 5
    %v7872 = vsel %vm214, %v7867, %v7871
    %v7873 = vshrl.u32 %v7738, 16
    %v7875 = vrot.slane %v7873, 4
    %v7876 = vor.u32 %v7875, %v7871
    %v7877 = vrot.slane %v7876, 4
    %7878 = vrot.lane.b32.xlu0 %v7752, 64
    %v7879 = vpop.permute.xlu0 %7878
    %7880 = vrot.lane.b32.xlu0 %v7762, 64
    %v7881 = vpop.permute.xlu0 %7880
    %7882 = vrot.lane.b32.xlu0 %v7772, 64
    %v7883 = vpop.permute.xlu0 %7882
    %7884 = vrot.lane.b32.xlu0 %v7782, 64
    %v7885 = vpop.permute.xlu0 %7884
    %7886 = vrot.lane.b32.xlu0 %v7792, 64
    %v7887 = vpop.permute.xlu0 %7886
    %7888 = vrot.lane.b32.xlu0 %v7802, 64
    %v7889 = vpop.permute.xlu0 %7888
    %7890 = vrot.lane.b32.xlu0 %v7812, 64
    %v7891 = vpop.permute.xlu0 %7890
    %7892 = vrot.lane.b32.xlu0 %v7822, 64
    %v7893 = vpop.permute.xlu0 %7892
    %7894 = vrot.lane.b32.xlu0 %v7832, 64
    %v7895 = vpop.permute.xlu0 %7894
    %7896 = vrot.lane.b32.xlu0 %v7842, 64
    %v7897 = vpop.permute.xlu0 %7896
    %7898 = vrot.lane.b32.xlu0 %v7852, 64
    %v7899 = vpop.permute.xlu0 %7898
    %7900 = vrot.lane.b32.xlu0 %v7862, 64
    %v7901 = vpop.permute.xlu0 %7900
    %7902 = vrot.lane.b32.xlu0 %v7872, 64
    %v7903 = vpop.permute.xlu0 %7902
    %7904 = vrot.lane.b32.xlu0 %v7877, 64
    %v7905 = vpop.permute.xlu0 %7904
    %7920 = vst.msk [vmem:[#allocation3 + $0xc] sm:$0xf] %vm7194, %v7879
    %7921 = vst.msk [vmem:[#allocation3 + $0x20] sm:$0xf] %vm7194, %v7881
    %7922 = vst.msk [vmem:[#allocation3 + $0x34] sm:$0xf] %vm7194, %v7883
    %7923 = vst.msk [vmem:[#allocation3 + $0x48] sm:$0xf] %vm7194, %v7885
    %7924 = vst.msk [vmem:[#allocation3 + $0x5c] sm:$0xf] %vm7194, %v7887
    %7925 = vst.msk [vmem:[#allocation3 + $0x70] sm:$0xf] %vm7194, %v7889
    %7926 = vst.msk [vmem:[#allocation3 + $0x84] sm:$0xf] %vm7194, %v7891
    %7927 = vst.msk [vmem:[#allocation3 + $0x98] sm:$0xf] %vm7194, %v7893
    %7928 = vst.msk [vmem:[#allocation3 + $0xac] sm:$0xf] %vm7194, %v7895
    %7929 = vst.msk [vmem:[#allocation3 + $0xc0] sm:$0xf] %vm7194, %v7897
    %7930 = vst.msk [vmem:[#allocation3 + $0xd4] sm:$0xf] %vm7194, %v7899
    %7931 = vst.msk [vmem:[#allocation3 + $0xe8] sm:$0xf] %vm7194, %v7901
    %7932 = vst.msk [vmem:[#allocation3 + $0xfc] sm:$0xf] %vm7194, %v7903
    %7933 = vst.msk [vmem:[#allocation3 + $0x110] sm:$0x7] %vm7208, %v7905
    %v7934 = vld [vmem:[#allocation7 + $0x8] sm:$0xe]
    %v7935 = vld [vmem:[#allocation7 + $0xc] sm:$0xf]
    %v7936 = vld [vmem:[#allocation7 + $0x10] sm:$0xf]
    %v7937 = vld [vmem:[#allocation7 + $0x14] sm:$0xf]
    %v7938 = vld [vmem:[#allocation7 + $0x18] sm:$0xf]
    %v7939 = vld [vmem:[#allocation7 + $0x1c] sm:$0xf]
    %v7940 = vld [vmem:[#allocation7 + $0x20] sm:$0xf]
    %v7941 = vld [vmem:[#allocation7 + $0x24] sm:$0xf]
    %v7942 = vld [vmem:[#allocation7 + $0x28] sm:$0xf]
    %v7943 = vld [vmem:[#allocation7 + $0x2c] sm:$0xf]
    %v7944 = vld [vmem:[#allocation7 + $0x30] sm:$0xf]
    %v7945 = vld [vmem:[#allocation7 + $0x34] sm:$0xf]
    %v7946 = vld [vmem:[#allocation7 + $0x38] sm:$0xf]
    %v7947 = vld [vmem:[#allocation7 + $0x3c] sm:$0xf]
    %v7962 = vrot.slane %v7934, 5
    %v7963 = vrot.slane %v7962, 4
    %v7964 = vrot.slane %v7935, 5
    %v7965 = vsel %vm1178, %v7963, %v7964
    %v7966 = vrot.slane %v7964, 4
    %v7967 = vrot.slane %v7936, 5
    %v7968 = vsel %vm1178, %v7966, %v7967
    %v7969 = vrot.slane %v7967, 4
    %v7970 = vrot.slane %v7937, 5
    %v7971 = vsel %vm1178, %v7969, %v7970
    %v7972 = vrot.slane %v7970, 4
    %v7973 = vrot.slane %v7938, 5
    %v7974 = vsel %vm1178, %v7972, %v7973
    %v7975 = vrot.slane %v7973, 4
    %v7976 = vrot.slane %v7939, 5
    %v7977 = vsel %vm1178, %v7975, %v7976
    %v7978 = vrot.slane %v7976, 4
    %v7979 = vrot.slane %v7940, 5
    %v7980 = vsel %vm1178, %v7978, %v7979
    %v7981 = vrot.slane %v7979, 4
    %v7982 = vrot.slane %v7941, 5
    %v7983 = vsel %vm1178, %v7981, %v7982
    %v7984 = vrot.slane %v7982, 4
    %v7985 = vrot.slane %v7942, 5
    %v7986 = vsel %vm1178, %v7984, %v7985
    %v7987 = vrot.slane %v7985, 4
    %v7988 = vrot.slane %v7943, 5
    %v7989 = vsel %vm1178, %v7987, %v7988
    %v7990 = vrot.slane %v7988, 4
    %v7991 = vrot.slane %v7944, 5
    %v7992 = vsel %vm1178, %v7990, %v7991
    %v7993 = vrot.slane %v7991, 4
    %v7994 = vrot.slane %v7945, 5
    %v7995 = vsel %vm1178, %v7993, %v7994
    %v7996 = vrot.slane %v7994, 4
    %v7997 = vrot.slane %v7946, 5
    %v7998 = vsel %vm1178, %v7996, %v7997
    %v7999 = vrot.slane %v7997, 4
    %v8000 = vrot.slane %v7947, 5
    %v8001 = vsel %vm1178, %v7999, %v8000
    %v8002 = vrot.slane %v8000, 4
    %8017 = vst.msk [vmem:[#allocation3 + $0x10] sm:$0xf] %vm6843, %v7965
    %8018 = vst.msk [vmem:[#allocation3 + $0x24] sm:$0xf] %vm6843, %v7968
    %8019 = vst.msk [vmem:[#allocation3 + $0x38] sm:$0xf] %vm6843, %v7971
    %8020 = vst.msk [vmem:[#allocation3 + $0x4c] sm:$0xf] %vm6843, %v7974
    %8021 = vst.msk [vmem:[#allocation3 + $0x60] sm:$0xf] %vm6843, %v7977
    %8022 = vst.msk [vmem:[#allocation3 + $0x74] sm:$0xf] %vm6843, %v7980
    %8023 = vst.msk [vmem:[#allocation3 + $0x88] sm:$0xf] %vm6843, %v7983
    %8024 = vst.msk [vmem:[#allocation3 + $0x9c] sm:$0xf] %vm6843, %v7986
    %8025 = vst.msk [vmem:[#allocation3 + $0xb0] sm:$0xf] %vm6843, %v7989
    %8026 = vst.msk [vmem:[#allocation3 + $0xc4] sm:$0xf] %vm6843, %v7992
    %8027 = vst.msk [vmem:[#allocation3 + $0xd8] sm:$0xf] %vm6843, %v7995
    %8028 = vst.msk [vmem:[#allocation3 + $0xec] sm:$0xf] %vm6843, %v7998
    %8029 = vst.msk [vmem:[#allocation3 + $0x100] sm:$0xf] %vm6843, %v8001
    %8030 = vst.msk [vmem:[#allocation3 + $0x114] sm:$0x7] %vm6997, %v8002
    %v8031 = vld [vmem:[#allocation3] sm:$0xff]
    %v8032 = vld [vmem:[#allocation3 + $0x8] sm:$0xff]
    %v8033 = vld [vmem:[#allocation3 + $0x10] sm:$0xf]
    %v8034 = vld [vmem:[#allocation3 + $0x14] sm:$0xff]
    %v8035 = vld [vmem:[#allocation3 + $0x1c] sm:$0xff]
    %v8036 = vld [vmem:[#allocation3 + $0x24] sm:$0xf]
    %v8037 = vld [vmem:[#allocation3 + $0x28] sm:$0xff]
    %v8038 = vld [vmem:[#allocation3 + $0x30] sm:$0xff]
    %v8039 = vld [vmem:[#allocation3 + $0x38] sm:$0xf]
    %v8040 = vld [vmem:[#allocation3 + $0x3c] sm:$0xff]
    %v8041 = vld [vmem:[#allocation3 + $0x44] sm:$0xff]
    %v8042 = vld [vmem:[#allocation3 + $0x4c] sm:$0xf]
    %v8043 = vld [vmem:[#allocation3 + $0x50] sm:$0xff]
    %v8044 = vld [vmem:[#allocation3 + $0x58] sm:$0xff]
    %v8045 = vld [vmem:[#allocation3 + $0x60] sm:$0xf]
    %v8046 = vld [vmem:[#allocation3 + $0x64] sm:$0xff]
    %v8047 = vld [vmem:[#allocation3 + $0x6c] sm:$0xff]
    %v8048 = vld [vmem:[#allocation3 + $0x74] sm:$0xf]
    %v8049 = vld [vmem:[#allocation3 + $0x78] sm:$0xff]
    %v8050 = vld [vmem:[#allocation3 + $0x80] sm:$0xff]
    %v8051 = vld [vmem:[#allocation3 + $0x88] sm:$0xf]
    %v8052 = vld [vmem:[#allocation3 + $0x8c] sm:$0xff]
    %v8053 = vld [vmem:[#allocation3 + $0x94] sm:$0xff]
    %v8054 = vld [vmem:[#allocation3 + $0x9c] sm:$0xf]
    %v8055 = vld [vmem:[#allocation3 + $0xa0] sm:$0xff]
    %v8056 = vld [vmem:[#allocation3 + $0xa8] sm:$0xff]
    %v8057 = vld [vmem:[#allocation3 + $0xb0] sm:$0xf]
    %v8058 = vld [vmem:[#allocation3 + $0xb4] sm:$0xff]
    %v8059 = vld [vmem:[#allocation3 + $0xbc] sm:$0xff]
    %v8060 = vld [vmem:[#allocation3 + $0xc4] sm:$0xf]
    %v8061 = vld [vmem:[#allocation3 + $0xc8] sm:$0xff]
    %v8062 = vld [vmem:[#allocation3 + $0xd0] sm:$0xff]
    %v8063 = vld [vmem:[#allocation3 + $0xd8] sm:$0xf]
    %v8064 = vld [vmem:[#allocation3 + $0xdc] sm:$0xff]
    %v8065 = vld [vmem:[#allocation3 + $0xe4] sm:$0xff]
    %v8066 = vld [vmem:[#allocation3 + $0xec] sm:$0xf]
    %v8067 = vld [vmem:[#allocation3 + $0xf0] sm:$0xff]
    %v8068 = vld [vmem:[#allocation3 + $0xf8] sm:$0xff]
    %v8069 = vld [vmem:[#allocation3 + $0x100] sm:$0xf]
    %v8070 = vld [vmem:[#allocation3 + $0x104] sm:$0x77]
    %v8071 = vld [vmem:[#allocation3 + $0x10c] sm:$0x77]
    %v8072 = vld [vmem:[#allocation3 + $0x114] sm:$0x7]
    %v8073 = vld [vmem:[%s2] sm:$0xf]
    %v8074 = vld [vmem:[%s2 + $0x4] sm:$0xf]
    %v8075 = vld [vmem:[%s2 + $0x8] sm:$0xf]
    %v8076 = vld [vmem:[%s2 + $0xc] sm:$0xf]
    %v8077 = vld [vmem:[%s2 + $0x10] sm:$0xf]
    %v8078 = vld [vmem:[%s2 + $0x14] sm:$0xf]
    %v8079 = vld [vmem:[%s2 + $0x18] sm:$0xf]
    %v8080 = vld [vmem:[%s2 + $0x1c] sm:$0xf]
    %v8081 = vld [vmem:[%s2 + $0x20] sm:$0xf]
    %v8082 = vld [vmem:[%s2 + $0x24] sm:$0xf]
    %v8083 = vld [vmem:[%s2 + $0x28] sm:$0xf]
    %v8084 = vld [vmem:[%s2 + $0x2c] sm:$0xf]
    %v8085 = vld [vmem:[%s2 + $0x30] sm:$0xf]
    %v8086 = vld [vmem:[%s2 + $0x34] sm:$0xf]
    %v8087 = vld [vmem:[%s2 + $0x38] sm:$0xf]
    %v8088 = vld [vmem:[%s2 + $0x3c] sm:$0xf]
    %v8089 = vld [vmem:[%s2 + $0x40] sm:$0xf]
    %v8090 = vld [vmem:[%s2 + $0x44] sm:$0xf]
    %v8091 = vld [vmem:[%s2 + $0x48] sm:$0xf]
    %v8092 = vld [vmem:[%s2 + $0x4c] sm:$0xf]
    %v8093 = vld [vmem:[%s2 + $0x50] sm:$0xf]
    %v8094 = vld [vmem:[%s2 + $0x54] sm:$0xf]
    %v8095 = vld [vmem:[%s2 + $0x58] sm:$0xf]
    %v8096 = vld [vmem:[%s2 + $0x5c] sm:$0xf]
    %v8097 = vld [vmem:[%s2 + $0x60] sm:$0xf]
    %v8098 = vld [vmem:[%s2 + $0x64] sm:$0xf]
    %v8099 = vld [vmem:[%s2 + $0x68] sm:$0xf]
    %v8100 = vld [vmem:[%s2 + $0x6c] sm:$0xf]
    %v8101 = vld [vmem:[%s2 + $0x70] sm:$0xf]
    %v8102 = vld [vmem:[%s2 + $0x74] sm:$0xf]
    %v8103 = vld [vmem:[%s2 + $0x78] sm:$0xf]
    %v8104 = vld [vmem:[%s2 + $0x7c] sm:$0xf]
    %v8105 = vld [vmem:[%s2 + $0x80] sm:$0xf]
    %v8106 = vld [vmem:[%s2 + $0x84] sm:$0xf]
    %v8107 = vld [vmem:[%s2 + $0x88] sm:$0xf]
    %v8108 = vld [vmem:[%s2 + $0x8c] sm:$0xf]
    %v8109 = vld [vmem:[%s2 + $0x90] sm:$0xf]
    %v8110 = vld [vmem:[%s2 + $0x94] sm:$0xf]
    %v8111 = vld [vmem:[%s2 + $0x98] sm:$0xf]
    %v8112 = vld [vmem:[%s2 + $0x9c] sm:$0xf]
    %v8113 = vld [vmem:[%s2 + $0xa0] sm:$0xf]
    %v8114 = vld [vmem:[%s2 + $0xa4] sm:$0xf]
    %v8115 = vld [vmem:[%s2 + $0xa8] sm:$0xf]
    %v8116 = vld [vmem:[%s2 + $0xac] sm:$0xf]
    %v8117 = vld [vmem:[%s2 + $0xb0] sm:$0xf]
    %v8118 = vld [vmem:[%s2 + $0xb4] sm:$0xf]
    %v8119 = vld [vmem:[%s2 + $0xb8] sm:$0xf]
    %v8120 = vld [vmem:[%s2 + $0xbc] sm:$0xf]
    %v8121 = vld [vmem:[%s2 + $0xc0] sm:$0xf]
    %v8122 = vld [vmem:[%s2 + $0xc4] sm:$0xf]
    %v8123 = vld [vmem:[%s2 + $0xc8] sm:$0xf]
    %v8124 = vld [vmem:[%s2 + $0xcc] sm:$0xf]
    %v8125 = vld [vmem:[%s2 + $0xd0] sm:$0xf]
    %v8126 = vld [vmem:[%s2 + $0xd4] sm:$0xf]
    %v8127 = vld [vmem:[%s2 + $0xd8] sm:$0xf]
    %v8128 = vld [vmem:[%s2 + $0xdc] sm:$0xf]
    %v8129 = vld [vmem:[%s2 + $0xe0] sm:$0xf]
    %v8130 = vld [vmem:[%s2 + $0xe4] sm:$0xf]
    %v8131 = vld [vmem:[%s2 + $0xe8] sm:$0xf]
    %v8132 = vld [vmem:[%s2 + $0xec] sm:$0xf]
    %v8133 = vld [vmem:[%s2 + $0xf0] sm:$0xf]
    %v8134 = vld [vmem:[%s2 + $0xf4] sm:$0xf]
    %v8135 = vld [vmem:[%s2 + $0xf8] sm:$0xf]
    %v8136 = vld [vmem:[%s2 + $0xfc] sm:$0xf]
    %v8137 = vld [vmem:[%s2 + $0x100] sm:$0xf]
    %v8138 = vld [vmem:[%s2 + $0x104] sm:$0xf]
    %v8139 = vld [vmem:[%s2 + $0x108] sm:$0xf]
    %v8140 = vld [vmem:[%s2 + $0x10c] sm:$0xf]
    %v8141 = vld [vmem:[%s2 + $0x110] sm:$0xf]
    %v8142 = vld [vmem:[%s2 + $0x114] sm:$0xf]
    %v8143 = vld [vmem:[%s2 + $0x118] sm:$0xf]
    %v8144 = vld [vmem:[%s2 + $0x11c] sm:$0xf]
    %v8187 = vunpack.c.l.b16 %v8031
    %v8188 = vunpack.c.h.b16 %v8031
    %v8189 = vunpack.c.l.b16 %v8032
    %v8190 = vunpack.c.h.b16 %v8032
    %v8191 = vunpack.c.l.b16 %v8033
    %v8192 = vunpack.c.l.b16 %v8034
    %v8193 = vunpack.c.h.b16 %v8034
    %v8194 = vunpack.c.l.b16 %v8035
    %v8195 = vunpack.c.h.b16 %v8035
    %v8196 = vunpack.c.l.b16 %v8036
    %v8197 = vunpack.c.l.b16 %v8037
    %v8198 = vunpack.c.h.b16 %v8037
    %v8199 = vunpack.c.l.b16 %v8038
    %v8200 = vunpack.c.h.b16 %v8038
    %v8201 = vunpack.c.l.b16 %v8039
    %v8202 = vunpack.c.l.b16 %v8040
    %v8203 = vunpack.c.h.b16 %v8040
    %v8204 = vunpack.c.l.b16 %v8041
    %v8205 = vunpack.c.h.b16 %v8041
    %v8206 = vunpack.c.l.b16 %v8042
    %v8207 = vunpack.c.l.b16 %v8043
    %v8208 = vunpack.c.h.b16 %v8043
    %v8209 = vunpack.c.l.b16 %v8044
    %v8210 = vunpack.c.h.b16 %v8044
    %v8211 = vunpack.c.l.b16 %v8045
    %v8212 = vunpack.c.l.b16 %v8046
    %v8213 = vunpack.c.h.b16 %v8046
    %v8214 = vunpack.c.l.b16 %v8047
    %v8215 = vunpack.c.h.b16 %v8047
    %v8216 = vunpack.c.l.b16 %v8048
    %v8217 = vunpack.c.l.b16 %v8049
    %v8218 = vunpack.c.h.b16 %v8049
    %v8219 = vunpack.c.l.b16 %v8050
    %v8220 = vunpack.c.h.b16 %v8050
    %v8221 = vunpack.c.l.b16 %v8051
    %v8222 = vunpack.c.l.b16 %v8052
    %v8223 = vunpack.c.h.b16 %v8052
    %v8224 = vunpack.c.l.b16 %v8053
    %v8225 = vunpack.c.h.b16 %v8053
    %v8226 = vunpack.c.l.b16 %v8054
    %v8227 = vunpack.c.l.b16 %v8055
    %v8228 = vunpack.c.h.b16 %v8055
    %v8229 = vunpack.c.l.b16 %v8056
    %v8230 = vunpack.c.h.b16 %v8056
    %v8231 = vunpack.c.l.b16 %v8057
    %v8232 = vunpack.c.l.b16 %v8058
    %v8233 = vunpack.c.h.b16 %v8058
    %v8234 = vunpack.c.l.b16 %v8059
    %v8235 = vunpack.c.h.b16 %v8059
    %v8236 = vunpack.c.l.b16 %v8060
    %v8237 = vunpack.c.l.b16 %v8061
    %v8238 = vunpack.c.h.b16 %v8061
    %v8239 = vunpack.c.l.b16 %v8062
    %v8240 = vunpack.c.h.b16 %v8062
    %v8241 = vunpack.c.l.b16 %v8063
    %v8242 = vunpack.c.l.b16 %v8064
    %v8243 = vunpack.c.h.b16 %v8064
    %v8244 = vunpack.c.l.b16 %v8065
    %v8245 = vunpack.c.h.b16 %v8065
    %v8246 = vunpack.c.l.b16 %v8066
    %v8247 = vunpack.c.l.b16 %v8067
    %v8248 = vunpack.c.h.b16 %v8067
    %v8249 = vunpack.c.l.b16 %v8068
    %v8250 = vunpack.c.h.b16 %v8068
    %v8251 = vunpack.c.l.b16 %v8069
    %v8252 = vunpack.c.l.b16 %v8070
    %v8253 = vunpack.c.h.b16 %v8070
    %v8254 = vunpack.c.l.b16 %v8071
    %v8255 = vunpack.c.h.b16 %v8071
    %v8256 = vunpack.c.l.b16 %v8072
    %v8257 = vpack.c.b16 %v8192, %v8187
    %v8258 = vpack.c.b16 %v8193, %v8188
    %v8259 = vpack.c.b16 %v8194, %v8189
    %v8260 = vpack.c.b16 %v8195, %v8190
    %v8261 = vpack.c.b16 %v8196, %v8191
    %v8262 = vpack.c.b16 %v8202, %v8197
    %v8263 = vpack.c.b16 %v8203, %v8198
    %v8264 = vpack.c.b16 %v8204, %v8199
    %v8265 = vpack.c.b16 %v8205, %v8200
    %v8266 = vpack.c.b16 %v8206, %v8201
    %v8267 = vpack.c.b16 %v8212, %v8207
    %v8268 = vpack.c.b16 %v8213, %v8208
    %v8269 = vpack.c.b16 %v8214, %v8209
    %v8270 = vpack.c.b16 %v8215, %v8210
    %v8271 = vpack.c.b16 %v8216, %v8211
    %v8272 = vpack.c.b16 %v8222, %v8217
    %v8273 = vpack.c.b16 %v8223, %v8218
    %v8274 = vpack.c.b16 %v8224, %v8219
    %v8275 = vpack.c.b16 %v8225, %v8220
    %v8276 = vpack.c.b16 %v8226, %v8221
    %v8277 = vpack.c.b16 %v8232, %v8227
    %v8278 = vpack.c.b16 %v8233, %v8228
    %v8279 = vpack.c.b16 %v8234, %v8229
    %v8280 = vpack.c.b16 %v8235, %v8230
    %v8281 = vpack.c.b16 %v8236, %v8231
    %v8282 = vpack.c.b16 %v8242, %v8237
    %v8283 = vpack.c.b16 %v8243, %v8238
    %v8284 = vpack.c.b16 %v8244, %v8239
    %v8285 = vpack.c.b16 %v8245, %v8240
    %v8286 = vpack.c.b16 %v8246, %v8241
    %v8287 = vpack.c.b16 %v8252, %v8247
    %v8288 = vpack.c.b16 %v8253, %v8248
    %v8289 = vpack.c.b16 %v8254, %v8249
    %v8290 = vpack.c.b16 %v8255, %v8250
    %v8291 = vpack.c.b16 %v8256, %v8251
    %v8392 = vunpack.c.l.b16 %v8073
    %v8393 = vunpack.c.l.b16 %v8074
    %v8394 = vunpack.c.l.b16 %v8075
    %v8395 = vunpack.c.l.b16 %v8076
    %v8396 = vunpack.c.l.b16 %v8077
    %v8397 = vunpack.c.l.b16 %v8078
    %v8398 = vunpack.c.l.b16 %v8079
    %v8399 = vunpack.c.l.b16 %v8080
    %v8400 = vunpack.c.l.b16 %v8081
    %v8401 = vunpack.c.l.b16 %v8082
    %v8402 = vunpack.c.l.b16 %v8083
    %v8403 = vunpack.c.l.b16 %v8084
    %v8404 = vunpack.c.l.b16 %v8085
    %v8405 = vunpack.c.l.b16 %v8086
    %v8406 = vunpack.c.l.b16 %v8087
    %v8407 = vunpack.c.l.b16 %v8088
    %v8408 = vunpack.c.l.b16 %v8089
    %v8409 = vunpack.c.l.b16 %v8090
    %v8410 = vunpack.c.l.b16 %v8091
    %v8411 = vunpack.c.l.b16 %v8092
    %v8412 = vunpack.c.l.b16 %v8093
    %v8413 = vunpack.c.l.b16 %v8094
    %v8414 = vunpack.c.l.b16 %v8095
    %v8415 = vunpack.c.l.b16 %v8096
    %v8416 = vunpack.c.l.b16 %v8097
    %v8417 = vunpack.c.l.b16 %v8098
    %v8418 = vunpack.c.l.b16 %v8099
    %v8419 = vunpack.c.l.b16 %v8100
    %v8420 = vunpack.c.l.b16 %v8101
    %v8421 = vunpack.c.l.b16 %v8102
    %v8422 = vunpack.c.l.b16 %v8103
    %v8423 = vunpack.c.l.b16 %v8104
    %v8424 = vunpack.c.l.b16 %v8105
    %v8425 = vunpack.c.l.b16 %v8106
    %v8426 = vunpack.c.l.b16 %v8107
    %v8427 = vunpack.c.l.b16 %v8108
    %v8428 = vunpack.c.l.b16 %v8109
    %v8429 = vunpack.c.l.b16 %v8110
    %v8430 = vunpack.c.l.b16 %v8111
    %v8431 = vunpack.c.l.b16 %v8112
    %v8432 = vunpack.c.l.b16 %v8113
    %v8433 = vunpack.c.l.b16 %v8114
    %v8434 = vunpack.c.l.b16 %v8115
    %v8435 = vunpack.c.l.b16 %v8116
    %v8436 = vunpack.c.l.b16 %v8117
    %v8437 = vunpack.c.l.b16 %v8118
    %v8438 = vunpack.c.l.b16 %v8119
    %v8439 = vunpack.c.l.b16 %v8120
    %v8440 = vunpack.c.l.b16 %v8121
    %v8441 = vunpack.c.l.b16 %v8122
    %v8442 = vunpack.c.l.b16 %v8123
    %v8443 = vunpack.c.l.b16 %v8124
    %v8444 = vunpack.c.l.b16 %v8125
    %v8445 = vunpack.c.l.b16 %v8126
    %v8446 = vunpack.c.l.b16 %v8127
    %v8447 = vunpack.c.l.b16 %v8128
    %v8448 = vunpack.c.l.b16 %v8129
    %v8449 = vunpack.c.l.b16 %v8130
    %v8450 = vunpack.c.l.b16 %v8131
    %v8451 = vunpack.c.l.b16 %v8132
    %v8452 = vunpack.c.l.b16 %v8133
    %v8453 = vunpack.c.l.b16 %v8134
    %v8454 = vunpack.c.l.b16 %v8135
    %v8455 = vunpack.c.l.b16 %v8136
    %v8456 = vunpack.c.l.b16 %v8137
    %v8457 = vunpack.c.l.b16 %v8138
    %v8458 = vunpack.c.l.b16 %v8139
    %v8459 = vunpack.c.l.b16 %v8140
    %v8460 = vunpack.c.l.b16 %v8141
    %v8461 = vunpack.c.l.b16 %v8142
    %v8462 = vunpack.c.l.b16 %v8143
    %v8463 = vunpack.c.l.b16 %v8144
    %v8464 = vpack.c.b16 %v8393, %v8392
    %v8465 = vpack.c.b16 %v8395, %v8394
    %v8466 = vpack.c.b16 %v8397, %v8396
    %v8467 = vpack.c.b16 %v8399, %v8398
    %v8468 = vpack.c.b16 %v8401, %v8400
    %v8469 = vpack.c.b16 %v8403, %v8402
    %v8470 = vpack.c.b16 %v8405, %v8404
    %v8471 = vpack.c.b16 %v8407, %v8406
    %v8472 = vpack.c.b16 %v8409, %v8408
    %v8473 = vpack.c.b16 %v8411, %v8410
    %v8474 = vpack.c.b16 %v8413, %v8412
    %v8475 = vpack.c.b16 %v8415, %v8414
    %v8476 = vpack.c.b16 %v8417, %v8416
    %v8477 = vpack.c.b16 %v8419, %v8418
    %v8478 = vpack.c.b16 %v8421, %v8420
    %v8479 = vpack.c.b16 %v8423, %v8422
    %v8480 = vpack.c.b16 %v8425, %v8424
    %v8481 = vpack.c.b16 %v8427, %v8426
    %v8482 = vpack.c.b16 %v8429, %v8428
    %v8483 = vpack.c.b16 %v8431, %v8430
    %v8484 = vpack.c.b16 %v8433, %v8432
    %v8485 = vpack.c.b16 %v8435, %v8434
    %v8486 = vpack.c.b16 %v8437, %v8436
    %v8487 = vpack.c.b16 %v8439, %v8438
    %v8488 = vpack.c.b16 %v8441, %v8440
    %v8489 = vpack.c.b16 %v8443, %v8442
    %v8490 = vpack.c.b16 %v8445, %v8444
    %v8491 = vpack.c.b16 %v8447, %v8446
    %v8492 = vpack.c.b16 %v8449, %v8448
    %v8493 = vpack.c.b16 %v8451, %v8450
    %v8494 = vpack.c.b16 %v8453, %v8452
    %v8495 = vpack.c.b16 %v8455, %v8454
    %v8496 = vpack.c.b16 %v8457, %v8456
    %v8497 = vpack.c.b16 %v8459, %v8458
    %v8498 = vpack.c.b16 %v8461, %v8460
    %v8499 = vpack.c.b16 %v8463, %v8462
    %v8537 = vsel %vm6467, %v8261, 0
    %v8540 = vsel %vm6467, %v8266, 0
    %v8543 = vsel %vm6467, %v8271, 0
    %v8546 = vsel %vm6467, %v8276, 0
    %v8549 = vsel %vm6467, %v8281, 0
    %v8552 = vsel %vm6467, %v8286, 0
    %v8555 = vsel %vm6467, %v8291, 0
    %8557 = vmatprep.subr.bf16.mxu0 0
    %8558 = vmatpush1.bf16.msra.mxu0 %v8471
    %8559 = vmatprep.subr.bf16.mxu0 0
    %8560 = vmatpush1.bf16.msra.mxu0 %v8470
    %8561 = vmatprep.subr.bf16.mxu0 0
    %8562 = vmatpush1.bf16.msra.mxu0 %v8469
    %8563 = vmatprep.subr.bf16.mxu0 0
    %8564 = vmatpush1.bf16.msra.mxu0 %v8468
    %8565 = vmatprep.subr.bf16.mxu0 0
    %8566 = vmatpush1.bf16.msra.mxu0 %v8467
    %8567 = vmatprep.subr.bf16.mxu0 0
    %8568 = vmatpush1.bf16.msra.mxu0 %v8466
    %8569 = vmatprep.subr.bf16.mxu0 0
    %8570 = vmatpush1.bf16.msra.mxu0 %v8465
    %8571 = vmatprep.subr.bf16.mxu0 0
    %8572 = vmatpush1.bf16.msra.mxu0 %v8464
    %8573 = vmatprep.subr.bf16.mxu0 0
    %8574 = vmatpush2.bf16.msra.mxu0 %v8479
    %8575 = vmatprep.subr.bf16.mxu0 0
    %8576 = vmatpush2.bf16.msra.mxu0 %v8478
    %8577 = vmatprep.subr.bf16.mxu0 0
    %8578 = vmatpush2.bf16.msra.mxu0 %v8477
    %8579 = vmatprep.subr.bf16.mxu0 0
    %8580 = vmatpush2.bf16.msra.mxu0 %v8476
    %8581 = vmatprep.subr.bf16.mxu0 0
    %8582 = vmatpush2.bf16.msra.mxu0 %v8475
    %8583 = vmatprep.subr.bf16.mxu0 0
    %8584 = vmatpush2.bf16.msra.mxu0 %v8474
    %8585 = vmatprep.subr.bf16.mxu0 0
    %8586 = vmatpush2.bf16.msra.mxu0 %v8473
    %8587 = vmatprep.subr.bf16.mxu0 0
    %8588 = vmatpush2.bf16.msra.mxu0 %v8472
    %8589 = vmatprep.mubr.bf16.mxu0 %v8258
    %8590 = vmatmul.mubr.bf16.gmra.mxu0 %v8257
    %v8591 = vpop.f32.mrf.mxu0
    %v8592 = vadd.f32 0.0, %v8591
    %v8593 = vpop.f32.mrf.mxu0
    %v8594 = vpop.f32.mrf.mxu0
    %v8595 = vadd.f32 0.0, %v8594
    %v8596 = vpop.f32.mrf.mxu0
    %8597 = vmatprep.mubr.bf16.mxu0 %v8263
    %8598 = vmatmul.mubr.bf16.gmra.mxu0 %v8262
    %v8599 = vpop.f32.mrf.mxu0
    %v8600 = vadd.f32 0.0, %v8599
    %v8601 = vpop.f32.mrf.mxu0
    %v8602 = vpop.f32.mrf.mxu0
    %v8603 = vadd.f32 0.0, %v8602
    %v8604 = vpop.f32.mrf.mxu0
    %8605 = vmatprep.mubr.bf16.mxu0 %v8268
    %8606 = vmatmul.mubr.bf16.gmra.mxu0 %v8267
    %v8607 = vpop.f32.mrf.mxu0
    %v8608 = vadd.f32 0.0, %v8607
    %v8609 = vpop.f32.mrf.mxu0
    %v8610 = vpop.f32.mrf.mxu0
    %v8611 = vadd.f32 0.0, %v8610
    %v8612 = vpop.f32.mrf.mxu0
    %8613 = vmatprep.mubr.bf16.mxu0 %v8273
    %8614 = vmatmul.mubr.bf16.gmra.mxu0 %v8272
    %v8615 = vpop.f32.mrf.mxu0
    %v8616 = vadd.f32 0.0, %v8615
    %v8617 = vpop.f32.mrf.mxu0
    %v8618 = vpop.f32.mrf.mxu0
    %v8619 = vadd.f32 0.0, %v8618
    %v8620 = vpop.f32.mrf.mxu0
    %8621 = vmatprep.mubr.bf16.mxu0 %v8278
    %8622 = vmatmul.mubr.bf16.gmra.mxu0 %v8277
    %v8623 = vpop.f32.mrf.mxu0
    %v8624 = vadd.f32 0.0, %v8623
    %v8625 = vpop.f32.mrf.mxu0
    %v8626 = vpop.f32.mrf.mxu0
    %v8627 = vadd.f32 0.0, %v8626
    %v8628 = vpop.f32.mrf.mxu0
    %8629 = vmatprep.mubr.bf16.mxu0 %v8283
    %8630 = vmatmul.mubr.bf16.gmra.mxu0 %v8282
    %v8631 = vpop.f32.mrf.mxu0
    %v8632 = vadd.f32 0.0, %v8631
    %v8633 = vpop.f32.mrf.mxu0
    %v8634 = vpop.f32.mrf.mxu0
    %v8635 = vadd.f32 0.0, %v8634
    %v8636 = vpop.f32.mrf.mxu0
    %8637 = vmatprep.mubr.bf16.mxu0 %v8288
    %8638 = vmatmul.mubr.bf16.gmra.mxu0 %v8287
    %v8639 = vpop.f32.mrf.mxu0
    %v8640 = vadd.f32 0.0, %v8639
    %v8641 = vpop.f32.mrf.mxu0
    %v8642 = vpop.f32.mrf.mxu0
    %v8643 = vadd.f32 0.0, %v8642
    %v8644 = vpop.f32.mrf.mxu0
    %8645 = vdwg.mxu0
    %8646 = vmatprep.subr.bf16.mxu0 0
    %8647 = vmatpush1.bf16.msra.mxu0 %v8487
    %8648 = vmatprep.subr.bf16.mxu0 0
    %8649 = vmatpush1.bf16.msra.mxu0 %v8486
    %8650 = vmatprep.subr.bf16.mxu0 0
    %8651 = vmatpush1.bf16.msra.mxu0 %v8485
    %8652 = vmatprep.subr.bf16.mxu0 0
    %8653 = vmatpush1.bf16.msra.mxu0 %v8484
    %8654 = vmatprep.subr.bf16.mxu0 0
    %8655 = vmatpush1.bf16.msra.mxu0 %v8483
    %8656 = vmatprep.subr.bf16.mxu0 0
    %8657 = vmatpush1.bf16.msra.mxu0 %v8482
    %8658 = vmatprep.subr.bf16.mxu0 0
    %8659 = vmatpush1.bf16.msra.mxu0 %v8481
    %8660 = vmatprep.subr.bf16.mxu0 0
    %8661 = vmatpush1.bf16.msra.mxu0 %v8480
    %8662 = vmatprep.subr.bf16.mxu0 0
    %8663 = vmatpush2.bf16.msra.mxu0 %v8495
    %8664 = vmatprep.subr.bf16.mxu0 0
    %8665 = vmatpush2.bf16.msra.mxu0 %v8494
    %8666 = vmatprep.subr.bf16.mxu0 0
    %8667 = vmatpush2.bf16.msra.mxu0 %v8493
    %8668 = vmatprep.subr.bf16.mxu0 0
    %8669 = vmatpush2.bf16.msra.mxu0 %v8492
    %8670 = vmatprep.subr.bf16.mxu0 0
    %8671 = vmatpush2.bf16.msra.mxu0 %v8491
    %8672 = vmatprep.subr.bf16.mxu0 0
    %8673 = vmatpush2.bf16.msra.mxu0 %v8490
    %8674 = vmatprep.subr.bf16.mxu0 0
    %8675 = vmatpush2.bf16.msra.mxu0 %v8489
    %8676 = vmatprep.subr.bf16.mxu0 0
    %8677 = vmatpush2.bf16.msra.mxu0 %v8488
    %8678 = vmatprep.mubr.bf16.mxu0 %v8260
    %8679 = vmatmul.mubr.bf16.gmra.mxu0 %v8259
    %v8680 = vpop.f32.mrf.mxu0
    %v8681 = vadd.f32 %v8592, %v8680
    %v8682 = vpop.f32.mrf.mxu0
    %v8683 = vpop.f32.mrf.mxu0
    %v8684 = vadd.f32 %v8595, %v8683
    %v8685 = vpop.f32.mrf.mxu0
    %8686 = vmatprep.mubr.bf16.mxu0 %v8265
    %8687 = vmatmul.mubr.bf16.gmra.mxu0 %v8264
    %v8688 = vpop.f32.mrf.mxu0
    %v8689 = vadd.f32 %v8600, %v8688
    %v8690 = vpop.f32.mrf.mxu0
    %v8691 = vpop.f32.mrf.mxu0
    %v8692 = vadd.f32 %v8603, %v8691
    %v8693 = vpop.f32.mrf.mxu0
    %8694 = vmatprep.mubr.bf16.mxu0 %v8270
    %8695 = vmatmul.mubr.bf16.gmra.mxu0 %v8269
    %v8696 = vpop.f32.mrf.mxu0
    %v8697 = vadd.f32 %v8608, %v8696
    %v8698 = vpop.f32.mrf.mxu0
    %v8699 = vpop.f32.mrf.mxu0
    %v8700 = vadd.f32 %v8611, %v8699
    %v8701 = vpop.f32.mrf.mxu0
    %8702 = vmatprep.mubr.bf16.mxu0 %v8275
    %8703 = vmatmul.mubr.bf16.gmra.mxu0 %v8274
    %v8704 = vpop.f32.mrf.mxu0
    %v8705 = vadd.f32 %v8616, %v8704
    %v8706 = vpop.f32.mrf.mxu0
    %v8707 = vpop.f32.mrf.mxu0
    %v8708 = vadd.f32 %v8619, %v8707
    %v8709 = vpop.f32.mrf.mxu0
    %8710 = vmatprep.mubr.bf16.mxu0 %v8280
    %8711 = vmatmul.mubr.bf16.gmra.mxu0 %v8279
    %v8712 = vpop.f32.mrf.mxu0
    %v8713 = vadd.f32 %v8624, %v8712
    %v8714 = vpop.f32.mrf.mxu0
    %v8715 = vpop.f32.mrf.mxu0
    %v8716 = vadd.f32 %v8627, %v8715
    %v8717 = vpop.f32.mrf.mxu0
    %8718 = vmatprep.mubr.bf16.mxu0 %v8285
    %8719 = vmatmul.mubr.bf16.gmra.mxu0 %v8284
    %v8720 = vpop.f32.mrf.mxu0
    %v8721 = vadd.f32 %v8632, %v8720
    %v8722 = vpop.f32.mrf.mxu0
    %v8723 = vpop.f32.mrf.mxu0
    %v8724 = vadd.f32 %v8635, %v8723
    %v8725 = vpop.f32.mrf.mxu0
    %8726 = vmatprep.mubr.bf16.mxu0 %v8290
    %8727 = vmatmul.mubr.bf16.gmra.mxu0 %v8289
    %v8728 = vpop.f32.mrf.mxu0
    %v8729 = vadd.f32 %v8640, %v8728
    %v8730 = vpop.f32.mrf.mxu0
    %v8731 = vpop.f32.mrf.mxu0
    %v8732 = vadd.f32 %v8643, %v8731
    %v8733 = vpop.f32.mrf.mxu0
    %8734 = vdwg.mxu0
    %8735 = vmatprep.subr.bf16.mxu0 0
    %8736 = vmatpush1.bf16.msra.mxu0 0
    %8737 = vmatprep.subr.bf16.mxu0 0
    %8738 = vmatpush1.bf16.msra.mxu0 0
    %8739 = vmatprep.subr.bf16.mxu0 0
    %8740 = vmatpush1.bf16.msra.mxu0 0
    %8741 = vmatprep.subr.bf16.mxu0 0
    %8742 = vmatpush1.bf16.msra.mxu0 0
    %8743 = vmatprep.subr.bf16.mxu0 0
    %8744 = vmatpush1.bf16.msra.mxu0 %v8499
    %8745 = vmatprep.subr.bf16.mxu0 0
    %8746 = vmatpush1.bf16.msra.mxu0 %v8498
    %8747 = vmatprep.subr.bf16.mxu0 0
    %8748 = vmatpush1.bf16.msra.mxu0 %v8497
    %8749 = vmatprep.subr.bf16.mxu0 0
    %8750 = vmatpush1.bf16.msra.mxu0 %v8496
    %8751 = vmatprep.subr.bf16.mxu0 0
    %8752 = vmatpush2.bf16.msra.mxu0 0
    %8753 = vmatprep.subr.bf16.mxu0 0
    %8754 = vmatpush2.bf16.msra.mxu0 0
    %8755 = vmatprep.subr.bf16.mxu0 0
    %8756 = vmatpush2.bf16.msra.mxu0 0
    %8757 = vmatprep.subr.bf16.mxu0 0
    %8758 = vmatpush2.bf16.msra.mxu0 0
    %8759 = vmatprep.subr.bf16.mxu0 0
    %8760 = vmatpush2.bf16.msra.mxu0 0
    %8761 = vmatprep.subr.bf16.mxu0 0
    %8762 = vmatpush2.bf16.msra.mxu0 0
    %8763 = vmatprep.subr.bf16.mxu0 0
    %8764 = vmatpush2.bf16.msra.mxu0 0
    %8765 = vmatprep.subr.bf16.mxu0 0
    %8766 = vmatpush2.bf16.msra.mxu0 0
    %8767 = vmatprep.mubr.bf16.mxu0 0
    %8768 = vmatmul.mubr.bf16.gmra.mxu0 %v8537
    %v8769 = vpop.f32.mrf.mxu0
    %v8770 = vadd.f32 %v8681, %v8769
    %v8771 = vpop.f32.mrf.mxu0
    %v8772 = vpop.f32.mrf.mxu0
    %v8773 = vadd.f32 %v8684, %v8772
    %v8774 = vpop.f32.mrf.mxu0
    %8775 = vmatprep.mubr.bf16.mxu0 0
    %8776 = vmatmul.mubr.bf16.gmra.mxu0 %v8540
    %v8777 = vpop.f32.mrf.mxu0
    %v8778 = vadd.f32 %v8689, %v8777
    %v8779 = vpop.f32.mrf.mxu0
    %v8780 = vpop.f32.mrf.mxu0
    %v8781 = vadd.f32 %v8692, %v8780
    %v8782 = vpop.f32.mrf.mxu0
    %8783 = vmatprep.mubr.bf16.mxu0 0
    %8784 = vmatmul.mubr.bf16.gmra.mxu0 %v8543
    %v8785 = vpop.f32.mrf.mxu0
    %v8786 = vadd.f32 %v8697, %v8785
    %v8787 = vpop.f32.mrf.mxu0
    %v8788 = vpop.f32.mrf.mxu0
    %v8789 = vadd.f32 %v8700, %v8788
    %v8790 = vpop.f32.mrf.mxu0
    %8791 = vmatprep.mubr.bf16.mxu0 0
    %8792 = vmatmul.mubr.bf16.gmra.mxu0 %v8546
    %v8793 = vpop.f32.mrf.mxu0
    %v8794 = vadd.f32 %v8705, %v8793
    %v8795 = vpop.f32.mrf.mxu0
    %v8796 = vpop.f32.mrf.mxu0
    %v8797 = vadd.f32 %v8708, %v8796
    %v8798 = vpop.f32.mrf.mxu0
    %8799 = vmatprep.mubr.bf16.mxu0 0
    %8800 = vmatmul.mubr.bf16.gmra.mxu0 %v8549
    %v8801 = vpop.f32.mrf.mxu0
    %v8802 = vadd.f32 %v8713, %v8801
    %v8803 = vpop.f32.mrf.mxu0
    %v8804 = vpop.f32.mrf.mxu0
    %v8805 = vadd.f32 %v8716, %v8804
    %v8806 = vpop.f32.mrf.mxu0
    %8807 = vmatprep.mubr.bf16.mxu0 0
    %8808 = vmatmul.mubr.bf16.gmra.mxu0 %v8552
    %v8809 = vpop.f32.mrf.mxu0
    %v8810 = vadd.f32 %v8721, %v8809
    %v8811 = vpop.f32.mrf.mxu0
    %v8812 = vpop.f32.mrf.mxu0
    %v8813 = vadd.f32 %v8724, %v8812
    %v8814 = vpop.f32.mrf.mxu0
    %8815 = vmatprep.mubr.bf16.mxu0 0
    %8816 = vmatmul.mubr.bf16.gmra.mxu0 %v8555
    %v8817 = vpop.f32.mrf.mxu0
    %v8818 = vadd.f32 %v8729, %v8817
    %v8819 = vpop.f32.mrf.mxu0
    %v8820 = vpop.f32.mrf.mxu0
    %v8821 = vadd.f32 %v8732, %v8820
    %v8822 = vpop.f32.mrf.mxu0
    %8823 = vdwg.mxu0
    %v8824 = vand.u32 %v5823, 63
    %v8825 = vshrl.u32 %v8824, 3
    %vm8826 = vcmp.lt.s32.totalorder %v8825, 5
    %v8827 = vand.u32 %v8824, 7
    %vm8828 = vcmp.lt.s32.totalorder %v8827, 5
    %vm8829 = vmand %vm8826, %vm8828
    %v8830 = vsel %vm8829, 1, 0
    %v8831 = vcvt.s32.f32 %v8830
    %vm8832 = vcmask 900096
    %v8834 = vsel %vm8832, %v8831, 0
    %v8837 = vsel %vm5863, %v8821, 0
    %8839 = vmatprep.subr.mxu0 0.0
    %8840 = vmatpush1.msra.mxu0 0.0
    %8841 = vmatprep.subr.mxu0 0.0
    %8842 = vmatpush1.msra.mxu0 0.0
    %8843 = vmatprep.subr.mxu0 0.0
    %8844 = vmatpush1.msra.mxu0 %v8837
    %8845 = vmatprep.subr.mxu0 0.0
    %8846 = vmatpush1.msra.mxu0 %v8818
    %8847 = vmatprep.subr.mxu0 0.0
    %8848 = vmatpush1.msra.mxu0 %v8813
    %8849 = vmatprep.subr.mxu0 0.0
    %8850 = vmatpush1.msra.mxu0 %v8810
    %8851 = vmatprep.subr.mxu0 0.0
    %8852 = vmatpush1.msra.mxu0 %v8805
    %8853 = vmatprep.subr.mxu0 0.0
    %8854 = vmatpush1.msra.mxu0 %v8802
    %8855 = vmatprep.subr.mxu0 0.0
    %8856 = vmatpush1.msra.mxu0 %v8797
    %8857 = vmatprep.subr.mxu0 0.0
    %8858 = vmatpush1.msra.mxu0 %v8794
    %8859 = vmatprep.subr.mxu0 0.0
    %8860 = vmatpush1.msra.mxu0 %v8789
    %8861 = vmatprep.subr.mxu0 0.0
    %8862 = vmatpush1.msra.mxu0 %v8786
    %8863 = vmatprep.subr.mxu0 0.0
    %8864 = vmatpush1.msra.mxu0 %v8781
    %8865 = vmatprep.subr.mxu0 0.0
    %8866 = vmatpush1.msra.mxu0 %v8778
    %8867 = vmatprep.subr.mxu0 0.0
    %8868 = vmatpush1.msra.mxu0 %v8773
    %8869 = vmatprep.subr.mxu0 0.0
    %8870 = vmatpush1.msra.mxu0 %v8770
    %8871 = vmatprep.subr.mxu0 0.0
    %8872 = vmatpush2.msra.mxu0 0.0
    %8873 = vmatprep.subr.mxu0 0.0
    %8874 = vmatpush2.msra.mxu0 0.0
    %8875 = vmatprep.subr.mxu0 0.0
    %8876 = vmatpush2.msra.mxu0 0.0
    %8877 = vmatprep.subr.mxu0 0.0
    %8878 = vmatpush2.msra.mxu0 0.0
    %8879 = vmatprep.subr.mxu0 0.0
    %8880 = vmatpush2.msra.mxu0 0.0
    %8881 = vmatprep.subr.mxu0 0.0
    %8882 = vmatpush2.msra.mxu0 0.0
    %8883 = vmatprep.subr.mxu0 0.0
    %8884 = vmatpush2.msra.mxu0 0.0
    %8885 = vmatprep.subr.mxu0 0.0
    %8886 = vmatpush2.msra.mxu0 0.0
    %8887 = vmatprep.subr.mxu0 0.0
    %8888 = vmatpush2.msra.mxu0 0.0
    %8889 = vmatprep.subr.mxu0 0.0
    %8890 = vmatpush2.msra.mxu0 0.0
    %8891 = vmatprep.subr.mxu0 0.0
    %8892 = vmatpush2.msra.mxu0 0.0
    %8893 = vmatprep.subr.mxu0 0.0
    %8894 = vmatpush2.msra.mxu0 0.0
    %8895 = vmatprep.subr.mxu0 0.0
    %8896 = vmatpush2.msra.mxu0 0.0
    %8897 = vmatprep.subr.mxu0 0.0
    %8898 = vmatpush2.msra.mxu0 0.0
    %8899 = vmatprep.subr.mxu0 0.0
    %8900 = vmatpush2.msra.mxu0 0.0
    %8901 = vmatprep.subr.mxu0 0.0
    %8902 = vmatpush2.msra.mxu0 0.0
    %8903 = vmatprep.mubr.f32.mxu0 0.0
    %8904 = vmatmul.mubr.f32.gmra.mxu0 %v8834
    %v8905 = vpop.f32.mrf.mxu0
    %v8906 = vadd.f32 0.0, %v8905
    %v8907 = vpop.f32.mrf.mxu0
    %8908 = vdwg.mxu0
    %v8909 = vmul.f32 %v8906, 0.02
    %v8910 = vlaneseq
    %v8911 = vshrl.u32 %v8910, 7
    %v8912 = vsub.s32 0, %v8911
    %v8913 = vrot.slane %v8909, %v8912
    %v8914 = vsub.f32 %v8770, %v8913
    %v8915 = vsub.f32 %v8773, %v8913
    %v8916 = vsub.f32 %v8778, %v8913
    %v8917 = vsub.f32 %v8781, %v8913
    %v8918 = vsub.f32 %v8786, %v8913
    %v8919 = vsub.f32 %v8789, %v8913
    %v8920 = vsub.f32 %v8794, %v8913
    %v8921 = vsub.f32 %v8797, %v8913
    %v8922 = vsub.f32 %v8802, %v8913
    %v8923 = vsub.f32 %v8805, %v8913
    %v8924 = vsub.f32 %v8810, %v8913
    %v8925 = vsub.f32 %v8813, %v8913
    %v8926 = vsub.f32 %v8818, %v8913
    %v8927 = vsub.f32 %v8821, %v8913
    %v8928 = vmul.f32 %v8914, %v8914
    %v8929 = vmul.f32 %v8915, %v8915
    %v8930 = vmul.f32 %v8916, %v8916
    %v8931 = vmul.f32 %v8917, %v8917
    %v8932 = vmul.f32 %v8918, %v8918
    %v8933 = vmul.f32 %v8919, %v8919
    %v8934 = vmul.f32 %v8920, %v8920
    %v8935 = vmul.f32 %v8921, %v8921
    %v8936 = vmul.f32 %v8922, %v8922
    %v8937 = vmul.f32 %v8923, %v8923
    %v8938 = vmul.f32 %v8924, %v8924
    %v8939 = vmul.f32 %v8925, %v8925
    %v8940 = vmul.f32 %v8926, %v8926
    %v8941 = vmul.f32 %v8927, %v8927
    %v8943 = vsel %vm5863, %v8941, 0
    %8945 = vmatprep.subr.mxu0 0.0
    %8946 = vmatpush1.msra.mxu0 0.0
    %8947 = vmatprep.subr.mxu0 0.0
    %8948 = vmatpush1.msra.mxu0 0.0
    %8949 = vmatprep.subr.mxu0 0.0
    %8950 = vmatpush1.msra.mxu0 %v8943
    %8951 = vmatprep.subr.mxu0 0.0
    %8952 = vmatpush1.msra.mxu0 %v8940
    %8953 = vmatprep.subr.mxu0 0.0
    %8954 = vmatpush1.msra.mxu0 %v8939
    %8955 = vmatprep.subr.mxu0 0.0
    %8956 = vmatpush1.msra.mxu0 %v8938
    %8957 = vmatprep.subr.mxu0 0.0
    %8958 = vmatpush1.msra.mxu0 %v8937
    %8959 = vmatprep.subr.mxu0 0.0
    %8960 = vmatpush1.msra.mxu0 %v8936
    %8961 = vmatprep.subr.mxu0 0.0
    %8962 = vmatpush1.msra.mxu0 %v8935
    %8963 = vmatprep.subr.mxu0 0.0
    %8964 = vmatpush1.msra.mxu0 %v8934
    %8965 = vmatprep.subr.mxu0 0.0
    %8966 = vmatpush1.msra.mxu0 %v8933
    %8967 = vmatprep.subr.mxu0 0.0
    %8968 = vmatpush1.msra.mxu0 %v8932
    %8969 = vmatprep.subr.mxu0 0.0
    %8970 = vmatpush1.msra.mxu0 %v8931
    %8971 = vmatprep.subr.mxu0 0.0
    %8972 = vmatpush1.msra.mxu0 %v8930
    %8973 = vmatprep.subr.mxu0 0.0
    %8974 = vmatpush1.msra.mxu0 %v8929
    %8975 = vmatprep.subr.mxu0 0.0
    %8976 = vmatpush1.msra.mxu0 %v8928
    %8977 = vmatprep.subr.mxu0 0.0
    %8978 = vmatpush2.msra.mxu0 0.0
    %8979 = vmatprep.subr.mxu0 0.0
    %8980 = vmatpush2.msra.mxu0 0.0
    %8981 = vmatprep.subr.mxu0 0.0
    %8982 = vmatpush2.msra.mxu0 0.0
    %8983 = vmatprep.subr.mxu0 0.0
    %8984 = vmatpush2.msra.mxu0 0.0
    %8985 = vmatprep.subr.mxu0 0.0
    %8986 = vmatpush2.msra.mxu0 0.0
    %8987 = vmatprep.subr.mxu0 0.0
    %8988 = vmatpush2.msra.mxu0 0.0
    %8989 = vmatprep.subr.mxu0 0.0
    %8990 = vmatpush2.msra.mxu0 0.0
    %8991 = vmatprep.subr.mxu0 0.0
    %8992 = vmatpush2.msra.mxu0 0.0
    %8993 = vmatprep.subr.mxu0 0.0
    %8994 = vmatpush2.msra.mxu0 0.0
    %8995 = vmatprep.subr.mxu0 0.0
    %8996 = vmatpush2.msra.mxu0 0.0
    %8997 = vmatprep.subr.mxu0 0.0
    %8998 = vmatpush2.msra.mxu0 0.0
    %8999 = vmatprep.subr.mxu0 0.0
    %9000 = vmatpush2.msra.mxu0 0.0
    %9001 = vmatprep.subr.mxu0 0.0
    %9002 = vmatpush2.msra.mxu0 0.0
    %9003 = vmatprep.subr.mxu0 0.0
    %9004 = vmatpush2.msra.mxu0 0.0
    %9005 = vmatprep.subr.mxu0 0.0
    %9006 = vmatpush2.msra.mxu0 0.0
    %9007 = vmatprep.subr.mxu0 0.0
    %9008 = vmatpush2.msra.mxu0 0.0
    %9009 = vmatprep.mubr.f32.mxu0 0.0
    %9010 = vmatmul.mubr.f32.gmra.mxu0 %v8834
    %v9011 = vpop.f32.mrf.mxu0
    %v9012 = vadd.f32 0.0, %v9011
    %v9013 = vpop.f32.mrf.mxu0
    %9014 = vdwg.mxu0
    %v9015 = vmul.f32 %v9012, 0.02
    %v9016 = vadd.f32 %v9015, 1e-05
    %v9017 = vrsqrt.pop %v9016
    %v9018 = vmul.f32 %v6968, %v9017
    %v9019 = vlaneseq
    %v9020 = vshrl.u32 %v9019, 7
    %v9021 = vsub.s32 0, %v9020
    %v9022 = vrot.slane %v9018, %v9021
    %v9023 = vmul.f32 %v8914, %v9022
    %v9024 = vmul.f32 %v8915, %v9022
    %v9025 = vmul.f32 %v8916, %v9022
    %v9026 = vmul.f32 %v8917, %v9022
    %v9027 = vmul.f32 %v8918, %v9022
    %v9028 = vmul.f32 %v8919, %v9022
    %v9029 = vmul.f32 %v8920, %v9022
    %v9030 = vmul.f32 %v8921, %v9022
    %v9031 = vmul.f32 %v8922, %v9022
    %v9032 = vmul.f32 %v8923, %v9022
    %v9033 = vmul.f32 %v8924, %v9022
    %v9034 = vmul.f32 %v8925, %v9022
    %v9035 = vmul.f32 %v8926, %v9022
    %v9036 = vmul.f32 %v8927, %v9022
    %v9037 = vlaneseq
    %v9038 = vshrl.u32 %v9037, 7
    %v9039 = vsub.s32 0, %v9038
    %v9040 = vrot.slane %v6969, %v9039
    %v9041 = vadd.f32 %v9023, %v9040
    %v9042 = vadd.f32 %v9024, %v9040
    %v9043 = vadd.f32 %v9025, %v9040
    %v9044 = vadd.f32 %v9026, %v9040
    %v9045 = vadd.f32 %v9027, %v9040
    %v9046 = vadd.f32 %v9028, %v9040
    %v9047 = vadd.f32 %v9029, %v9040
    %v9048 = vadd.f32 %v9030, %v9040
    %v9049 = vadd.f32 %v9031, %v9040
    %v9050 = vadd.f32 %v9032, %v9040
    %v9051 = vadd.f32 %v9033, %v9040
    %v9052 = vadd.f32 %v9034, %v9040
    %v9053 = vadd.f32 %v9035, %v9040
    %v9054 = vadd.f32 %v9036, %v9040
    %v9055 = vmax.f32 %v9041, 0.0
    %v9056 = vmax.f32 %v9042, 0.0
    %v9057 = vmax.f32 %v9043, 0.0
    %v9058 = vmax.f32 %v9044, 0.0
    %v9059 = vmax.f32 %v9045, 0.0
    %v9060 = vmax.f32 %v9046, 0.0
    %v9061 = vmax.f32 %v9047, 0.0
    %v9062 = vmax.f32 %v9048, 0.0
    %v9063 = vmax.f32 %v9049, 0.0
    %v9064 = vmax.f32 %v9050, 0.0
    %v9065 = vmax.f32 %v9051, 0.0
    %v9066 = vmax.f32 %v9052, 0.0
    %v9067 = vmax.f32 %v9053, 0.0
    %v9068 = vmax.f32 %v9054, 0.0
    %9069 = vst.msk [vmem:[#allocation4] sm:$0xff] %vm6467, %v9055
    %9070 = vst.msk [vmem:[#allocation4 + $0x8] sm:$0xff] %vm6467, %v9056
    %9071 = vst.msk [vmem:[#allocation4 + $0x10] sm:$0xff] %vm6467, %v9057
    %9072 = vst.msk [vmem:[#allocation4 + $0x18] sm:$0xff] %vm6467, %v9058
    %9073 = vst.msk [vmem:[#allocation4 + $0x20] sm:$0xff] %vm6467, %v9059
    %9074 = vst.msk [vmem:[#allocation4 + $0x28] sm:$0xff] %vm6467, %v9060
    %9075 = vst.msk [vmem:[#allocation4 + $0x30] sm:$0xff] %vm6467, %v9061
    %9076 = vst.msk [vmem:[#allocation4 + $0x38] sm:$0xff] %vm6467, %v9062
    %9077 = vst.msk [vmem:[#allocation4 + $0x40] sm:$0xff] %vm6467, %v9063
    %9078 = vst.msk [vmem:[#allocation4 + $0x48] sm:$0xff] %vm6467, %v9064
    %9079 = vst.msk [vmem:[#allocation4 + $0x50] sm:$0xff] %vm6467, %v9065
    %9080 = vst.msk [vmem:[#allocation4 + $0x58] sm:$0xff] %vm6467, %v9066
    %9081 = vst.msk [vmem:[#allocation4 + $0x60] sm:$0xff] %vm6467, %v9067
    %9082 = vst.msk [vmem:[#allocation4 + $0x68] sm:$0x3f] %vm6527, %v9068
    %9083 = vst.msk [vmem:[#allocation4 + $0x6e] sm:$0xff] %vm6467, 0.0
    %9084 = vst.msk [vmem:[#allocation4 + $0x76] sm:$0xff] %vm6467, 0.0
    %9085 = vst.msk [vmem:[#allocation4 + $0x7e] sm:$0x3] %vm6533, 0.0
    %v9086 = vld [vmem:[#allocation4] sm:$0xff]
    %v9087 = vld [vmem:[#allocation4 + $0x8] sm:$0xff]
    %v9088 = vld [vmem:[#allocation4 + $0x10] sm:$0xff]
    %v9089 = vld [vmem:[#allocation4 + $0x18] sm:$0xff]
    %v9090 = vld [vmem:[#allocation4 + $0x20] sm:$0xff]
    %v9091 = vld [vmem:[#allocation4 + $0x28] sm:$0xff]
    %v9092 = vld [vmem:[#allocation4 + $0x30] sm:$0xff]
    %v9093 = vld [vmem:[#allocation4 + $0x38] sm:$0xff]
    %v9094 = vld [vmem:[#allocation4 + $0x40] sm:$0xff]
    %v9095 = vld [vmem:[#allocation4 + $0x48] sm:$0xff]
    %v9096 = vld [vmem:[#allocation4 + $0x50] sm:$0xff]
    %v9097 = vld [vmem:[#allocation4 + $0x58] sm:$0xff]
    %v9098 = vld [vmem:[#allocation4 + $0x60] sm:$0xff]
    %v9099 = vld [vmem:[#allocation4 + $0x68] sm:$0xff]
    %v9100 = vld [vmem:[#allocation4 + $0x70] sm:$0xff]
    %v9101 = vld [vmem:[#allocation4 + $0x78] sm:$0x7f]
    %v9102 = vld [vmem:[#allocation4 + $0x1] sm:$0xff]
    %v9103 = vld [vmem:[#allocation4 + $0x9] sm:$0xff]
    %v9104 = vld [vmem:[#allocation4 + $0x11] sm:$0xff]
    %v9105 = vld [vmem:[#allocation4 + $0x19] sm:$0xff]
    %v9106 = vld [vmem:[#allocation4 + $0x21] sm:$0xff]
    %v9107 = vld [vmem:[#allocation4 + $0x29] sm:$0xff]
    %v9108 = vld [vmem:[#allocation4 + $0x31] sm:$0xff]
    %v9109 = vld [vmem:[#allocation4 + $0x39] sm:$0xff]
    %v9110 = vld [vmem:[#allocation4 + $0x41] sm:$0xff]
    %v9111 = vld [vmem:[#allocation4 + $0x49] sm:$0xff]
    %v9112 = vld [vmem:[#allocation4 + $0x51] sm:$0xff]
    %v9113 = vld [vmem:[#allocation4 + $0x59] sm:$0xff]
    %v9114 = vld [vmem:[#allocation4 + $0x61] sm:$0xff]
    %v9115 = vld [vmem:[#allocation4 + $0x69] sm:$0xff]
    %v9116 = vld [vmem:[#allocation4 + $0x71] sm:$0xff]
    %v9117 = vld [vmem:[#allocation4 + $0x79] sm:$0x7f]
    %v9118 = vmax.f32 %v9086, %v9102
    %v9119 = vmax.f32 %v9087, %v9103
    %v9120 = vmax.f32 %v9088, %v9104
    %v9121 = vmax.f32 %v9089, %v9105
    %v9122 = vmax.f32 %v9090, %v9106
    %v9123 = vmax.f32 %v9091, %v9107
    %v9124 = vmax.f32 %v9092, %v9108
    %v9125 = vmax.f32 %v9093, %v9109
    %v9126 = vmax.f32 %v9094, %v9110
    %v9127 = vmax.f32 %v9095, %v9111
    %v9128 = vmax.f32 %v9096, %v9112
    %v9129 = vmax.f32 %v9097, %v9113
    %v9130 = vmax.f32 %v9098, %v9114
    %v9131 = vmax.f32 %v9099, %v9115
    %v9132 = vmax.f32 %v9100, %v9116
    %v9133 = vmax.f32 %v9101, %v9117
    %9134 = vst.msk [vmem:[#allocation5] sm:$0xff] %vm6467, %v9118
    %9135 = vst.msk [vmem:[#allocation5 + $0x8] sm:$0xff] %vm6467, %v9119
    %9136 = vst.msk [vmem:[#allocation5 + $0x10] sm:$0xff] %vm6467, %v9120
    %9137 = vst.msk [vmem:[#allocation5 + $0x18] sm:$0xff] %vm6467, %v9121
    %9138 = vst.msk [vmem:[#allocation5 + $0x20] sm:$0xff] %vm6467, %v9122
    %9139 = vst.msk [vmem:[#allocation5 + $0x28] sm:$0xff] %vm6467, %v9123
    %9140 = vst.msk [vmem:[#allocation5 + $0x30] sm:$0xff] %vm6467, %v9124
    %9141 = vst.msk [vmem:[#allocation5 + $0x38] sm:$0xff] %vm6467, %v9125
    %9142 = vst.msk [vmem:[#allocation5 + $0x40] sm:$0xff] %vm6467, %v9126
    %9143 = vst.msk [vmem:[#allocation5 + $0x48] sm:$0xff] %vm6467, %v9127
    %9144 = vst.msk [vmem:[#allocation5 + $0x50] sm:$0xff] %vm6467, %v9128
    %9145 = vst.msk [vmem:[#allocation5 + $0x58] sm:$0xff] %vm6467, %v9129
    %9146 = vst.msk [vmem:[#allocation5 + $0x60] sm:$0xff] %vm6467, %v9130
    %9147 = vst.msk [vmem:[#allocation5 + $0x68] sm:$0xff] %vm6467, %v9131
    %9148 = vst.msk [vmem:[#allocation5 + $0x70] sm:$0xff] %vm6467, %v9132
    %9149 = vst.msk [vmem:[#allocation5 + $0x78] sm:$0x7f] %vm6790, %v9133
    %9150 = vst.msk [vmem:[#allocation8] sm:$0xf] %vm6843, 0
    %9151 = vst.msk [vmem:[#allocation8 + $0x4] sm:$0xf] %vm6843, 0
    %9152 = vst.msk [vmem:[#allocation8 + $0x8] sm:$0xf] %vm6843, 0
    %9153 = vst.msk [vmem:[#allocation8 + $0xc] sm:$0xf] %vm6843, 0
    %v9154 = vld [vmem:[#allocation5] ss:$2 sm:$0xff]
    %v9155 = vld [vmem:[%s6793] ss:$2 sm:$0xff]
    %v9156 = vld [vmem:[%s6795] ss:$2 sm:$0xff]
    %v9157 = vld [vmem:[%s6797] ss:$2 sm:$0xff]
    %9158 = vst.msk [vmem:[#allocation6] sm:$0xff] %vm6467, %v9154
    %9159 = vst.msk [vmem:[#allocation6 + $0x8] sm:$0xff] %vm6467, %v9155
    %9160 = vst.msk [vmem:[#allocation6 + $0x10] sm:$0xff] %vm6467, %v9156
    %9161 = vst.msk [vmem:[#allocation6 + $0x18] sm:$0xff] %vm6467, %v9157
    %v9162 = vld [vmem:[#allocation6] sm:$0x3]
    %v9163 = vld [vmem:[#allocation6 + $0x4] sm:$0x3]
    %v9164 = vmax.f32 %v9162, %v9163
    %v9165 = vpack.c.bf16 %v9164, %v9164
    %v9167 = vunpack.c.l.b16 %v9165
    %v9168 = vpack.c.b16 %v9167, %v9167
    %v9170 = vshrl.u32 %v9168, 16
    %v9172 = vrot.slane %v9170, 5
    %v9173 = vshll.u32 %v9168, 16
    %v9175 = vrot.slane %v9173, 6
    %v9176 = vor.u32 %v9172, %v9175
    %vm9178 = vcmask 519170
    %vm9179 = vsmask.f32 3338
    %vm9180 = vmand %vm9178, %vm9179
    %v9181 = vld [vmem:[#allocation8] sm:$0xc]
    %v9182 = vsel %vm9180, %v9176, %v9181
    %9183 = vst [vmem:[#allocation8] sm:$0xc] %v9182
    %v9184 = vld [vmem:[#allocation6 + $0x8] sm:$0x3]
    %v9185 = vld [vmem:[#allocation6 + $0xc] sm:$0x3]
    %v9186 = vmax.f32 %v9184, %v9185
    %v9187 = vpack.c.bf16 %v9186, %v9186
    %v9189 = vunpack.c.l.b16 %v9187
    %v9190 = vpack.c.b16 %v9189, %v9189
    %v9192 = vshrl.u32 %v9190, 16
    %v9194 = vrot.slane %v9192, 7
    %v9195 = vshll.u32 %v9190, 16
    %v9197 = vor.u32 %v9194, %v9195
    %vm9199 = vcmask 517120
    %vm9200 = vsmask.f32 1282
    %vm9201 = vmand %vm9199, %vm9200
    %v9202 = vld [vmem:[#allocation8 + $0x4] sm:$0x3]
    %v9203 = vsel %vm9201, %v9197, %v9202
    %9204 = vst [vmem:[#allocation8 + $0x4] sm:$0x3] %v9203
    %v9205 = vld [vmem:[%s6799] ss:$2 sm:$0xff]
    %v9206 = vld [vmem:[%s6801] ss:$2 sm:$0xff]
    %v9207 = vld [vmem:[%s6803] ss:$2 sm:$0xff]
    %v9208 = vld [vmem:[%s6805] ss:$2 sm:$0xff]
    %9209 = vst.msk [vmem:[#allocation6] sm:$0xff] %vm6467, %v9205
    %9210 = vst.msk [vmem:[#allocation6 + $0x8] sm:$0xff] %vm6467, %v9206
    %9211 = vst.msk [vmem:[#allocation6 + $0x10] sm:$0xff] %vm6467, %v9207
    %9212 = vst.msk [vmem:[#allocation6 + $0x18] sm:$0xff] %vm6467, %v9208
    %v9213 = vld [vmem:[#allocation6] sm:$0x3]
    %v9214 = vld [vmem:[#allocation6 + $0x4] sm:$0x3]
    %v9215 = vmax.f32 %v9213, %v9214
    %v9216 = vpack.c.bf16 %v9215, %v9215
    %v9218 = vunpack.c.l.b16 %v9216
    %v9219 = vpack.c.b16 %v9218, %v9218
    %v9221 = vshrl.u32 %v9219, 16
    %v9223 = vrot.slane %v9221, 5
    %v9224 = vshll.u32 %v9219, 16
    %v9226 = vrot.slane %v9224, 6
    %v9227 = vor.u32 %v9223, %v9226
    %v9229 = vld [vmem:[#allocation8 + $0x8] sm:$0xc]
    %v9230 = vsel %vm9180, %v9227, %v9229
    %9231 = vst [vmem:[#allocation8 + $0x8] sm:$0xc] %v9230
    %v9232 = vld [vmem:[#allocation6 + $0x8] sm:$0x3]
    %v9233 = vld [vmem:[#allocation6 + $0xc] sm:$0x3]
    %v9234 = vmax.f32 %v9232, %v9233
    %v9235 = vpack.c.bf16 %v9234, %v9234
    %v9237 = vunpack.c.l.b16 %v9235
    %v9238 = vpack.c.b16 %v9237, %v9237
    %v9240 = vshrl.u32 %v9238, 16
    %v9242 = vrot.slane %v9240, 7
    %v9243 = vshll.u32 %v9238, 16
    %v9245 = vor.u32 %v9242, %v9243
    %v9247 = vld [vmem:[#allocation8 + $0xc] sm:$0x3]
    %v9248 = vsel %vm9201, %v9245, %v9247
    %9249 = vst [vmem:[#allocation8 + $0xc] sm:$0x3] %v9248
    %v9250 = vld [vmem:[%s5 + $0x2] sm:$0x1]
    %v9251 = vld [vmem:[%s6 + $0x2] sm:$0x1]
    %v9252 = vld [vmem:[#allocation8] sm:$0xf]
    %v9253 = vld [vmem:[#allocation8 + $0x4] sm:$0xf]
    %v9254 = vld [vmem:[#allocation8 + $0x8] sm:$0x7]
    %9255 = vst.msk [vmem:[#allocation3] sm:$0xf] %vm6843, %v9252
    %9256 = vst.msk [vmem:[#allocation3 + $0x14] sm:$0xf] %vm6843, %v9253
    %9257 = vst.msk [vmem:[#allocation3 + $0x28] sm:$0x7] %vm6997, %v9254
    %v9258 = vld [vmem:[#allocation8] sm:$0xf]
    %v9259 = vld [vmem:[#allocation8 + $0x4] sm:$0xf]
    %v9260 = vld [vmem:[#allocation8 + $0x8] sm:$0xf]
    %v9262 = vshrl.u32 %v9258, 16
    %v9264 = vrot.slane %v9262, 4
    %v9265 = vshll.u32 %v9258, 16
    %v9267 = vrot.slane %v9265, 5
    %v9268 = vor.u32 %v9264, %v9267
    %v9269 = vrot.slane %v9268, 4
    %v9271 = vshll.u32 %v9259, 16
    %v9273 = vrot.slane %v9271, 5
    %v9274 = vsel %vm214, %v9269, %v9273
    %v9275 = vshrl.u32 %v9259, 16
    %v9277 = vrot.slane %v9275, 4
    %v9278 = vor.u32 %v9277, %v9273
    %v9279 = vrot.slane %v9278, 4
    %v9281 = vshll.u32 %v9260, 16
    %v9283 = vrot.slane %v9281, 5
    %v9284 = vsel %vm214, %v9279, %v9283
    %v9285 = vshrl.u32 %v9260, 16
    %v9287 = vrot.slane %v9285, 4
    %v9288 = vor.u32 %v9287, %v9283
    %v9289 = vrot.slane %v9288, 4
    %9290 = vrot.lane.b32.xlu0 %v9274, 64
    %v9291 = vpop.permute.xlu0 %9290
    %9292 = vrot.lane.b32.xlu0 %v9284, 64
    %v9293 = vpop.permute.xlu0 %9292
    %9294 = vrot.lane.b32.xlu0 %v9289, 64
    %v9295 = vpop.permute.xlu0 %9294
    %9299 = vst.msk [vmem:[#allocation3] sm:$0xf] %vm7194, %v9291
    %9300 = vst.msk [vmem:[#allocation3 + $0x14] sm:$0xf] %vm7194, %v9293
    %9301 = vst.msk [vmem:[#allocation3 + $0x28] sm:$0x7] %vm7208, %v9295
    %v9302 = vld [vmem:[#allocation8] sm:$0xe]
    %v9303 = vld [vmem:[#allocation8 + $0x4] sm:$0xf]
    %v9304 = vld [vmem:[#allocation8 + $0x8] sm:$0xf]
    %v9308 = vrot.slane %v9302, 5
    %v9309 = vrot.slane %v9308, 4
    %v9310 = vrot.slane %v9303, 5
    %v9311 = vsel %vm1178, %v9309, %v9310
    %v9312 = vrot.slane %v9310, 4
    %v9313 = vrot.slane %v9304, 5
    %v9314 = vsel %vm1178, %v9312, %v9313
    %v9315 = vrot.slane %v9313, 4
    %9319 = vst.msk [vmem:[#allocation3 + $0x4] sm:$0xf] %vm6843, %v9311
    %9320 = vst.msk [vmem:[#allocation3 + $0x18] sm:$0xf] %vm6843, %v9314
    %9321 = vst.msk [vmem:[#allocation3 + $0x2c] sm:$0x7] %vm6997, %v9315
    %v9322 = vld [vmem:[#allocation8] sm:$0xc]
    %v9323 = vld [vmem:[#allocation8 + $0x4] sm:$0xf]
    %v9324 = vld [vmem:[#allocation8 + $0x8] sm:$0xf]
    %v9325 = vld [vmem:[#allocation8 + $0xc] sm:$0x1]
    %vm9330 = vcmask 1041408
    %vm9331 = vcmask 1045508
    %vm9332 = vmor %vm9330, %vm9331
    %v9333 = vrot.slane %v9322, 6
    %v9334 = vrot.slane %v9333, 4
    %v9335 = vrot.slane %v9323, 6
    %v9336 = vsel %vm9332, %v9334, %v9335
    %v9337 = vrot.slane %v9335, 4
    %v9338 = vrot.slane %v9324, 6
    %v9339 = vsel %vm9332, %v9337, %v9338
    %v9340 = vrot.slane %v9338, 4
    %v9341 = vrot.slane %v9325, 6
    %v9342 = vsel %vm9332, %v9340, %v9341
    %9343 = vrot.lane.b32.xlu0 %v9336, 64
    %v9344 = vpop.permute.xlu0 %9343
    %9345 = vrot.lane.b32.xlu0 %v9339, 64
    %v9346 = vpop.permute.xlu0 %9345
    %9347 = vrot.lane.b32.xlu0 %v9342, 64
    %v9348 = vpop.permute.xlu0 %9347
    %9352 = vst.msk [vmem:[#allocation3 + $0x4] sm:$0xf] %vm7194, %v9344
    %9353 = vst.msk [vmem:[#allocation3 + $0x18] sm:$0xf] %vm7194, %v9346
    %9354 = vst.msk [vmem:[#allocation3 + $0x2c] sm:$0x7] %vm7208, %v9348
    %v9355 = vld [vmem:[#allocation8] sm:$0xc]
    %v9356 = vld [vmem:[#allocation8 + $0x4] sm:$0xf]
    %v9357 = vld [vmem:[#allocation8 + $0x8] sm:$0xf]
    %v9358 = vld [vmem:[#allocation8 + $0xc] sm:$0x3]
    %vm9359 = vsmask.f32 1280
    %vm9360 = vsmask.f32 5392
    %vm9361 = vmor %vm9359, %vm9360
    %v9363 = vshrl.u32 %v9355, 16
    %v9365 = vrot.slane %v9363, 6
    %v9366 = vshll.u32 %v9355, 16
    %v9368 = vrot.slane %v9366, 7
    %v9369 = vor.u32 %v9365, %v9368
    %v9370 = vrot.slane %v9369, 4
    %v9372 = vshrl.u32 %v9356, 16
    %v9374 = vrot.slane %v9372, 6
    %v9375 = vshll.u32 %v9356, 16
    %v9377 = vrot.slane %v9375, 7
    %v9378 = vor.u32 %v9374, %v9377
    %v9379 = vsel %vm9361, %v9370, %v9378
    %v9380 = vrot.slane %v9378, 4
    %v9382 = vshrl.u32 %v9357, 16
    %v9384 = vrot.slane %v9382, 6
    %v9385 = vshll.u32 %v9357, 16
    %v9387 = vrot.slane %v9385, 7
    %v9388 = vor.u32 %v9384, %v9387
    %v9389 = vsel %vm9361, %v9380, %v9388
    %v9390 = vrot.slane %v9388, 4
    %v9392 = vshrl.u32 %v9358, 16
    %v9394 = vrot.slane %v9392, 6
    %v9395 = vshll.u32 %v9358, 16
    %v9397 = vrot.slane %v9395, 7
    %v9398 = vor.u32 %v9394, %v9397
    %v9399 = vsel %vm9361, %v9390, %v9398
    %9403 = vst.msk [vmem:[#allocation3 + $0x8] sm:$0xf] %vm6843, %v9379
    %9404 = vst.msk [vmem:[#allocation3 + $0x1c] sm:$0xf] %vm6843, %v9389
    %9405 = vst.msk [vmem:[#allocation3 + $0x30] sm:$0x7] %vm6997, %v9399
    %v9406 = vld [vmem:[#allocation8] sm:$0x8]
    %v9407 = vld [vmem:[#allocation8 + $0x4] sm:$0xf]
    %v9408 = vld [vmem:[#allocation8 + $0x8] sm:$0xf]
    %v9409 = vld [vmem:[#allocation8 + $0xc] sm:$0x3]
    %vm9414 = vcmask 1040384
    %vm9415 = vcmask 1044484
    %vm9416 = vmor %vm9414, %vm9415
    %v9417 = vrot.slane %v9406, 7
    %v9418 = vrot.slane %v9417, 4
    %v9419 = vrot.slane %v9407, 7
    %v9420 = vsel %vm9416, %v9418, %v9419
    %v9421 = vrot.slane %v9419, 4
    %v9422 = vrot.slane %v9408, 7
    %v9423 = vsel %vm9416, %v9421, %v9422
    %v9424 = vrot.slane %v9422, 4
    %v9425 = vrot.slane %v9409, 7
    %v9426 = vsel %vm9416, %v9424, %v9425
    %9427 = vrot.lane.b32.xlu0 %v9420, 64
    %v9428 = vpop.permute.xlu0 %9427
    %9429 = vrot.lane.b32.xlu0 %v9423, 64
    %v9430 = vpop.permute.xlu0 %9429
    %9431 = vrot.lane.b32.xlu0 %v9426, 64
    %v9432 = vpop.permute.xlu0 %9431
    %9436 = vst.msk [vmem:[#allocation3 + $0x8] sm:$0xf] %vm7194, %v9428
    %9437 = vst.msk [vmem:[#allocation3 + $0x1c] sm:$0xf] %vm7194, %v9430
    %9438 = vst.msk [vmem:[#allocation3 + $0x30] sm:$0x7] %vm7208, %v9432
    %v9439 = vld [vmem:[#allocation8 + $0x4] sm:$0xf]
    %v9440 = vld [vmem:[#allocation8 + $0x8] sm:$0xf]
    %v9441 = vld [vmem:[#allocation8 + $0xc] sm:$0x7]
    %9442 = vst.msk [vmem:[#allocation3 + $0xc] sm:$0xf] %vm6843, %v9439
    %9443 = vst.msk [vmem:[#allocation3 + $0x20] sm:$0xf] %vm6843, %v9440
    %9444 = vst.msk [vmem:[#allocation3 + $0x34] sm:$0x7] %vm6997, %v9441
    %v9445 = vld [vmem:[#allocation8 + $0x4] sm:$0xf]
    %v9446 = vld [vmem:[#allocation8 + $0x8] sm:$0xf]
    %v9447 = vld [vmem:[#allocation8 + $0xc] sm:$0xf]
    %v9449 = vshrl.u32 %v9445, 16
    %v9451 = vrot.slane %v9449, 4
    %v9452 = vshll.u32 %v9445, 16
    %v9454 = vrot.slane %v9452, 5
    %v9455 = vor.u32 %v9451, %v9454
    %v9456 = vrot.slane %v9455, 4
    %v9458 = vshll.u32 %v9446, 16
    %v9460 = vrot.slane %v9458, 5
    %v9461 = vsel %vm214, %v9456, %v9460
    %v9462 = vshrl.u32 %v9446, 16
    %v9464 = vrot.slane %v9462, 4
    %v9465 = vor.u32 %v9464, %v9460
    %v9466 = vrot.slane %v9465, 4
    %v9468 = vshll.u32 %v9447, 16
    %v9470 = vrot.slane %v9468, 5
    %v9471 = vsel %vm214, %v9466, %v9470
    %v9472 = vshrl.u32 %v9447, 16
    %v9474 = vrot.slane %v9472, 4
    %v9475 = vor.u32 %v9474, %v9470
    %v9476 = vrot.slane %v9475, 4
    %9477 = vrot.lane.b32.xlu0 %v9461, 64
    %v9478 = vpop.permute.xlu0 %9477
    %9479 = vrot.lane.b32.xlu0 %v9471, 64
    %v9480 = vpop.permute.xlu0 %9479
    %9481 = vrot.lane.b32.xlu0 %v9476, 64
    %v9482 = vpop.permute.xlu0 %9481
    %9486 = vst.msk [vmem:[#allocation3 + $0xc] sm:$0xf] %vm7194, %v9478
    %9487 = vst.msk [vmem:[#allocation3 + $0x20] sm:$0xf] %vm7194, %v9480
    %9488 = vst.msk [vmem:[#allocation3 + $0x34] sm:$0x7] %vm7208, %v9482
    %v9489 = vld [vmem:[#allocation8 + $0x4] sm:$0xe]
    %v9490 = vld [vmem:[#allocation8 + $0x8] sm:$0xf]
    %v9491 = vld [vmem:[#allocation8 + $0xc] sm:$0xf]
    %v9495 = vrot.slane %v9489, 5
    %v9496 = vrot.slane %v9495, 4
    %v9497 = vrot.slane %v9490, 5
    %v9498 = vsel %vm1178, %v9496, %v9497
    %v9499 = vrot.slane %v9497, 4
    %v9500 = vrot.slane %v9491, 5
    %v9501 = vsel %vm1178, %v9499, %v9500
    %v9502 = vrot.slane %v9500, 4
    %9506 = vst.msk [vmem:[#allocation3 + $0x10] sm:$0xf] %vm6843, %v9498
    %9507 = vst.msk [vmem:[#allocation3 + $0x24] sm:$0xf] %vm6843, %v9501
    %9508 = vst.msk [vmem:[#allocation3 + $0x38] sm:$0x7] %vm6997, %v9502
    %v9509 = vld [vmem:[#allocation3] sm:$0xff]
    %v9510 = vld [vmem:[#allocation3 + $0x8] sm:$0xff]
    %v9511 = vld [vmem:[#allocation3 + $0x10] sm:$0xf]
    %v9512 = vld [vmem:[#allocation3 + $0x14] sm:$0xff]
    %v9513 = vld [vmem:[#allocation3 + $0x1c] sm:$0xff]
    %v9514 = vld [vmem:[#allocation3 + $0x24] sm:$0xf]
    %v9515 = vld [vmem:[#allocation3 + $0x28] sm:$0x77]
    %v9516 = vld [vmem:[#allocation3 + $0x30] sm:$0x77]
    %v9517 = vld [vmem:[#allocation3 + $0x38] sm:$0x7]
    %v9518 = vld [vmem:[%s3] sm:$0xf]
    %v9519 = vld [vmem:[%s3 + $0x4] sm:$0xf]
    %v9520 = vld [vmem:[%s3 + $0x8] sm:$0xf]
    %v9521 = vld [vmem:[%s3 + $0xc] sm:$0xf]
    %v9522 = vld [vmem:[%s3 + $0x10] sm:$0xf]
    %v9523 = vld [vmem:[%s3 + $0x14] sm:$0xf]
    %v9524 = vld [vmem:[%s3 + $0x18] sm:$0xf]
    %v9525 = vld [vmem:[%s3 + $0x1c] sm:$0xf]
    %v9526 = vld [vmem:[%s3 + $0x20] sm:$0xf]
    %v9527 = vld [vmem:[%s3 + $0x24] sm:$0xf]
    %v9528 = vld [vmem:[%s3 + $0x28] sm:$0xf]
    %v9529 = vld [vmem:[%s3 + $0x2c] sm:$0xf]
    %v9530 = vld [vmem:[%s3 + $0x30] sm:$0xf]
    %v9531 = vld [vmem:[%s3 + $0x34] sm:$0xf]
    %v9532 = vld [vmem:[%s3 + $0x38] sm:$0xf]
    %v9533 = vld [vmem:[%s3 + $0x3c] sm:$0xf]
    %v9534 = vld [vmem:[%s3 + $0x40] sm:$0xf]
    %v9535 = vld [vmem:[%s3 + $0x44] sm:$0xf]
    %v9536 = vld [vmem:[%s3 + $0x48] sm:$0xf]
    %v9537 = vld [vmem:[%s3 + $0x4c] sm:$0xf]
    %v9538 = vld [vmem:[%s3 + $0x50] sm:$0xf]
    %v9539 = vld [vmem:[%s3 + $0x54] sm:$0xf]
    %v9540 = vld [vmem:[%s3 + $0x58] sm:$0xf]
    %v9541 = vld [vmem:[%s3 + $0x5c] sm:$0xf]
    %v9542 = vld [vmem:[%s3 + $0x60] sm:$0xf]
    %v9543 = vld [vmem:[%s3 + $0x64] sm:$0xf]
    %v9544 = vld [vmem:[%s3 + $0x68] sm:$0xf]
    %v9545 = vld [vmem:[%s3 + $0x6c] sm:$0xf]
    %v9546 = vld [vmem:[%s3 + $0x70] sm:$0xf]
    %v9547 = vld [vmem:[%s3 + $0x74] sm:$0xf]
    %v9548 = vld [vmem:[%s3 + $0x78] sm:$0xf]
    %v9549 = vld [vmem:[%s3 + $0x7c] sm:$0xf]
    %v9550 = vld [vmem:[%s3 + $0x80] sm:$0xf]
    %v9551 = vld [vmem:[%s3 + $0x84] sm:$0xf]
    %v9552 = vld [vmem:[%s3 + $0x88] sm:$0xf]
    %v9553 = vld [vmem:[%s3 + $0x8c] sm:$0xf]
    %v9554 = vld [vmem:[%s3 + $0x90] sm:$0xf]
    %v9555 = vld [vmem:[%s3 + $0x94] sm:$0xf]
    %v9556 = vld [vmem:[%s3 + $0x98] sm:$0xf]
    %v9557 = vld [vmem:[%s3 + $0x9c] sm:$0xf]
    %v9558 = vld [vmem:[%s3 + $0xa0] sm:$0xf]
    %v9559 = vld [vmem:[%s3 + $0xa4] sm:$0xf]
    %v9560 = vld [vmem:[%s3 + $0xa8] sm:$0xf]
    %v9561 = vld [vmem:[%s3 + $0xac] sm:$0xf]
    %v9562 = vld [vmem:[%s3 + $0xb0] sm:$0xf]
    %v9563 = vld [vmem:[%s3 + $0xb4] sm:$0xf]
    %v9564 = vld [vmem:[%s3 + $0xb8] sm:$0xf]
    %v9565 = vld [vmem:[%s3 + $0xbc] sm:$0xf]
    %v9566 = vld [vmem:[%s3 + $0xc0] sm:$0xf]
    %v9567 = vld [vmem:[%s3 + $0xc4] sm:$0xf]
    %v9568 = vld [vmem:[%s3 + $0xc8] sm:$0xf]
    %v9569 = vld [vmem:[%s3 + $0xcc] sm:$0xf]
    %v9570 = vld [vmem:[%s3 + $0xd0] sm:$0xf]
    %v9571 = vld [vmem:[%s3 + $0xd4] sm:$0xf]
    %v9572 = vld [vmem:[%s3 + $0xd8] sm:$0xf]
    %v9573 = vld [vmem:[%s3 + $0xdc] sm:$0xf]
    %v9574 = vld [vmem:[%s3 + $0xe0] sm:$0xf]
    %v9575 = vld [vmem:[%s3 + $0xe4] sm:$0xf]
    %v9576 = vld [vmem:[%s3 + $0xe8] sm:$0xf]
    %v9577 = vld [vmem:[%s3 + $0xec] sm:$0xf]
    %v9578 = vld [vmem:[%s3 + $0xf0] sm:$0xf]
    %v9579 = vld [vmem:[%s3 + $0xf4] sm:$0xf]
    %v9580 = vld [vmem:[%s3 + $0xf8] sm:$0xf]
    %v9581 = vld [vmem:[%s3 + $0xfc] sm:$0xf]
    %v9582 = vld [vmem:[%s3 + $0x100] sm:$0xf]
    %v9583 = vld [vmem:[%s3 + $0x104] sm:$0xf]
    %v9584 = vld [vmem:[%s3 + $0x108] sm:$0xf]
    %v9585 = vld [vmem:[%s3 + $0x10c] sm:$0xf]
    %v9586 = vld [vmem:[%s3 + $0x110] sm:$0xf]
    %v9587 = vld [vmem:[%s3 + $0x114] sm:$0xf]
    %v9588 = vld [vmem:[%s3 + $0x118] sm:$0xf]
    %v9589 = vld [vmem:[%s3 + $0x11c] sm:$0xf]
    %v9599 = vunpack.c.l.b16 %v9509
    %v9600 = vunpack.c.h.b16 %v9509
    %v9601 = vunpack.c.l.b16 %v9510
    %v9602 = vunpack.c.h.b16 %v9510
    %v9603 = vunpack.c.l.b16 %v9511
    %v9604 = vunpack.c.l.b16 %v9512
    %v9605 = vunpack.c.h.b16 %v9512
    %v9606 = vunpack.c.l.b16 %v9513
    %v9607 = vunpack.c.h.b16 %v9513
    %v9608 = vunpack.c.l.b16 %v9514
    %v9609 = vunpack.c.l.b16 %v9515
    %v9610 = vunpack.c.h.b16 %v9515
    %v9611 = vunpack.c.l.b16 %v9516
    %v9612 = vunpack.c.h.b16 %v9516
    %v9613 = vunpack.c.l.b16 %v9517
    %v9614 = vpack.c.b16 %v9604, %v9599
    %v9615 = vpack.c.b16 %v9605, %v9600
    %v9616 = vpack.c.b16 %v9606, %v9601
    %v9617 = vpack.c.b16 %v9607, %v9602
    %v9618 = vpack.c.b16 %v9608, %v9603
    %v9619 = vpack.c.b16 %v9609, %v9609
    %v9620 = vpack.c.b16 %v9610, %v9610
    %v9621 = vpack.c.b16 %v9611, %v9611
    %v9622 = vpack.c.b16 %v9612, %v9612
    %v9623 = vpack.c.b16 %v9613, %v9613
    %v9704 = vunpack.c.l.b16 %v9518
    %v9705 = vunpack.c.l.b16 %v9519
    %v9706 = vunpack.c.l.b16 %v9520
    %v9707 = vunpack.c.l.b16 %v9521
    %v9708 = vunpack.c.l.b16 %v9522
    %v9709 = vunpack.c.l.b16 %v9523
    %v9710 = vunpack.c.l.b16 %v9524
    %v9711 = vunpack.c.l.b16 %v9525
    %v9712 = vunpack.c.l.b16 %v9526
    %v9713 = vunpack.c.l.b16 %v9527
    %v9714 = vunpack.c.l.b16 %v9528
    %v9715 = vunpack.c.l.b16 %v9529
    %v9716 = vunpack.c.l.b16 %v9530
    %v9717 = vunpack.c.l.b16 %v9531
    %v9718 = vunpack.c.l.b16 %v9532
    %v9719 = vunpack.c.l.b16 %v9533
    %v9720 = vunpack.c.l.b16 %v9534
    %v9721 = vunpack.c.l.b16 %v9535
    %v9722 = vunpack.c.l.b16 %v9536
    %v9723 = vunpack.c.l.b16 %v9537
    %v9724 = vunpack.c.l.b16 %v9538
    %v9725 = vunpack.c.l.b16 %v9539
    %v9726 = vunpack.c.l.b16 %v9540
    %v9727 = vunpack.c.l.b16 %v9541
    %v9728 = vunpack.c.l.b16 %v9542
    %v9729 = vunpack.c.l.b16 %v9543
    %v9730 = vunpack.c.l.b16 %v9544
    %v9731 = vunpack.c.l.b16 %v9545
    %v9732 = vunpack.c.l.b16 %v9546
    %v9733 = vunpack.c.l.b16 %v9547
    %v9734 = vunpack.c.l.b16 %v9548
    %v9735 = vunpack.c.l.b16 %v9549
    %v9736 = vunpack.c.l.b16 %v9550
    %v9737 = vunpack.c.l.b16 %v9551
    %v9738 = vunpack.c.l.b16 %v9552
    %v9739 = vunpack.c.l.b16 %v9553
    %v9740 = vunpack.c.l.b16 %v9554
    %v9741 = vunpack.c.l.b16 %v9555
    %v9742 = vunpack.c.l.b16 %v9556
    %v9743 = vunpack.c.l.b16 %v9557
    %v9744 = vunpack.c.l.b16 %v9558
    %v9745 = vunpack.c.l.b16 %v9559
    %v9746 = vunpack.c.l.b16 %v9560
    %v9747 = vunpack.c.l.b16 %v9561
    %v9748 = vunpack.c.l.b16 %v9562
    %v9749 = vunpack.c.l.b16 %v9563
    %v9750 = vunpack.c.l.b16 %v9564
    %v9751 = vunpack.c.l.b16 %v9565
    %v9752 = vunpack.c.l.b16 %v9566
    %v9753 = vunpack.c.l.b16 %v9567
    %v9754 = vunpack.c.l.b16 %v9568
    %v9755 = vunpack.c.l.b16 %v9569
    %v9756 = vunpack.c.l.b16 %v9570
    %v9757 = vunpack.c.l.b16 %v9571
    %v9758 = vunpack.c.l.b16 %v9572
    %v9759 = vunpack.c.l.b16 %v9573
    %v9760 = vunpack.c.l.b16 %v9574
    %v9761 = vunpack.c.l.b16 %v9575
    %v9762 = vunpack.c.l.b16 %v9576
    %v9763 = vunpack.c.l.b16 %v9577
    %v9764 = vunpack.c.l.b16 %v9578
    %v9765 = vunpack.c.l.b16 %v9579
    %v9766 = vunpack.c.l.b16 %v9580
    %v9767 = vunpack.c.l.b16 %v9581
    %v9768 = vunpack.c.l.b16 %v9582
    %v9769 = vunpack.c.l.b16 %v9583
    %v9770 = vunpack.c.l.b16 %v9584
    %v9771 = vunpack.c.l.b16 %v9585
    %v9772 = vunpack.c.l.b16 %v9586
    %v9773 = vunpack.c.l.b16 %v9587
    %v9774 = vunpack.c.l.b16 %v9588
    %v9775 = vunpack.c.l.b16 %v9589
    %v9776 = vpack.c.b16 %v9705, %v9704
    %v9777 = vpack.c.b16 %v9707, %v9706
    %v9778 = vpack.c.b16 %v9709, %v9708
    %v9779 = vpack.c.b16 %v9711, %v9710
    %v9780 = vpack.c.b16 %v9713, %v9712
    %v9781 = vpack.c.b16 %v9715, %v9714
    %v9782 = vpack.c.b16 %v9717, %v9716
    %v9783 = vpack.c.b16 %v9719, %v9718
    %v9784 = vpack.c.b16 %v9721, %v9720
    %v9785 = vpack.c.b16 %v9723, %v9722
    %v9786 = vpack.c.b16 %v9725, %v9724
    %v9787 = vpack.c.b16 %v9727, %v9726
    %v9788 = vpack.c.b16 %v9729, %v9728
    %v9789 = vpack.c.b16 %v9731, %v9730
    %v9790 = vpack.c.b16 %v9733, %v9732
    %v9791 = vpack.c.b16 %v9735, %v9734
    %v9792 = vpack.c.b16 %v9737, %v9736
    %v9793 = vpack.c.b16 %v9739, %v9738
    %v9794 = vpack.c.b16 %v9741, %v9740
    %v9795 = vpack.c.b16 %v9743, %v9742
    %v9796 = vpack.c.b16 %v9745, %v9744
    %v9797 = vpack.c.b16 %v9747, %v9746
    %v9798 = vpack.c.b16 %v9749, %v9748
    %v9799 = vpack.c.b16 %v9751, %v9750
    %v9800 = vpack.c.b16 %v9753, %v9752
    %v9801 = vpack.c.b16 %v9755, %v9754
    %v9802 = vpack.c.b16 %v9757, %v9756
    %v9803 = vpack.c.b16 %v9759, %v9758
    %v9804 = vpack.c.b16 %v9761, %v9760
    %v9805 = vpack.c.b16 %v9763, %v9762
    %v9806 = vpack.c.b16 %v9765, %v9764
    %v9807 = vpack.c.b16 %v9767, %v9766
    %v9808 = vpack.c.b16 %v9769, %v9768
    %v9809 = vpack.c.b16 %v9771, %v9770
    %v9810 = vpack.c.b16 %v9773, %v9772
    %v9811 = vpack.c.b16 %v9775, %v9774
    %v9849 = vsel %vm6467, %v9618, 0
    %v9852 = vsel %vm6467, %v9623, 0
    %9854 = vmatprep.subr.bf16.mxu0 0
    %9855 = vmatpush1.bf16.msra.mxu0 %v9783
    %9856 = vmatprep.subr.bf16.mxu0 0
    %9857 = vmatpush1.bf16.msra.mxu0 %v9782
    %9858 = vmatprep.subr.bf16.mxu0 0
    %9859 = vmatpush1.bf16.msra.mxu0 %v9781
    %9860 = vmatprep.subr.bf16.mxu0 0
    %9861 = vmatpush1.bf16.msra.mxu0 %v9780
    %9862 = vmatprep.subr.bf16.mxu0 0
    %9863 = vmatpush1.bf16.msra.mxu0 %v9779
    %9864 = vmatprep.subr.bf16.mxu0 0
    %9865 = vmatpush1.bf16.msra.mxu0 %v9778
    %9866 = vmatprep.subr.bf16.mxu0 0
    %9867 = vmatpush1.bf16.msra.mxu0 %v9777
    %9868 = vmatprep.subr.bf16.mxu0 0
    %9869 = vmatpush1.bf16.msra.mxu0 %v9776
    %9870 = vmatprep.subr.bf16.mxu0 0
    %9871 = vmatpush2.bf16.msra.mxu0 %v9791
    %9872 = vmatprep.subr.bf16.mxu0 0
    %9873 = vmatpush2.bf16.msra.mxu0 %v9790
    %9874 = vmatprep.subr.bf16.mxu0 0
    %9875 = vmatpush2.bf16.msra.mxu0 %v9789
    %9876 = vmatprep.subr.bf16.mxu0 0
    %9877 = vmatpush2.bf16.msra.mxu0 %v9788
    %9878 = vmatprep.subr.bf16.mxu0 0
    %9879 = vmatpush2.bf16.msra.mxu0 %v9787
    %9880 = vmatprep.subr.bf16.mxu0 0
    %9881 = vmatpush2.bf16.msra.mxu0 %v9786
    %9882 = vmatprep.subr.bf16.mxu0 0
    %9883 = vmatpush2.bf16.msra.mxu0 %v9785
    %9884 = vmatprep.subr.bf16.mxu0 0
    %9885 = vmatpush2.bf16.msra.mxu0 %v9784
    %9886 = vmatprep.mubr.bf16.mxu0 %v9615
    %9887 = vmatmul.mubr.bf16.gmra.mxu0 %v9614
    %v9888 = vpop.f32.mrf.mxu0
    %v9889 = vadd.f32 0.0, %v9888
    %v9890 = vpop.f32.mrf.mxu0
    %v9891 = vpop.f32.mrf.mxu0
    %v9892 = vadd.f32 0.0, %v9891
    %v9893 = vpop.f32.mrf.mxu0
    %9894 = vmatprep.mubr.bf16.mxu0 %v9620
    %9895 = vmatmul.mubr.bf16.gmra.mxu0 %v9619
    %v9896 = vpop.f32.mrf.mxu0
    %v9897 = vadd.f32 0.0, %v9896
    %v9898 = vpop.f32.mrf.mxu0
    %v9899 = vpop.f32.mrf.mxu0
    %v9900 = vpop.f32.mrf.mxu0
    %9901 = vdwg.mxu0
    %9902 = vmatprep.subr.bf16.mxu0 0
    %9903 = vmatpush1.bf16.msra.mxu0 %v9799
    %9904 = vmatprep.subr.bf16.mxu0 0
    %9905 = vmatpush1.bf16.msra.mxu0 %v9798
    %9906 = vmatprep.subr.bf16.mxu0 0
    %9907 = vmatpush1.bf16.msra.mxu0 %v9797
    %9908 = vmatprep.subr.bf16.mxu0 0
    %9909 = vmatpush1.bf16.msra.mxu0 %v9796
    %9910 = vmatprep.subr.bf16.mxu0 0
    %9911 = vmatpush1.bf16.msra.mxu0 %v9795
    %9912 = vmatprep.subr.bf16.mxu0 0
    %9913 = vmatpush1.bf16.msra.mxu0 %v9794
    %9914 = vmatprep.subr.bf16.mxu0 0
    %9915 = vmatpush1.bf16.msra.mxu0 %v9793
    %9916 = vmatprep.subr.bf16.mxu0 0
    %9917 = vmatpush1.bf16.msra.mxu0 %v9792
    %9918 = vmatprep.subr.bf16.mxu0 0
    %9919 = vmatpush2.bf16.msra.mxu0 %v9807
    %9920 = vmatprep.subr.bf16.mxu0 0
    %9921 = vmatpush2.bf16.msra.mxu0 %v9806
    %9922 = vmatprep.subr.bf16.mxu0 0
    %9923 = vmatpush2.bf16.msra.mxu0 %v9805
    %9924 = vmatprep.subr.bf16.mxu0 0
    %9925 = vmatpush2.bf16.msra.mxu0 %v9804
    %9926 = vmatprep.subr.bf16.mxu0 0
    %9927 = vmatpush2.bf16.msra.mxu0 %v9803
    %9928 = vmatprep.subr.bf16.mxu0 0
    %9929 = vmatpush2.bf16.msra.mxu0 %v9802
    %9930 = vmatprep.subr.bf16.mxu0 0
    %9931 = vmatpush2.bf16.msra.mxu0 %v9801
    %9932 = vmatprep.subr.bf16.mxu0 0
    %9933 = vmatpush2.bf16.msra.mxu0 %v9800
    %9934 = vmatprep.mubr.bf16.mxu0 %v9617
    %9935 = vmatmul.mubr.bf16.gmra.mxu0 %v9616
    %v9936 = vpop.f32.mrf.mxu0
    %v9937 = vadd.f32 %v9889, %v9936
    %v9938 = vpop.f32.mrf.mxu0
    %v9939 = vpop.f32.mrf.mxu0
    %v9940 = vadd.f32 %v9892, %v9939
    %v9941 = vpop.f32.mrf.mxu0
    %9942 = vmatprep.mubr.bf16.mxu0 %v9622
    %9943 = vmatmul.mubr.bf16.gmra.mxu0 %v9621
    %v9944 = vpop.f32.mrf.mxu0
    %v9945 = vadd.f32 %v9897, %v9944
    %v9946 = vpop.f32.mrf.mxu0
    %v9947 = vpop.f32.mrf.mxu0
    %v9948 = vpop.f32.mrf.mxu0
    %9949 = vdwg.mxu0
    %9950 = vmatprep.subr.bf16.mxu0 0
    %9951 = vmatpush1.bf16.msra.mxu0 0
    %9952 = vmatprep.subr.bf16.mxu0 0
    %9953 = vmatpush1.bf16.msra.mxu0 0
    %9954 = vmatprep.subr.bf16.mxu0 0
    %9955 = vmatpush1.bf16.msra.mxu0 0
    %9956 = vmatprep.subr.bf16.mxu0 0
    %9957 = vmatpush1.bf16.msra.mxu0 0
    %9958 = vmatprep.subr.bf16.mxu0 0
    %9959 = vmatpush1.bf16.msra.mxu0 %v9811
    %9960 = vmatprep.subr.bf16.mxu0 0
    %9961 = vmatpush1.bf16.msra.mxu0 %v9810
    %9962 = vmatprep.subr.bf16.mxu0 0
    %9963 = vmatpush1.bf16.msra.mxu0 %v9809
    %9964 = vmatprep.subr.bf16.mxu0 0
    %9965 = vmatpush1.bf16.msra.mxu0 %v9808
    %9966 = vmatprep.subr.bf16.mxu0 0
    %9967 = vmatpush2.bf16.msra.mxu0 0
    %9968 = vmatprep.subr.bf16.mxu0 0
    %9969 = vmatpush2.bf16.msra.mxu0 0
    %9970 = vmatprep.subr.bf16.mxu0 0
    %9971 = vmatpush2.bf16.msra.mxu0 0
    %9972 = vmatprep.subr.bf16.mxu0 0
    %9973 = vmatpush2.bf16.msra.mxu0 0
    %9974 = vmatprep.subr.bf16.mxu0 0
    %9975 = vmatpush2.bf16.msra.mxu0 0
    %9976 = vmatprep.subr.bf16.mxu0 0
    %9977 = vmatpush2.bf16.msra.mxu0 0
    %9978 = vmatprep.subr.bf16.mxu0 0
    %9979 = vmatpush2.bf16.msra.mxu0 0
    %9980 = vmatprep.subr.bf16.mxu0 0
    %9981 = vmatpush2.bf16.msra.mxu0 0
    %9982 = vmatprep.mubr.bf16.mxu0 0
    %9983 = vmatmul.mubr.bf16.gmra.mxu0 %v9849
    %v9984 = vpop.f32.mrf.mxu0
    %v9985 = vadd.f32 %v9937, %v9984
    %v9986 = vpop.f32.mrf.mxu0
    %v9987 = vpop.f32.mrf.mxu0
    %v9988 = vadd.f32 %v9940, %v9987
    %v9989 = vpop.f32.mrf.mxu0
    %9990 = vmatprep.mubr.bf16.mxu0 0
    %9991 = vmatmul.mubr.bf16.gmra.mxu0 %v9852
    %v9992 = vpop.f32.mrf.mxu0
    %v9993 = vadd.f32 %v9945, %v9992
    %v9994 = vpop.f32.mrf.mxu0
    %v9995 = vpop.f32.mrf.mxu0
    %v9996 = vpop.f32.mrf.mxu0
    %9997 = vdwg.mxu0
    %v9998 = vand.u32 %v5823, 15
    %v9999 = vshrl.u32 %v9998, 2
    %vm10000 = vcmp.lt.s32.totalorder %v9999, 2
    %v10001 = vand.u32 %v9998, 3
    %vm10002 = vcmp.lt.s32.totalorder %v10001, 2
    %vm10003 = vmand %vm10000, %vm10002
    %v10004 = vsel %vm10003, 1, 0
    %v10005 = vcvt.s32.f32 %v10004
    %vm10006 = vcmask 179200
    %v10008 = vsel %vm10006, %v10005, 0
    %v10011 = vsel %vm5863, %v9993, 0
    %10013 = vmatprep.subr.mxu0 0.0
    %10014 = vmatpush1.msra.mxu0 0.0
    %10015 = vmatprep.subr.mxu0 0.0
    %10016 = vmatpush1.msra.mxu0 0.0
    %10017 = vmatprep.subr.mxu0 0.0
    %10018 = vmatpush1.msra.mxu0 0.0
    %10019 = vmatprep.subr.mxu0 0.0
    %10020 = vmatpush1.msra.mxu0 0.0
    %10021 = vmatprep.subr.mxu0 0.0
    %10022 = vmatpush1.msra.mxu0 0.0
    %10023 = vmatprep.subr.mxu0 0.0
    %10024 = vmatpush1.msra.mxu0 0.0
    %10025 = vmatprep.subr.mxu0 0.0
    %10026 = vmatpush1.msra.mxu0 0.0
    %10027 = vmatprep.subr.mxu0 0.0
    %10028 = vmatpush1.msra.mxu0 0.0
    %10029 = vmatprep.subr.mxu0 0.0
    %10030 = vmatpush1.msra.mxu0 0.0
    %10031 = vmatprep.subr.mxu0 0.0
    %10032 = vmatpush1.msra.mxu0 0.0
    %10033 = vmatprep.subr.mxu0 0.0
    %10034 = vmatpush1.msra.mxu0 0.0
    %10035 = vmatprep.subr.mxu0 0.0
    %10036 = vmatpush1.msra.mxu0 0.0
    %10037 = vmatprep.subr.mxu0 0.0
    %10038 = vmatpush1.msra.mxu0 0.0
    %10039 = vmatprep.subr.mxu0 0.0
    %10040 = vmatpush1.msra.mxu0 %v10011
    %10041 = vmatprep.subr.mxu0 0.0
    %10042 = vmatpush1.msra.mxu0 %v9988
    %10043 = vmatprep.subr.mxu0 0.0
    %10044 = vmatpush1.msra.mxu0 %v9985
    %10045 = vmatprep.subr.mxu0 0.0
    %10046 = vmatpush2.msra.mxu0 0.0
    %10047 = vmatprep.subr.mxu0 0.0
    %10048 = vmatpush2.msra.mxu0 0.0
    %10049 = vmatprep.subr.mxu0 0.0
    %10050 = vmatpush2.msra.mxu0 0.0
    %10051 = vmatprep.subr.mxu0 0.0
    %10052 = vmatpush2.msra.mxu0 0.0
    %10053 = vmatprep.subr.mxu0 0.0
    %10054 = vmatpush2.msra.mxu0 0.0
    %10055 = vmatprep.subr.mxu0 0.0
    %10056 = vmatpush2.msra.mxu0 0.0
    %10057 = vmatprep.subr.mxu0 0.0
    %10058 = vmatpush2.msra.mxu0 0.0
    %10059 = vmatprep.subr.mxu0 0.0
    %10060 = vmatpush2.msra.mxu0 0.0
    %10061 = vmatprep.subr.mxu0 0.0
    %10062 = vmatpush2.msra.mxu0 0.0
    %10063 = vmatprep.subr.mxu0 0.0
    %10064 = vmatpush2.msra.mxu0 0.0
    %10065 = vmatprep.subr.mxu0 0.0
    %10066 = vmatpush2.msra.mxu0 0.0
    %10067 = vmatprep.subr.mxu0 0.0
    %10068 = vmatpush2.msra.mxu0 0.0
    %10069 = vmatprep.subr.mxu0 0.0
    %10070 = vmatpush2.msra.mxu0 0.0
    %10071 = vmatprep.subr.mxu0 0.0
    %10072 = vmatpush2.msra.mxu0 0.0
    %10073 = vmatprep.subr.mxu0 0.0
    %10074 = vmatpush2.msra.mxu0 0.0
    %10075 = vmatprep.subr.mxu0 0.0
    %10076 = vmatpush2.msra.mxu0 0.0
    %10077 = vmatprep.mubr.f32.mxu0 0.0
    %10078 = vmatmul.mubr.f32.gmra.mxu0 %v10008
    %v10079 = vpop.f32.mrf.mxu0
    %v10080 = vadd.f32 0.0, %v10079
    %v10081 = vpop.f32.mrf.mxu0
    %10082 = vdwg.mxu0
    %v10083 = vmul.f32 %v10080, 0.125
    %v10084 = vlaneseq
    %v10085 = vshrl.u32 %v10084, 7
    %v10086 = vsub.s32 0, %v10085
    %v10087 = vrot.slane %v10083, %v10086
    %v10088 = vsub.f32 %v9985, %v10087
    %v10089 = vsub.f32 %v9988, %v10087
    %v10090 = vsub.f32 %v9993, %v10087
    %v10091 = vmul.f32 %v10088, %v10088
    %v10092 = vmul.f32 %v10089, %v10089
    %v10093 = vmul.f32 %v10090, %v10090
    %v10095 = vsel %vm5863, %v10093, 0
    %10097 = vmatprep.subr.mxu0 0.0
    %10098 = vmatpush1.msra.mxu0 0.0
    %10099 = vmatprep.subr.mxu0 0.0
    %10100 = vmatpush1.msra.mxu0 0.0
    %10101 = vmatprep.subr.mxu0 0.0
    %10102 = vmatpush1.msra.mxu0 0.0
    %10103 = vmatprep.subr.mxu0 0.0
    %10104 = vmatpush1.msra.mxu0 0.0
    %10105 = vmatprep.subr.mxu0 0.0
    %10106 = vmatpush1.msra.mxu0 0.0
    %10107 = vmatprep.subr.mxu0 0.0
    %10108 = vmatpush1.msra.mxu0 0.0
    %10109 = vmatprep.subr.mxu0 0.0
    %10110 = vmatpush1.msra.mxu0 0.0
    %10111 = vmatprep.subr.mxu0 0.0
    %10112 = vmatpush1.msra.mxu0 0.0
    %10113 = vmatprep.subr.mxu0 0.0
    %10114 = vmatpush1.msra.mxu0 0.0
    %10115 = vmatprep.subr.mxu0 0.0
    %10116 = vmatpush1.msra.mxu0 0.0
    %10117 = vmatprep.subr.mxu0 0.0
    %10118 = vmatpush1.msra.mxu0 0.0
    %10119 = vmatprep.subr.mxu0 0.0
    %10120 = vmatpush1.msra.mxu0 0.0
    %10121 = vmatprep.subr.mxu0 0.0
    %10122 = vmatpush1.msra.mxu0 0.0
    %10123 = vmatprep.subr.mxu0 0.0
    %10124 = vmatpush1.msra.mxu0 %v10095
    %10125 = vmatprep.subr.mxu0 0.0
    %10126 = vmatpush1.msra.mxu0 %v10092
    %10127 = vmatprep.subr.mxu0 0.0
    %10128 = vmatpush1.msra.mxu0 %v10091
    %10129 = vmatprep.subr.mxu0 0.0
    %10130 = vmatpush2.msra.mxu0 0.0
    %10131 = vmatprep.subr.mxu0 0.0
    %10132 = vmatpush2.msra.mxu0 0.0
    %10133 = vmatprep.subr.mxu0 0.0
    %10134 = vmatpush2.msra.mxu0 0.0
    %10135 = vmatprep.subr.mxu0 0.0
    %10136 = vmatpush2.msra.mxu0 0.0
    %10137 = vmatprep.subr.mxu0 0.0
    %10138 = vmatpush2.msra.mxu0 0.0
    %10139 = vmatprep.subr.mxu0 0.0
    %10140 = vmatpush2.msra.mxu0 0.0
    %10141 = vmatprep.subr.mxu0 0.0
    %10142 = vmatpush2.msra.mxu0 0.0
    %10143 = vmatprep.subr.mxu0 0.0
    %10144 = vmatpush2.msra.mxu0 0.0
    %10145 = vmatprep.subr.mxu0 0.0
    %10146 = vmatpush2.msra.mxu0 0.0
    %10147 = vmatprep.subr.mxu0 0.0
    %10148 = vmatpush2.msra.mxu0 0.0
    %10149 = vmatprep.subr.mxu0 0.0
    %10150 = vmatpush2.msra.mxu0 0.0
    %10151 = vmatprep.subr.mxu0 0.0
    %10152 = vmatpush2.msra.mxu0 0.0
    %10153 = vmatprep.subr.mxu0 0.0
    %10154 = vmatpush2.msra.mxu0 0.0
    %10155 = vmatprep.subr.mxu0 0.0
    %10156 = vmatpush2.msra.mxu0 0.0
    %10157 = vmatprep.subr.mxu0 0.0
    %10158 = vmatpush2.msra.mxu0 0.0
    %10159 = vmatprep.subr.mxu0 0.0
    %10160 = vmatpush2.msra.mxu0 0.0
    %10161 = vmatprep.mubr.f32.mxu0 0.0
    %10162 = vmatmul.mubr.f32.gmra.mxu0 %v10008
    %v10163 = vpop.f32.mrf.mxu0
    %v10164 = vadd.f32 0.0, %v10163
    %v10165 = vpop.f32.mrf.mxu0
    %10166 = vdwg.mxu0
    %v10167 = vmul.f32 %v10164, 0.125
    %v10168 = vadd.f32 %v10167, 1e-05
    %v10169 = vrsqrt.pop %v10168
    %v10170 = vmul.f32 %v9250, %v10169
    %v10171 = vlaneseq
    %v10172 = vshrl.u32 %v10171, 7
    %v10173 = vsub.s32 0, %v10172
    %v10174 = vrot.slane %v10170, %v10173
    %v10175 = vmul.f32 %v10088, %v10174
    %v10176 = vmul.f32 %v10089, %v10174
    %v10177 = vmul.f32 %v10090, %v10174
    %v10178 = vlaneseq
    %v10179 = vshrl.u32 %v10178, 7
    %v10180 = vsub.s32 0, %v10179
    %v10181 = vrot.slane %v9251, %v10180
    %v10182 = vadd.f32 %v10175, %v10181
    %v10183 = vadd.f32 %v10176, %v10181
    %v10184 = vadd.f32 %v10177, %v10181
    %v10185 = vmax.f32 %v10182, 0.0
    %v10186 = vmax.f32 %v10183, 0.0
    %v10187 = vmax.f32 %v10184, 0.0
    %10188 = vst.msk [vmem:[#allocation9] sm:$0xf] %vm6843, 0
    %10189 = vst.msk [vmem:[#allocation9 + $0x4] sm:$0xf] %vm6843, 0
    %10190 = vst.msk [vmem:[#allocation9 + $0x8] sm:$0xf] %vm6843, 0
    %10191 = vst.msk [vmem:[#allocation9 + $0xc] sm:$0xf] %vm6843, 0
    %v10192 = vlaneseq
    %v10193 = vshrl.u32 %v10192, 7
    %v10194 = vadd.s32 %v10193, 8
    %v10195 = vadd.s32 %v10193, 16
    %v10196 = vand.u32 %v10193, 15
    %v10197 = vand.u32 %v10194, 15
    %v10198 = vand.u32 %v10195, 15
    %v10199 = vshrl.u32 %v10196, 2
    %v10200 = vshrl.u32 %v10197, 2
    %v10201 = vshrl.u32 %v10198, 2
    %vm10202 = vcmp.lt.s32.totalorder %v10199, 2
    %vm10203 = vcmp.lt.s32.totalorder %v10200, 2
    %vm10204 = vcmp.lt.s32.totalorder %v10201, 2
    %v10205 = vand.u32 %v10196, 3
    %v10206 = vand.u32 %v10197, 3
    %v10207 = vand.u32 %v10198, 3
    %vm10208 = vcmp.lt.s32.totalorder %v10205, 2
    %vm10209 = vcmp.lt.s32.totalorder %v10206, 2
    %vm10210 = vcmp.lt.s32.totalorder %v10207, 2
    %vm10211 = vmand %vm10202, %vm10208
    %vm10212 = vmand %vm10203, %vm10209
    %vm10213 = vmand %vm10204, %vm10210
    %v10214 = vsel %vm10211, 1, 0
    %v10215 = vsel %vm10212, 1, 0
    %v10216 = vsel %vm10213, 1, 0
    %vm10217 = vcmp.eq.s32.totalorder %v10214, 1
    %vm10218 = vcmp.eq.s32.totalorder %v10215, 1
    %vm10219 = vcmp.eq.s32.totalorder %v10216, 1
    %v10220 = vsel %vm10217, %v10185, 0.0
    %v10221 = vsel %vm10218, %v10186, 0.0
    %v10222 = vsel %vm10219, %v10187, 0.0
    %v10223 = vpack.c.bf16 %v10221, %v10220
    %v10224 = vpack.c.bf16 %v10222, %v10222
    %v10227 = vunpack.c.l.b16 %v10223
    %v10228 = vunpack.c.h.b16 %v10223
    %v10229 = vunpack.c.l.b16 %v10224
    %v10230 = vpack.c.b16 %v10227, %v10227
    %v10231 = vpack.c.b16 %v10228, %v10228
    %v10232 = vpack.c.b16 %v10229, %v10229
    %vm10233 = vsmask.f32 2304
    %vm10234 = vsmask.f32 6416
    %vm10235 = vmor %vm10233, %vm10234
    %v10237 = vshrl.u32 %v10230, 16
    %v10239 = vrot.slane %v10237, 5
    %v10240 = vshll.u32 %v10230, 16
    %v10242 = vrot.slane %v10240, 6
    %v10243 = vor.u32 %v10239, %v10242
    %v10244 = vrot.slane %v10243, 4
    %v10246 = vshrl.u32 %v10231, 16
    %v10248 = vrot.slane %v10246, 5
    %v10249 = vshll.u32 %v10231, 16
    %v10251 = vrot.slane %v10249, 6
    %v10252 = vor.u32 %v10248, %v10251
    %v10253 = vsel %vm10235, %v10244, %v10252
    %v10254 = vrot.slane %v10252, 4
    %v10256 = vshrl.u32 %v10232, 16
    %v10258 = vrot.slane %v10256, 5
    %v10259 = vshll.u32 %v10232, 16
    %v10261 = vrot.slane %v10259, 6
    %v10262 = vor.u32 %v10258, %v10261
    %v10263 = vsel %vm10235, %v10254, %v10262
    %v10264 = vrot.slane %v10262, 4
    %vm10269 = vsmask.f32 7946
    %vm10270 = vmand %vm9178, %vm10269
    %v10271 = vld [vmem:[#allocation9] sm:$0xc]
    %v10272 = vsel %vm10270, %v10243, %v10271
    %10273 = vst [vmem:[#allocation9] sm:$0xc] %v10272
    %10274 = vst.msk [vmem:[#allocation9 + $0x4] sm:$0xf] %vm6843, %v10253
    %10275 = vst.msk [vmem:[#allocation9 + $0x8] sm:$0xf] %vm6843, %v10263
    %vm10276 = vmand %vm9199, %vm9359
    %v10277 = vld [vmem:[#allocation9 + $0xc] sm:$0x3]
    %v10278 = vsel %vm10276, %v10264, %v10277
    %10279 = vst [vmem:[#allocation9 + $0xc] sm:$0x3] %v10278
    %v10280 = vld [vmem:[%s5 + $0x3] sm:$0x1]
    %v10281 = vld [vmem:[%s6 + $0x3] sm:$0x1]
    %v10282 = vld [vmem:[#allocation9] sm:$0xf]
    %v10283 = vld [vmem:[#allocation9 + $0x4] sm:$0xf]
    %v10284 = vld [vmem:[#allocation9 + $0x8] sm:$0x7]
    %10285 = vst.msk [vmem:[#allocation3] sm:$0xf] %vm6843, %v10282
    %10286 = vst.msk [vmem:[#allocation3 + $0x14] sm:$0xf] %vm6843, %v10283
    %10287 = vst.msk [vmem:[#allocation3 + $0x28] sm:$0x7] %vm6997, %v10284
    %v10288 = vld [vmem:[#allocation9] sm:$0xf]
    %v10289 = vld [vmem:[#allocation9 + $0x4] sm:$0xf]
    %v10290 = vld [vmem:[#allocation9 + $0x8] sm:$0xf]
    %v10292 = vshrl.u32 %v10288, 16
    %v10294 = vrot.slane %v10292, 4
    %v10295 = vshll.u32 %v10288, 16
    %v10297 = vrot.slane %v10295, 5
    %v10298 = vor.u32 %v10294, %v10297
    %v10299 = vrot.slane %v10298, 4
    %v10301 = vshll.u32 %v10289, 16
    %v10303 = vrot.slane %v10301, 5
    %v10304 = vsel %vm214, %v10299, %v10303
    %v10305 = vshrl.u32 %v10289, 16
    %v10307 = vrot.slane %v10305, 4
    %v10308 = vor.u32 %v10307, %v10303
    %v10309 = vrot.slane %v10308, 4
    %v10311 = vshll.u32 %v10290, 16
    %v10313 = vrot.slane %v10311, 5
    %v10314 = vsel %vm214, %v10309, %v10313
    %v10315 = vshrl.u32 %v10290, 16
    %v10317 = vrot.slane %v10315, 4
    %v10318 = vor.u32 %v10317, %v10313
    %v10319 = vrot.slane %v10318, 4
    %10320 = vrot.lane.b32.xlu0 %v10304, 64
    %v10321 = vpop.permute.xlu0 %10320
    %10322 = vrot.lane.b32.xlu0 %v10314, 64
    %v10323 = vpop.permute.xlu0 %10322
    %10324 = vrot.lane.b32.xlu0 %v10319, 64
    %v10325 = vpop.permute.xlu0 %10324
    %10329 = vst.msk [vmem:[#allocation3] sm:$0xf] %vm7194, %v10321
    %10330 = vst.msk [vmem:[#allocation3 + $0x14] sm:$0xf] %vm7194, %v10323
    %10331 = vst.msk [vmem:[#allocation3 + $0x28] sm:$0x7] %vm7208, %v10325
    %v10332 = vld [vmem:[#allocation9] sm:$0xe]
    %v10333 = vld [vmem:[#allocation9 + $0x4] sm:$0xf]
    %v10334 = vld [vmem:[#allocation9 + $0x8] sm:$0xf]
    %v10338 = vrot.slane %v10332, 5
    %v10339 = vrot.slane %v10338, 4
    %v10340 = vrot.slane %v10333, 5
    %v10341 = vsel %vm1178, %v10339, %v10340
    %v10342 = vrot.slane %v10340, 4
    %v10343 = vrot.slane %v10334, 5
    %v10344 = vsel %vm1178, %v10342, %v10343
    %v10345 = vrot.slane %v10343, 4
    %10349 = vst.msk [vmem:[#allocation3 + $0x4] sm:$0xf] %vm6843, %v10341
    %10350 = vst.msk [vmem:[#allocation3 + $0x18] sm:$0xf] %vm6843, %v10344
    %10351 = vst.msk [vmem:[#allocation3 + $0x2c] sm:$0x7] %vm6997, %v10345
    %v10352 = vld [vmem:[#allocation9] sm:$0xc]
    %v10353 = vld [vmem:[#allocation9 + $0x4] sm:$0xf]
    %v10354 = vld [vmem:[#allocation9 + $0x8] sm:$0xf]
    %v10355 = vld [vmem:[#allocation9 + $0xc] sm:$0x1]
    %v10360 = vrot.slane %v10352, 6
    %v10361 = vrot.slane %v10360, 4
    %v10362 = vrot.slane %v10353, 6
    %v10363 = vsel %vm9332, %v10361, %v10362
    %v10364 = vrot.slane %v10362, 4
    %v10365 = vrot.slane %v10354, 6
    %v10366 = vsel %vm9332, %v10364, %v10365
    %v10367 = vrot.slane %v10365, 4
    %v10368 = vrot.slane %v10355, 6
    %v10369 = vsel %vm9332, %v10367, %v10368
    %10370 = vrot.lane.b32.xlu0 %v10363, 64
    %v10371 = vpop.permute.xlu0 %10370
    %10372 = vrot.lane.b32.xlu0 %v10366, 64
    %v10373 = vpop.permute.xlu0 %10372
    %10374 = vrot.lane.b32.xlu0 %v10369, 64
    %v10375 = vpop.permute.xlu0 %10374
    %10379 = vst.msk [vmem:[#allocation3 + $0x4] sm:$0xf] %vm7194, %v10371
    %10380 = vst.msk [vmem:[#allocation3 + $0x18] sm:$0xf] %vm7194, %v10373
    %10381 = vst.msk [vmem:[#allocation3 + $0x2c] sm:$0x7] %vm7208, %v10375
    %v10382 = vld [vmem:[#allocation9] sm:$0xc]
    %v10383 = vld [vmem:[#allocation9 + $0x4] sm:$0xf]
    %v10384 = vld [vmem:[#allocation9 + $0x8] sm:$0xf]
    %v10385 = vld [vmem:[#allocation9 + $0xc] sm:$0x3]
    %v10387 = vshrl.u32 %v10382, 16
    %v10389 = vrot.slane %v10387, 6
    %v10390 = vshll.u32 %v10382, 16
    %v10392 = vrot.slane %v10390, 7
    %v10393 = vor.u32 %v10389, %v10392
    %v10394 = vrot.slane %v10393, 4
    %v10396 = vshrl.u32 %v10383, 16
    %v10398 = vrot.slane %v10396, 6
    %v10399 = vshll.u32 %v10383, 16
    %v10401 = vrot.slane %v10399, 7
    %v10402 = vor.u32 %v10398, %v10401
    %v10403 = vsel %vm9361, %v10394, %v10402
    %v10404 = vrot.slane %v10402, 4
    %v10406 = vshrl.u32 %v10384, 16
    %v10408 = vrot.slane %v10406, 6
    %v10409 = vshll.u32 %v10384, 16
    %v10411 = vrot.slane %v10409, 7
    %v10412 = vor.u32 %v10408, %v10411
    %v10413 = vsel %vm9361, %v10404, %v10412
    %v10414 = vrot.slane %v10412, 4
    %v10416 = vshrl.u32 %v10385, 16
    %v10418 = vrot.slane %v10416, 6
    %v10419 = vshll.u32 %v10385, 16
    %v10421 = vrot.slane %v10419, 7
    %v10422 = vor.u32 %v10418, %v10421
    %v10423 = vsel %vm9361, %v10414, %v10422
    %10427 = vst.msk [vmem:[#allocation3 + $0x8] sm:$0xf] %vm6843, %v10403
    %10428 = vst.msk [vmem:[#allocation3 + $0x1c] sm:$0xf] %vm6843, %v10413
    %10429 = vst.msk [vmem:[#allocation3 + $0x30] sm:$0x7] %vm6997, %v10423
    %v10430 = vld [vmem:[#allocation9] sm:$0x8]
    %v10431 = vld [vmem:[#allocation9 + $0x4] sm:$0xf]
    %v10432 = vld [vmem:[#allocation9 + $0x8] sm:$0xf]
    %v10433 = vld [vmem:[#allocation9 + $0xc] sm:$0x3]
    %v10438 = vrot.slane %v10430, 7
    %v10439 = vrot.slane %v10438, 4
    %v10440 = vrot.slane %v10431, 7
    %v10441 = vsel %vm9416, %v10439, %v10440
    %v10442 = vrot.slane %v10440, 4
    %v10443 = vrot.slane %v10432, 7
    %v10444 = vsel %vm9416, %v10442, %v10443
    %v10445 = vrot.slane %v10443, 4
    %v10446 = vrot.slane %v10433, 7
    %v10447 = vsel %vm9416, %v10445, %v10446
    %10448 = vrot.lane.b32.xlu0 %v10441, 64
    %v10449 = vpop.permute.xlu0 %10448
    %10450 = vrot.lane.b32.xlu0 %v10444, 64
    %v10451 = vpop.permute.xlu0 %10450
    %10452 = vrot.lane.b32.xlu0 %v10447, 64
    %v10453 = vpop.permute.xlu0 %10452
    %10457 = vst.msk [vmem:[#allocation3 + $0x8] sm:$0xf] %vm7194, %v10449
    %10458 = vst.msk [vmem:[#allocation3 + $0x1c] sm:$0xf] %vm7194, %v10451
    %10459 = vst.msk [vmem:[#allocation3 + $0x30] sm:$0x7] %vm7208, %v10453
    %v10460 = vld [vmem:[#allocation9 + $0x4] sm:$0xf]
    %v10461 = vld [vmem:[#allocation9 + $0x8] sm:$0xf]
    %v10462 = vld [vmem:[#allocation9 + $0xc] sm:$0x7]
    %10463 = vst.msk [vmem:[#allocation3 + $0xc] sm:$0xf] %vm6843, %v10460
    %10464 = vst.msk [vmem:[#allocation3 + $0x20] sm:$0xf] %vm6843, %v10461
    %10465 = vst.msk [vmem:[#allocation3 + $0x34] sm:$0x7] %vm6997, %v10462
    %v10466 = vld [vmem:[#allocation9 + $0x4] sm:$0xf]
    %v10467 = vld [vmem:[#allocation9 + $0x8] sm:$0xf]
    %v10468 = vld [vmem:[#allocation9 + $0xc] sm:$0xf]
    %v10470 = vshrl.u32 %v10466, 16
    %v10472 = vrot.slane %v10470, 4
    %v10473 = vshll.u32 %v10466, 16
    %v10475 = vrot.slane %v10473, 5
    %v10476 = vor.u32 %v10472, %v10475
    %v10477 = vrot.slane %v10476, 4
    %v10479 = vshll.u32 %v10467, 16
    %v10481 = vrot.slane %v10479, 5
    %v10482 = vsel %vm214, %v10477, %v10481
    %v10483 = vshrl.u32 %v10467, 16
    %v10485 = vrot.slane %v10483, 4
    %v10486 = vor.u32 %v10485, %v10481
    %v10487 = vrot.slane %v10486, 4
    %v10489 = vshll.u32 %v10468, 16
    %v10491 = vrot.slane %v10489, 5
    %v10492 = vsel %vm214, %v10487, %v10491
    %v10493 = vshrl.u32 %v10468, 16
    %v10495 = vrot.slane %v10493, 4
    %v10496 = vor.u32 %v10495, %v10491
    %v10497 = vrot.slane %v10496, 4
    %10498 = vrot.lane.b32.xlu0 %v10482, 64
    %v10499 = vpop.permute.xlu0 %10498
    %10500 = vrot.lane.b32.xlu0 %v10492, 64
    %v10501 = vpop.permute.xlu0 %10500
    %10502 = vrot.lane.b32.xlu0 %v10497, 64
    %v10503 = vpop.permute.xlu0 %10502
    %10507 = vst.msk [vmem:[#allocation3 + $0xc] sm:$0xf] %vm7194, %v10499
    %10508 = vst.msk [vmem:[#allocation3 + $0x20] sm:$0xf] %vm7194, %v10501
    %10509 = vst.msk [vmem:[#allocation3 + $0x34] sm:$0x7] %vm7208, %v10503
    %v10510 = vld [vmem:[#allocation9 + $0x4] sm:$0xe]
    %v10511 = vld [vmem:[#allocation9 + $0x8] sm:$0xf]
    %v10512 = vld [vmem:[#allocation9 + $0xc] sm:$0xf]
    %v10516 = vrot.slane %v10510, 5
    %v10517 = vrot.slane %v10516, 4
    %v10518 = vrot.slane %v10511, 5
    %v10519 = vsel %vm1178, %v10517, %v10518
    %v10520 = vrot.slane %v10518, 4
    %v10521 = vrot.slane %v10512, 5
    %v10522 = vsel %vm1178, %v10520, %v10521
    %v10523 = vrot.slane %v10521, 4
    %10527 = vst.msk [vmem:[#allocation3 + $0x10] sm:$0xf] %vm6843, %v10519
    %10528 = vst.msk [vmem:[#allocation3 + $0x24] sm:$0xf] %vm6843, %v10522
    %10529 = vst.msk [vmem:[#allocation3 + $0x38] sm:$0x7] %vm6997, %v10523
    %v10530 = vld [vmem:[#allocation3] sm:$0xff]
    %v10531 = vld [vmem:[#allocation3 + $0x8] sm:$0xff]
    %v10532 = vld [vmem:[#allocation3 + $0x10] sm:$0xf]
    %v10533 = vld [vmem:[#allocation3 + $0x14] sm:$0xff]
    %v10534 = vld [vmem:[#allocation3 + $0x1c] sm:$0xff]
    %v10535 = vld [vmem:[#allocation3 + $0x24] sm:$0xf]
    %v10536 = vld [vmem:[#allocation3 + $0x28] sm:$0x77]
    %v10537 = vld [vmem:[#allocation3 + $0x30] sm:$0x77]
    %v10538 = vld [vmem:[#allocation3 + $0x38] sm:$0x7]
    %v10539 = vld [vmem:[%s4] sm:$0xf]
    %v10540 = vld [vmem:[%s4 + $0x4] sm:$0xf]
    %v10541 = vld [vmem:[%s4 + $0x8] sm:$0xf]
    %v10542 = vld [vmem:[%s4 + $0xc] sm:$0xf]
    %v10543 = vld [vmem:[%s4 + $0x10] sm:$0xf]
    %v10544 = vld [vmem:[%s4 + $0x14] sm:$0xf]
    %v10545 = vld [vmem:[%s4 + $0x18] sm:$0xf]
    %v10546 = vld [vmem:[%s4 + $0x1c] sm:$0xf]
    %v10547 = vld [vmem:[%s4 + $0x20] sm:$0xf]
    %v10548 = vld [vmem:[%s4 + $0x24] sm:$0xf]
    %v10549 = vld [vmem:[%s4 + $0x28] sm:$0xf]
    %v10550 = vld [vmem:[%s4 + $0x2c] sm:$0xf]
    %v10551 = vld [vmem:[%s4 + $0x30] sm:$0xf]
    %v10552 = vld [vmem:[%s4 + $0x34] sm:$0xf]
    %v10553 = vld [vmem:[%s4 + $0x38] sm:$0xf]
    %v10554 = vld [vmem:[%s4 + $0x3c] sm:$0xf]
    %v10555 = vld [vmem:[%s4 + $0x40] sm:$0xf]
    %v10556 = vld [vmem:[%s4 + $0x44] sm:$0xf]
    %v10557 = vld [vmem:[%s4 + $0x48] sm:$0xf]
    %v10558 = vld [vmem:[%s4 + $0x4c] sm:$0xf]
    %v10559 = vld [vmem:[%s4 + $0x50] sm:$0xf]
    %v10560 = vld [vmem:[%s4 + $0x54] sm:$0xf]
    %v10561 = vld [vmem:[%s4 + $0x58] sm:$0xf]
    %v10562 = vld [vmem:[%s4 + $0x5c] sm:$0xf]
    %v10563 = vld [vmem:[%s4 + $0x60] sm:$0xf]
    %v10564 = vld [vmem:[%s4 + $0x64] sm:$0xf]
    %v10565 = vld [vmem:[%s4 + $0x68] sm:$0xf]
    %v10566 = vld [vmem:[%s4 + $0x6c] sm:$0xf]
    %v10567 = vld [vmem:[%s4 + $0x70] sm:$0xf]
    %v10568 = vld [vmem:[%s4 + $0x74] sm:$0xf]
    %v10569 = vld [vmem:[%s4 + $0x78] sm:$0xf]
    %v10570 = vld [vmem:[%s4 + $0x7c] sm:$0xf]
    %v10571 = vld [vmem:[%s4 + $0x80] sm:$0xf]
    %v10572 = vld [vmem:[%s4 + $0x84] sm:$0xf]
    %v10573 = vld [vmem:[%s4 + $0x88] sm:$0xf]
    %v10574 = vld [vmem:[%s4 + $0x8c] sm:$0xf]
    %v10575 = vld [vmem:[%s4 + $0x90] sm:$0xf]
    %v10576 = vld [vmem:[%s4 + $0x94] sm:$0xf]
    %v10577 = vld [vmem:[%s4 + $0x98] sm:$0xf]
    %v10578 = vld [vmem:[%s4 + $0x9c] sm:$0xf]
    %v10579 = vld [vmem:[%s4 + $0xa0] sm:$0xf]
    %v10580 = vld [vmem:[%s4 + $0xa4] sm:$0xf]
    %v10581 = vld [vmem:[%s4 + $0xa8] sm:$0xf]
    %v10582 = vld [vmem:[%s4 + $0xac] sm:$0xf]
    %v10583 = vld [vmem:[%s4 + $0xb0] sm:$0xf]
    %v10584 = vld [vmem:[%s4 + $0xb4] sm:$0xf]
    %v10585 = vld [vmem:[%s4 + $0xb8] sm:$0xf]
    %v10586 = vld [vmem:[%s4 + $0xbc] sm:$0xf]
    %v10587 = vld [vmem:[%s4 + $0xc0] sm:$0xf]
    %v10588 = vld [vmem:[%s4 + $0xc4] sm:$0xf]
    %v10589 = vld [vmem:[%s4 + $0xc8] sm:$0xf]
    %v10590 = vld [vmem:[%s4 + $0xcc] sm:$0xf]
    %v10591 = vld [vmem:[%s4 + $0xd0] sm:$0xf]
    %v10592 = vld [vmem:[%s4 + $0xd4] sm:$0xf]
    %v10593 = vld [vmem:[%s4 + $0xd8] sm:$0xf]
    %v10594 = vld [vmem:[%s4 + $0xdc] sm:$0xf]
    %v10595 = vld [vmem:[%s4 + $0xe0] sm:$0xf]
    %v10596 = vld [vmem:[%s4 + $0xe4] sm:$0xf]
    %v10597 = vld [vmem:[%s4 + $0xe8] sm:$0xf]
    %v10598 = vld [vmem:[%s4 + $0xec] sm:$0xf]
    %v10599 = vld [vmem:[%s4 + $0xf0] sm:$0xf]
    %v10600 = vld [vmem:[%s4 + $0xf4] sm:$0xf]
    %v10601 = vld [vmem:[%s4 + $0xf8] sm:$0xf]
    %v10602 = vld [vmem:[%s4 + $0xfc] sm:$0xf]
    %v10603 = vld [vmem:[%s4 + $0x100] sm:$0xf]
    %v10604 = vld [vmem:[%s4 + $0x104] sm:$0xf]
    %v10605 = vld [vmem:[%s4 + $0x108] sm:$0xf]
    %v10606 = vld [vmem:[%s4 + $0x10c] sm:$0xf]
    %v10607 = vld [vmem:[%s4 + $0x110] sm:$0xf]
    %v10608 = vld [vmem:[%s4 + $0x114] sm:$0xf]
    %v10609 = vld [vmem:[%s4 + $0x118] sm:$0xf]
    %v10610 = vld [vmem:[%s4 + $0x11c] sm:$0xf]
    %v10620 = vunpack.c.l.b16 %v10530
    %v10621 = vunpack.c.h.b16 %v10530
    %v10622 = vunpack.c.l.b16 %v10531
    %v10623 = vunpack.c.h.b16 %v10531
    %v10624 = vunpack.c.l.b16 %v10532
    %v10625 = vunpack.c.l.b16 %v10533
    %v10626 = vunpack.c.h.b16 %v10533
    %v10627 = vunpack.c.l.b16 %v10534
    %v10628 = vunpack.c.h.b16 %v10534
    %v10629 = vunpack.c.l.b16 %v10535
    %v10630 = vunpack.c.l.b16 %v10536
    %v10631 = vunpack.c.h.b16 %v10536
    %v10632 = vunpack.c.l.b16 %v10537
    %v10633 = vunpack.c.h.b16 %v10537
    %v10634 = vunpack.c.l.b16 %v10538
    %v10635 = vpack.c.b16 %v10625, %v10620
    %v10636 = vpack.c.b16 %v10626, %v10621
    %v10637 = vpack.c.b16 %v10627, %v10622
    %v10638 = vpack.c.b16 %v10628, %v10623
    %v10639 = vpack.c.b16 %v10629, %v10624
    %v10640 = vpack.c.b16 %v10630, %v10630
    %v10641 = vpack.c.b16 %v10631, %v10631
    %v10642 = vpack.c.b16 %v10632, %v10632
    %v10643 = vpack.c.b16 %v10633, %v10633
    %v10644 = vpack.c.b16 %v10634, %v10634
    %v10725 = vunpack.c.l.b16 %v10539
    %v10726 = vunpack.c.l.b16 %v10540
    %v10727 = vunpack.c.l.b16 %v10541
    %v10728 = vunpack.c.l.b16 %v10542
    %v10729 = vunpack.c.l.b16 %v10543
    %v10730 = vunpack.c.l.b16 %v10544
    %v10731 = vunpack.c.l.b16 %v10545
    %v10732 = vunpack.c.l.b16 %v10546
    %v10733 = vunpack.c.l.b16 %v10547
    %v10734 = vunpack.c.l.b16 %v10548
    %v10735 = vunpack.c.l.b16 %v10549
    %v10736 = vunpack.c.l.b16 %v10550
    %v10737 = vunpack.c.l.b16 %v10551
    %v10738 = vunpack.c.l.b16 %v10552
    %v10739 = vunpack.c.l.b16 %v10553
    %v10740 = vunpack.c.l.b16 %v10554
    %v10741 = vunpack.c.l.b16 %v10555
    %v10742 = vunpack.c.l.b16 %v10556
    %v10743 = vunpack.c.l.b16 %v10557
    %v10744 = vunpack.c.l.b16 %v10558
    %v10745 = vunpack.c.l.b16 %v10559
    %v10746 = vunpack.c.l.b16 %v10560
    %v10747 = vunpack.c.l.b16 %v10561
    %v10748 = vunpack.c.l.b16 %v10562
    %v10749 = vunpack.c.l.b16 %v10563
    %v10750 = vunpack.c.l.b16 %v10564
    %v10751 = vunpack.c.l.b16 %v10565
    %v10752 = vunpack.c.l.b16 %v10566
    %v10753 = vunpack.c.l.b16 %v10567
    %v10754 = vunpack.c.l.b16 %v10568
    %v10755 = vunpack.c.l.b16 %v10569
    %v10756 = vunpack.c.l.b16 %v10570
    %v10757 = vunpack.c.l.b16 %v10571
    %v10758 = vunpack.c.l.b16 %v10572
    %v10759 = vunpack.c.l.b16 %v10573
    %v10760 = vunpack.c.l.b16 %v10574
    %v10761 = vunpack.c.l.b16 %v10575
    %v10762 = vunpack.c.l.b16 %v10576
    %v10763 = vunpack.c.l.b16 %v10577
    %v10764 = vunpack.c.l.b16 %v10578
    %v10765 = vunpack.c.l.b16 %v10579
    %v10766 = vunpack.c.l.b16 %v10580
    %v10767 = vunpack.c.l.b16 %v10581
    %v10768 = vunpack.c.l.b16 %v10582
    %v10769 = vunpack.c.l.b16 %v10583
    %v10770 = vunpack.c.l.b16 %v10584
    %v10771 = vunpack.c.l.b16 %v10585
    %v10772 = vunpack.c.l.b16 %v10586
    %v10773 = vunpack.c.l.b16 %v10587
    %v10774 = vunpack.c.l.b16 %v10588
    %v10775 = vunpack.c.l.b16 %v10589
    %v10776 = vunpack.c.l.b16 %v10590
    %v10777 = vunpack.c.l.b16 %v10591
    %v10778 = vunpack.c.l.b16 %v10592
    %v10779 = vunpack.c.l.b16 %v10593
    %v10780 = vunpack.c.l.b16 %v10594
    %v10781 = vunpack.c.l.b16 %v10595
    %v10782 = vunpack.c.l.b16 %v10596
    %v10783 = vunpack.c.l.b16 %v10597
    %v10784 = vunpack.c.l.b16 %v10598
    %v10785 = vunpack.c.l.b16 %v10599
    %v10786 = vunpack.c.l.b16 %v10600
    %v10787 = vunpack.c.l.b16 %v10601
    %v10788 = vunpack.c.l.b16 %v10602
    %v10789 = vunpack.c.l.b16 %v10603
    %v10790 = vunpack.c.l.b16 %v10604
    %v10791 = vunpack.c.l.b16 %v10605
    %v10792 = vunpack.c.l.b16 %v10606
    %v10793 = vunpack.c.l.b16 %v10607
    %v10794 = vunpack.c.l.b16 %v10608
    %v10795 = vunpack.c.l.b16 %v10609
    %v10796 = vunpack.c.l.b16 %v10610
    %v10797 = vpack.c.b16 %v10726, %v10725
    %v10798 = vpack.c.b16 %v10728, %v10727
    %v10799 = vpack.c.b16 %v10730, %v10729
    %v10800 = vpack.c.b16 %v10732, %v10731
    %v10801 = vpack.c.b16 %v10734, %v10733
    %v10802 = vpack.c.b16 %v10736, %v10735
    %v10803 = vpack.c.b16 %v10738, %v10737
    %v10804 = vpack.c.b16 %v10740, %v10739
    %v10805 = vpack.c.b16 %v10742, %v10741
    %v10806 = vpack.c.b16 %v10744, %v10743
    %v10807 = vpack.c.b16 %v10746, %v10745
    %v10808 = vpack.c.b16 %v10748, %v10747
    %v10809 = vpack.c.b16 %v10750, %v10749
    %v10810 = vpack.c.b16 %v10752, %v10751
    %v10811 = vpack.c.b16 %v10754, %v10753
    %v10812 = vpack.c.b16 %v10756, %v10755
    %v10813 = vpack.c.b16 %v10758, %v10757
    %v10814 = vpack.c.b16 %v10760, %v10759
    %v10815 = vpack.c.b16 %v10762, %v10761
    %v10816 = vpack.c.b16 %v10764, %v10763
    %v10817 = vpack.c.b16 %v10766, %v10765
    %v10818 = vpack.c.b16 %v10768, %v10767
    %v10819 = vpack.c.b16 %v10770, %v10769
    %v10820 = vpack.c.b16 %v10772, %v10771
    %v10821 = vpack.c.b16 %v10774, %v10773
    %v10822 = vpack.c.b16 %v10776, %v10775
    %v10823 = vpack.c.b16 %v10778, %v10777
    %v10824 = vpack.c.b16 %v10780, %v10779
    %v10825 = vpack.c.b16 %v10782, %v10781
    %v10826 = vpack.c.b16 %v10784, %v10783
    %v10827 = vpack.c.b16 %v10786, %v10785
    %v10828 = vpack.c.b16 %v10788, %v10787
    %v10829 = vpack.c.b16 %v10790, %v10789
    %v10830 = vpack.c.b16 %v10792, %v10791
    %v10831 = vpack.c.b16 %v10794, %v10793
    %v10832 = vpack.c.b16 %v10796, %v10795
    %v10870 = vsel %vm6467, %v10639, 0
    %v10873 = vsel %vm6467, %v10644, 0
    %10875 = vmatprep.subr.bf16.mxu0 0
    %10876 = vmatpush1.bf16.msra.mxu0 %v10804
    %10877 = vmatprep.subr.bf16.mxu0 0
    %10878 = vmatpush1.bf16.msra.mxu0 %v10803
    %10879 = vmatprep.subr.bf16.mxu0 0
    %10880 = vmatpush1.bf16.msra.mxu0 %v10802
    %10881 = vmatprep.subr.bf16.mxu0 0
    %10882 = vmatpush1.bf16.msra.mxu0 %v10801
    %10883 = vmatprep.subr.bf16.mxu0 0
    %10884 = vmatpush1.bf16.msra.mxu0 %v10800
    %10885 = vmatprep.subr.bf16.mxu0 0
    %10886 = vmatpush1.bf16.msra.mxu0 %v10799
    %10887 = vmatprep.subr.bf16.mxu0 0
    %10888 = vmatpush1.bf16.msra.mxu0 %v10798
    %10889 = vmatprep.subr.bf16.mxu0 0
    %10890 = vmatpush1.bf16.msra.mxu0 %v10797
    %10891 = vmatprep.subr.bf16.mxu0 0
    %10892 = vmatpush2.bf16.msra.mxu0 %v10812
    %10893 = vmatprep.subr.bf16.mxu0 0
    %10894 = vmatpush2.bf16.msra.mxu0 %v10811
    %10895 = vmatprep.subr.bf16.mxu0 0
    %10896 = vmatpush2.bf16.msra.mxu0 %v10810
    %10897 = vmatprep.subr.bf16.mxu0 0
    %10898 = vmatpush2.bf16.msra.mxu0 %v10809
    %10899 = vmatprep.subr.bf16.mxu0 0
    %10900 = vmatpush2.bf16.msra.mxu0 %v10808
    %10901 = vmatprep.subr.bf16.mxu0 0
    %10902 = vmatpush2.bf16.msra.mxu0 %v10807
    %10903 = vmatprep.subr.bf16.mxu0 0
    %10904 = vmatpush2.bf16.msra.mxu0 %v10806
    %10905 = vmatprep.subr.bf16.mxu0 0
    %10906 = vmatpush2.bf16.msra.mxu0 %v10805
    %10907 = vmatprep.mubr.bf16.mxu0 %v10636
    %10908 = vmatmul.mubr.bf16.gmra.mxu0 %v10635
    %v10909 = vpop.f32.mrf.mxu0
    %v10910 = vadd.f32 0.0, %v10909
    %v10911 = vpop.f32.mrf.mxu0
    %v10912 = vpop.f32.mrf.mxu0
    %v10913 = vadd.f32 0.0, %v10912
    %v10914 = vpop.f32.mrf.mxu0
    %10915 = vmatprep.mubr.bf16.mxu0 %v10641
    %10916 = vmatmul.mubr.bf16.gmra.mxu0 %v10640
    %v10917 = vpop.f32.mrf.mxu0
    %v10918 = vadd.f32 0.0, %v10917
    %v10919 = vpop.f32.mrf.mxu0
    %v10920 = vpop.f32.mrf.mxu0
    %v10921 = vpop.f32.mrf.mxu0
    %10922 = vdwg.mxu0
    %10923 = vmatprep.subr.bf16.mxu0 0
    %10924 = vmatpush1.bf16.msra.mxu0 %v10820
    %10925 = vmatprep.subr.bf16.mxu0 0
    %10926 = vmatpush1.bf16.msra.mxu0 %v10819
    %10927 = vmatprep.subr.bf16.mxu0 0
    %10928 = vmatpush1.bf16.msra.mxu0 %v10818
    %10929 = vmatprep.subr.bf16.mxu0 0
    %10930 = vmatpush1.bf16.msra.mxu0 %v10817
    %10931 = vmatprep.subr.bf16.mxu0 0
    %10932 = vmatpush1.bf16.msra.mxu0 %v10816
    %10933 = vmatprep.subr.bf16.mxu0 0
    %10934 = vmatpush1.bf16.msra.mxu0 %v10815
    %10935 = vmatprep.subr.bf16.mxu0 0
    %10936 = vmatpush1.bf16.msra.mxu0 %v10814
    %10937 = vmatprep.subr.bf16.mxu0 0
    %10938 = vmatpush1.bf16.msra.mxu0 %v10813
    %10939 = vmatprep.subr.bf16.mxu0 0
    %10940 = vmatpush2.bf16.msra.mxu0 %v10828
    %10941 = vmatprep.subr.bf16.mxu0 0
    %10942 = vmatpush2.bf16.msra.mxu0 %v10827
    %10943 = vmatprep.subr.bf16.mxu0 0
    %10944 = vmatpush2.bf16.msra.mxu0 %v10826
    %10945 = vmatprep.subr.bf16.mxu0 0
    %10946 = vmatpush2.bf16.msra.mxu0 %v10825
    %10947 = vmatprep.subr.bf16.mxu0 0
    %10948 = vmatpush2.bf16.msra.mxu0 %v10824
    %10949 = vmatprep.subr.bf16.mxu0 0
    %10950 = vmatpush2.bf16.msra.mxu0 %v10823
    %10951 = vmatprep.subr.bf16.mxu0 0
    %10952 = vmatpush2.bf16.msra.mxu0 %v10822
    %10953 = vmatprep.subr.bf16.mxu0 0
    %10954 = vmatpush2.bf16.msra.mxu0 %v10821
    %10955 = vmatprep.mubr.bf16.mxu0 %v10638
    %10956 = vmatmul.mubr.bf16.gmra.mxu0 %v10637
    %v10957 = vpop.f32.mrf.mxu0
    %v10958 = vadd.f32 %v10910, %v10957
    %v10959 = vpop.f32.mrf.mxu0
    %v10960 = vpop.f32.mrf.mxu0
    %v10961 = vadd.f32 %v10913, %v10960
    %v10962 = vpop.f32.mrf.mxu0
    %10963 = vmatprep.mubr.bf16.mxu0 %v10643
    %10964 = vmatmul.mubr.bf16.gmra.mxu0 %v10642
    %v10965 = vpop.f32.mrf.mxu0
    %v10966 = vadd.f32 %v10918, %v10965
    %v10967 = vpop.f32.mrf.mxu0
    %v10968 = vpop.f32.mrf.mxu0
    %v10969 = vpop.f32.mrf.mxu0
    %10970 = vdwg.mxu0
    %10971 = vmatprep.subr.bf16.mxu0 0
    %10972 = vmatpush1.bf16.msra.mxu0 0
    %10973 = vmatprep.subr.bf16.mxu0 0
    %10974 = vmatpush1.bf16.msra.mxu0 0
    %10975 = vmatprep.subr.bf16.mxu0 0
    %10976 = vmatpush1.bf16.msra.mxu0 0
    %10977 = vmatprep.subr.bf16.mxu0 0
    %10978 = vmatpush1.bf16.msra.mxu0 0
    %10979 = vmatprep.subr.bf16.mxu0 0
    %10980 = vmatpush1.bf16.msra.mxu0 %v10832
    %10981 = vmatprep.subr.bf16.mxu0 0
    %10982 = vmatpush1.bf16.msra.mxu0 %v10831
    %10983 = vmatprep.subr.bf16.mxu0 0
    %10984 = vmatpush1.bf16.msra.mxu0 %v10830
    %10985 = vmatprep.subr.bf16.mxu0 0
    %10986 = vmatpush1.bf16.msra.mxu0 %v10829
    %10987 = vmatprep.subr.bf16.mxu0 0
    %10988 = vmatpush2.bf16.msra.mxu0 0
    %10989 = vmatprep.subr.bf16.mxu0 0
    %10990 = vmatpush2.bf16.msra.mxu0 0
    %10991 = vmatprep.subr.bf16.mxu0 0
    %10992 = vmatpush2.bf16.msra.mxu0 0
    %10993 = vmatprep.subr.bf16.mxu0 0
    %10994 = vmatpush2.bf16.msra.mxu0 0
    %10995 = vmatprep.subr.bf16.mxu0 0
    %10996 = vmatpush2.bf16.msra.mxu0 0
    %10997 = vmatprep.subr.bf16.mxu0 0
    %10998 = vmatpush2.bf16.msra.mxu0 0
    %10999 = vmatprep.subr.bf16.mxu0 0
    %11000 = vmatpush2.bf16.msra.mxu0 0
    %11001 = vmatprep.subr.bf16.mxu0 0
    %11002 = vmatpush2.bf16.msra.mxu0 0
    %11003 = vmatprep.mubr.bf16.mxu0 0
    %11004 = vmatmul.mubr.bf16.gmra.mxu0 %v10870
    %v11005 = vpop.f32.mrf.mxu0
    %v11006 = vadd.f32 %v10958, %v11005
    %v11007 = vpop.f32.mrf.mxu0
    %v11008 = vpop.f32.mrf.mxu0
    %v11009 = vadd.f32 %v10961, %v11008
    %v11010 = vpop.f32.mrf.mxu0
    %11011 = vmatprep.mubr.bf16.mxu0 0
    %11012 = vmatmul.mubr.bf16.gmra.mxu0 %v10873
    %v11013 = vpop.f32.mrf.mxu0
    %v11014 = vadd.f32 %v10966, %v11013
    %v11015 = vpop.f32.mrf.mxu0
    %v11016 = vpop.f32.mrf.mxu0
    %v11017 = vpop.f32.mrf.mxu0
    %11018 = vdwg.mxu0
    %v11020 = vsel %vm5863, %v11014, 0
    %11022 = vmatprep.subr.mxu0 0.0
    %11023 = vmatpush1.msra.mxu0 0.0
    %11024 = vmatprep.subr.mxu0 0.0
    %11025 = vmatpush1.msra.mxu0 0.0
    %11026 = vmatprep.subr.mxu0 0.0
    %11027 = vmatpush1.msra.mxu0 0.0
    %11028 = vmatprep.subr.mxu0 0.0
    %11029 = vmatpush1.msra.mxu0 0.0
    %11030 = vmatprep.subr.mxu0 0.0
    %11031 = vmatpush1.msra.mxu0 0.0
    %11032 = vmatprep.subr.mxu0 0.0
    %11033 = vmatpush1.msra.mxu0 0.0
    %11034 = vmatprep.subr.mxu0 0.0
    %11035 = vmatpush1.msra.mxu0 0.0
    %11036 = vmatprep.subr.mxu0 0.0
    %11037 = vmatpush1.msra.mxu0 0.0
    %11038 = vmatprep.subr.mxu0 0.0
    %11039 = vmatpush1.msra.mxu0 0.0
    %11040 = vmatprep.subr.mxu0 0.0
    %11041 = vmatpush1.msra.mxu0 0.0
    %11042 = vmatprep.subr.mxu0 0.0
    %11043 = vmatpush1.msra.mxu0 0.0
    %11044 = vmatprep.subr.mxu0 0.0
    %11045 = vmatpush1.msra.mxu0 0.0
    %11046 = vmatprep.subr.mxu0 0.0
    %11047 = vmatpush1.msra.mxu0 0.0
    %11048 = vmatprep.subr.mxu0 0.0
    %11049 = vmatpush1.msra.mxu0 %v11020
    %11050 = vmatprep.subr.mxu0 0.0
    %11051 = vmatpush1.msra.mxu0 %v11009
    %11052 = vmatprep.subr.mxu0 0.0
    %11053 = vmatpush1.msra.mxu0 %v11006
    %11054 = vmatprep.subr.mxu0 0.0
    %11055 = vmatpush2.msra.mxu0 0.0
    %11056 = vmatprep.subr.mxu0 0.0
    %11057 = vmatpush2.msra.mxu0 0.0
    %11058 = vmatprep.subr.mxu0 0.0
    %11059 = vmatpush2.msra.mxu0 0.0
    %11060 = vmatprep.subr.mxu0 0.0
    %11061 = vmatpush2.msra.mxu0 0.0
    %11062 = vmatprep.subr.mxu0 0.0
    %11063 = vmatpush2.msra.mxu0 0.0
    %11064 = vmatprep.subr.mxu0 0.0
    %11065 = vmatpush2.msra.mxu0 0.0
    %11066 = vmatprep.subr.mxu0 0.0
    %11067 = vmatpush2.msra.mxu0 0.0
    %11068 = vmatprep.subr.mxu0 0.0
    %11069 = vmatpush2.msra.mxu0 0.0
    %11070 = vmatprep.subr.mxu0 0.0
    %11071 = vmatpush2.msra.mxu0 0.0
    %11072 = vmatprep.subr.mxu0 0.0
    %11073 = vmatpush2.msra.mxu0 0.0
    %11074 = vmatprep.subr.mxu0 0.0
    %11075 = vmatpush2.msra.mxu0 0.0
    %11076 = vmatprep.subr.mxu0 0.0
    %11077 = vmatpush2.msra.mxu0 0.0
    %11078 = vmatprep.subr.mxu0 0.0
    %11079 = vmatpush2.msra.mxu0 0.0
    %11080 = vmatprep.subr.mxu0 0.0
    %11081 = vmatpush2.msra.mxu0 0.0
    %11082 = vmatprep.subr.mxu0 0.0
    %11083 = vmatpush2.msra.mxu0 0.0
    %11084 = vmatprep.subr.mxu0 0.0
    %11085 = vmatpush2.msra.mxu0 0.0
    %11086 = vmatprep.mubr.f32.mxu0 0.0
    %11087 = vmatmul.mubr.f32.gmra.mxu0 %v10008
    %v11088 = vpop.f32.mrf.mxu0
    %v11089 = vadd.f32 0.0, %v11088
    %v11090 = vpop.f32.mrf.mxu0
    %11091 = vdwg.mxu0
    %v11092 = vmul.f32 %v11089, 0.125
    %v11093 = vlaneseq
    %v11094 = vshrl.u32 %v11093, 7
    %v11095 = vsub.s32 0, %v11094
    %v11096 = vrot.slane %v11092, %v11095
    %v11097 = vsub.f32 %v11006, %v11096
    %v11098 = vsub.f32 %v11009, %v11096
    %v11099 = vsub.f32 %v11014, %v11096
    %v11100 = vmul.f32 %v11097, %v11097
    %v11101 = vmul.f32 %v11098, %v11098
    %v11102 = vmul.f32 %v11099, %v11099
    %v11104 = vsel %vm5863, %v11102, 0
    %11106 = vmatprep.subr.mxu0 0.0
    %11107 = vmatpush1.msra.mxu0 0.0
    %11108 = vmatprep.subr.mxu0 0.0
    %11109 = vmatpush1.msra.mxu0 0.0
    %11110 = vmatprep.subr.mxu0 0.0
    %11111 = vmatpush1.msra.mxu0 0.0
    %11112 = vmatprep.subr.mxu0 0.0
    %11113 = vmatpush1.msra.mxu0 0.0
    %11114 = vmatprep.subr.mxu0 0.0
    %11115 = vmatpush1.msra.mxu0 0.0
    %11116 = vmatprep.subr.mxu0 0.0
    %11117 = vmatpush1.msra.mxu0 0.0
    %11118 = vmatprep.subr.mxu0 0.0
    %11119 = vmatpush1.msra.mxu0 0.0
    %11120 = vmatprep.subr.mxu0 0.0
    %11121 = vmatpush1.msra.mxu0 0.0
    %11122 = vmatprep.subr.mxu0 0.0
    %11123 = vmatpush1.msra.mxu0 0.0
    %11124 = vmatprep.subr.mxu0 0.0
    %11125 = vmatpush1.msra.mxu0 0.0
    %11126 = vmatprep.subr.mxu0 0.0
    %11127 = vmatpush1.msra.mxu0 0.0
    %11128 = vmatprep.subr.mxu0 0.0
    %11129 = vmatpush1.msra.mxu0 0.0
    %11130 = vmatprep.subr.mxu0 0.0
    %11131 = vmatpush1.msra.mxu0 0.0
    %11132 = vmatprep.subr.mxu0 0.0
    %11133 = vmatpush1.msra.mxu0 %v11104
    %11134 = vmatprep.subr.mxu0 0.0
    %11135 = vmatpush1.msra.mxu0 %v11101
    %11136 = vmatprep.subr.mxu0 0.0
    %11137 = vmatpush1.msra.mxu0 %v11100
    %11138 = vmatprep.subr.mxu0 0.0
    %11139 = vmatpush2.msra.mxu0 0.0
    %11140 = vmatprep.subr.mxu0 0.0
    %11141 = vmatpush2.msra.mxu0 0.0
    %11142 = vmatprep.subr.mxu0 0.0
    %11143 = vmatpush2.msra.mxu0 0.0
    %11144 = vmatprep.subr.mxu0 0.0
    %11145 = vmatpush2.msra.mxu0 0.0
    %11146 = vmatprep.subr.mxu0 0.0
    %11147 = vmatpush2.msra.mxu0 0.0
    %11148 = vmatprep.subr.mxu0 0.0
    %11149 = vmatpush2.msra.mxu0 0.0
    %11150 = vmatprep.subr.mxu0 0.0
    %11151 = vmatpush2.msra.mxu0 0.0
    %11152 = vmatprep.subr.mxu0 0.0
    %11153 = vmatpush2.msra.mxu0 0.0
    %11154 = vmatprep.subr.mxu0 0.0
    %11155 = vmatpush2.msra.mxu0 0.0
    %11156 = vmatprep.subr.mxu0 0.0
    %11157 = vmatpush2.msra.mxu0 0.0
    %11158 = vmatprep.subr.mxu0 0.0
    %11159 = vmatpush2.msra.mxu0 0.0
    %11160 = vmatprep.subr.mxu0 0.0
    %11161 = vmatpush2.msra.mxu0 0.0
    %11162 = vmatprep.subr.mxu0 0.0
    %11163 = vmatpush2.msra.mxu0 0.0
    %11164 = vmatprep.subr.mxu0 0.0
    %11165 = vmatpush2.msra.mxu0 0.0
    %11166 = vmatprep.subr.mxu0 0.0
    %11167 = vmatpush2.msra.mxu0 0.0
    %11168 = vmatprep.subr.mxu0 0.0
    %11169 = vmatpush2.msra.mxu0 0.0
    %11170 = vmatprep.mubr.f32.mxu0 0.0
    %11171 = vmatmul.mubr.f32.gmra.mxu0 %v10008
    %v11172 = vpop.f32.mrf.mxu0
    %v11173 = vadd.f32 0.0, %v11172
    %v11174 = vpop.f32.mrf.mxu0
    %11175 = vdwg.mxu0
    %v11176 = vmul.f32 %v11173, 0.125
    %v11177 = vadd.f32 %v11176, 1e-05
    %v11178 = vrsqrt.pop %v11177
    %v11179 = vmul.f32 %v10280, %v11178
    %v11180 = vlaneseq
    %v11181 = vshrl.u32 %v11180, 7
    %v11182 = vsub.s32 0, %v11181
    %v11183 = vrot.slane %v11179, %v11182
    %v11184 = vmul.f32 %v11097, %v11183
    %v11185 = vmul.f32 %v11099, %v11183
    %v11186 = vlaneseq
    %v11187 = vshrl.u32 %v11186, 7
    %v11188 = vsub.s32 0, %v11187
    %v11189 = vrot.slane %v10281, %v11188
    %v11190 = vadd.f32 %v11184, %v11189
    %v11191 = vadd.f32 %v11185, %v11189
    %v11192 = vmax.f32 %v11190, 0.0
    %v11193 = vmax.f32 %v11191, 0.0
    %11194 = vst.msk [vmem:[#allocation10] sm:$0x3] %vm6533, %v11192
    %vm11195 = vcmask 521220
    %11196 = vst.msk [vmem:[#allocation10 - $0x2] sm:$0x30] %vm11195, %v11192
    %11197 = vst.msk [vmem:[#allocation10 + $0x4] sm:$0x3] %vm6533, %v11193
    %11198 = vst.msk [vmem:[#allocation10 + $0x2] sm:$0x30] %vm11195, %v11193
    // Predicated region
    $region30: #{_lambda_.1} parent=1 // pred_check
      _
    $region31: #{_lambda_.1} parent=1 // pred_check_branch
      %11200 = sbr.rel (0) target = $region33
    $region32: #{_lambda_.1} parent=1 // pred_region
      %s11202 = ssub.s32 128, 128
      %11203 = vsyncadd [#allocation11], %s11202
      %s11205 = sshll.u32 [#allocation10], 4
      %s11206 = int_to_ptr.vmem [resolvable:$true] %s11205
      %11208 = dma.vmem_to_hbm [thread:$0]  %s11206, 128, %s7, [#allocation11]
    $region33: #{_lambda_.1} parent=1 // pred_fallthru
      _
    // Predicated region
    $region34: #{_lambda_.1} parent=1 // pred_check
      _
    $region35: #{_lambda_.1} parent=1 // pred_check_branch
      %11210 = sbr.rel (0) target = $region37
    $region36: #{_lambda_.1} parent=1 // pred_region
      %11211 = dma.done [#allocation11], 128
    $region37: #{_lambda_.1} parent=1 // pred_fallthru
      _
    %11212 = vsyncpa [#allocation11], 1

</llo_original>
